<compile_context>
chip_gen: v7x
topology: tpu7x:2x2x1
jax: 0.10.0
libtpu: 0.0.40
codegen_flags: <defaults>
</compile_context>

<pallas_src>
import jax
import jax.numpy as jnp
from jax import lax
from jax.experimental import pallas as pl
from jax.experimental.pallas import tpu as pltpu

HPAD = 8    # H halo (>= max dilation 7); 3rd-minor dim, no alignment constraint
WPAD = 16   # W halo (>= 7, multiple of 16 => bf16-sublane-aligned center store)


def aspp_kernel(x_ref, wc_ref, w3_ref, w5_ref, w7_ref, wimg_ref, bias_ref, o_ref, xp):
    """One batch element per grid step.

    x_ref    : (1, H, W, C)   bf16  input image (NHWC, unpadded)
    wc_ref   : (C, D)         bf16  merged center weight (1x1 branch + all 3x3 centers) x wout
    w*_ref   : (2, 4C, D)     bf16  off-center taps of one dilation, K-packed 4-per-group, x wout
    wimg_ref : (C, D)         bf16  image-level 1x1 conv weight x wout
    bias_ref : (1, D)         f32   all branch biases + output bias folded through wout
    o_ref    : (1, H, W, D)   f32   output (NHWC)
    xp       : (H+2*HPAD, W+2*WPAD, C) bf16 VMEM scratch -- zero-padded image
    """
    _, H, W, C = x_ref.shape
    D = wc_ref.shape[-1]
    Hp = H + 2 * HPAD
    Wp = W + 2 * WPAD
    bf16 = jnp.bfloat16

    # --- zero only the halo strips (center is fully overwritten below).  Must run
    #     every step: each TensorCore on v7x has its own scratch instance. ---
    xp[0:HPAD, :, :] = jnp.zeros((HPAD, Wp, C), bf16)
    xp[HPAD + H:Hp, :, :] = jnp.zeros((HPAD, Wp, C), bf16)
    xp[HPAD:HPAD + H, 0:WPAD, :] = jnp.zeros((H, WPAD, C), bf16)
    xp[HPAD:HPAD + H, WPAD + W:Wp, :] = jnp.zeros((H, WPAD, C), bf16)

    # --- bf16 center store; W-offset 16 is sublane-aligned for bf16 ---
    x_center = x_ref[0]                                           # (H, W, C) bf16
    xp[HPAD:HPAD + H, WPAD:WPAD + W, :] = x_center

    x_flat = x_center.reshape(H * W, C)                           # (HW, C) bf16

    # --- AdaptiveAvgPool2d((1,1)) + folded 1x1 conv; bilinear upsample of a
    #     1x1 map with align_corners=True is just a broadcast ---
    pooled = jnp.mean(x_flat.astype(jnp.float32), axis=0, keepdims=True)   # (1, C) f32
    img = jnp.dot(pooled.astype(bf16), wimg_ref[...],
                  preferred_element_type=jnp.float32)             # (1, D) f32

    # --- single accumulator: merged center taps (1x1 branch + 3x3 centers) ---
    acc = jnp.dot(x_flat, wc_ref[...], preferred_element_type=jnp.float32)   # (HW, D) f32

    # --- off-center taps, K-packed: 4 taps -> one K=4C dot (2 dots per dilation).
    #     padding == dilation => output spatial size == input spatial size. ---
    for d, w_ref in ((3, w3_ref), (5, w5_ref), (7, w7_ref)):
        taps = []
        for kh in range(3):
            for kw in range(3):
                if kh == 1 and kw == 1:
                    continue
                hs = HPAD + d * (kh - 1)
                ws = WPAD + d * (kw - 1)
                taps.append(xp[hs:hs + H, ws:ws + W, :].reshape(H * W, C))  # bf16, no cast
        lhs0 = jnp.concatenate(taps[0:4], axis=-1)                # (HW, 4C) bf16
        lhs1 = jnp.concatenate(taps[4:8], axis=-1)                # (HW, 4C) bf16
        acc = acc + jnp.dot(lhs0, w_ref[0], preferred_element_type=jnp.float32)
        acc = acc + jnp.dot(lhs1, w_ref[1], preferred_element_type=jnp.float32)

    # --- broadcast image feature + fused bias, added exactly once ---
    out = acc + (img + bias_ref[...])
    o_ref[...] = out.reshape(1, H, W, D).astype(o_ref.dtype)


def aspp_forward(x_nchw, params):
    """params: wimg (C,D), bimg (1,D), w1 (C,D), b1 (1,D),
               w3/w5/w7 (3,3,C,D) HWIO, b3/b5/b7 (1,D),
               wout (5D, D) with channel order [image_feat, a1, a3, a5, a7], bout (1,D)."""
    wimg, bimg, w1, b1, w3, b3, w5, b5, w7, b7, wout, bout = params
    N, C, H, W = x_nchw.shape
    D = wimg.shape[1]
    f32, bf16 = jnp.float32, jnp.bfloat16

    # --- fold the final 1x1 output conv into every branch (once, in fp32) ---
    Wo = [wout[i * D:(i + 1) * D].astype(f32) for i in range(5)]

    wimg_f = wimg.astype(f32) @ Wo[0]                                   # (C, D)
    w1_f = w1.astype(f32) @ Wo[1]                                       # (C, D)
    w3_f = jnp.einsum('hwcd,de->hwce', w3.astype(f32), Wo[2])           # (3,3,C,D)
    w5_f = jnp.einsum('hwcd,de->hwce', w5.astype(f32), Wo[3])
    w7_f = jnp.einsum('hwcd,de->hwce', w7.astype(f32), Wo[4])

    # merged center tap: 1x1 branch + center of every dilated 3x3
    w_center = w1_f + w3_f[1, 1] + w5_f[1, 1] + w7_f[1, 1]              # (C, D)

    def packed_off_taps(wf):
        # 8 off-center taps in (kh, kw) order, K-packed 4 per group along C
        taps = [wf[kh, kw] for kh in range(3) for kw in range(3) if not (kh == 1 and kw == 1)]
        return jnp.stack(taps, axis=0).reshape(2, 4 * C, D)             # (2, 4C, D)

    w3_p, w5_p, w7_p = packed_off_taps(w3_f), packed_off_taps(w5_f), packed_off_taps(w7_f)

    # all biases folded through wout into a single (1, D) bias
    bias_f = (bimg.astype(f32) @ Wo[0] + b1.astype(f32) @ Wo[1] + b3.astype(f32) @ Wo[2]
              + b5.astype(f32) @ Wo[3] + b7.astype(f32) @ Wo[4] + bout.astype(f32))

    x_nhwc = jnp.transpose(x_nchw, (0, 2, 3, 1)).astype(bf16)           # NCHW -> NHWC, bf16

    Hp, Wp = H + 2 * HPAD, W + 2 * WPAD

    def rep(shape):  # replicated (non-batched) operand
        nd = len(shape)
        return pl.BlockSpec(shape, lambda b, _nd=nd: (0,) * _nd)

    out_nhwc = pl.pallas_call(
        aspp_kernel,
        out_shape=jax.ShapeDtypeStruct((N, H, W, D), jnp.float32),
        grid_spec=pltpu.PrefetchScalarGridSpec(
            num_scalar_prefetch=0,
            grid=(N,),
            in_specs=[
                pl.BlockSpec((1, H, W, C), lambda b: (b, 0, 0, 0)),
                rep((C, D)),
                rep((2, 4 * C, D)), rep((2, 4 * C, D)), rep((2, 4 * C, D)),
                rep((C, D)),
                rep((1, D)),
            ],
            out_specs=pl.BlockSpec((1, H, W, D), lambda b: (b, 0, 0, 0)),
            scratch_shapes=[pltpu.VMEM((Hp, Wp, C), jnp.bfloat16)],
        ),
        compiler_params=pltpu.CompilerParams(dimension_semantics=("parallel",)),
    )(x_nhwc,
      w_center.astype(bf16), w3_p.astype(bf16), w5_p.astype(bf16), w7_p.astype(bf16),
      wimg_f.astype(bf16), bias_f)

    return jnp.transpose(out_nhwc, (0, 3, 1, 2))                        # NHWC -> NCHW


def aspp_reference(x_nchw, params):
    """Pure-JAX fp32 reference with the original (un-folded) semantics."""
    wimg, bimg, w1, b1, w3, b3, w5, b5, w7, b7, wout, bout = params
    x = jnp.transpose(x_nchw, (0, 2, 3, 1))
    N, H, W, C = x.shape
    pooled = jnp.mean(x, axis=(1, 2))                                   # (N, C)
    img = pooled @ wimg + bimg                                          # (N, D)
    img = jnp.broadcast_to(img[:, None, None, :], (N, H, W, wimg.shape[1]))
    a1 = jnp.einsum('nhwc,cd->nhwd', x, w1) + b1

    def dconv(w, b, d):
        y = lax.conv_general_dilated(
            x, w, window_strides=(1, 1), padding=[(d, d), (d, d)],
            rhs_dilation=(d, d), dimension_numbers=('NHWC', 'HWIO', 'NHWC'))
        return y + b

    a3 = dconv(w3, b3, 3)
    a5 = dconv(w5, b5, 5)
    a7 = dconv(w7, b7, 7)
    cat = jnp.concatenate([img, a1, a3, a5, a7], axis=-1)
    out = jnp.einsum('nhwc,cd->nhwd', cat, wout) + bout
    return jnp.transpose(out, (0, 3, 1, 2))


if __name__ == "__main__":
    N, C, H, W, D = 2, 64, 16, 16, 64          # module defaults: in_channel=64, depth=64
    key = jax.random.PRNGKey(0)
    keys = jax.random.split(key, 13)
    s = 0.05
    x = jax.random.normal(keys[0], (N, C, H, W), jnp.float32)
    wimg = jax.random.normal(keys[1], (C, D), jnp.float32) * s
    bimg = jax.random.normal(keys[2], (1, D), jnp.float32) * s
    w1 = jax.random.normal(keys[3], (C, D), jnp.float32) * s
    b1 = jax.random.normal(keys[4], (1, D), jnp.float32) * s
    w3 = jax.random.normal(keys[5], (3, 3, C, D), jnp.float32) * s
    b3 = jax.random.normal(keys[6], (1, D), jnp.float32) * s
    w5 = jax.random.normal(keys[7], (3, 3, C, D), jnp.float32) * s
    b5 = jax.random.normal(keys[8], (1, D), jnp.float32) * s
    w7 = jax.random.normal(keys[9], (3, 3, C, D), jnp.float32) * s
    b7 = jax.random.normal(keys[10], (1, D), jnp.float32) * s
    wout = jax.random.normal(keys[11], (5 * D, D), jnp.float32) * s
    bout = jax.random.normal(keys[12], (1, D), jnp.float32) * s
    params = (wimg, bimg, w1, b1, w3, b3, w5, b5, w7, b7, wout, bout)

    out = jax.block_until_ready(aspp_forward(x, params))
    ref = jax.block_until_ready(aspp_reference(x, params))
    assert out.shape == (N, D, H, W), out.shape
    err = float(jnp.max(jnp.abs(out - ref)))
    # bf16 MXU inputs with fp32 accumulation: expected max abs err ~6e-3 at these scales;
    # a real bug (wrong tap offset / weight packing order) would produce errors >= 1e-1.
    if err > 3e-2:
        raise AssertionError(f"mismatch vs reference: max abs err = {err}")
    print("KERNEL_OK")
</pallas_src>

<mosaic_0001>
module attributes {stable_mosaic.version = 11 : i64} {
  func.func @aspp_kernel(%arg0: i32, %arg1: memref<1x16x16x64xbf16, #tpu.memory_space<vmem>>, %arg2: memref<64x64xbf16, #tpu.memory_space<vmem>>, %arg3: memref<2x256x64xbf16, #tpu.memory_space<vmem>>, %arg4: memref<2x256x64xbf16, #tpu.memory_space<vmem>>, %arg5: memref<2x256x64xbf16, #tpu.memory_space<vmem>>, %arg6: memref<64x64xbf16, #tpu.memory_space<vmem>>, %arg7: memref<1x64xf32, #tpu.memory_space<vmem>>, %arg8: memref<1x16x16x64xf32, #tpu.memory_space<vmem>>, %arg9: memref<32x48x64xbf16, #tpu.memory_space<vmem>>) attributes {dimension_semantics = [#tpu.dimension_semantics<parallel>], iteration_bounds = array<i64: 2>, scalar_prefetch = 0 : i64, scratch_operands = 1 : i64, tpu.core_type = #tpu.core_type<tc>, window_params = [{transform_indices = @transform_0, window_bounds = array<i64: 1, 16, 16, 64>}, {pipeline_mode = #tpu.pipeline_mode<synchronous>, transform_indices = @transform_1, window_bounds = array<i64: 64, 64>}, {pipeline_mode = #tpu.pipeline_mode<synchronous>, transform_indices = @transform_2, window_bounds = array<i64: 2, 256, 64>}, {pipeline_mode = #tpu.pipeline_mode<synchronous>, transform_indices = @transform_3, window_bounds = array<i64: 2, 256, 64>}, {pipeline_mode = #tpu.pipeline_mode<synchronous>, transform_indices = @transform_4, window_bounds = array<i64: 2, 256, 64>}, {pipeline_mode = #tpu.pipeline_mode<synchronous>, transform_indices = @transform_5, window_bounds = array<i64: 64, 64>}, {pipeline_mode = #tpu.pipeline_mode<synchronous>, transform_indices = @transform_6, window_bounds = array<i64: 1, 64>}, {transform_indices = @transform_7, window_bounds = array<i64: 1, 16, 16, 64>}]} {
    %cst = arith.constant 0.000000e+00 : bf16
    %0 = vector.broadcast %cst : bf16 to vector<8x48x64xbf16>
    %c0 = arith.constant 0 : index
    %c0_0 = arith.constant 0 : index
    %c0_1 = arith.constant 0 : index
    %1 = vector.load %arg9[%c0, %c0_0, %c0_1] : memref<32x48x64xbf16, #tpu.memory_space<vmem>>, vector<8x48x64xbf16>
    tpu.vector_store %arg9[%c0, %c0_0, %c0_1], %0 {strides = array<i32>} : memref<32x48x64xbf16, #tpu.memory_space<vmem>>, vector<8x48x64xbf16>,
    %cst_2 = arith.constant 0.000000e+00 : bf16
    %2 = vector.broadcast %cst_2 : bf16 to vector<8x48x64xbf16>
    %c24 = arith.constant 24 : index
    %c0_3 = arith.constant 0 : index
    %c0_4 = arith.constant 0 : index
    %3 = vector.load %arg9[%c24, %c0_3, %c0_4] : memref<32x48x64xbf16, #tpu.memory_space<vmem>>, vector<8x48x64xbf16>
    tpu.vector_store %arg9[%c24, %c0_3, %c0_4], %2 {strides = array<i32>} : memref<32x48x64xbf16, #tpu.memory_space<vmem>>, vector<8x48x64xbf16>,
    %cst_5 = arith.constant 0.000000e+00 : bf16
    %4 = vector.broadcast %cst_5 : bf16 to vector<16x16x64xbf16>
    %c8 = arith.constant 8 : index
    %c0_6 = arith.constant 0 : index
    %c0_7 = arith.constant 0 : index
    %5 = vector.load %arg9[%c8, %c0_6, %c0_7] : memref<32x48x64xbf16, #tpu.memory_space<vmem>>, vector<16x16x64xbf16>
    tpu.vector_store %arg9[%c8, %c0_6, %c0_7], %4 {strides = array<i32>} : memref<32x48x64xbf16, #tpu.memory_space<vmem>>, vector<16x16x64xbf16>,
    %cst_8 = arith.constant 0.000000e+00 : bf16
    %6 = vector.broadcast %cst_8 : bf16 to vector<16x16x64xbf16>
    %c8_9 = arith.constant 8 : index
    %c32 = arith.constant 32 : index
    %c0_10 = arith.constant 0 : index
    %7 = vector.load %arg9[%c8_9, %c32, %c0_10] : memref<32x48x64xbf16, #tpu.memory_space<vmem>>, vector<16x16x64xbf16>
    tpu.vector_store %arg9[%c8_9, %c32, %c0_10], %6 {strides = array<i32>} : memref<32x48x64xbf16, #tpu.memory_space<vmem>>, vector<16x16x64xbf16>,
    %c0_11 = arith.constant 0 : index
    %c0_12 = arith.constant 0 : index
    %c0_13 = arith.constant 0 : index
    %c0_14 = arith.constant 0 : index
    %8 = vector.load %arg1[%c0_11, %c0_12, %c0_13, %c0_14] : memref<1x16x16x64xbf16, #tpu.memory_space<vmem>>, vector<1x16x16x64xbf16>
    %9 = vector.shape_cast %8 : vector<1x16x16x64xbf16> to vector<16x16x64xbf16>
    %c8_15 = arith.constant 8 : index
    %c16 = arith.constant 16 : index
    %c0_16 = arith.constant 0 : index
    %10 = vector.load %arg9[%c8_15, %c16, %c0_16] : memref<32x48x64xbf16, #tpu.memory_space<vmem>>, vector<16x16x64xbf16>
    tpu.vector_store %arg9[%c8_15, %c16, %c0_16], %9 {strides = array<i32>} : memref<32x48x64xbf16, #tpu.memory_space<vmem>>, vector<16x16x64xbf16>,
    %11 = vector.shape_cast %9 : vector<16x16x64xbf16> to vector<256x64xbf16>
    %12 = arith.extf %11 : vector<256x64xbf16> to vector<256x64xf32>
    %cst_17 = arith.constant dense<0.000000e+00> : vector<64xf32>
    %13 = vector.multi_reduction <add>, %12, %cst_17 [0] : vector<256x64xf32> to vector<64xf32>
    %14 = vector.shape_cast %13 : vector<64xf32> to vector<1x64xf32>
    %cst_18 = arith.constant 2.560000e+02 : f32
    %15 = vector.broadcast %cst_18 : f32 to vector<1x64xf32>
    %16 = arith.divf %14, %15 : vector<1x64xf32>
    %17 = arith.truncf %16 : vector<1x64xf32> to vector<1x64xbf16>
    %c0_19 = arith.constant 0 : index
    %c0_20 = arith.constant 0 : index
    %18 = vector.load %arg6[%c0_19, %c0_20] : memref<64x64xbf16, #tpu.memory_space<vmem>>, vector<64x64xbf16>
    %cst_21 = arith.constant dense<0.000000e+00> : vector<1x64xf32>
    %19 = tpu.matmul %17, %18, %cst_21 {dimension_numbers = #tpu.dot_dimension_numbers<[1], [0], [0], [1], [0, 0, 1, 1], [], []>} : vector<1x64xbf16>, vector<64x64xbf16>, vector<1x64xf32> -> vector<1x64xf32>
    %c0_22 = arith.constant 0 : index
    %c0_23 = arith.constant 0 : index
    %20 = vector.load %arg2[%c0_22, %c0_23] : memref<64x64xbf16, #tpu.memory_space<vmem>>, vector<64x64xbf16>
    %cst_24 = arith.constant dense<0.000000e+00> : vector<256x64xf32>
    %21 = tpu.matmul %11, %20, %cst_24 {dimension_numbers = #tpu.dot_dimension_numbers<[1], [0], [0], [1], [0, 0, 1, 1], [], []>} : vector<256x64xbf16>, vector<64x64xbf16>, vector<256x64xf32> -> vector<256x64xf32>
    %c5 = arith.constant 5 : index
    %c13 = arith.constant 13 : index
    %c0_25 = arith.constant 0 : index
    %22 = vector.load %arg9[%c5, %c13, %c0_25] : memref<32x48x64xbf16, #tpu.memory_space<vmem>>, vector<16x16x64xbf16>
    %23 = vector.shape_cast %22 : vector<16x16x64xbf16> to vector<256x64xbf16>
    %c5_26 = arith.constant 5 : index
    %c16_27 = arith.constant 16 : index
    %c0_28 = arith.constant 0 : index
    %24 = vector.load %arg9[%c5_26, %c16_27, %c0_28] : memref<32x48x64xbf16, #tpu.memory_space<vmem>>, vector<16x16x64xbf16>
    %25 = vector.shape_cast %24 : vector<16x16x64xbf16> to vector<256x64xbf16>
    %c5_29 = arith.constant 5 : index
    %c19 = arith.constant 19 : index
    %c0_30 = arith.constant 0 : index
    %26 = vector.load %arg9[%c5_29, %c19, %c0_30] : memref<32x48x64xbf16, #tpu.memory_space<vmem>>, vector<16x16x64xbf16>
    %27 = vector.shape_cast %26 : vector<16x16x64xbf16> to vector<256x64xbf16>
    %c8_31 = arith.constant 8 : index
    %c13_32 = arith.constant 13 : index
    %c0_33 = arith.constant 0 : index
    %28 = vector.load %arg9[%c8_31, %c13_32, %c0_33] : memref<32x48x64xbf16, #tpu.memory_space<vmem>>, vector<16x16x64xbf16>
    %29 = vector.shape_cast %28 : vector<16x16x64xbf16> to vector<256x64xbf16>
    %c8_34 = arith.constant 8 : index
    %c19_35 = arith.constant 19 : index
    %c0_36 = arith.constant 0 : index
    %30 = vector.load %arg9[%c8_34, %c19_35, %c0_36] : memref<32x48x64xbf16, #tpu.memory_space<vmem>>, vector<16x16x64xbf16>
    %31 = vector.shape_cast %30 : vector<16x16x64xbf16> to vector<256x64xbf16>
    %c11 = arith.constant 11 : index
    %c13_37 = arith.constant 13 : index
    %c0_38 = arith.constant 0 : index
    %32 = vector.load %arg9[%c11, %c13_37, %c0_38] : memref<32x48x64xbf16, #tpu.memory_space<vmem>>, vector<16x16x64xbf16>
    %33 = vector.shape_cast %32 : vector<16x16x64xbf16> to vector<256x64xbf16>
    %c11_39 = arith.constant 11 : index
    %c16_40 = arith.constant 16 : index
    %c0_41 = arith.constant 0 : index
    %34 = vector.load %arg9[%c11_39, %c16_40, %c0_41] : memref<32x48x64xbf16, #tpu.memory_space<vmem>>, vector<16x16x64xbf16>
    %35 = vector.shape_cast %34 : vector<16x16x64xbf16> to vector<256x64xbf16>
    %c11_42 = arith.constant 11 : index
    %c19_43 = arith.constant 19 : index
    %c0_44 = arith.constant 0 : index
    %36 = vector.load %arg9[%c11_42, %c19_43, %c0_44] : memref<32x48x64xbf16, #tpu.memory_space<vmem>>, vector<16x16x64xbf16>
    %37 = vector.shape_cast %36 : vector<16x16x64xbf16> to vector<256x64xbf16>
    %38 = tpu.concatenate %23, %25, %27, %29 in 1 : vector<256x64xbf16>, vector<256x64xbf16>, vector<256x64xbf16>, vector<256x64xbf16> -> vector<256x256xbf16>
    %39 = tpu.concatenate %31, %33, %35, %37 in 1 : vector<256x64xbf16>, vector<256x64xbf16>, vector<256x64xbf16>, vector<256x64xbf16> -> vector<256x256xbf16>
    %c0_45 = arith.constant 0 : index
    %c0_46 = arith.constant 0 : index
    %c0_47 = arith.constant 0 : index
    %40 = vector.load %arg3[%c0_45, %c0_46, %c0_47] : memref<2x256x64xbf16, #tpu.memory_space<vmem>>, vector<1x256x64xbf16>
    %41 = vector.shape_cast %40 : vector<1x256x64xbf16> to vector<256x64xbf16>
    %cst_48 = arith.constant dense<0.000000e+00> : vector<256x64xf32>
    %42 = tpu.matmul %38, %41, %cst_48 {dimension_numbers = #tpu.dot_dimension_numbers<[1], [0], [0], [1], [0, 0, 1, 1], [], []>} : vector<256x256xbf16>, vector<256x64xbf16>, vector<256x64xf32> -> vector<256x64xf32>
    %43 = arith.addf %21, %42 : vector<256x64xf32>
    %c1 = arith.constant 1 : index
    %c0_49 = arith.constant 0 : index
    %c0_50 = arith.constant 0 : index
    %44 = vector.load %arg3[%c1, %c0_49, %c0_50] : memref<2x256x64xbf16, #tpu.memory_space<vmem>>, vector<1x256x64xbf16>
    %45 = vector.shape_cast %44 : vector<1x256x64xbf16> to vector<256x64xbf16>
    %cst_51 = arith.constant dense<0.000000e+00> : vector<256x64xf32>
    %46 = tpu.matmul %39, %45, %cst_51 {dimension_numbers = #tpu.dot_dimension_numbers<[1], [0], [0], [1], [0, 0, 1, 1], [], []>} : vector<256x256xbf16>, vector<256x64xbf16>, vector<256x64xf32> -> vector<256x64xf32>
    %47 = arith.addf %43, %46 : vector<256x64xf32>
    %c3 = arith.constant 3 : index
    %c11_52 = arith.constant 11 : index
    %c0_53 = arith.constant 0 : index
    %48 = vector.load %arg9[%c3, %c11_52, %c0_53] : memref<32x48x64xbf16, #tpu.memory_space<vmem>>, vector<16x16x64xbf16>
    %49 = vector.shape_cast %48 : vector<16x16x64xbf16> to vector<256x64xbf16>
    %c3_54 = arith.constant 3 : index
    %c16_55 = arith.constant 16 : index
    %c0_56 = arith.constant 0 : index
    %50 = vector.load %arg9[%c3_54, %c16_55, %c0_56] : memref<32x48x64xbf16, #tpu.memory_space<vmem>>, vector<16x16x64xbf16>
    %51 = vector.shape_cast %50 : vector<16x16x64xbf16> to vector<256x64xbf16>
    %c3_57 = arith.constant 3 : index
    %c21 = arith.constant 21 : index
    %c0_58 = arith.constant 0 : index
    %52 = vector.load %arg9[%c3_57, %c21, %c0_58] : memref<32x48x64xbf16, #tpu.memory_space<vmem>>, vector<16x16x64xbf16>
    %53 = vector.shape_cast %52 : vector<16x16x64xbf16> to vector<256x64xbf16>
    %c8_59 = arith.constant 8 : index
    %c11_60 = arith.constant 11 : index
    %c0_61 = arith.constant 0 : index
    %54 = vector.load %arg9[%c8_59, %c11_60, %c0_61] : memref<32x48x64xbf16, #tpu.memory_space<vmem>>, vector<16x16x64xbf16>
    %55 = vector.shape_cast %54 : vector<16x16x64xbf16> to vector<256x64xbf16>
    %c8_62 = arith.constant 8 : index
    %c21_63 = arith.constant 21 : index
    %c0_64 = arith.constant 0 : index
    %56 = vector.load %arg9[%c8_62, %c21_63, %c0_64] : memref<32x48x64xbf16, #tpu.memory_space<vmem>>, vector<16x16x64xbf16>
    %57 = vector.shape_cast %56 : vector<16x16x64xbf16> to vector<256x64xbf16>
    %c13_65 = arith.constant 13 : index
    %c11_66 = arith.constant 11 : index
    %c0_67 = arith.constant 0 : index
    %58 = vector.load %arg9[%c13_65, %c11_66, %c0_67] : memref<32x48x64xbf16, #tpu.memory_space<vmem>>, vector<16x16x64xbf16>
    %59 = vector.shape_cast %58 : vector<16x16x64xbf16> to vector<256x64xbf16>
    %c13_68 = arith.constant 13 : index
    %c16_69 = arith.constant 16 : index
    %c0_70 = arith.constant 0 : index
    %60 = vector.load %arg9[%c13_68, %c16_69, %c0_70] : memref<32x48x64xbf16, #tpu.memory_space<vmem>>, vector<16x16x64xbf16>
    %61 = vector.shape_cast %60 : vector<16x16x64xbf16> to vector<256x64xbf16>
    %c13_71 = arith.constant 13 : index
    %c21_72 = arith.constant 21 : index
    %c0_73 = arith.constant 0 : index
    %62 = vector.load %arg9[%c13_71, %c21_72, %c0_73] : memref<32x48x64xbf16, #tpu.memory_space<vmem>>, vector<16x16x64xbf16>
    %63 = vector.shape_cast %62 : vector<16x16x64xbf16> to vector<256x64xbf16>
    %64 = tpu.concatenate %49, %51, %53, %55 in 1 : vector<256x64xbf16>, vector<256x64xbf16>, vector<256x64xbf16>, vector<256x64xbf16> -> vector<256x256xbf16>
    %65 = tpu.concatenate %57, %59, %61, %63 in 1 : vector<256x64xbf16>, vector<256x64xbf16>, vector<256x64xbf16>, vector<256x64xbf16> -> vector<256x256xbf16>
    %c0_74 = arith.constant 0 : index
    %c0_75 = arith.constant 0 : index
    %c0_76 = arith.constant 0 : index
    %66 = vector.load %arg4[%c0_74, %c0_75, %c0_76] : memref<2x256x64xbf16, #tpu.memory_space<vmem>>, vector<1x256x64xbf16>
    %67 = vector.shape_cast %66 : vector<1x256x64xbf16> to vector<256x64xbf16>
    %cst_77 = arith.constant dense<0.000000e+00> : vector<256x64xf32>
    %68 = tpu.matmul %64, %67, %cst_77 {dimension_numbers = #tpu.dot_dimension_numbers<[1], [0], [0], [1], [0, 0, 1, 1], [], []>} : vector<256x256xbf16>, vector<256x64xbf16>, vector<256x64xf32> -> vector<256x64xf32>
    %69 = arith.addf %47, %68 : vector<256x64xf32>
    %c1_78 = arith.constant 1 : index
    %c0_79 = arith.constant 0 : index
    %c0_80 = arith.constant 0 : index
    %70 = vector.load %arg4[%c1_78, %c0_79, %c0_80] : memref<2x256x64xbf16, #tpu.memory_space<vmem>>, vector<1x256x64xbf16>
    %71 = vector.shape_cast %70 : vector<1x256x64xbf16> to vector<256x64xbf16>
    %cst_81 = arith.constant dense<0.000000e+00> : vector<256x64xf32>
    %72 = tpu.matmul %65, %71, %cst_81 {dimension_numbers = #tpu.dot_dimension_numbers<[1], [0], [0], [1], [0, 0, 1, 1], [], []>} : vector<256x256xbf16>, vector<256x64xbf16>, vector<256x64xf32> -> vector<256x64xf32>
    %73 = arith.addf %69, %72 : vector<256x64xf32>
    %c1_82 = arith.constant 1 : index
    %c9 = arith.constant 9 : index
    %c0_83 = arith.constant 0 : index
    %74 = vector.load %arg9[%c1_82, %c9, %c0_83] : memref<32x48x64xbf16, #tpu.memory_space<vmem>>, vector<16x16x64xbf16>
    %75 = vector.shape_cast %74 : vector<16x16x64xbf16> to vector<256x64xbf16>
    %c1_84 = arith.constant 1 : index
    %c16_85 = arith.constant 16 : index
    %c0_86 = arith.constant 0 : index
    %76 = vector.load %arg9[%c1_84, %c16_85, %c0_86] : memref<32x48x64xbf16, #tpu.memory_space<vmem>>, vector<16x16x64xbf16>
    %77 = vector.shape_cast %76 : vector<16x16x64xbf16> to vector<256x64xbf16>
    %c1_87 = arith.constant 1 : index
    %c23 = arith.constant 23 : index
    %c0_88 = arith.constant 0 : index
    %78 = vector.load %arg9[%c1_87, %c23, %c0_88] : memref<32x48x64xbf16, #tpu.memory_space<vmem>>, vector<16x16x64xbf16>
    %79 = vector.shape_cast %78 : vector<16x16x64xbf16> to vector<256x64xbf16>
    %c8_89 = arith.constant 8 : index
    %c9_90 = arith.constant 9 : index
    %c0_91 = arith.constant 0 : index
    %80 = vector.load %arg9[%c8_89, %c9_90, %c0_91] : memref<32x48x64xbf16, #tpu.memory_space<vmem>>, vector<16x16x64xbf16>
    %81 = vector.shape_cast %80 : vector<16x16x64xbf16> to vector<256x64xbf16>
    %c8_92 = arith.constant 8 : index
    %c23_93 = arith.constant 23 : index
    %c0_94 = arith.constant 0 : index
    %82 = vector.load %arg9[%c8_92, %c23_93, %c0_94] : memref<32x48x64xbf16, #tpu.memory_space<vmem>>, vector<16x16x64xbf16>
    %83 = vector.shape_cast %82 : vector<16x16x64xbf16> to vector<256x64xbf16>
    %c15 = arith.constant 15 : index
    %c9_95 = arith.constant 9 : index
    %c0_96 = arith.constant 0 : index
    %84 = vector.load %arg9[%c15, %c9_95, %c0_96] : memref<32x48x64xbf16, #tpu.memory_space<vmem>>, vector<16x16x64xbf16>
    %85 = vector.shape_cast %84 : vector<16x16x64xbf16> to vector<256x64xbf16>
    %c15_97 = arith.constant 15 : index
    %c16_98 = arith.constant 16 : index
    %c0_99 = arith.constant 0 : index
    %86 = vector.load %arg9[%c15_97, %c16_98, %c0_99] : memref<32x48x64xbf16, #tpu.memory_space<vmem>>, vector<16x16x64xbf16>
    %87 = vector.shape_cast %86 : vector<16x16x64xbf16> to vector<256x64xbf16>
    %c15_100 = arith.constant 15 : index
    %c23_101 = arith.constant 23 : index
    %c0_102 = arith.constant 0 : index
    %88 = vector.load %arg9[%c15_100, %c23_101, %c0_102] : memref<32x48x64xbf16, #tpu.memory_space<vmem>>, vector<16x16x64xbf16>
    %89 = vector.shape_cast %88 : vector<16x16x64xbf16> to vector<256x64xbf16>
    %90 = tpu.concatenate %75, %77, %79, %81 in 1 : vector<256x64xbf16>, vector<256x64xbf16>, vector<256x64xbf16>, vector<256x64xbf16> -> vector<256x256xbf16>
    %91 = tpu.concatenate %83, %85, %87, %89 in 1 : vector<256x64xbf16>, vector<256x64xbf16>, vector<256x64xbf16>, vector<256x64xbf16> -> vector<256x256xbf16>
    %c0_103 = arith.constant 0 : index
    %c0_104 = arith.constant 0 : index
    %c0_105 = arith.constant 0 : index
    %92 = vector.load %arg5[%c0_103, %c0_104, %c0_105] : memref<2x256x64xbf16, #tpu.memory_space<vmem>>, vector<1x256x64xbf16>
    %93 = vector.shape_cast %92 : vector<1x256x64xbf16> to vector<256x64xbf16>
    %cst_106 = arith.constant dense<0.000000e+00> : vector<256x64xf32>
    %94 = tpu.matmul %90, %93, %cst_106 {dimension_numbers = #tpu.dot_dimension_numbers<[1], [0], [0], [1], [0, 0, 1, 1], [], []>} : vector<256x256xbf16>, vector<256x64xbf16>, vector<256x64xf32> -> vector<256x64xf32>
    %95 = arith.addf %73, %94 : vector<256x64xf32>
    %c1_107 = arith.constant 1 : index
    %c0_108 = arith.constant 0 : index
    %c0_109 = arith.constant 0 : index
    %96 = vector.load %arg5[%c1_107, %c0_108, %c0_109] : memref<2x256x64xbf16, #tpu.memory_space<vmem>>, vector<1x256x64xbf16>
    %97 = vector.shape_cast %96 : vector<1x256x64xbf16> to vector<256x64xbf16>
    %cst_110 = arith.constant dense<0.000000e+00> : vector<256x64xf32>
    %98 = tpu.matmul %91, %97, %cst_110 {dimension_numbers = #tpu.dot_dimension_numbers<[1], [0], [0], [1], [0, 0, 1, 1], [], []>} : vector<256x256xbf16>, vector<256x64xbf16>, vector<256x64xf32> -> vector<256x64xf32>
    %99 = arith.addf %95, %98 : vector<256x64xf32>
    %c0_111 = arith.constant 0 : index
    %c0_112 = arith.constant 0 : index
    %100 = vector.load %arg7[%c0_111, %c0_112] : memref<1x64xf32, #tpu.memory_space<vmem>>, vector<1x64xf32>
    %101 = arith.addf %19, %100 : vector<1x64xf32>
    %102 = vector.broadcast %101 : vector<1x64xf32> to vector<256x64xf32>
    %103 = arith.addf %99, %102 : vector<256x64xf32>
    %104 = vector.shape_cast %103 : vector<256x64xf32> to vector<1x16x16x64xf32>
    %c0_113 = arith.constant 0 : index
    %c0_114 = arith.constant 0 : index
    %c0_115 = arith.constant 0 : index
    %c0_116 = arith.constant 0 : index
    %105 = vector.load %arg8[%c0_113, %c0_114, %c0_115, %c0_116] : memref<1x16x16x64xf32, #tpu.memory_space<vmem>>, vector<1x16x16x64xf32>
    tpu.vector_store %arg8[%c0_113, %c0_114, %c0_115, %c0_116], %104 {strides = array<i32>} : memref<1x16x16x64xf32, #tpu.memory_space<vmem>>, vector<1x16x16x64xf32>,
    return
  }
  func.func @transform_0(%arg0: i32) -> (i32, i32, i32, i32) {
    %c0_i32 = arith.constant 0 : i32
    %c0_i32_0 = arith.constant 0 : i32
    %c0_i32_1 = arith.constant 0 : i32
    %c0_i32_2 = arith.constant 0 : i32
    return %arg0, %c0_i32, %c0_i32_0, %c0_i32_1 : i32, i32, i32, i32
  }
  func.func @transform_1(%arg0: i32) -> (i32, i32) {
    %c0_i32 = arith.constant 0 : i32
    %c0_i32_0 = arith.constant 0 : i32
    %c0_i32_1 = arith.constant 0 : i32
    return %c0_i32, %c0_i32_0 : i32, i32
  }
  func.func @transform_2(%arg0: i32) -> (i32, i32, i32) {
    %c0_i32 = arith.constant 0 : i32
    %c0_i32_0 = arith.constant 0 : i32
    %c0_i32_1 = arith.constant 0 : i32
    %c0_i32_2 = arith.constant 0 : i32
    return %c0_i32, %c0_i32_0, %c0_i32_1 : i32, i32, i32
  }
  func.func @transform_3(%arg0: i32) -> (i32, i32, i32) {
    %c0_i32 = arith.constant 0 : i32
    %c0_i32_0 = arith.constant 0 : i32
    %c0_i32_1 = arith.constant 0 : i32
    %c0_i32_2 = arith.constant 0 : i32
    return %c0_i32, %c0_i32_0, %c0_i32_1 : i32, i32, i32
  }
  func.func @transform_4(%arg0: i32) -> (i32, i32, i32) {
    %c0_i32 = arith.constant 0 : i32
    %c0_i32_0 = arith.constant 0 : i32
    %c0_i32_1 = arith.constant 0 : i32
    %c0_i32_2 = arith.constant 0 : i32
    return %c0_i32, %c0_i32_0, %c0_i32_1 : i32, i32, i32
  }
  func.func @transform_5(%arg0: i32) -> (i32, i32) {
    %c0_i32 = arith.constant 0 : i32
    %c0_i32_0 = arith.constant 0 : i32
    %c0_i32_1 = arith.constant 0 : i32
    return %c0_i32, %c0_i32_0 : i32, i32
  }
  func.func @transform_6(%arg0: i32) -> (i32, i32) {
    %c0_i32 = arith.constant 0 : i32
    %c0_i32_0 = arith.constant 0 : i32
    %c0_i32_1 = arith.constant 0 : i32
    return %c0_i32, %c0_i32_0 : i32, i32
  }
  func.func @transform_7(%arg0: i32) -> (i32, i32, i32, i32) {
    %c0_i32 = arith.constant 0 : i32
    %c0_i32_0 = arith.constant 0 : i32
    %c0_i32_1 = arith.constant 0 : i32
    %c0_i32_2 = arith.constant 0 : i32
    return %arg0, %c0_i32, %c0_i32_0, %c0_i32_1 : i32, i32, i32, i32
  }
}

</mosaic_0001>

<llo_original>
// kernel: tpu_custom_call.1
$region0: #{tpu_custom_call.1}
  #allocation0 [shape = 'u32[]', space=smem, size = 0x4, offset = 0x4, fixed_abs, tag = 'smem constant byte address 0x4 - core index']
  #allocation1 [shape = 'u32[144,128]{1,0:T(1,128)}', space=vmem, size = 0x12000, scoped, tag = 'internal scratch']
  #allocation2 [shape = 'bf16[32,48,64]{2,1,0:T(16,128)(2,1)}', space=vmem, size = 0x60000, scoped, tag = 'scratch operand']
  %s0 = inlined_call_operand.vmem [shape: bf16[2,16,16,64], index: 0, kind: input, shape index: {}]
  %s1 = inlined_call_operand.vmem [shape: bf16[64,64], index: 1, kind: input, shape index: {}]
  %s2 = inlined_call_operand.vmem [shape: bf16[2,256,64], index: 2, kind: input, shape index: {}]
  %s3 = inlined_call_operand.vmem [shape: bf16[2,256,64], index: 3, kind: input, shape index: {}]
  %s4 = inlined_call_operand.vmem [shape: bf16[2,256,64], index: 4, kind: input, shape index: {}]
  %s5 = inlined_call_operand.vmem [shape: bf16[64,64], index: 5, kind: input, shape index: {}]
  %s6 = inlined_call_operand.vmem [shape: f32[1,64], index: 6, kind: input, shape index: {}]
  %s7 = inlined_call_operand.hbm [shape: f32[2,16,16,64], index: 7, kind: output, shape index: {}]
  %s8 = sld [smem:[#allocation0]]
  $region61: #{tpu_custom_call.1} parent=0
    _
  %s10 = ssub.s32 1, %s8
  %s11 = scalar_select 0, %s10, %s8
  $region1: #{tpu_custom_call.1} parent=0
    #allocation3 [shape = 'u8[262144]{0}', space=vmem, size = 0x40000, scoped, tag = 'output window, operand 0']
    #allocation4 [shape = 's32[2]{0}', space=sflag, size = 0x8, scoped, tag = 'scoped memory for tpu_custom_call.1']
    %12 = vsyncpa [#allocation4], 0
    %s13 = scalar_lea.sflag [#allocation4], 1
    %14 = vsyncpa %s13, 0
    loop: start=0, step=1, limit=4
    $region2: #{tpu_custom_call.1} parent=1 // loop_pre_header
      _
    $region3: #{tpu_custom_call.1} parent=1 // loop_header
      %s16 = sphi 0, %s20
      %p17 = scmp.ge.s32.totalorder %s16, 4
      %s26 = sphi 0, %s28
      %s29 = sphi 0, %s26
      %s30 = sphi 0, %s29
      %s46 = sphi 0, %s30
      %s50 = sphi 0, %s50
      %s52 = sphi 0, %s50
      %s53 = sphi 0, %s52
      %s67 = sphi 0, %s53
      %s71 = sphi 0, %s71
      %s73 = sphi 0, %s71
      %s74 = sphi 0, %s73
      %s88 = sphi 0, %s74
      %s92 = sphi 0, %s92
      %s94 = sphi 0, %s92
      %s95 = sphi 0, %s94
      %s109 = sphi 0, %s95
      %s113 = sphi 0, %s113
      %s115 = sphi 0, %s113
      %s116 = sphi 0, %s115
      %s130 = sphi 0, %s116
      %s134 = sphi 0, %s134
      %s136 = sphi 0, %s134
      %s137 = sphi 0, %s136
      %s151 = sphi 0, %s137
      %s155 = sphi 0, %s155
      %s157 = sphi 0, %s155
      %s158 = sphi 0, %s157
      %s172 = sphi 0, %s158
      %s178 = sphi 0, %s180
      %s181 = sphi 0, %s178
      %s182 = sphi 0, %s181
      %s198 = sphi 0, %s182
    $region4: #{tpu_custom_call.1} parent=1 // loop_header_branch
      %19 = sbr.rel (%p17) target = $region8
    $region5: #{tpu_custom_call.1} parent=1 // loop_body
      %s21 = ssub.s32 %s16, 1
      %s22 = ssub.s32 %s16, 2
      %s23 = sadd.s32 %s16, 1
      %s24 = ssub.s32 %s16, %s23
      %p25 = scmp.eq.s32.totalorder %s24, 0
      %s27 = sadd.s32 %s26, 1
      %s28 = scalar_select %p25, %s26, %s27
      %p31 = pneg %p25
      %p32 = scmp.eq.s32.totalorder %s16, 1
      %p33 = por %p31, %p32
      %p34 = scmp.ne.s32.totalorder %s26, %s29
      %p35 = scmp.eq.s32.totalorder %s16, 0
      %p36 = por %p34, %p35
      %p37 = scmp.ne.s32.totalorder %s26, %s29
      %p38 = scmp.eq.s32.totalorder %s21, 1
      %p39 = por %p37, %p38
      %p40 = scmp.ne.s32.totalorder %s29, %s30
      %p41 = scmp.eq.s32.totalorder %s21, 0
      %p42 = por %p40, %p41
      %p43 = scmp.ne.s32.totalorder %s29, %s30
      %p44 = scmp.eq.s32.totalorder %s22, 1
      %p45 = por %p43, %p44
      %p47 = scmp.ne.s32.totalorder %s30, %s46
      %p48 = scmp.eq.s32.totalorder %s22, 0
      %p49 = por %p47, %p48
      %s51 = sadd.s32 %s50, 1
      %p54 = scmp.eq.s32.totalorder %s16, 1
      %p55 = scmp.ne.s32.totalorder %s50, %s52
      %p56 = scmp.eq.s32.totalorder %s16, 0
      %p57 = por %p55, %p56
      %p58 = scmp.ne.s32.totalorder %s50, %s52
      %p59 = scmp.eq.s32.totalorder %s21, 1
      %p60 = por %p58, %p59
      %p61 = scmp.ne.s32.totalorder %s52, %s53
      %p62 = scmp.eq.s32.totalorder %s21, 0
      %p63 = por %p61, %p62
      %p64 = scmp.ne.s32.totalorder %s52, %s53
      %p65 = scmp.eq.s32.totalorder %s22, 1
      %p66 = por %p64, %p65
      %p68 = scmp.ne.s32.totalorder %s53, %s67
      %p69 = scmp.eq.s32.totalorder %s22, 0
      %p70 = por %p68, %p69
      %s72 = sadd.s32 %s71, 1
      %p75 = scmp.eq.s32.totalorder %s16, 1
      %p76 = scmp.ne.s32.totalorder %s71, %s73
      %p77 = scmp.eq.s32.totalorder %s16, 0
      %p78 = por %p76, %p77
      %p79 = scmp.ne.s32.totalorder %s71, %s73
      %p80 = scmp.eq.s32.totalorder %s21, 1
      %p81 = por %p79, %p80
      %p82 = scmp.ne.s32.totalorder %s73, %s74
      %p83 = scmp.eq.s32.totalorder %s21, 0
      %p84 = por %p82, %p83
      %p85 = scmp.ne.s32.totalorder %s73, %s74
      %p86 = scmp.eq.s32.totalorder %s22, 1
      %p87 = por %p85, %p86
      %p89 = scmp.ne.s32.totalorder %s74, %s88
      %p90 = scmp.eq.s32.totalorder %s22, 0
      %p91 = por %p89, %p90
      %s93 = sadd.s32 %s92, 1
      %p96 = scmp.eq.s32.totalorder %s16, 1
      %p97 = scmp.ne.s32.totalorder %s92, %s94
      %p98 = scmp.eq.s32.totalorder %s16, 0
      %p99 = por %p97, %p98
      %p100 = scmp.ne.s32.totalorder %s92, %s94
      %p101 = scmp.eq.s32.totalorder %s21, 1
      %p102 = por %p100, %p101
      %p103 = scmp.ne.s32.totalorder %s94, %s95
      %p104 = scmp.eq.s32.totalorder %s21, 0
      %p105 = por %p103, %p104
      %p106 = scmp.ne.s32.totalorder %s94, %s95
      %p107 = scmp.eq.s32.totalorder %s22, 1
      %p108 = por %p106, %p107
      %p110 = scmp.ne.s32.totalorder %s95, %s109
      %p111 = scmp.eq.s32.totalorder %s22, 0
      %p112 = por %p110, %p111
      %s114 = sadd.s32 %s113, 1
      %p117 = scmp.eq.s32.totalorder %s16, 1
      %p118 = scmp.ne.s32.totalorder %s113, %s115
      %p119 = scmp.eq.s32.totalorder %s16, 0
      %p120 = por %p118, %p119
      %p121 = scmp.ne.s32.totalorder %s113, %s115
      %p122 = scmp.eq.s32.totalorder %s21, 1
      %p123 = por %p121, %p122
      %p124 = scmp.ne.s32.totalorder %s115, %s116
      %p125 = scmp.eq.s32.totalorder %s21, 0
      %p126 = por %p124, %p125
      %p127 = scmp.ne.s32.totalorder %s115, %s116
      %p128 = scmp.eq.s32.totalorder %s22, 1
      %p129 = por %p127, %p128
      %p131 = scmp.ne.s32.totalorder %s116, %s130
      %p132 = scmp.eq.s32.totalorder %s22, 0
      %p133 = por %p131, %p132
      %s135 = sadd.s32 %s134, 1
      %p138 = scmp.eq.s32.totalorder %s16, 1
      %p139 = scmp.ne.s32.totalorder %s134, %s136
      %p140 = scmp.eq.s32.totalorder %s16, 0
      %p141 = por %p139, %p140
      %p142 = scmp.ne.s32.totalorder %s134, %s136
      %p143 = scmp.eq.s32.totalorder %s21, 1
      %p144 = por %p142, %p143
      %p145 = scmp.ne.s32.totalorder %s136, %s137
      %p146 = scmp.eq.s32.totalorder %s21, 0
      %p147 = por %p145, %p146
      %p148 = scmp.ne.s32.totalorder %s136, %s137
      %p149 = scmp.eq.s32.totalorder %s22, 1
      %p150 = por %p148, %p149
      %p152 = scmp.ne.s32.totalorder %s137, %s151
      %p153 = scmp.eq.s32.totalorder %s22, 0
      %p154 = por %p152, %p153
      %s156 = sadd.s32 %s155, 1
      %p159 = scmp.eq.s32.totalorder %s16, 1
      %p160 = scmp.ne.s32.totalorder %s155, %s157
      %p161 = scmp.eq.s32.totalorder %s16, 0
      %p162 = por %p160, %p161
      %p163 = scmp.ne.s32.totalorder %s155, %s157
      %p164 = scmp.eq.s32.totalorder %s21, 1
      %p165 = por %p163, %p164
      %p166 = scmp.ne.s32.totalorder %s157, %s158
      %p167 = scmp.eq.s32.totalorder %s21, 0
      %p168 = por %p166, %p167
      %p169 = scmp.ne.s32.totalorder %s157, %s158
      %p170 = scmp.eq.s32.totalorder %s22, 1
      %p171 = por %p169, %p170
      %p173 = scmp.ne.s32.totalorder %s158, %s172
      %p174 = scmp.eq.s32.totalorder %s22, 0
      %p175 = por %p173, %p174
      %s176 = ssub.s32 %s16, %s23
      %p177 = scmp.eq.s32.totalorder %s176, 0
      %s179 = sadd.s32 %s178, 1
      %s180 = scalar_select %p177, %s178, %s179
      %p183 = pneg %p177
      %p184 = scmp.eq.s32.totalorder %s16, 1
      %p185 = por %p183, %p184
      %p186 = scmp.ne.s32.totalorder %s178, %s181
      %p187 = scmp.eq.s32.totalorder %s16, 0
      %p188 = por %p186, %p187
      %p189 = scmp.ne.s32.totalorder %s178, %s181
      %p190 = scmp.eq.s32.totalorder %s21, 1
      %p191 = por %p189, %p190
      %p192 = scmp.ne.s32.totalorder %s181, %s182
      %p193 = scmp.eq.s32.totalorder %s21, 0
      %p194 = por %p192, %p193
      %p195 = scmp.ne.s32.totalorder %s181, %s182
      %p196 = scmp.eq.s32.totalorder %s22, 1
      %p197 = por %p195, %p196
      %p199 = scmp.ne.s32.totalorder %s182, %s198
      %p200 = scmp.eq.s32.totalorder %s22, 0
      %p201 = por %p199, %p200
      %p202 = scmp.le.s32.totalorder 1, %s16
      %p203 = scmp.lt.s32.totalorder %s16, 3
      %p204 = pnand %p202, %p203
      %p205 = pneg %p204
      // Predicated region
      $region9: #{tpu_custom_call.1} parent=5 // pred_check
        _
      $region10: #{tpu_custom_call.1} parent=5 // pred_check_branch
        %207 = sbr.rel (%p204) target = $region12
      $region11: #{tpu_custom_call.1} parent=5 // pred_region
        %s208 = ssub.s32 %s16, 1
        // Predicated region
        $region13: #{tpu_custom_call.1} parent=11 // pred_check
          %p209 = pneg %p63
        $region14: #{tpu_custom_call.1} parent=11 // pred_check_branch
          %211 = sbr.rel (%p209) target = $region16
        $region15: #{tpu_custom_call.1} parent=11 // pred_region
          _
        $region16: #{tpu_custom_call.1} parent=11 // pred_fallthru
          _
        // Predicated region
        $region17: #{tpu_custom_call.1} parent=11 // pred_check
          %p212 = pneg %p84
        $region18: #{tpu_custom_call.1} parent=11 // pred_check_branch
          %214 = sbr.rel (%p212) target = $region20
        $region19: #{tpu_custom_call.1} parent=11 // pred_region
          _
        $region20: #{tpu_custom_call.1} parent=11 // pred_fallthru
          _
        // Predicated region
        $region21: #{tpu_custom_call.1} parent=11 // pred_check
          %p215 = pneg %p105
        $region22: #{tpu_custom_call.1} parent=11 // pred_check_branch
          %217 = sbr.rel (%p215) target = $region24
        $region23: #{tpu_custom_call.1} parent=11 // pred_region
          _
        $region24: #{tpu_custom_call.1} parent=11 // pred_fallthru
          _
        // Predicated region
        $region25: #{tpu_custom_call.1} parent=11 // pred_check
          %p218 = pneg %p126
        $region26: #{tpu_custom_call.1} parent=11 // pred_check_branch
          %220 = sbr.rel (%p218) target = $region28
        $region27: #{tpu_custom_call.1} parent=11 // pred_region
          _
        $region28: #{tpu_custom_call.1} parent=11 // pred_fallthru
          _
        // Predicated region
        $region29: #{tpu_custom_call.1} parent=11 // pred_check
          %p221 = pneg %p147
        $region30: #{tpu_custom_call.1} parent=11 // pred_check_branch
          %223 = sbr.rel (%p221) target = $region32
        $region31: #{tpu_custom_call.1} parent=11 // pred_region
          _
        $region32: #{tpu_custom_call.1} parent=11 // pred_fallthru
          _
        // Predicated region
        $region33: #{tpu_custom_call.1} parent=11 // pred_check
          %p224 = pneg %p168
        $region34: #{tpu_custom_call.1} parent=11 // pred_check_branch
          %226 = sbr.rel (%p224) target = $region36
        $region35: #{tpu_custom_call.1} parent=11 // pred_region
          _
        $region36: #{tpu_custom_call.1} parent=11 // pred_fallthru
          _
      $region12: #{tpu_custom_call.1} parent=5 // pred_fallthru
        _
      %p227 = scmp.lt.s32.totalorder %s16, 2
      // Predicated region
      $region37: #{tpu_custom_call.1} parent=5 // pred_check
        %p228 = pneg %p227
      $region38: #{tpu_custom_call.1} parent=5 // pred_check_branch
        %230 = sbr.rel (%p228) target = $region40
      $region39: #{tpu_custom_call.1} parent=5 // pred_region
        // Predicated region
        $region41: #{tpu_custom_call.1} parent=39 // pred_check
          %p231 = pneg %p36
        $region42: #{tpu_custom_call.1} parent=39 // pred_check_branch
          %233 = sbr.rel (%p231) target = $region44
        $region43: #{tpu_custom_call.1} parent=39 // pred_region
          %p234 = scmp.lt.s32.totalorder %s16, 1
          %s235 = scalar_select %p234, %s16, 1
          %s236 = smul.addr %s235, 32
          %s237 = smul.addr %s236, 4
          %s238 = scalar_lea.vmem %s0, %s237
        $region44: #{tpu_custom_call.1} parent=39 // pred_fallthru
          _
      $region40: #{tpu_custom_call.1} parent=5 // pred_fallthru
        _
      %p239 = scmp.le.s32.totalorder 1, %s16
      %p240 = scmp.lt.s32.totalorder %s16, 3
      %p241 = pnand %p239, %p240
      %p242 = pneg %p241
      // Predicated region
      $region45: #{tpu_custom_call.1} parent=5 // pred_check
        _
      $region46: #{tpu_custom_call.1} parent=5 // pred_check_branch
        %244 = sbr.rel (%p241) target = $region48
      $region47: #{tpu_custom_call.1} parent=5 // pred_region
        %s245 = ssub.s32 %s16, 1
        %p246 = scmp.lt.s32.totalorder %s21, 1
        %s247 = scalar_select %p246, %s21, 1
        %s248 = smul.addr %s247, 32
        %s249 = smul.addr %s248, 4
        %s250 = scalar_lea.vmem %s0, %s249
        %p251 = pneg %p42
        %p252 = pneg %p39
        %p253 = pneg %p63
        %p254 = pneg %p60
        %p255 = pneg %p84
        %p256 = pneg %p81
        %p257 = pneg %p105
        %p258 = pneg %p102
        %p259 = pneg %p126
        %p260 = pneg %p123
        %p261 = pneg %p147
        %p262 = pneg %p144
        %p263 = pneg %p168
        %p264 = pneg %p165
        %p265 = pneg %p194
        %p266 = pneg %p191
        %s267 = sand.u32 %s181, 1
        %s268 = scalar_lea.sflag [#allocation4], %s267
        %s269 = sand.u32 %s181, 1
        %s270 = smul.addr %s269, 256
        %s271 = scalar_lea.vmem [#allocation3], %s270
        %p272 = scmp.lt.s32.totalorder %s21, 1
        %s273 = scalar_select %p272, %s21, 1
        %s274 = smul.addr %s273, 32
        %s275 = smul.addr %s274, 4
        %s276 = scalar_lea.vmem %s0, %s275
        %vm278 = vcmask 523264
        %279 = vst.msk [vmem:[#allocation2] sm:$0xff] %vm278, 0
        %280 = vst.msk [vmem:[#allocation2 + $0x8] sm:$0xff] %vm278, 0
        %281 = vst.msk [vmem:[#allocation2 + $0x10] sm:$0xff] %vm278, 0
        %282 = vst.msk [vmem:[#allocation2 + $0x18] sm:$0xff] %vm278, 0
        %283 = vst.msk [vmem:[#allocation2 + $0x20] sm:$0xff] %vm278, 0
        %284 = vst.msk [vmem:[#allocation2 + $0x28] sm:$0xff] %vm278, 0
        %285 = vst.msk [vmem:[#allocation2 + $0x30] sm:$0xff] %vm278, 0
        %286 = vst.msk [vmem:[#allocation2 + $0x38] sm:$0xff] %vm278, 0
        %287 = vst.msk [vmem:[#allocation2 + $0x40] sm:$0xff] %vm278, 0
        %288 = vst.msk [vmem:[#allocation2 + $0x48] sm:$0xff] %vm278, 0
        %289 = vst.msk [vmem:[#allocation2 + $0x50] sm:$0xff] %vm278, 0
        %290 = vst.msk [vmem:[#allocation2 + $0x58] sm:$0xff] %vm278, 0
        %291 = vst.msk [vmem:[#allocation2 + $0x60] sm:$0xff] %vm278, 0
        %292 = vst.msk [vmem:[#allocation2 + $0x68] sm:$0xff] %vm278, 0
        %293 = vst.msk [vmem:[#allocation2 + $0x70] sm:$0xff] %vm278, 0
        %294 = vst.msk [vmem:[#allocation2 + $0x78] sm:$0xff] %vm278, 0
        %295 = vst.msk [vmem:[#allocation2 + $0x80] sm:$0xff] %vm278, 0
        %296 = vst.msk [vmem:[#allocation2 + $0x88] sm:$0xff] %vm278, 0
        %297 = vst.msk [vmem:[#allocation2 + $0x90] sm:$0xff] %vm278, 0
        %298 = vst.msk [vmem:[#allocation2 + $0x98] sm:$0xff] %vm278, 0
        %299 = vst.msk [vmem:[#allocation2 + $0xa0] sm:$0xff] %vm278, 0
        %300 = vst.msk [vmem:[#allocation2 + $0xa8] sm:$0xff] %vm278, 0
        %301 = vst.msk [vmem:[#allocation2 + $0xb0] sm:$0xff] %vm278, 0
        %302 = vst.msk [vmem:[#allocation2 + $0xb8] sm:$0xff] %vm278, 0
        %s303 = scalar_lea.vmem [#allocation2], 576
        %304 = vst.msk [vmem:[%s303] sm:$0xff] %vm278, 0
        %305 = vst.msk [vmem:[%s303 + $0x8] sm:$0xff] %vm278, 0
        %306 = vst.msk [vmem:[%s303 + $0x10] sm:$0xff] %vm278, 0
        %307 = vst.msk [vmem:[%s303 + $0x18] sm:$0xff] %vm278, 0
        %308 = vst.msk [vmem:[%s303 + $0x20] sm:$0xff] %vm278, 0
        %309 = vst.msk [vmem:[%s303 + $0x28] sm:$0xff] %vm278, 0
        %310 = vst.msk [vmem:[%s303 + $0x30] sm:$0xff] %vm278, 0
        %311 = vst.msk [vmem:[%s303 + $0x38] sm:$0xff] %vm278, 0
        %312 = vst.msk [vmem:[%s303 + $0x40] sm:$0xff] %vm278, 0
        %313 = vst.msk [vmem:[%s303 + $0x48] sm:$0xff] %vm278, 0
        %314 = vst.msk [vmem:[%s303 + $0x50] sm:$0xff] %vm278, 0
        %315 = vst.msk [vmem:[%s303 + $0x58] sm:$0xff] %vm278, 0
        %316 = vst.msk [vmem:[%s303 + $0x60] sm:$0xff] %vm278, 0
        %317 = vst.msk [vmem:[%s303 + $0x68] sm:$0xff] %vm278, 0
        %318 = vst.msk [vmem:[%s303 + $0x70] sm:$0xff] %vm278, 0
        %319 = vst.msk [vmem:[%s303 + $0x78] sm:$0xff] %vm278, 0
        %320 = vst.msk [vmem:[%s303 + $0x80] sm:$0xff] %vm278, 0
        %321 = vst.msk [vmem:[%s303 + $0x88] sm:$0xff] %vm278, 0
        %322 = vst.msk [vmem:[%s303 + $0x90] sm:$0xff] %vm278, 0
        %323 = vst.msk [vmem:[%s303 + $0x98] sm:$0xff] %vm278, 0
        %324 = vst.msk [vmem:[%s303 + $0xa0] sm:$0xff] %vm278, 0
        %325 = vst.msk [vmem:[%s303 + $0xa8] sm:$0xff] %vm278, 0
        %326 = vst.msk [vmem:[%s303 + $0xb0] sm:$0xff] %vm278, 0
        %327 = vst.msk [vmem:[%s303 + $0xb8] sm:$0xff] %vm278, 0
        %s328 = scalar_lea.vmem [#allocation2], 192
        %329 = vst.msk [vmem:[%s328] sm:$0xff] %vm278, 0
        %330 = vst.msk [vmem:[%s328 + $0x18] sm:$0xff] %vm278, 0
        %331 = vst.msk [vmem:[%s328 + $0x30] sm:$0xff] %vm278, 0
        %332 = vst.msk [vmem:[%s328 + $0x48] sm:$0xff] %vm278, 0
        %333 = vst.msk [vmem:[%s328 + $0x60] sm:$0xff] %vm278, 0
        %334 = vst.msk [vmem:[%s328 + $0x78] sm:$0xff] %vm278, 0
        %335 = vst.msk [vmem:[%s328 + $0x90] sm:$0xff] %vm278, 0
        %336 = vst.msk [vmem:[%s328 + $0xa8] sm:$0xff] %vm278, 0
        %337 = vst.msk [vmem:[%s328 + $0xc0] sm:$0xff] %vm278, 0
        %338 = vst.msk [vmem:[%s328 + $0xd8] sm:$0xff] %vm278, 0
        %339 = vst.msk [vmem:[%s328 + $0xf0] sm:$0xff] %vm278, 0
        %340 = vst.msk [vmem:[%s328 + $0x108] sm:$0xff] %vm278, 0
        %341 = vst.msk [vmem:[%s328 + $0x120] sm:$0xff] %vm278, 0
        %342 = vst.msk [vmem:[%s328 + $0x138] sm:$0xff] %vm278, 0
        %343 = vst.msk [vmem:[%s328 + $0x150] sm:$0xff] %vm278, 0
        %344 = vst.msk [vmem:[%s328 + $0x168] sm:$0xff] %vm278, 0
        %345 = vst.msk [vmem:[%s328 + $0x10] sm:$0xff] %vm278, 0
        %346 = vst.msk [vmem:[%s328 + $0x28] sm:$0xff] %vm278, 0
        %347 = vst.msk [vmem:[%s328 + $0x40] sm:$0xff] %vm278, 0
        %348 = vst.msk [vmem:[%s328 + $0x58] sm:$0xff] %vm278, 0
        %349 = vst.msk [vmem:[%s328 + $0x70] sm:$0xff] %vm278, 0
        %350 = vst.msk [vmem:[%s328 + $0x88] sm:$0xff] %vm278, 0
        %351 = vst.msk [vmem:[%s328 + $0xa0] sm:$0xff] %vm278, 0
        %352 = vst.msk [vmem:[%s328 + $0xb8] sm:$0xff] %vm278, 0
        %353 = vst.msk [vmem:[%s328 + $0xd0] sm:$0xff] %vm278, 0
        %354 = vst.msk [vmem:[%s328 + $0xe8] sm:$0xff] %vm278, 0
        %355 = vst.msk [vmem:[%s328 + $0x100] sm:$0xff] %vm278, 0
        %356 = vst.msk [vmem:[%s328 + $0x118] sm:$0xff] %vm278, 0
        %357 = vst.msk [vmem:[%s328 + $0x130] sm:$0xff] %vm278, 0
        %358 = vst.msk [vmem:[%s328 + $0x148] sm:$0xff] %vm278, 0
        %359 = vst.msk [vmem:[%s328 + $0x160] sm:$0xff] %vm278, 0
        %360 = vst.msk [vmem:[%s328 + $0x178] sm:$0xff] %vm278, 0
        %v361 = vld [vmem:[%s276] sm:$0xf]
        %v362 = vld [vmem:[%s276 + $0x4] sm:$0xf]
        %v363 = vld [vmem:[%s276 + $0x8] sm:$0xf]
        %v364 = vld [vmem:[%s276 + $0xc] sm:$0xf]
        %v365 = vld [vmem:[%s276 + $0x10] sm:$0xf]
        %v366 = vld [vmem:[%s276 + $0x14] sm:$0xf]
        %v367 = vld [vmem:[%s276 + $0x18] sm:$0xf]
        %v368 = vld [vmem:[%s276 + $0x1c] sm:$0xf]
        %v369 = vld [vmem:[%s276 + $0x20] sm:$0xf]
        %v370 = vld [vmem:[%s276 + $0x24] sm:$0xf]
        %v371 = vld [vmem:[%s276 + $0x28] sm:$0xf]
        %v372 = vld [vmem:[%s276 + $0x2c] sm:$0xf]
        %v373 = vld [vmem:[%s276 + $0x30] sm:$0xf]
        %v374 = vld [vmem:[%s276 + $0x34] sm:$0xf]
        %v375 = vld [vmem:[%s276 + $0x38] sm:$0xf]
        %v376 = vld [vmem:[%s276 + $0x3c] sm:$0xf]
        %v377 = vld [vmem:[%s276 + $0x40] sm:$0xf]
        %v378 = vld [vmem:[%s276 + $0x44] sm:$0xf]
        %v379 = vld [vmem:[%s276 + $0x48] sm:$0xf]
        %v380 = vld [vmem:[%s276 + $0x4c] sm:$0xf]
        %v381 = vld [vmem:[%s276 + $0x50] sm:$0xf]
        %v382 = vld [vmem:[%s276 + $0x54] sm:$0xf]
        %v383 = vld [vmem:[%s276 + $0x58] sm:$0xf]
        %v384 = vld [vmem:[%s276 + $0x5c] sm:$0xf]
        %v385 = vld [vmem:[%s276 + $0x60] sm:$0xf]
        %v386 = vld [vmem:[%s276 + $0x64] sm:$0xf]
        %v387 = vld [vmem:[%s276 + $0x68] sm:$0xf]
        %v388 = vld [vmem:[%s276 + $0x6c] sm:$0xf]
        %v389 = vld [vmem:[%s276 + $0x70] sm:$0xf]
        %v390 = vld [vmem:[%s276 + $0x74] sm:$0xf]
        %v391 = vld [vmem:[%s276 + $0x78] sm:$0xf]
        %v392 = vld [vmem:[%s276 + $0x7c] sm:$0xf]
        %v425 = vunpack.c.l.b16 %v361
        %v426 = vunpack.c.l.b16 %v362
        %v427 = vunpack.c.l.b16 %v363
        %v428 = vunpack.c.l.b16 %v364
        %v429 = vunpack.c.l.b16 %v365
        %v430 = vunpack.c.l.b16 %v366
        %v431 = vunpack.c.l.b16 %v367
        %v432 = vunpack.c.l.b16 %v368
        %v433 = vunpack.c.l.b16 %v369
        %v434 = vunpack.c.l.b16 %v370
        %v435 = vunpack.c.l.b16 %v371
        %v436 = vunpack.c.l.b16 %v372
        %v437 = vunpack.c.l.b16 %v373
        %v438 = vunpack.c.l.b16 %v374
        %v439 = vunpack.c.l.b16 %v375
        %v440 = vunpack.c.l.b16 %v376
        %v441 = vunpack.c.l.b16 %v377
        %v442 = vunpack.c.l.b16 %v378
        %v443 = vunpack.c.l.b16 %v379
        %v444 = vunpack.c.l.b16 %v380
        %v445 = vunpack.c.l.b16 %v381
        %v446 = vunpack.c.l.b16 %v382
        %v447 = vunpack.c.l.b16 %v383
        %v448 = vunpack.c.l.b16 %v384
        %v449 = vunpack.c.l.b16 %v385
        %v450 = vunpack.c.l.b16 %v386
        %v451 = vunpack.c.l.b16 %v387
        %v452 = vunpack.c.l.b16 %v388
        %v453 = vunpack.c.l.b16 %v389
        %v454 = vunpack.c.l.b16 %v390
        %v455 = vunpack.c.l.b16 %v391
        %v456 = vunpack.c.l.b16 %v392
        %v457 = vpack.c.b16 %v426, %v425
        %v458 = vpack.c.b16 %v428, %v427
        %v459 = vpack.c.b16 %v430, %v429
        %v460 = vpack.c.b16 %v432, %v431
        %v461 = vpack.c.b16 %v434, %v433
        %v462 = vpack.c.b16 %v436, %v435
        %v463 = vpack.c.b16 %v438, %v437
        %v464 = vpack.c.b16 %v440, %v439
        %v465 = vpack.c.b16 %v442, %v441
        %v466 = vpack.c.b16 %v444, %v443
        %v467 = vpack.c.b16 %v446, %v445
        %v468 = vpack.c.b16 %v448, %v447
        %v469 = vpack.c.b16 %v450, %v449
        %v470 = vpack.c.b16 %v452, %v451
        %v471 = vpack.c.b16 %v454, %v453
        %v472 = vpack.c.b16 %v456, %v455
        %489 = vst.msk [vmem:[%s328 + $0x8] sm:$0xff] %vm278, %v457
        %490 = vst.msk [vmem:[%s328 + $0x20] sm:$0xff] %vm278, %v458
        %491 = vst.msk [vmem:[%s328 + $0x38] sm:$0xff] %vm278, %v459
        %492 = vst.msk [vmem:[%s328 + $0x50] sm:$0xff] %vm278, %v460
        %493 = vst.msk [vmem:[%s328 + $0x68] sm:$0xff] %vm278, %v461
        %494 = vst.msk [vmem:[%s328 + $0x80] sm:$0xff] %vm278, %v462
        %495 = vst.msk [vmem:[%s328 + $0x98] sm:$0xff] %vm278, %v463
        %496 = vst.msk [vmem:[%s328 + $0xb0] sm:$0xff] %vm278, %v464
        %497 = vst.msk [vmem:[%s328 + $0xc8] sm:$0xff] %vm278, %v465
        %498 = vst.msk [vmem:[%s328 + $0xe0] sm:$0xff] %vm278, %v466
        %499 = vst.msk [vmem:[%s328 + $0xf8] sm:$0xff] %vm278, %v467
        %500 = vst.msk [vmem:[%s328 + $0x110] sm:$0xff] %vm278, %v468
        %501 = vst.msk [vmem:[%s328 + $0x128] sm:$0xff] %vm278, %v469
        %502 = vst.msk [vmem:[%s328 + $0x140] sm:$0xff] %vm278, %v470
        %503 = vst.msk [vmem:[%s328 + $0x158] sm:$0xff] %vm278, %v471
        %504 = vst.msk [vmem:[%s328 + $0x170] sm:$0xff] %vm278, %v472
        %v505 = vunpack.c.l.bf16 %v361
        %v506 = vunpack.c.l.bf16 %v362
        %v507 = vunpack.c.l.bf16 %v363
        %v508 = vunpack.c.l.bf16 %v364
        %v509 = vunpack.c.l.bf16 %v365
        %v510 = vunpack.c.l.bf16 %v366
        %v511 = vunpack.c.l.bf16 %v367
        %v512 = vunpack.c.l.bf16 %v368
        %v513 = vunpack.c.l.bf16 %v369
        %v514 = vunpack.c.l.bf16 %v370
        %v515 = vunpack.c.l.bf16 %v371
        %v516 = vunpack.c.l.bf16 %v372
        %v517 = vunpack.c.l.bf16 %v373
        %v518 = vunpack.c.l.bf16 %v374
        %v519 = vunpack.c.l.bf16 %v375
        %v520 = vunpack.c.l.bf16 %v376
        %v521 = vunpack.c.l.bf16 %v377
        %v522 = vunpack.c.l.bf16 %v378
        %v523 = vunpack.c.l.bf16 %v379
        %v524 = vunpack.c.l.bf16 %v380
        %v525 = vunpack.c.l.bf16 %v381
        %v526 = vunpack.c.l.bf16 %v382
        %v527 = vunpack.c.l.bf16 %v383
        %v528 = vunpack.c.l.bf16 %v384
        %v529 = vunpack.c.l.bf16 %v385
        %v530 = vunpack.c.l.bf16 %v386
        %v531 = vunpack.c.l.bf16 %v387
        %v532 = vunpack.c.l.bf16 %v388
        %v533 = vunpack.c.l.bf16 %v389
        %v534 = vunpack.c.l.bf16 %v390
        %v535 = vunpack.c.l.bf16 %v391
        %v536 = vunpack.c.l.bf16 %v392
        %v537 = vsel %vm278, %v505, 0.0
        %v538 = vsel %vm278, %v506, 0.0
        %v539 = vadd.f32 %v537, %v538
        %v540 = vsel %vm278, %v507, 0.0
        %v541 = vadd.f32 %v539, %v540
        %v542 = vsel %vm278, %v508, 0.0
        %v543 = vadd.f32 %v541, %v542
        %v544 = vsel %vm278, %v509, 0.0
        %v545 = vadd.f32 %v543, %v544
        %v546 = vsel %vm278, %v510, 0.0
        %v547 = vadd.f32 %v545, %v546
        %v548 = vsel %vm278, %v511, 0.0
        %v549 = vadd.f32 %v547, %v548
        %v550 = vsel %vm278, %v512, 0.0
        %v551 = vadd.f32 %v549, %v550
        %v552 = vsel %vm278, %v513, 0.0
        %v553 = vadd.f32 %v551, %v552
        %v554 = vsel %vm278, %v514, 0.0
        %v555 = vadd.f32 %v553, %v554
        %v556 = vsel %vm278, %v515, 0.0
        %v557 = vadd.f32 %v555, %v556
        %v558 = vsel %vm278, %v516, 0.0
        %v559 = vadd.f32 %v557, %v558
        %v560 = vsel %vm278, %v517, 0.0
        %v561 = vadd.f32 %v559, %v560
        %v562 = vsel %vm278, %v518, 0.0
        %v563 = vadd.f32 %v561, %v562
        %v564 = vsel %vm278, %v519, 0.0
        %v565 = vadd.f32 %v563, %v564
        %v566 = vsel %vm278, %v520, 0.0
        %v567 = vadd.f32 %v565, %v566
        %v568 = vsel %vm278, %v521, 0.0
        %v569 = vadd.f32 %v567, %v568
        %v570 = vsel %vm278, %v522, 0.0
        %v571 = vadd.f32 %v569, %v570
        %v572 = vsel %vm278, %v523, 0.0
        %v573 = vadd.f32 %v571, %v572
        %v574 = vsel %vm278, %v524, 0.0
        %v575 = vadd.f32 %v573, %v574
        %v576 = vsel %vm278, %v525, 0.0
        %v577 = vadd.f32 %v575, %v576
        %v578 = vsel %vm278, %v526, 0.0
        %v579 = vadd.f32 %v577, %v578
        %v580 = vsel %vm278, %v527, 0.0
        %v581 = vadd.f32 %v579, %v580
        %v582 = vsel %vm278, %v528, 0.0
        %v583 = vadd.f32 %v581, %v582
        %v584 = vsel %vm278, %v529, 0.0
        %v585 = vadd.f32 %v583, %v584
        %v586 = vsel %vm278, %v530, 0.0
        %v587 = vadd.f32 %v585, %v586
        %v588 = vsel %vm278, %v531, 0.0
        %v589 = vadd.f32 %v587, %v588
        %v590 = vsel %vm278, %v532, 0.0
        %v591 = vadd.f32 %v589, %v590
        %v592 = vsel %vm278, %v533, 0.0
        %v593 = vadd.f32 %v591, %v592
        %v594 = vsel %vm278, %v534, 0.0
        %v595 = vadd.f32 %v593, %v594
        %v596 = vsel %vm278, %v535, 0.0
        %v597 = vadd.f32 %v595, %v596
        %v598 = vsel %vm278, %v536, 0.0
        %v599 = vadd.f32 %v597, %v598
        %v600 = vrot.slane %v599, 4
        %v601 = vadd.f32 %v599, %v600
        %v602 = vrot.slane %v601, 2
        %v603 = vadd.f32 %v601, %v602
        %v604 = vrot.slane %v603, 1
        %v605 = vadd.f32 %v603, %v604
        %v606 = vrcp.pop 256.0
        %v607 = vmul.f32 %v605, %v606
        %v608 = vpack.c.bf16 %v607, %v607
        %v609 = vld [vmem:[%s5] sm:$0xf]
        %v610 = vld [vmem:[%s5 + $0x4] sm:$0xf]
        %v611 = vld [vmem:[%s5 + $0x8] sm:$0xf]
        %v612 = vld [vmem:[%s5 + $0xc] sm:$0xf]
        %v613 = vld [vmem:[%s5 + $0x10] sm:$0xf]
        %v614 = vld [vmem:[%s5 + $0x14] sm:$0xf]
        %v615 = vld [vmem:[%s5 + $0x18] sm:$0xf]
        %v616 = vld [vmem:[%s5 + $0x1c] sm:$0xf]
        %v617 = vld [vmem:[%s1] sm:$0xf]
        %v618 = vld [vmem:[%s1 + $0x4] sm:$0xf]
        %v619 = vld [vmem:[%s1 + $0x8] sm:$0xf]
        %v620 = vld [vmem:[%s1 + $0xc] sm:$0xf]
        %v621 = vld [vmem:[%s1 + $0x10] sm:$0xf]
        %v622 = vld [vmem:[%s1 + $0x14] sm:$0xf]
        %v623 = vld [vmem:[%s1 + $0x18] sm:$0xf]
        %v624 = vld [vmem:[%s1 + $0x1c] sm:$0xf]
        %s625 = scalar_lea.vmem [#allocation2], 120
        %v626 = vld [vmem:[%s625] sm:$0xc0]
        %v627 = vld [vmem:[%s625 + $0x8] sm:$0x7f]
        %v628 = vld [vmem:[%s625 + $0x18] sm:$0xc0]
        %v629 = vld [vmem:[%s625 + $0x20] sm:$0x7f]
        %v630 = vld [vmem:[%s625 + $0x30] sm:$0xc0]
        %v631 = vld [vmem:[%s625 + $0x38] sm:$0x7f]
        %v632 = vld [vmem:[%s625 + $0x48] sm:$0xc0]
        %v633 = vld [vmem:[%s625 + $0x50] sm:$0x7f]
        %v634 = vld [vmem:[%s625 + $0x60] sm:$0xc0]
        %v635 = vld [vmem:[%s625 + $0x68] sm:$0x7f]
        %v636 = vld [vmem:[%s625 + $0x78] sm:$0xc0]
        %v637 = vld [vmem:[%s625 + $0x80] sm:$0x7f]
        %v638 = vld [vmem:[%s625 + $0x90] sm:$0xc0]
        %v639 = vld [vmem:[%s625 + $0x98] sm:$0x7f]
        %v640 = vld [vmem:[%s625 + $0xa8] sm:$0xc0]
        %v641 = vld [vmem:[%s625 + $0xb0] sm:$0x7f]
        %v642 = vld [vmem:[%s625 + $0xc0] sm:$0xc0]
        %v643 = vld [vmem:[%s625 + $0xc8] sm:$0x7f]
        %v644 = vld [vmem:[%s625 + $0xd8] sm:$0xc0]
        %v645 = vld [vmem:[%s625 + $0xe0] sm:$0x7f]
        %v646 = vld [vmem:[%s625 + $0xf0] sm:$0xc0]
        %v647 = vld [vmem:[%s625 + $0xf8] sm:$0x7f]
        %v648 = vld [vmem:[%s625 + $0x108] sm:$0xc0]
        %v649 = vld [vmem:[%s625 + $0x110] sm:$0x7f]
        %v650 = vld [vmem:[%s625 + $0x120] sm:$0xc0]
        %v651 = vld [vmem:[%s625 + $0x128] sm:$0x7f]
        %v652 = vld [vmem:[%s625 + $0x138] sm:$0xc0]
        %v653 = vld [vmem:[%s625 + $0x140] sm:$0x7f]
        %v654 = vld [vmem:[%s625 + $0x150] sm:$0xc0]
        %v655 = vld [vmem:[%s625 + $0x158] sm:$0x7f]
        %v656 = vld [vmem:[%s625 + $0x168] sm:$0xc0]
        %v657 = vld [vmem:[%s625 + $0x170] sm:$0x7f]
        %vm658 = vsmask.f32 1280
        %v660 = vshrl.u32 %v626, 16
        %v662 = vrot.slane %v660, 6
        %v663 = vshll.u32 %v626, 16
        %v665 = vrot.slane %v663, 7
        %v666 = vor.u32 %v662, %v665
        %v668 = vshrl.u32 %v627, 16
        %v670 = vrot.slane %v668, 6
        %v671 = vshll.u32 %v627, 16
        %v673 = vrot.slane %v671, 7
        %v674 = vor.u32 %v670, %v673
        %v675 = vsel %vm658, %v666, %v674
        %v677 = vshrl.u32 %v628, 16
        %v679 = vrot.slane %v677, 6
        %v680 = vshll.u32 %v628, 16
        %v682 = vrot.slane %v680, 7
        %v683 = vor.u32 %v679, %v682
        %v685 = vshrl.u32 %v629, 16
        %v687 = vrot.slane %v685, 6
        %v688 = vshll.u32 %v629, 16
        %v690 = vrot.slane %v688, 7
        %v691 = vor.u32 %v687, %v690
        %v692 = vsel %vm658, %v683, %v691
        %v694 = vshrl.u32 %v630, 16
        %v696 = vrot.slane %v694, 6
        %v697 = vshll.u32 %v630, 16
        %v699 = vrot.slane %v697, 7
        %v700 = vor.u32 %v696, %v699
        %v702 = vshrl.u32 %v631, 16
        %v704 = vrot.slane %v702, 6
        %v705 = vshll.u32 %v631, 16
        %v707 = vrot.slane %v705, 7
        %v708 = vor.u32 %v704, %v707
        %v709 = vsel %vm658, %v700, %v708
        %v711 = vshrl.u32 %v632, 16
        %v713 = vrot.slane %v711, 6
        %v714 = vshll.u32 %v632, 16
        %v716 = vrot.slane %v714, 7
        %v717 = vor.u32 %v713, %v716
        %v719 = vshrl.u32 %v633, 16
        %v721 = vrot.slane %v719, 6
        %v722 = vshll.u32 %v633, 16
        %v724 = vrot.slane %v722, 7
        %v725 = vor.u32 %v721, %v724
        %v726 = vsel %vm658, %v717, %v725
        %v728 = vshrl.u32 %v634, 16
        %v730 = vrot.slane %v728, 6
        %v731 = vshll.u32 %v634, 16
        %v733 = vrot.slane %v731, 7
        %v734 = vor.u32 %v730, %v733
        %v736 = vshrl.u32 %v635, 16
        %v738 = vrot.slane %v736, 6
        %v739 = vshll.u32 %v635, 16
        %v741 = vrot.slane %v739, 7
        %v742 = vor.u32 %v738, %v741
        %v743 = vsel %vm658, %v734, %v742
        %v745 = vshrl.u32 %v636, 16
        %v747 = vrot.slane %v745, 6
        %v748 = vshll.u32 %v636, 16
        %v750 = vrot.slane %v748, 7
        %v751 = vor.u32 %v747, %v750
        %v753 = vshrl.u32 %v637, 16
        %v755 = vrot.slane %v753, 6
        %v756 = vshll.u32 %v637, 16
        %v758 = vrot.slane %v756, 7
        %v759 = vor.u32 %v755, %v758
        %v760 = vsel %vm658, %v751, %v759
        %v762 = vshrl.u32 %v638, 16
        %v764 = vrot.slane %v762, 6
        %v765 = vshll.u32 %v638, 16
        %v767 = vrot.slane %v765, 7
        %v768 = vor.u32 %v764, %v767
        %v770 = vshrl.u32 %v639, 16
        %v772 = vrot.slane %v770, 6
        %v773 = vshll.u32 %v639, 16
        %v775 = vrot.slane %v773, 7
        %v776 = vor.u32 %v772, %v775
        %v777 = vsel %vm658, %v768, %v776
        %v779 = vshrl.u32 %v640, 16
        %v781 = vrot.slane %v779, 6
        %v782 = vshll.u32 %v640, 16
        %v784 = vrot.slane %v782, 7
        %v785 = vor.u32 %v781, %v784
        %v787 = vshrl.u32 %v641, 16
        %v789 = vrot.slane %v787, 6
        %v790 = vshll.u32 %v641, 16
        %v792 = vrot.slane %v790, 7
        %v793 = vor.u32 %v789, %v792
        %v794 = vsel %vm658, %v785, %v793
        %v796 = vshrl.u32 %v642, 16
        %v798 = vrot.slane %v796, 6
        %v799 = vshll.u32 %v642, 16
        %v801 = vrot.slane %v799, 7
        %v802 = vor.u32 %v798, %v801
        %v804 = vshrl.u32 %v643, 16
        %v806 = vrot.slane %v804, 6
        %v807 = vshll.u32 %v643, 16
        %v809 = vrot.slane %v807, 7
        %v810 = vor.u32 %v806, %v809
        %v811 = vsel %vm658, %v802, %v810
        %v813 = vshrl.u32 %v644, 16
        %v815 = vrot.slane %v813, 6
        %v816 = vshll.u32 %v644, 16
        %v818 = vrot.slane %v816, 7
        %v819 = vor.u32 %v815, %v818
        %v821 = vshrl.u32 %v645, 16
        %v823 = vrot.slane %v821, 6
        %v824 = vshll.u32 %v645, 16
        %v826 = vrot.slane %v824, 7
        %v827 = vor.u32 %v823, %v826
        %v828 = vsel %vm658, %v819, %v827
        %v830 = vshrl.u32 %v646, 16
        %v832 = vrot.slane %v830, 6
        %v833 = vshll.u32 %v646, 16
        %v835 = vrot.slane %v833, 7
        %v836 = vor.u32 %v832, %v835
        %v838 = vshrl.u32 %v647, 16
        %v840 = vrot.slane %v838, 6
        %v841 = vshll.u32 %v647, 16
        %v843 = vrot.slane %v841, 7
        %v844 = vor.u32 %v840, %v843
        %v845 = vsel %vm658, %v836, %v844
        %v847 = vshrl.u32 %v648, 16
        %v849 = vrot.slane %v847, 6
        %v850 = vshll.u32 %v648, 16
        %v852 = vrot.slane %v850, 7
        %v853 = vor.u32 %v849, %v852
        %v855 = vshrl.u32 %v649, 16
        %v857 = vrot.slane %v855, 6
        %v858 = vshll.u32 %v649, 16
        %v860 = vrot.slane %v858, 7
        %v861 = vor.u32 %v857, %v860
        %v862 = vsel %vm658, %v853, %v861
        %v864 = vshrl.u32 %v650, 16
        %v866 = vrot.slane %v864, 6
        %v867 = vshll.u32 %v650, 16
        %v869 = vrot.slane %v867, 7
        %v870 = vor.u32 %v866, %v869
        %v872 = vshrl.u32 %v651, 16
        %v874 = vrot.slane %v872, 6
        %v875 = vshll.u32 %v651, 16
        %v877 = vrot.slane %v875, 7
        %v878 = vor.u32 %v874, %v877
        %v879 = vsel %vm658, %v870, %v878
        %v881 = vshrl.u32 %v652, 16
        %v883 = vrot.slane %v881, 6
        %v884 = vshll.u32 %v652, 16
        %v886 = vrot.slane %v884, 7
        %v887 = vor.u32 %v883, %v886
        %v889 = vshrl.u32 %v653, 16
        %v891 = vrot.slane %v889, 6
        %v892 = vshll.u32 %v653, 16
        %v894 = vrot.slane %v892, 7
        %v895 = vor.u32 %v891, %v894
        %v896 = vsel %vm658, %v887, %v895
        %v898 = vshrl.u32 %v654, 16
        %v900 = vrot.slane %v898, 6
        %v901 = vshll.u32 %v654, 16
        %v903 = vrot.slane %v901, 7
        %v904 = vor.u32 %v900, %v903
        %v906 = vshrl.u32 %v655, 16
        %v908 = vrot.slane %v906, 6
        %v909 = vshll.u32 %v655, 16
        %v911 = vrot.slane %v909, 7
        %v912 = vor.u32 %v908, %v911
        %v913 = vsel %vm658, %v904, %v912
        %v915 = vshrl.u32 %v656, 16
        %v917 = vrot.slane %v915, 6
        %v918 = vshll.u32 %v656, 16
        %v920 = vrot.slane %v918, 7
        %v921 = vor.u32 %v917, %v920
        %v923 = vshrl.u32 %v657, 16
        %v925 = vrot.slane %v923, 6
        %v926 = vshll.u32 %v657, 16
        %v928 = vrot.slane %v926, 7
        %v929 = vor.u32 %v925, %v928
        %v930 = vsel %vm658, %v921, %v929
        %v931 = vld [vmem:[%s625 + $0x8] sm:$0xff]
        %v932 = vld [vmem:[%s625 + $0x20] sm:$0xff]
        %v933 = vld [vmem:[%s625 + $0x38] sm:$0xff]
        %v934 = vld [vmem:[%s625 + $0x50] sm:$0xff]
        %v935 = vld [vmem:[%s625 + $0x68] sm:$0xff]
        %v936 = vld [vmem:[%s625 + $0x80] sm:$0xff]
        %v937 = vld [vmem:[%s625 + $0x98] sm:$0xff]
        %v938 = vld [vmem:[%s625 + $0xb0] sm:$0xff]
        %v939 = vld [vmem:[%s625 + $0xc8] sm:$0xff]
        %v940 = vld [vmem:[%s625 + $0xe0] sm:$0xff]
        %v941 = vld [vmem:[%s625 + $0xf8] sm:$0xff]
        %v942 = vld [vmem:[%s625 + $0x110] sm:$0xff]
        %v943 = vld [vmem:[%s625 + $0x128] sm:$0xff]
        %v944 = vld [vmem:[%s625 + $0x140] sm:$0xff]
        %v945 = vld [vmem:[%s625 + $0x158] sm:$0xff]
        %v946 = vld [vmem:[%s625 + $0x170] sm:$0xff]
        %v947 = vld [vmem:[%s625 + $0x8] sm:$0xfe]
        %v948 = vld [vmem:[%s625 + $0x10] sm:$0x3]
        %v949 = vld [vmem:[%s625 + $0x20] sm:$0xfe]
        %v950 = vld [vmem:[%s625 + $0x28] sm:$0x3]
        %v951 = vld [vmem:[%s625 + $0x38] sm:$0xfe]
        %v952 = vld [vmem:[%s625 + $0x40] sm:$0x3]
        %v953 = vld [vmem:[%s625 + $0x50] sm:$0xfe]
        %v954 = vld [vmem:[%s625 + $0x58] sm:$0x3]
        %v955 = vld [vmem:[%s625 + $0x68] sm:$0xfe]
        %v956 = vld [vmem:[%s625 + $0x70] sm:$0x3]
        %v957 = vld [vmem:[%s625 + $0x80] sm:$0xfe]
        %v958 = vld [vmem:[%s625 + $0x88] sm:$0x3]
        %v959 = vld [vmem:[%s625 + $0x98] sm:$0xfe]
        %v960 = vld [vmem:[%s625 + $0xa0] sm:$0x3]
        %v961 = vld [vmem:[%s625 + $0xb0] sm:$0xfe]
        %v962 = vld [vmem:[%s625 + $0xb8] sm:$0x3]
        %v963 = vld [vmem:[%s625 + $0xc8] sm:$0xfe]
        %v964 = vld [vmem:[%s625 + $0xd0] sm:$0x3]
        %v965 = vld [vmem:[%s625 + $0xe0] sm:$0xfe]
        %v966 = vld [vmem:[%s625 + $0xe8] sm:$0x3]
        %v967 = vld [vmem:[%s625 + $0xf8] sm:$0xfe]
        %v968 = vld [vmem:[%s625 + $0x100] sm:$0x3]
        %v969 = vld [vmem:[%s625 + $0x110] sm:$0xfe]
        %v970 = vld [vmem:[%s625 + $0x118] sm:$0x3]
        %v971 = vld [vmem:[%s625 + $0x128] sm:$0xfe]
        %v972 = vld [vmem:[%s625 + $0x130] sm:$0x3]
        %v973 = vld [vmem:[%s625 + $0x140] sm:$0xfe]
        %v974 = vld [vmem:[%s625 + $0x148] sm:$0x3]
        %v975 = vld [vmem:[%s625 + $0x158] sm:$0xfe]
        %v976 = vld [vmem:[%s625 + $0x160] sm:$0x3]
        %v977 = vld [vmem:[%s625 + $0x170] sm:$0xfe]
        %v978 = vld [vmem:[%s625 + $0x178] sm:$0x3]
        %vm979 = vsmask.f32 6400
        %v981 = vshrl.u32 %v947, 16
        %v983 = vrot.slane %v981, 1
        %v984 = vshll.u32 %v947, 16
        %v986 = vrot.slane %v984, 2
        %v987 = vor.u32 %v983, %v986
        %v989 = vshrl.u32 %v948, 16
        %v991 = vrot.slane %v989, 1
        %v992 = vshll.u32 %v948, 16
        %v994 = vrot.slane %v992, 2
        %v995 = vor.u32 %v991, %v994
        %v996 = vsel %vm979, %v987, %v995
        %v998 = vshrl.u32 %v949, 16
        %v1000 = vrot.slane %v998, 1
        %v1001 = vshll.u32 %v949, 16
        %v1003 = vrot.slane %v1001, 2
        %v1004 = vor.u32 %v1000, %v1003
        %v1006 = vshrl.u32 %v950, 16
        %v1008 = vrot.slane %v1006, 1
        %v1009 = vshll.u32 %v950, 16
        %v1011 = vrot.slane %v1009, 2
        %v1012 = vor.u32 %v1008, %v1011
        %v1013 = vsel %vm979, %v1004, %v1012
        %v1015 = vshrl.u32 %v951, 16
        %v1017 = vrot.slane %v1015, 1
        %v1018 = vshll.u32 %v951, 16
        %v1020 = vrot.slane %v1018, 2
        %v1021 = vor.u32 %v1017, %v1020
        %v1023 = vshrl.u32 %v952, 16
        %v1025 = vrot.slane %v1023, 1
        %v1026 = vshll.u32 %v952, 16
        %v1028 = vrot.slane %v1026, 2
        %v1029 = vor.u32 %v1025, %v1028
        %v1030 = vsel %vm979, %v1021, %v1029
        %v1032 = vshrl.u32 %v953, 16
        %v1034 = vrot.slane %v1032, 1
        %v1035 = vshll.u32 %v953, 16
        %v1037 = vrot.slane %v1035, 2
        %v1038 = vor.u32 %v1034, %v1037
        %v1040 = vshrl.u32 %v954, 16
        %v1042 = vrot.slane %v1040, 1
        %v1043 = vshll.u32 %v954, 16
        %v1045 = vrot.slane %v1043, 2
        %v1046 = vor.u32 %v1042, %v1045
        %v1047 = vsel %vm979, %v1038, %v1046
        %v1049 = vshrl.u32 %v955, 16
        %v1051 = vrot.slane %v1049, 1
        %v1052 = vshll.u32 %v955, 16
        %v1054 = vrot.slane %v1052, 2
        %v1055 = vor.u32 %v1051, %v1054
        %v1057 = vshrl.u32 %v956, 16
        %v1059 = vrot.slane %v1057, 1
        %v1060 = vshll.u32 %v956, 16
        %v1062 = vrot.slane %v1060, 2
        %v1063 = vor.u32 %v1059, %v1062
        %v1064 = vsel %vm979, %v1055, %v1063
        %v1066 = vshrl.u32 %v957, 16
        %v1068 = vrot.slane %v1066, 1
        %v1069 = vshll.u32 %v957, 16
        %v1071 = vrot.slane %v1069, 2
        %v1072 = vor.u32 %v1068, %v1071
        %v1074 = vshrl.u32 %v958, 16
        %v1076 = vrot.slane %v1074, 1
        %v1077 = vshll.u32 %v958, 16
        %v1079 = vrot.slane %v1077, 2
        %v1080 = vor.u32 %v1076, %v1079
        %v1081 = vsel %vm979, %v1072, %v1080
        %v1083 = vshrl.u32 %v959, 16
        %v1085 = vrot.slane %v1083, 1
        %v1086 = vshll.u32 %v959, 16
        %v1088 = vrot.slane %v1086, 2
        %v1089 = vor.u32 %v1085, %v1088
        %v1091 = vshrl.u32 %v960, 16
        %v1093 = vrot.slane %v1091, 1
        %v1094 = vshll.u32 %v960, 16
        %v1096 = vrot.slane %v1094, 2
        %v1097 = vor.u32 %v1093, %v1096
        %v1098 = vsel %vm979, %v1089, %v1097
        %v1100 = vshrl.u32 %v961, 16
        %v1102 = vrot.slane %v1100, 1
        %v1103 = vshll.u32 %v961, 16
        %v1105 = vrot.slane %v1103, 2
        %v1106 = vor.u32 %v1102, %v1105
        %v1108 = vshrl.u32 %v962, 16
        %v1110 = vrot.slane %v1108, 1
        %v1111 = vshll.u32 %v962, 16
        %v1113 = vrot.slane %v1111, 2
        %v1114 = vor.u32 %v1110, %v1113
        %v1115 = vsel %vm979, %v1106, %v1114
        %v1117 = vshrl.u32 %v963, 16
        %v1119 = vrot.slane %v1117, 1
        %v1120 = vshll.u32 %v963, 16
        %v1122 = vrot.slane %v1120, 2
        %v1123 = vor.u32 %v1119, %v1122
        %v1125 = vshrl.u32 %v964, 16
        %v1127 = vrot.slane %v1125, 1
        %v1128 = vshll.u32 %v964, 16
        %v1130 = vrot.slane %v1128, 2
        %v1131 = vor.u32 %v1127, %v1130
        %v1132 = vsel %vm979, %v1123, %v1131
        %v1134 = vshrl.u32 %v965, 16
        %v1136 = vrot.slane %v1134, 1
        %v1137 = vshll.u32 %v965, 16
        %v1139 = vrot.slane %v1137, 2
        %v1140 = vor.u32 %v1136, %v1139
        %v1142 = vshrl.u32 %v966, 16
        %v1144 = vrot.slane %v1142, 1
        %v1145 = vshll.u32 %v966, 16
        %v1147 = vrot.slane %v1145, 2
        %v1148 = vor.u32 %v1144, %v1147
        %v1149 = vsel %vm979, %v1140, %v1148
        %v1151 = vshrl.u32 %v967, 16
        %v1153 = vrot.slane %v1151, 1
        %v1154 = vshll.u32 %v967, 16
        %v1156 = vrot.slane %v1154, 2
        %v1157 = vor.u32 %v1153, %v1156
        %v1159 = vshrl.u32 %v968, 16
        %v1161 = vrot.slane %v1159, 1
        %v1162 = vshll.u32 %v968, 16
        %v1164 = vrot.slane %v1162, 2
        %v1165 = vor.u32 %v1161, %v1164
        %v1166 = vsel %vm979, %v1157, %v1165
        %v1168 = vshrl.u32 %v969, 16
        %v1170 = vrot.slane %v1168, 1
        %v1171 = vshll.u32 %v969, 16
        %v1173 = vrot.slane %v1171, 2
        %v1174 = vor.u32 %v1170, %v1173
        %v1176 = vshrl.u32 %v970, 16
        %v1178 = vrot.slane %v1176, 1
        %v1179 = vshll.u32 %v970, 16
        %v1181 = vrot.slane %v1179, 2
        %v1182 = vor.u32 %v1178, %v1181
        %v1183 = vsel %vm979, %v1174, %v1182
        %v1185 = vshrl.u32 %v971, 16
        %v1187 = vrot.slane %v1185, 1
        %v1188 = vshll.u32 %v971, 16
        %v1190 = vrot.slane %v1188, 2
        %v1191 = vor.u32 %v1187, %v1190
        %v1193 = vshrl.u32 %v972, 16
        %v1195 = vrot.slane %v1193, 1
        %v1196 = vshll.u32 %v972, 16
        %v1198 = vrot.slane %v1196, 2
        %v1199 = vor.u32 %v1195, %v1198
        %v1200 = vsel %vm979, %v1191, %v1199
        %v1202 = vshrl.u32 %v973, 16
        %v1204 = vrot.slane %v1202, 1
        %v1205 = vshll.u32 %v973, 16
        %v1207 = vrot.slane %v1205, 2
        %v1208 = vor.u32 %v1204, %v1207
        %v1210 = vshrl.u32 %v974, 16
        %v1212 = vrot.slane %v1210, 1
        %v1213 = vshll.u32 %v974, 16
        %v1215 = vrot.slane %v1213, 2
        %v1216 = vor.u32 %v1212, %v1215
        %v1217 = vsel %vm979, %v1208, %v1216
        %v1219 = vshrl.u32 %v975, 16
        %v1221 = vrot.slane %v1219, 1
        %v1222 = vshll.u32 %v975, 16
        %v1224 = vrot.slane %v1222, 2
        %v1225 = vor.u32 %v1221, %v1224
        %v1227 = vshrl.u32 %v976, 16
        %v1229 = vrot.slane %v1227, 1
        %v1230 = vshll.u32 %v976, 16
        %v1232 = vrot.slane %v1230, 2
        %v1233 = vor.u32 %v1229, %v1232
        %v1234 = vsel %vm979, %v1225, %v1233
        %v1236 = vshrl.u32 %v977, 16
        %v1238 = vrot.slane %v1236, 1
        %v1239 = vshll.u32 %v977, 16
        %v1241 = vrot.slane %v1239, 2
        %v1242 = vor.u32 %v1238, %v1241
        %v1244 = vshrl.u32 %v978, 16
        %v1246 = vrot.slane %v1244, 1
        %v1247 = vshll.u32 %v978, 16
        %v1249 = vrot.slane %v1247, 2
        %v1250 = vor.u32 %v1246, %v1249
        %v1251 = vsel %vm979, %v1242, %v1250
        %v1252 = vld [vmem:[%s328] sm:$0xc0]
        %v1253 = vld [vmem:[%s328 + $0x8] sm:$0x7f]
        %v1254 = vld [vmem:[%s328 + $0x18] sm:$0xc0]
        %v1255 = vld [vmem:[%s328 + $0x20] sm:$0x7f]
        %v1256 = vld [vmem:[%s328 + $0x30] sm:$0xc0]
        %v1257 = vld [vmem:[%s328 + $0x38] sm:$0x7f]
        %v1258 = vld [vmem:[%s328 + $0x48] sm:$0xc0]
        %v1259 = vld [vmem:[%s328 + $0x50] sm:$0x7f]
        %v1260 = vld [vmem:[%s328 + $0x60] sm:$0xc0]
        %v1261 = vld [vmem:[%s328 + $0x68] sm:$0x7f]
        %v1262 = vld [vmem:[%s328 + $0x78] sm:$0xc0]
        %v1263 = vld [vmem:[%s328 + $0x80] sm:$0x7f]
        %v1264 = vld [vmem:[%s328 + $0x90] sm:$0xc0]
        %v1265 = vld [vmem:[%s328 + $0x98] sm:$0x7f]
        %v1266 = vld [vmem:[%s328 + $0xa8] sm:$0xc0]
        %v1267 = vld [vmem:[%s328 + $0xb0] sm:$0x7f]
        %v1268 = vld [vmem:[%s328 + $0xc0] sm:$0xc0]
        %v1269 = vld [vmem:[%s328 + $0xc8] sm:$0x7f]
        %v1270 = vld [vmem:[%s328 + $0xd8] sm:$0xc0]
        %v1271 = vld [vmem:[%s328 + $0xe0] sm:$0x7f]
        %v1272 = vld [vmem:[%s328 + $0xf0] sm:$0xc0]
        %v1273 = vld [vmem:[%s328 + $0xf8] sm:$0x7f]
        %v1274 = vld [vmem:[%s328 + $0x108] sm:$0xc0]
        %v1275 = vld [vmem:[%s328 + $0x110] sm:$0x7f]
        %v1276 = vld [vmem:[%s328 + $0x120] sm:$0xc0]
        %v1277 = vld [vmem:[%s328 + $0x128] sm:$0x7f]
        %v1278 = vld [vmem:[%s328 + $0x138] sm:$0xc0]
        %v1279 = vld [vmem:[%s328 + $0x140] sm:$0x7f]
        %v1280 = vld [vmem:[%s328 + $0x150] sm:$0xc0]
        %v1281 = vld [vmem:[%s328 + $0x158] sm:$0x7f]
        %v1282 = vld [vmem:[%s328 + $0x168] sm:$0xc0]
        %v1283 = vld [vmem:[%s328 + $0x170] sm:$0x7f]
        %v1285 = vshrl.u32 %v1252, 16
        %v1287 = vrot.slane %v1285, 6
        %v1288 = vshll.u32 %v1252, 16
        %v1290 = vrot.slane %v1288, 7
        %v1291 = vor.u32 %v1287, %v1290
        %v1293 = vshrl.u32 %v1253, 16
        %v1295 = vrot.slane %v1293, 6
        %v1296 = vshll.u32 %v1253, 16
        %v1298 = vrot.slane %v1296, 7
        %v1299 = vor.u32 %v1295, %v1298
        %v1300 = vsel %vm658, %v1291, %v1299
        %v1302 = vshrl.u32 %v1254, 16
        %v1304 = vrot.slane %v1302, 6
        %v1305 = vshll.u32 %v1254, 16
        %v1307 = vrot.slane %v1305, 7
        %v1308 = vor.u32 %v1304, %v1307
        %v1310 = vshrl.u32 %v1255, 16
        %v1312 = vrot.slane %v1310, 6
        %v1313 = vshll.u32 %v1255, 16
        %v1315 = vrot.slane %v1313, 7
        %v1316 = vor.u32 %v1312, %v1315
        %v1317 = vsel %vm658, %v1308, %v1316
        %v1319 = vshrl.u32 %v1256, 16
        %v1321 = vrot.slane %v1319, 6
        %v1322 = vshll.u32 %v1256, 16
        %v1324 = vrot.slane %v1322, 7
        %v1325 = vor.u32 %v1321, %v1324
        %v1327 = vshrl.u32 %v1257, 16
        %v1329 = vrot.slane %v1327, 6
        %v1330 = vshll.u32 %v1257, 16
        %v1332 = vrot.slane %v1330, 7
        %v1333 = vor.u32 %v1329, %v1332
        %v1334 = vsel %vm658, %v1325, %v1333
        %v1336 = vshrl.u32 %v1258, 16
        %v1338 = vrot.slane %v1336, 6
        %v1339 = vshll.u32 %v1258, 16
        %v1341 = vrot.slane %v1339, 7
        %v1342 = vor.u32 %v1338, %v1341
        %v1344 = vshrl.u32 %v1259, 16
        %v1346 = vrot.slane %v1344, 6
        %v1347 = vshll.u32 %v1259, 16
        %v1349 = vrot.slane %v1347, 7
        %v1350 = vor.u32 %v1346, %v1349
        %v1351 = vsel %vm658, %v1342, %v1350
        %v1353 = vshrl.u32 %v1260, 16
        %v1355 = vrot.slane %v1353, 6
        %v1356 = vshll.u32 %v1260, 16
        %v1358 = vrot.slane %v1356, 7
        %v1359 = vor.u32 %v1355, %v1358
        %v1361 = vshrl.u32 %v1261, 16
        %v1363 = vrot.slane %v1361, 6
        %v1364 = vshll.u32 %v1261, 16
        %v1366 = vrot.slane %v1364, 7
        %v1367 = vor.u32 %v1363, %v1366
        %v1368 = vsel %vm658, %v1359, %v1367
        %v1370 = vshrl.u32 %v1262, 16
        %v1372 = vrot.slane %v1370, 6
        %v1373 = vshll.u32 %v1262, 16
        %v1375 = vrot.slane %v1373, 7
        %v1376 = vor.u32 %v1372, %v1375
        %v1378 = vshrl.u32 %v1263, 16
        %v1380 = vrot.slane %v1378, 6
        %v1381 = vshll.u32 %v1263, 16
        %v1383 = vrot.slane %v1381, 7
        %v1384 = vor.u32 %v1380, %v1383
        %v1385 = vsel %vm658, %v1376, %v1384
        %v1387 = vshrl.u32 %v1264, 16
        %v1389 = vrot.slane %v1387, 6
        %v1390 = vshll.u32 %v1264, 16
        %v1392 = vrot.slane %v1390, 7
        %v1393 = vor.u32 %v1389, %v1392
        %v1395 = vshrl.u32 %v1265, 16
        %v1397 = vrot.slane %v1395, 6
        %v1398 = vshll.u32 %v1265, 16
        %v1400 = vrot.slane %v1398, 7
        %v1401 = vor.u32 %v1397, %v1400
        %v1402 = vsel %vm658, %v1393, %v1401
        %v1404 = vshrl.u32 %v1266, 16
        %v1406 = vrot.slane %v1404, 6
        %v1407 = vshll.u32 %v1266, 16
        %v1409 = vrot.slane %v1407, 7
        %v1410 = vor.u32 %v1406, %v1409
        %v1412 = vshrl.u32 %v1267, 16
        %v1414 = vrot.slane %v1412, 6
        %v1415 = vshll.u32 %v1267, 16
        %v1417 = vrot.slane %v1415, 7
        %v1418 = vor.u32 %v1414, %v1417
        %v1419 = vsel %vm658, %v1410, %v1418
        %v1421 = vshrl.u32 %v1268, 16
        %v1423 = vrot.slane %v1421, 6
        %v1424 = vshll.u32 %v1268, 16
        %v1426 = vrot.slane %v1424, 7
        %v1427 = vor.u32 %v1423, %v1426
        %v1429 = vshrl.u32 %v1269, 16
        %v1431 = vrot.slane %v1429, 6
        %v1432 = vshll.u32 %v1269, 16
        %v1434 = vrot.slane %v1432, 7
        %v1435 = vor.u32 %v1431, %v1434
        %v1436 = vsel %vm658, %v1427, %v1435
        %v1438 = vshrl.u32 %v1270, 16
        %v1440 = vrot.slane %v1438, 6
        %v1441 = vshll.u32 %v1270, 16
        %v1443 = vrot.slane %v1441, 7
        %v1444 = vor.u32 %v1440, %v1443
        %v1446 = vshrl.u32 %v1271, 16
        %v1448 = vrot.slane %v1446, 6
        %v1449 = vshll.u32 %v1271, 16
        %v1451 = vrot.slane %v1449, 7
        %v1452 = vor.u32 %v1448, %v1451
        %v1453 = vsel %vm658, %v1444, %v1452
        %v1455 = vshrl.u32 %v1272, 16
        %v1457 = vrot.slane %v1455, 6
        %v1458 = vshll.u32 %v1272, 16
        %v1460 = vrot.slane %v1458, 7
        %v1461 = vor.u32 %v1457, %v1460
        %v1463 = vshrl.u32 %v1273, 16
        %v1465 = vrot.slane %v1463, 6
        %v1466 = vshll.u32 %v1273, 16
        %v1468 = vrot.slane %v1466, 7
        %v1469 = vor.u32 %v1465, %v1468
        %v1470 = vsel %vm658, %v1461, %v1469
        %v1472 = vshrl.u32 %v1274, 16
        %v1474 = vrot.slane %v1472, 6
        %v1475 = vshll.u32 %v1274, 16
        %v1477 = vrot.slane %v1475, 7
        %v1478 = vor.u32 %v1474, %v1477
        %v1480 = vshrl.u32 %v1275, 16
        %v1482 = vrot.slane %v1480, 6
        %v1483 = vshll.u32 %v1275, 16
        %v1485 = vrot.slane %v1483, 7
        %v1486 = vor.u32 %v1482, %v1485
        %v1487 = vsel %vm658, %v1478, %v1486
        %v1489 = vshrl.u32 %v1276, 16
        %v1491 = vrot.slane %v1489, 6
        %v1492 = vshll.u32 %v1276, 16
        %v1494 = vrot.slane %v1492, 7
        %v1495 = vor.u32 %v1491, %v1494
        %v1497 = vshrl.u32 %v1277, 16
        %v1499 = vrot.slane %v1497, 6
        %v1500 = vshll.u32 %v1277, 16
        %v1502 = vrot.slane %v1500, 7
        %v1503 = vor.u32 %v1499, %v1502
        %v1504 = vsel %vm658, %v1495, %v1503
        %v1506 = vshrl.u32 %v1278, 16
        %v1508 = vrot.slane %v1506, 6
        %v1509 = vshll.u32 %v1278, 16
        %v1511 = vrot.slane %v1509, 7
        %v1512 = vor.u32 %v1508, %v1511
        %v1514 = vshrl.u32 %v1279, 16
        %v1516 = vrot.slane %v1514, 6
        %v1517 = vshll.u32 %v1279, 16
        %v1519 = vrot.slane %v1517, 7
        %v1520 = vor.u32 %v1516, %v1519
        %v1521 = vsel %vm658, %v1512, %v1520
        %v1523 = vshrl.u32 %v1280, 16
        %v1525 = vrot.slane %v1523, 6
        %v1526 = vshll.u32 %v1280, 16
        %v1528 = vrot.slane %v1526, 7
        %v1529 = vor.u32 %v1525, %v1528
        %v1531 = vshrl.u32 %v1281, 16
        %v1533 = vrot.slane %v1531, 6
        %v1534 = vshll.u32 %v1281, 16
        %v1536 = vrot.slane %v1534, 7
        %v1537 = vor.u32 %v1533, %v1536
        %v1538 = vsel %vm658, %v1529, %v1537
        %v1540 = vshrl.u32 %v1282, 16
        %v1542 = vrot.slane %v1540, 6
        %v1543 = vshll.u32 %v1282, 16
        %v1545 = vrot.slane %v1543, 7
        %v1546 = vor.u32 %v1542, %v1545
        %v1548 = vshrl.u32 %v1283, 16
        %v1550 = vrot.slane %v1548, 6
        %v1551 = vshll.u32 %v1283, 16
        %v1553 = vrot.slane %v1551, 7
        %v1554 = vor.u32 %v1550, %v1553
        %v1555 = vsel %vm658, %v1546, %v1554
        %v1556 = vld [vmem:[%s328 + $0x8] sm:$0xfe]
        %v1557 = vld [vmem:[%s328 + $0x10] sm:$0x3]
        %v1558 = vld [vmem:[%s328 + $0x20] sm:$0xfe]
        %v1559 = vld [vmem:[%s328 + $0x28] sm:$0x3]
        %v1560 = vld [vmem:[%s328 + $0x38] sm:$0xfe]
        %v1561 = vld [vmem:[%s328 + $0x40] sm:$0x3]
        %v1562 = vld [vmem:[%s328 + $0x50] sm:$0xfe]
        %v1563 = vld [vmem:[%s328 + $0x58] sm:$0x3]
        %v1564 = vld [vmem:[%s328 + $0x68] sm:$0xfe]
        %v1565 = vld [vmem:[%s328 + $0x70] sm:$0x3]
        %v1566 = vld [vmem:[%s328 + $0x80] sm:$0xfe]
        %v1567 = vld [vmem:[%s328 + $0x88] sm:$0x3]
        %v1568 = vld [vmem:[%s328 + $0x98] sm:$0xfe]
        %v1569 = vld [vmem:[%s328 + $0xa0] sm:$0x3]
        %v1570 = vld [vmem:[%s328 + $0xb0] sm:$0xfe]
        %v1571 = vld [vmem:[%s328 + $0xb8] sm:$0x3]
        %v1572 = vld [vmem:[%s328 + $0xc8] sm:$0xfe]
        %v1573 = vld [vmem:[%s328 + $0xd0] sm:$0x3]
        %v1574 = vld [vmem:[%s328 + $0xe0] sm:$0xfe]
        %v1575 = vld [vmem:[%s328 + $0xe8] sm:$0x3]
        %v1576 = vld [vmem:[%s328 + $0xf8] sm:$0xfe]
        %v1577 = vld [vmem:[%s328 + $0x100] sm:$0x3]
        %v1578 = vld [vmem:[%s328 + $0x110] sm:$0xfe]
        %v1579 = vld [vmem:[%s328 + $0x118] sm:$0x3]
        %v1580 = vld [vmem:[%s328 + $0x128] sm:$0xfe]
        %v1581 = vld [vmem:[%s328 + $0x130] sm:$0x3]
        %v1582 = vld [vmem:[%s328 + $0x140] sm:$0xfe]
        %v1583 = vld [vmem:[%s328 + $0x148] sm:$0x3]
        %v1584 = vld [vmem:[%s328 + $0x158] sm:$0xfe]
        %v1585 = vld [vmem:[%s328 + $0x160] sm:$0x3]
        %v1586 = vld [vmem:[%s328 + $0x170] sm:$0xfe]
        %v1587 = vld [vmem:[%s328 + $0x178] sm:$0x3]
        %v1589 = vshrl.u32 %v1556, 16
        %v1591 = vrot.slane %v1589, 1
        %v1592 = vshll.u32 %v1556, 16
        %v1594 = vrot.slane %v1592, 2
        %v1595 = vor.u32 %v1591, %v1594
        %v1597 = vshrl.u32 %v1557, 16
        %v1599 = vrot.slane %v1597, 1
        %v1600 = vshll.u32 %v1557, 16
        %v1602 = vrot.slane %v1600, 2
        %v1603 = vor.u32 %v1599, %v1602
        %v1604 = vsel %vm979, %v1595, %v1603
        %v1606 = vshrl.u32 %v1558, 16
        %v1608 = vrot.slane %v1606, 1
        %v1609 = vshll.u32 %v1558, 16
        %v1611 = vrot.slane %v1609, 2
        %v1612 = vor.u32 %v1608, %v1611
        %v1614 = vshrl.u32 %v1559, 16
        %v1616 = vrot.slane %v1614, 1
        %v1617 = vshll.u32 %v1559, 16
        %v1619 = vrot.slane %v1617, 2
        %v1620 = vor.u32 %v1616, %v1619
        %v1621 = vsel %vm979, %v1612, %v1620
        %v1623 = vshrl.u32 %v1560, 16
        %v1625 = vrot.slane %v1623, 1
        %v1626 = vshll.u32 %v1560, 16
        %v1628 = vrot.slane %v1626, 2
        %v1629 = vor.u32 %v1625, %v1628
        %v1631 = vshrl.u32 %v1561, 16
        %v1633 = vrot.slane %v1631, 1
        %v1634 = vshll.u32 %v1561, 16
        %v1636 = vrot.slane %v1634, 2
        %v1637 = vor.u32 %v1633, %v1636
        %v1638 = vsel %vm979, %v1629, %v1637
        %v1640 = vshrl.u32 %v1562, 16
        %v1642 = vrot.slane %v1640, 1
        %v1643 = vshll.u32 %v1562, 16
        %v1645 = vrot.slane %v1643, 2
        %v1646 = vor.u32 %v1642, %v1645
        %v1648 = vshrl.u32 %v1563, 16
        %v1650 = vrot.slane %v1648, 1
        %v1651 = vshll.u32 %v1563, 16
        %v1653 = vrot.slane %v1651, 2
        %v1654 = vor.u32 %v1650, %v1653
        %v1655 = vsel %vm979, %v1646, %v1654
        %v1657 = vshrl.u32 %v1564, 16
        %v1659 = vrot.slane %v1657, 1
        %v1660 = vshll.u32 %v1564, 16
        %v1662 = vrot.slane %v1660, 2
        %v1663 = vor.u32 %v1659, %v1662
        %v1665 = vshrl.u32 %v1565, 16
        %v1667 = vrot.slane %v1665, 1
        %v1668 = vshll.u32 %v1565, 16
        %v1670 = vrot.slane %v1668, 2
        %v1671 = vor.u32 %v1667, %v1670
        %v1672 = vsel %vm979, %v1663, %v1671
        %v1674 = vshrl.u32 %v1566, 16
        %v1676 = vrot.slane %v1674, 1
        %v1677 = vshll.u32 %v1566, 16
        %v1679 = vrot.slane %v1677, 2
        %v1680 = vor.u32 %v1676, %v1679
        %v1682 = vshrl.u32 %v1567, 16
        %v1684 = vrot.slane %v1682, 1
        %v1685 = vshll.u32 %v1567, 16
        %v1687 = vrot.slane %v1685, 2
        %v1688 = vor.u32 %v1684, %v1687
        %v1689 = vsel %vm979, %v1680, %v1688
        %v1691 = vshrl.u32 %v1568, 16
        %v1693 = vrot.slane %v1691, 1
        %v1694 = vshll.u32 %v1568, 16
        %v1696 = vrot.slane %v1694, 2
        %v1697 = vor.u32 %v1693, %v1696
        %v1699 = vshrl.u32 %v1569, 16
        %v1701 = vrot.slane %v1699, 1
        %v1702 = vshll.u32 %v1569, 16
        %v1704 = vrot.slane %v1702, 2
        %v1705 = vor.u32 %v1701, %v1704
        %v1706 = vsel %vm979, %v1697, %v1705
        %v1708 = vshrl.u32 %v1570, 16
        %v1710 = vrot.slane %v1708, 1
        %v1711 = vshll.u32 %v1570, 16
        %v1713 = vrot.slane %v1711, 2
        %v1714 = vor.u32 %v1710, %v1713
        %v1716 = vshrl.u32 %v1571, 16
        %v1718 = vrot.slane %v1716, 1
        %v1719 = vshll.u32 %v1571, 16
        %v1721 = vrot.slane %v1719, 2
        %v1722 = vor.u32 %v1718, %v1721
        %v1723 = vsel %vm979, %v1714, %v1722
        %v1725 = vshrl.u32 %v1572, 16
        %v1727 = vrot.slane %v1725, 1
        %v1728 = vshll.u32 %v1572, 16
        %v1730 = vrot.slane %v1728, 2
        %v1731 = vor.u32 %v1727, %v1730
        %v1733 = vshrl.u32 %v1573, 16
        %v1735 = vrot.slane %v1733, 1
        %v1736 = vshll.u32 %v1573, 16
        %v1738 = vrot.slane %v1736, 2
        %v1739 = vor.u32 %v1735, %v1738
        %v1740 = vsel %vm979, %v1731, %v1739
        %v1742 = vshrl.u32 %v1574, 16
        %v1744 = vrot.slane %v1742, 1
        %v1745 = vshll.u32 %v1574, 16
        %v1747 = vrot.slane %v1745, 2
        %v1748 = vor.u32 %v1744, %v1747
        %v1750 = vshrl.u32 %v1575, 16
        %v1752 = vrot.slane %v1750, 1
        %v1753 = vshll.u32 %v1575, 16
        %v1755 = vrot.slane %v1753, 2
        %v1756 = vor.u32 %v1752, %v1755
        %v1757 = vsel %vm979, %v1748, %v1756
        %v1759 = vshrl.u32 %v1576, 16
        %v1761 = vrot.slane %v1759, 1
        %v1762 = vshll.u32 %v1576, 16
        %v1764 = vrot.slane %v1762, 2
        %v1765 = vor.u32 %v1761, %v1764
        %v1767 = vshrl.u32 %v1577, 16
        %v1769 = vrot.slane %v1767, 1
        %v1770 = vshll.u32 %v1577, 16
        %v1772 = vrot.slane %v1770, 2
        %v1773 = vor.u32 %v1769, %v1772
        %v1774 = vsel %vm979, %v1765, %v1773
        %v1776 = vshrl.u32 %v1578, 16
        %v1778 = vrot.slane %v1776, 1
        %v1779 = vshll.u32 %v1578, 16
        %v1781 = vrot.slane %v1779, 2
        %v1782 = vor.u32 %v1778, %v1781
        %v1784 = vshrl.u32 %v1579, 16
        %v1786 = vrot.slane %v1784, 1
        %v1787 = vshll.u32 %v1579, 16
        %v1789 = vrot.slane %v1787, 2
        %v1790 = vor.u32 %v1786, %v1789
        %v1791 = vsel %vm979, %v1782, %v1790
        %v1793 = vshrl.u32 %v1580, 16
        %v1795 = vrot.slane %v1793, 1
        %v1796 = vshll.u32 %v1580, 16
        %v1798 = vrot.slane %v1796, 2
        %v1799 = vor.u32 %v1795, %v1798
        %v1801 = vshrl.u32 %v1581, 16
        %v1803 = vrot.slane %v1801, 1
        %v1804 = vshll.u32 %v1581, 16
        %v1806 = vrot.slane %v1804, 2
        %v1807 = vor.u32 %v1803, %v1806
        %v1808 = vsel %vm979, %v1799, %v1807
        %v1810 = vshrl.u32 %v1582, 16
        %v1812 = vrot.slane %v1810, 1
        %v1813 = vshll.u32 %v1582, 16
        %v1815 = vrot.slane %v1813, 2
        %v1816 = vor.u32 %v1812, %v1815
        %v1818 = vshrl.u32 %v1583, 16
        %v1820 = vrot.slane %v1818, 1
        %v1821 = vshll.u32 %v1583, 16
        %v1823 = vrot.slane %v1821, 2
        %v1824 = vor.u32 %v1820, %v1823
        %v1825 = vsel %vm979, %v1816, %v1824
        %v1827 = vshrl.u32 %v1584, 16
        %v1829 = vrot.slane %v1827, 1
        %v1830 = vshll.u32 %v1584, 16
        %v1832 = vrot.slane %v1830, 2
        %v1833 = vor.u32 %v1829, %v1832
        %v1835 = vshrl.u32 %v1585, 16
        %v1837 = vrot.slane %v1835, 1
        %v1838 = vshll.u32 %v1585, 16
        %v1840 = vrot.slane %v1838, 2
        %v1841 = vor.u32 %v1837, %v1840
        %v1842 = vsel %vm979, %v1833, %v1841
        %v1844 = vshrl.u32 %v1586, 16
        %v1846 = vrot.slane %v1844, 1
        %v1847 = vshll.u32 %v1586, 16
        %v1849 = vrot.slane %v1847, 2
        %v1850 = vor.u32 %v1846, %v1849
        %v1852 = vshrl.u32 %v1587, 16
        %v1854 = vrot.slane %v1852, 1
        %v1855 = vshll.u32 %v1587, 16
        %v1857 = vrot.slane %v1855, 2
        %v1858 = vor.u32 %v1854, %v1857
        %v1859 = vsel %vm979, %v1850, %v1858
        %s1860 = scalar_lea.vmem [#allocation2], 264
        %v1861 = vld [vmem:[%s1860] sm:$0xc0]
        %v1862 = vld [vmem:[%s1860 + $0x8] sm:$0x7f]
        %v1863 = vld [vmem:[%s1860 + $0x18] sm:$0xc0]
        %v1864 = vld [vmem:[%s1860 + $0x20] sm:$0x7f]
        %v1865 = vld [vmem:[%s1860 + $0x30] sm:$0xc0]
        %v1866 = vld [vmem:[%s1860 + $0x38] sm:$0x7f]
        %v1867 = vld [vmem:[%s1860 + $0x48] sm:$0xc0]
        %v1868 = vld [vmem:[%s1860 + $0x50] sm:$0x7f]
        %v1869 = vld [vmem:[%s1860 + $0x60] sm:$0xc0]
        %v1870 = vld [vmem:[%s1860 + $0x68] sm:$0x7f]
        %v1871 = vld [vmem:[%s1860 + $0x78] sm:$0xc0]
        %v1872 = vld [vmem:[%s1860 + $0x80] sm:$0x7f]
        %v1873 = vld [vmem:[%s1860 + $0x90] sm:$0xc0]
        %v1874 = vld [vmem:[%s1860 + $0x98] sm:$0x7f]
        %v1875 = vld [vmem:[%s1860 + $0xa8] sm:$0xc0]
        %v1876 = vld [vmem:[%s1860 + $0xb0] sm:$0x7f]
        %v1877 = vld [vmem:[%s1860 + $0xc0] sm:$0xc0]
        %v1878 = vld [vmem:[%s1860 + $0xc8] sm:$0x7f]
        %v1879 = vld [vmem:[%s1860 + $0xd8] sm:$0xc0]
        %v1880 = vld [vmem:[%s1860 + $0xe0] sm:$0x7f]
        %v1881 = vld [vmem:[%s1860 + $0xf0] sm:$0xc0]
        %v1882 = vld [vmem:[%s1860 + $0xf8] sm:$0x7f]
        %v1883 = vld [vmem:[%s1860 + $0x108] sm:$0xc0]
        %v1884 = vld [vmem:[%s1860 + $0x110] sm:$0x7f]
        %v1885 = vld [vmem:[%s1860 + $0x120] sm:$0xc0]
        %v1886 = vld [vmem:[%s1860 + $0x128] sm:$0x7f]
        %v1887 = vld [vmem:[%s1860 + $0x138] sm:$0xc0]
        %v1888 = vld [vmem:[%s1860 + $0x140] sm:$0x7f]
        %v1889 = vld [vmem:[%s1860 + $0x150] sm:$0xc0]
        %v1890 = vld [vmem:[%s1860 + $0x158] sm:$0x7f]
        %v1891 = vld [vmem:[%s1860 + $0x168] sm:$0xc0]
        %v1892 = vld [vmem:[%s1860 + $0x170] sm:$0x7f]
        %v1894 = vshrl.u32 %v1861, 16
        %v1896 = vrot.slane %v1894, 6
        %v1897 = vshll.u32 %v1861, 16
        %v1899 = vrot.slane %v1897, 7
        %v1900 = vor.u32 %v1896, %v1899
        %v1902 = vshrl.u32 %v1862, 16
        %v1904 = vrot.slane %v1902, 6
        %v1905 = vshll.u32 %v1862, 16
        %v1907 = vrot.slane %v1905, 7
        %v1908 = vor.u32 %v1904, %v1907
        %v1909 = vsel %vm658, %v1900, %v1908
        %v1911 = vshrl.u32 %v1863, 16
        %v1913 = vrot.slane %v1911, 6
        %v1914 = vshll.u32 %v1863, 16
        %v1916 = vrot.slane %v1914, 7
        %v1917 = vor.u32 %v1913, %v1916
        %v1919 = vshrl.u32 %v1864, 16
        %v1921 = vrot.slane %v1919, 6
        %v1922 = vshll.u32 %v1864, 16
        %v1924 = vrot.slane %v1922, 7
        %v1925 = vor.u32 %v1921, %v1924
        %v1926 = vsel %vm658, %v1917, %v1925
        %v1928 = vshrl.u32 %v1865, 16
        %v1930 = vrot.slane %v1928, 6
        %v1931 = vshll.u32 %v1865, 16
        %v1933 = vrot.slane %v1931, 7
        %v1934 = vor.u32 %v1930, %v1933
        %v1936 = vshrl.u32 %v1866, 16
        %v1938 = vrot.slane %v1936, 6
        %v1939 = vshll.u32 %v1866, 16
        %v1941 = vrot.slane %v1939, 7
        %v1942 = vor.u32 %v1938, %v1941
        %v1943 = vsel %vm658, %v1934, %v1942
        %v1945 = vshrl.u32 %v1867, 16
        %v1947 = vrot.slane %v1945, 6
        %v1948 = vshll.u32 %v1867, 16
        %v1950 = vrot.slane %v1948, 7
        %v1951 = vor.u32 %v1947, %v1950
        %v1953 = vshrl.u32 %v1868, 16
        %v1955 = vrot.slane %v1953, 6
        %v1956 = vshll.u32 %v1868, 16
        %v1958 = vrot.slane %v1956, 7
        %v1959 = vor.u32 %v1955, %v1958
        %v1960 = vsel %vm658, %v1951, %v1959
        %v1962 = vshrl.u32 %v1869, 16
        %v1964 = vrot.slane %v1962, 6
        %v1965 = vshll.u32 %v1869, 16
        %v1967 = vrot.slane %v1965, 7
        %v1968 = vor.u32 %v1964, %v1967
        %v1970 = vshrl.u32 %v1870, 16
        %v1972 = vrot.slane %v1970, 6
        %v1973 = vshll.u32 %v1870, 16
        %v1975 = vrot.slane %v1973, 7
        %v1976 = vor.u32 %v1972, %v1975
        %v1977 = vsel %vm658, %v1968, %v1976
        %v1979 = vshrl.u32 %v1871, 16
        %v1981 = vrot.slane %v1979, 6
        %v1982 = vshll.u32 %v1871, 16
        %v1984 = vrot.slane %v1982, 7
        %v1985 = vor.u32 %v1981, %v1984
        %v1987 = vshrl.u32 %v1872, 16
        %v1989 = vrot.slane %v1987, 6
        %v1990 = vshll.u32 %v1872, 16
        %v1992 = vrot.slane %v1990, 7
        %v1993 = vor.u32 %v1989, %v1992
        %v1994 = vsel %vm658, %v1985, %v1993
        %v1996 = vshrl.u32 %v1873, 16
        %v1998 = vrot.slane %v1996, 6
        %v1999 = vshll.u32 %v1873, 16
        %v2001 = vrot.slane %v1999, 7
        %v2002 = vor.u32 %v1998, %v2001
        %v2004 = vshrl.u32 %v1874, 16
        %v2006 = vrot.slane %v2004, 6
        %v2007 = vshll.u32 %v1874, 16
        %v2009 = vrot.slane %v2007, 7
        %v2010 = vor.u32 %v2006, %v2009
        %v2011 = vsel %vm658, %v2002, %v2010
        %v2013 = vshrl.u32 %v1875, 16
        %v2015 = vrot.slane %v2013, 6
        %v2016 = vshll.u32 %v1875, 16
        %v2018 = vrot.slane %v2016, 7
        %v2019 = vor.u32 %v2015, %v2018
        %v2021 = vshrl.u32 %v1876, 16
        %v2023 = vrot.slane %v2021, 6
        %v2024 = vshll.u32 %v1876, 16
        %v2026 = vrot.slane %v2024, 7
        %v2027 = vor.u32 %v2023, %v2026
        %v2028 = vsel %vm658, %v2019, %v2027
        %v2030 = vshrl.u32 %v1877, 16
        %v2032 = vrot.slane %v2030, 6
        %v2033 = vshll.u32 %v1877, 16
        %v2035 = vrot.slane %v2033, 7
        %v2036 = vor.u32 %v2032, %v2035
        %v2038 = vshrl.u32 %v1878, 16
        %v2040 = vrot.slane %v2038, 6
        %v2041 = vshll.u32 %v1878, 16
        %v2043 = vrot.slane %v2041, 7
        %v2044 = vor.u32 %v2040, %v2043
        %v2045 = vsel %vm658, %v2036, %v2044
        %v2047 = vshrl.u32 %v1879, 16
        %v2049 = vrot.slane %v2047, 6
        %v2050 = vshll.u32 %v1879, 16
        %v2052 = vrot.slane %v2050, 7
        %v2053 = vor.u32 %v2049, %v2052
        %v2055 = vshrl.u32 %v1880, 16
        %v2057 = vrot.slane %v2055, 6
        %v2058 = vshll.u32 %v1880, 16
        %v2060 = vrot.slane %v2058, 7
        %v2061 = vor.u32 %v2057, %v2060
        %v2062 = vsel %vm658, %v2053, %v2061
        %v2064 = vshrl.u32 %v1881, 16
        %v2066 = vrot.slane %v2064, 6
        %v2067 = vshll.u32 %v1881, 16
        %v2069 = vrot.slane %v2067, 7
        %v2070 = vor.u32 %v2066, %v2069
        %v2072 = vshrl.u32 %v1882, 16
        %v2074 = vrot.slane %v2072, 6
        %v2075 = vshll.u32 %v1882, 16
        %v2077 = vrot.slane %v2075, 7
        %v2078 = vor.u32 %v2074, %v2077
        %v2079 = vsel %vm658, %v2070, %v2078
        %v2081 = vshrl.u32 %v1883, 16
        %v2083 = vrot.slane %v2081, 6
        %v2084 = vshll.u32 %v1883, 16
        %v2086 = vrot.slane %v2084, 7
        %v2087 = vor.u32 %v2083, %v2086
        %v2089 = vshrl.u32 %v1884, 16
        %v2091 = vrot.slane %v2089, 6
        %v2092 = vshll.u32 %v1884, 16
        %v2094 = vrot.slane %v2092, 7
        %v2095 = vor.u32 %v2091, %v2094
        %v2096 = vsel %vm658, %v2087, %v2095
        %v2098 = vshrl.u32 %v1885, 16
        %v2100 = vrot.slane %v2098, 6
        %v2101 = vshll.u32 %v1885, 16
        %v2103 = vrot.slane %v2101, 7
        %v2104 = vor.u32 %v2100, %v2103
        %v2106 = vshrl.u32 %v1886, 16
        %v2108 = vrot.slane %v2106, 6
        %v2109 = vshll.u32 %v1886, 16
        %v2111 = vrot.slane %v2109, 7
        %v2112 = vor.u32 %v2108, %v2111
        %v2113 = vsel %vm658, %v2104, %v2112
        %v2115 = vshrl.u32 %v1887, 16
        %v2117 = vrot.slane %v2115, 6
        %v2118 = vshll.u32 %v1887, 16
        %v2120 = vrot.slane %v2118, 7
        %v2121 = vor.u32 %v2117, %v2120
        %v2123 = vshrl.u32 %v1888, 16
        %v2125 = vrot.slane %v2123, 6
        %v2126 = vshll.u32 %v1888, 16
        %v2128 = vrot.slane %v2126, 7
        %v2129 = vor.u32 %v2125, %v2128
        %v2130 = vsel %vm658, %v2121, %v2129
        %v2132 = vshrl.u32 %v1889, 16
        %v2134 = vrot.slane %v2132, 6
        %v2135 = vshll.u32 %v1889, 16
        %v2137 = vrot.slane %v2135, 7
        %v2138 = vor.u32 %v2134, %v2137
        %v2140 = vshrl.u32 %v1890, 16
        %v2142 = vrot.slane %v2140, 6
        %v2143 = vshll.u32 %v1890, 16
        %v2145 = vrot.slane %v2143, 7
        %v2146 = vor.u32 %v2142, %v2145
        %v2147 = vsel %vm658, %v2138, %v2146
        %v2149 = vshrl.u32 %v1891, 16
        %v2151 = vrot.slane %v2149, 6
        %v2152 = vshll.u32 %v1891, 16
        %v2154 = vrot.slane %v2152, 7
        %v2155 = vor.u32 %v2151, %v2154
        %v2157 = vshrl.u32 %v1892, 16
        %v2159 = vrot.slane %v2157, 6
        %v2160 = vshll.u32 %v1892, 16
        %v2162 = vrot.slane %v2160, 7
        %v2163 = vor.u32 %v2159, %v2162
        %v2164 = vsel %vm658, %v2155, %v2163
        %v2165 = vld [vmem:[%s1860 + $0x8] sm:$0xff]
        %v2166 = vld [vmem:[%s1860 + $0x20] sm:$0xff]
        %v2167 = vld [vmem:[%s1860 + $0x38] sm:$0xff]
        %v2168 = vld [vmem:[%s1860 + $0x50] sm:$0xff]
        %v2169 = vld [vmem:[%s1860 + $0x68] sm:$0xff]
        %v2170 = vld [vmem:[%s1860 + $0x80] sm:$0xff]
        %v2171 = vld [vmem:[%s1860 + $0x98] sm:$0xff]
        %v2172 = vld [vmem:[%s1860 + $0xb0] sm:$0xff]
        %v2173 = vld [vmem:[%s1860 + $0xc8] sm:$0xff]
        %v2174 = vld [vmem:[%s1860 + $0xe0] sm:$0xff]
        %v2175 = vld [vmem:[%s1860 + $0xf8] sm:$0xff]
        %v2176 = vld [vmem:[%s1860 + $0x110] sm:$0xff]
        %v2177 = vld [vmem:[%s1860 + $0x128] sm:$0xff]
        %v2178 = vld [vmem:[%s1860 + $0x140] sm:$0xff]
        %v2179 = vld [vmem:[%s1860 + $0x158] sm:$0xff]
        %v2180 = vld [vmem:[%s1860 + $0x170] sm:$0xff]
        %v2181 = vld [vmem:[%s1860 + $0x8] sm:$0xfe]
        %v2182 = vld [vmem:[%s1860 + $0x10] sm:$0x3]
        %v2183 = vld [vmem:[%s1860 + $0x20] sm:$0xfe]
        %v2184 = vld [vmem:[%s1860 + $0x28] sm:$0x3]
        %v2185 = vld [vmem:[%s1860 + $0x38] sm:$0xfe]
        %v2186 = vld [vmem:[%s1860 + $0x40] sm:$0x3]
        %v2187 = vld [vmem:[%s1860 + $0x50] sm:$0xfe]
        %v2188 = vld [vmem:[%s1860 + $0x58] sm:$0x3]
        %v2189 = vld [vmem:[%s1860 + $0x68] sm:$0xfe]
        %v2190 = vld [vmem:[%s1860 + $0x70] sm:$0x3]
        %v2191 = vld [vmem:[%s1860 + $0x80] sm:$0xfe]
        %v2192 = vld [vmem:[%s1860 + $0x88] sm:$0x3]
        %v2193 = vld [vmem:[%s1860 + $0x98] sm:$0xfe]
        %v2194 = vld [vmem:[%s1860 + $0xa0] sm:$0x3]
        %v2195 = vld [vmem:[%s1860 + $0xb0] sm:$0xfe]
        %v2196 = vld [vmem:[%s1860 + $0xb8] sm:$0x3]
        %v2197 = vld [vmem:[%s1860 + $0xc8] sm:$0xfe]
        %v2198 = vld [vmem:[%s1860 + $0xd0] sm:$0x3]
        %v2199 = vld [vmem:[%s1860 + $0xe0] sm:$0xfe]
        %v2200 = vld [vmem:[%s1860 + $0xe8] sm:$0x3]
        %v2201 = vld [vmem:[%s1860 + $0xf8] sm:$0xfe]
        %v2202 = vld [vmem:[%s1860 + $0x100] sm:$0x3]
        %v2203 = vld [vmem:[%s1860 + $0x110] sm:$0xfe]
        %v2204 = vld [vmem:[%s1860 + $0x118] sm:$0x3]
        %v2205 = vld [vmem:[%s1860 + $0x128] sm:$0xfe]
        %v2206 = vld [vmem:[%s1860 + $0x130] sm:$0x3]
        %v2207 = vld [vmem:[%s1860 + $0x140] sm:$0xfe]
        %v2208 = vld [vmem:[%s1860 + $0x148] sm:$0x3]
        %v2209 = vld [vmem:[%s1860 + $0x158] sm:$0xfe]
        %v2210 = vld [vmem:[%s1860 + $0x160] sm:$0x3]
        %v2211 = vld [vmem:[%s1860 + $0x170] sm:$0xfe]
        %v2212 = vld [vmem:[%s1860 + $0x178] sm:$0x3]
        %v2214 = vshrl.u32 %v2181, 16
        %v2216 = vrot.slane %v2214, 1
        %v2217 = vshll.u32 %v2181, 16
        %v2219 = vrot.slane %v2217, 2
        %v2220 = vor.u32 %v2216, %v2219
        %v2222 = vshrl.u32 %v2182, 16
        %v2224 = vrot.slane %v2222, 1
        %v2225 = vshll.u32 %v2182, 16
        %v2227 = vrot.slane %v2225, 2
        %v2228 = vor.u32 %v2224, %v2227
        %v2229 = vsel %vm979, %v2220, %v2228
        %v2231 = vshrl.u32 %v2183, 16
        %v2233 = vrot.slane %v2231, 1
        %v2234 = vshll.u32 %v2183, 16
        %v2236 = vrot.slane %v2234, 2
        %v2237 = vor.u32 %v2233, %v2236
        %v2239 = vshrl.u32 %v2184, 16
        %v2241 = vrot.slane %v2239, 1
        %v2242 = vshll.u32 %v2184, 16
        %v2244 = vrot.slane %v2242, 2
        %v2245 = vor.u32 %v2241, %v2244
        %v2246 = vsel %vm979, %v2237, %v2245
        %v2248 = vshrl.u32 %v2185, 16
        %v2250 = vrot.slane %v2248, 1
        %v2251 = vshll.u32 %v2185, 16
        %v2253 = vrot.slane %v2251, 2
        %v2254 = vor.u32 %v2250, %v2253
        %v2256 = vshrl.u32 %v2186, 16
        %v2258 = vrot.slane %v2256, 1
        %v2259 = vshll.u32 %v2186, 16
        %v2261 = vrot.slane %v2259, 2
        %v2262 = vor.u32 %v2258, %v2261
        %v2263 = vsel %vm979, %v2254, %v2262
        %v2265 = vshrl.u32 %v2187, 16
        %v2267 = vrot.slane %v2265, 1
        %v2268 = vshll.u32 %v2187, 16
        %v2270 = vrot.slane %v2268, 2
        %v2271 = vor.u32 %v2267, %v2270
        %v2273 = vshrl.u32 %v2188, 16
        %v2275 = vrot.slane %v2273, 1
        %v2276 = vshll.u32 %v2188, 16
        %v2278 = vrot.slane %v2276, 2
        %v2279 = vor.u32 %v2275, %v2278
        %v2280 = vsel %vm979, %v2271, %v2279
        %v2282 = vshrl.u32 %v2189, 16
        %v2284 = vrot.slane %v2282, 1
        %v2285 = vshll.u32 %v2189, 16
        %v2287 = vrot.slane %v2285, 2
        %v2288 = vor.u32 %v2284, %v2287
        %v2290 = vshrl.u32 %v2190, 16
        %v2292 = vrot.slane %v2290, 1
        %v2293 = vshll.u32 %v2190, 16
        %v2295 = vrot.slane %v2293, 2
        %v2296 = vor.u32 %v2292, %v2295
        %v2297 = vsel %vm979, %v2288, %v2296
        %v2299 = vshrl.u32 %v2191, 16
        %v2301 = vrot.slane %v2299, 1
        %v2302 = vshll.u32 %v2191, 16
        %v2304 = vrot.slane %v2302, 2
        %v2305 = vor.u32 %v2301, %v2304
        %v2307 = vshrl.u32 %v2192, 16
        %v2309 = vrot.slane %v2307, 1
        %v2310 = vshll.u32 %v2192, 16
        %v2312 = vrot.slane %v2310, 2
        %v2313 = vor.u32 %v2309, %v2312
        %v2314 = vsel %vm979, %v2305, %v2313
        %v2316 = vshrl.u32 %v2193, 16
        %v2318 = vrot.slane %v2316, 1
        %v2319 = vshll.u32 %v2193, 16
        %v2321 = vrot.slane %v2319, 2
        %v2322 = vor.u32 %v2318, %v2321
        %v2324 = vshrl.u32 %v2194, 16
        %v2326 = vrot.slane %v2324, 1
        %v2327 = vshll.u32 %v2194, 16
        %v2329 = vrot.slane %v2327, 2
        %v2330 = vor.u32 %v2326, %v2329
        %v2331 = vsel %vm979, %v2322, %v2330
        %v2333 = vshrl.u32 %v2195, 16
        %v2335 = vrot.slane %v2333, 1
        %v2336 = vshll.u32 %v2195, 16
        %v2338 = vrot.slane %v2336, 2
        %v2339 = vor.u32 %v2335, %v2338
        %v2341 = vshrl.u32 %v2196, 16
        %v2343 = vrot.slane %v2341, 1
        %v2344 = vshll.u32 %v2196, 16
        %v2346 = vrot.slane %v2344, 2
        %v2347 = vor.u32 %v2343, %v2346
        %v2348 = vsel %vm979, %v2339, %v2347
        %v2350 = vshrl.u32 %v2197, 16
        %v2352 = vrot.slane %v2350, 1
        %v2353 = vshll.u32 %v2197, 16
        %v2355 = vrot.slane %v2353, 2
        %v2356 = vor.u32 %v2352, %v2355
        %v2358 = vshrl.u32 %v2198, 16
        %v2360 = vrot.slane %v2358, 1
        %v2361 = vshll.u32 %v2198, 16
        %v2363 = vrot.slane %v2361, 2
        %v2364 = vor.u32 %v2360, %v2363
        %v2365 = vsel %vm979, %v2356, %v2364
        %v2367 = vshrl.u32 %v2199, 16
        %v2369 = vrot.slane %v2367, 1
        %v2370 = vshll.u32 %v2199, 16
        %v2372 = vrot.slane %v2370, 2
        %v2373 = vor.u32 %v2369, %v2372
        %v2375 = vshrl.u32 %v2200, 16
        %v2377 = vrot.slane %v2375, 1
        %v2378 = vshll.u32 %v2200, 16
        %v2380 = vrot.slane %v2378, 2
        %v2381 = vor.u32 %v2377, %v2380
        %v2382 = vsel %vm979, %v2373, %v2381
        %v2384 = vshrl.u32 %v2201, 16
        %v2386 = vrot.slane %v2384, 1
        %v2387 = vshll.u32 %v2201, 16
        %v2389 = vrot.slane %v2387, 2
        %v2390 = vor.u32 %v2386, %v2389
        %v2392 = vshrl.u32 %v2202, 16
        %v2394 = vrot.slane %v2392, 1
        %v2395 = vshll.u32 %v2202, 16
        %v2397 = vrot.slane %v2395, 2
        %v2398 = vor.u32 %v2394, %v2397
        %v2399 = vsel %vm979, %v2390, %v2398
        %v2401 = vshrl.u32 %v2203, 16
        %v2403 = vrot.slane %v2401, 1
        %v2404 = vshll.u32 %v2203, 16
        %v2406 = vrot.slane %v2404, 2
        %v2407 = vor.u32 %v2403, %v2406
        %v2409 = vshrl.u32 %v2204, 16
        %v2411 = vrot.slane %v2409, 1
        %v2412 = vshll.u32 %v2204, 16
        %v2414 = vrot.slane %v2412, 2
        %v2415 = vor.u32 %v2411, %v2414
        %v2416 = vsel %vm979, %v2407, %v2415
        %v2418 = vshrl.u32 %v2205, 16
        %v2420 = vrot.slane %v2418, 1
        %v2421 = vshll.u32 %v2205, 16
        %v2423 = vrot.slane %v2421, 2
        %v2424 = vor.u32 %v2420, %v2423
        %v2426 = vshrl.u32 %v2206, 16
        %v2428 = vrot.slane %v2426, 1
        %v2429 = vshll.u32 %v2206, 16
        %v2431 = vrot.slane %v2429, 2
        %v2432 = vor.u32 %v2428, %v2431
        %v2433 = vsel %vm979, %v2424, %v2432
        %v2435 = vshrl.u32 %v2207, 16
        %v2437 = vrot.slane %v2435, 1
        %v2438 = vshll.u32 %v2207, 16
        %v2440 = vrot.slane %v2438, 2
        %v2441 = vor.u32 %v2437, %v2440
        %v2443 = vshrl.u32 %v2208, 16
        %v2445 = vrot.slane %v2443, 1
        %v2446 = vshll.u32 %v2208, 16
        %v2448 = vrot.slane %v2446, 2
        %v2449 = vor.u32 %v2445, %v2448
        %v2450 = vsel %vm979, %v2441, %v2449
        %v2452 = vshrl.u32 %v2209, 16
        %v2454 = vrot.slane %v2452, 1
        %v2455 = vshll.u32 %v2209, 16
        %v2457 = vrot.slane %v2455, 2
        %v2458 = vor.u32 %v2454, %v2457
        %v2460 = vshrl.u32 %v2210, 16
        %v2462 = vrot.slane %v2460, 1
        %v2463 = vshll.u32 %v2210, 16
        %v2465 = vrot.slane %v2463, 2
        %v2466 = vor.u32 %v2462, %v2465
        %v2467 = vsel %vm979, %v2458, %v2466
        %v2469 = vshrl.u32 %v2211, 16
        %v2471 = vrot.slane %v2469, 1
        %v2472 = vshll.u32 %v2211, 16
        %v2474 = vrot.slane %v2472, 2
        %v2475 = vor.u32 %v2471, %v2474
        %v2477 = vshrl.u32 %v2212, 16
        %v2479 = vrot.slane %v2477, 1
        %v2480 = vshll.u32 %v2212, 16
        %v2482 = vrot.slane %v2480, 2
        %v2483 = vor.u32 %v2479, %v2482
        %v2484 = vsel %vm979, %v2475, %v2483
        %2501 = vrot.lane.b32.xlu0 %v931, 64
        %v2502 = vpop.permute.xlu0 %2501
        %2503 = vrot.lane.b32.xlu0 %v932, 64
        %v2504 = vpop.permute.xlu0 %2503
        %2505 = vrot.lane.b32.xlu0 %v933, 64
        %v2506 = vpop.permute.xlu0 %2505
        %2507 = vrot.lane.b32.xlu0 %v934, 64
        %v2508 = vpop.permute.xlu0 %2507
        %2509 = vrot.lane.b32.xlu0 %v935, 64
        %v2510 = vpop.permute.xlu0 %2509
        %2511 = vrot.lane.b32.xlu0 %v936, 64
        %v2512 = vpop.permute.xlu0 %2511
        %2513 = vrot.lane.b32.xlu0 %v937, 64
        %v2514 = vpop.permute.xlu0 %2513
        %2515 = vrot.lane.b32.xlu0 %v938, 64
        %v2516 = vpop.permute.xlu0 %2515
        %2517 = vrot.lane.b32.xlu0 %v939, 64
        %v2518 = vpop.permute.xlu0 %2517
        %2519 = vrot.lane.b32.xlu0 %v940, 64
        %v2520 = vpop.permute.xlu0 %2519
        %2521 = vrot.lane.b32.xlu0 %v941, 64
        %v2522 = vpop.permute.xlu0 %2521
        %2523 = vrot.lane.b32.xlu0 %v942, 64
        %v2524 = vpop.permute.xlu0 %2523
        %2525 = vrot.lane.b32.xlu0 %v943, 64
        %v2526 = vpop.permute.xlu0 %2525
        %2527 = vrot.lane.b32.xlu0 %v944, 64
        %v2528 = vpop.permute.xlu0 %2527
        %2529 = vrot.lane.b32.xlu0 %v945, 64
        %v2530 = vpop.permute.xlu0 %2529
        %2531 = vrot.lane.b32.xlu0 %v946, 64
        %v2532 = vpop.permute.xlu0 %2531
        %2533 = vrot.lane.b32.xlu0 %v1300, 64
        %v2534 = vpop.permute.xlu0 %2533
        %2535 = vrot.lane.b32.xlu0 %v1317, 64
        %v2536 = vpop.permute.xlu0 %2535
        %2537 = vrot.lane.b32.xlu0 %v1334, 64
        %v2538 = vpop.permute.xlu0 %2537
        %2539 = vrot.lane.b32.xlu0 %v1351, 64
        %v2540 = vpop.permute.xlu0 %2539
        %2541 = vrot.lane.b32.xlu0 %v1368, 64
        %v2542 = vpop.permute.xlu0 %2541
        %2543 = vrot.lane.b32.xlu0 %v1385, 64
        %v2544 = vpop.permute.xlu0 %2543
        %2545 = vrot.lane.b32.xlu0 %v1402, 64
        %v2546 = vpop.permute.xlu0 %2545
        %2547 = vrot.lane.b32.xlu0 %v1419, 64
        %v2548 = vpop.permute.xlu0 %2547
        %2549 = vrot.lane.b32.xlu0 %v1436, 64
        %v2550 = vpop.permute.xlu0 %2549
        %2551 = vrot.lane.b32.xlu0 %v1453, 64
        %v2552 = vpop.permute.xlu0 %2551
        %2553 = vrot.lane.b32.xlu0 %v1470, 64
        %v2554 = vpop.permute.xlu0 %2553
        %2555 = vrot.lane.b32.xlu0 %v1487, 64
        %v2556 = vpop.permute.xlu0 %2555
        %2557 = vrot.lane.b32.xlu0 %v1504, 64
        %v2558 = vpop.permute.xlu0 %2557
        %2559 = vrot.lane.b32.xlu0 %v1521, 64
        %v2560 = vpop.permute.xlu0 %2559
        %2561 = vrot.lane.b32.xlu0 %v1538, 64
        %v2562 = vpop.permute.xlu0 %2561
        %2563 = vrot.lane.b32.xlu0 %v1555, 64
        %v2564 = vpop.permute.xlu0 %2563
        %v2567 = vsel %vm278, %v675, %v2502
        %v2571 = vsel %vm278, %v692, %v2504
        %v2575 = vsel %vm278, %v709, %v2506
        %v2579 = vsel %vm278, %v726, %v2508
        %v2583 = vsel %vm278, %v743, %v2510
        %v2587 = vsel %vm278, %v760, %v2512
        %v2591 = vsel %vm278, %v777, %v2514
        %v2595 = vsel %vm278, %v794, %v2516
        %v2599 = vsel %vm278, %v811, %v2518
        %v2603 = vsel %vm278, %v828, %v2520
        %v2607 = vsel %vm278, %v845, %v2522
        %v2611 = vsel %vm278, %v862, %v2524
        %v2615 = vsel %vm278, %v879, %v2526
        %v2619 = vsel %vm278, %v896, %v2528
        %v2623 = vsel %vm278, %v913, %v2530
        %v2627 = vsel %vm278, %v930, %v2532
        %v2631 = vsel %vm278, %v996, %v2534
        %v2635 = vsel %vm278, %v1013, %v2536
        %v2639 = vsel %vm278, %v1030, %v2538
        %v2643 = vsel %vm278, %v1047, %v2540
        %v2647 = vsel %vm278, %v1064, %v2542
        %v2651 = vsel %vm278, %v1081, %v2544
        %v2655 = vsel %vm278, %v1098, %v2546
        %v2659 = vsel %vm278, %v1115, %v2548
        %v2663 = vsel %vm278, %v1132, %v2550
        %v2667 = vsel %vm278, %v1149, %v2552
        %v2671 = vsel %vm278, %v1166, %v2554
        %v2675 = vsel %vm278, %v1183, %v2556
        %v2679 = vsel %vm278, %v1200, %v2558
        %v2683 = vsel %vm278, %v1217, %v2560
        %v2687 = vsel %vm278, %v1234, %v2562
        %v2691 = vsel %vm278, %v1251, %v2564
        %2693 = vrot.lane.b32.xlu0 %v1909, 64
        %v2694 = vpop.permute.xlu0 %2693
        %2695 = vrot.lane.b32.xlu0 %v1926, 64
        %v2696 = vpop.permute.xlu0 %2695
        %2697 = vrot.lane.b32.xlu0 %v1943, 64
        %v2698 = vpop.permute.xlu0 %2697
        %2699 = vrot.lane.b32.xlu0 %v1960, 64
        %v2700 = vpop.permute.xlu0 %2699
        %2701 = vrot.lane.b32.xlu0 %v1977, 64
        %v2702 = vpop.permute.xlu0 %2701
        %2703 = vrot.lane.b32.xlu0 %v1994, 64
        %v2704 = vpop.permute.xlu0 %2703
        %2705 = vrot.lane.b32.xlu0 %v2011, 64
        %v2706 = vpop.permute.xlu0 %2705
        %2707 = vrot.lane.b32.xlu0 %v2028, 64
        %v2708 = vpop.permute.xlu0 %2707
        %2709 = vrot.lane.b32.xlu0 %v2045, 64
        %v2710 = vpop.permute.xlu0 %2709
        %2711 = vrot.lane.b32.xlu0 %v2062, 64
        %v2712 = vpop.permute.xlu0 %2711
        %2713 = vrot.lane.b32.xlu0 %v2079, 64
        %v2714 = vpop.permute.xlu0 %2713
        %2715 = vrot.lane.b32.xlu0 %v2096, 64
        %v2716 = vpop.permute.xlu0 %2715
        %2717 = vrot.lane.b32.xlu0 %v2113, 64
        %v2718 = vpop.permute.xlu0 %2717
        %2719 = vrot.lane.b32.xlu0 %v2130, 64
        %v2720 = vpop.permute.xlu0 %2719
        %2721 = vrot.lane.b32.xlu0 %v2147, 64
        %v2722 = vpop.permute.xlu0 %2721
        %2723 = vrot.lane.b32.xlu0 %v2164, 64
        %v2724 = vpop.permute.xlu0 %2723
        %2725 = vrot.lane.b32.xlu0 %v2229, 64
        %v2726 = vpop.permute.xlu0 %2725
        %2727 = vrot.lane.b32.xlu0 %v2246, 64
        %v2728 = vpop.permute.xlu0 %2727
        %2729 = vrot.lane.b32.xlu0 %v2263, 64
        %v2730 = vpop.permute.xlu0 %2729
        %2731 = vrot.lane.b32.xlu0 %v2280, 64
        %v2732 = vpop.permute.xlu0 %2731
        %2733 = vrot.lane.b32.xlu0 %v2297, 64
        %v2734 = vpop.permute.xlu0 %2733
        %2735 = vrot.lane.b32.xlu0 %v2314, 64
        %v2736 = vpop.permute.xlu0 %2735
        %2737 = vrot.lane.b32.xlu0 %v2331, 64
        %v2738 = vpop.permute.xlu0 %2737
        %2739 = vrot.lane.b32.xlu0 %v2348, 64
        %v2740 = vpop.permute.xlu0 %2739
        %2741 = vrot.lane.b32.xlu0 %v2365, 64
        %v2742 = vpop.permute.xlu0 %2741
        %2743 = vrot.lane.b32.xlu0 %v2382, 64
        %v2744 = vpop.permute.xlu0 %2743
        %2745 = vrot.lane.b32.xlu0 %v2399, 64
        %v2746 = vpop.permute.xlu0 %2745
        %2747 = vrot.lane.b32.xlu0 %v2416, 64
        %v2748 = vpop.permute.xlu0 %2747
        %2749 = vrot.lane.b32.xlu0 %v2433, 64
        %v2750 = vpop.permute.xlu0 %2749
        %2751 = vrot.lane.b32.xlu0 %v2450, 64
        %v2752 = vpop.permute.xlu0 %2751
        %2753 = vrot.lane.b32.xlu0 %v2467, 64
        %v2754 = vpop.permute.xlu0 %2753
        %2755 = vrot.lane.b32.xlu0 %v2484, 64
        %v2756 = vpop.permute.xlu0 %2755
        %v2759 = vsel %vm278, %v1604, %v2694
        %v2763 = vsel %vm278, %v1621, %v2696
        %v2767 = vsel %vm278, %v1638, %v2698
        %v2771 = vsel %vm278, %v1655, %v2700
        %v2775 = vsel %vm278, %v1672, %v2702
        %v2779 = vsel %vm278, %v1689, %v2704
        %v2783 = vsel %vm278, %v1706, %v2706
        %v2787 = vsel %vm278, %v1723, %v2708
        %v2791 = vsel %vm278, %v1740, %v2710
        %v2795 = vsel %vm278, %v1757, %v2712
        %v2799 = vsel %vm278, %v1774, %v2714
        %v2803 = vsel %vm278, %v1791, %v2716
        %v2807 = vsel %vm278, %v1808, %v2718
        %v2811 = vsel %vm278, %v1825, %v2720
        %v2815 = vsel %vm278, %v1842, %v2722
        %v2819 = vsel %vm278, %v1859, %v2724
        %v2823 = vsel %vm278, %v2165, %v2726
        %v2827 = vsel %vm278, %v2166, %v2728
        %v2831 = vsel %vm278, %v2167, %v2730
        %v2835 = vsel %vm278, %v2168, %v2732
        %v2839 = vsel %vm278, %v2169, %v2734
        %v2843 = vsel %vm278, %v2170, %v2736
        %v2847 = vsel %vm278, %v2171, %v2738
        %v2851 = vsel %vm278, %v2172, %v2740
        %v2855 = vsel %vm278, %v2173, %v2742
        %v2859 = vsel %vm278, %v2174, %v2744
        %v2863 = vsel %vm278, %v2175, %v2746
        %v2867 = vsel %vm278, %v2176, %v2748
        %v2871 = vsel %vm278, %v2177, %v2750
        %v2875 = vsel %vm278, %v2178, %v2752
        %v2879 = vsel %vm278, %v2179, %v2754
        %v2883 = vsel %vm278, %v2180, %v2756
        %v2885 = vld [vmem:[%s2] sm:$0xf]
        %v2886 = vld [vmem:[%s2 + $0x4] sm:$0xf]
        %v2887 = vld [vmem:[%s2 + $0x8] sm:$0xf]
        %v2888 = vld [vmem:[%s2 + $0xc] sm:$0xf]
        %v2889 = vld [vmem:[%s2 + $0x10] sm:$0xf]
        %v2890 = vld [vmem:[%s2 + $0x14] sm:$0xf]
        %v2891 = vld [vmem:[%s2 + $0x18] sm:$0xf]
        %v2892 = vld [vmem:[%s2 + $0x1c] sm:$0xf]
        %v2893 = vld [vmem:[%s2 + $0x20] sm:$0xf]
        %v2894 = vld [vmem:[%s2 + $0x24] sm:$0xf]
        %v2895 = vld [vmem:[%s2 + $0x28] sm:$0xf]
        %v2896 = vld [vmem:[%s2 + $0x2c] sm:$0xf]
        %v2897 = vld [vmem:[%s2 + $0x30] sm:$0xf]
        %v2898 = vld [vmem:[%s2 + $0x34] sm:$0xf]
        %v2899 = vld [vmem:[%s2 + $0x38] sm:$0xf]
        %v2900 = vld [vmem:[%s2 + $0x3c] sm:$0xf]
        %v2901 = vld [vmem:[%s2 + $0x40] sm:$0xf]
        %v2902 = vld [vmem:[%s2 + $0x44] sm:$0xf]
        %v2903 = vld [vmem:[%s2 + $0x48] sm:$0xf]
        %v2904 = vld [vmem:[%s2 + $0x4c] sm:$0xf]
        %v2905 = vld [vmem:[%s2 + $0x50] sm:$0xf]
        %v2906 = vld [vmem:[%s2 + $0x54] sm:$0xf]
        %v2907 = vld [vmem:[%s2 + $0x58] sm:$0xf]
        %v2908 = vld [vmem:[%s2 + $0x5c] sm:$0xf]
        %v2909 = vld [vmem:[%s2 + $0x60] sm:$0xf]
        %v2910 = vld [vmem:[%s2 + $0x64] sm:$0xf]
        %v2911 = vld [vmem:[%s2 + $0x68] sm:$0xf]
        %v2912 = vld [vmem:[%s2 + $0x6c] sm:$0xf]
        %v2913 = vld [vmem:[%s2 + $0x70] sm:$0xf]
        %v2914 = vld [vmem:[%s2 + $0x74] sm:$0xf]
        %v2915 = vld [vmem:[%s2 + $0x78] sm:$0xf]
        %v2916 = vld [vmem:[%s2 + $0x7c] sm:$0xf]
        %v2949 = vunpack.c.l.b16 %v2885
        %v2950 = vunpack.c.l.b16 %v2886
        %v2951 = vunpack.c.l.b16 %v2887
        %v2952 = vunpack.c.l.b16 %v2888
        %v2953 = vunpack.c.l.b16 %v2889
        %v2954 = vunpack.c.l.b16 %v2890
        %v2955 = vunpack.c.l.b16 %v2891
        %v2956 = vunpack.c.l.b16 %v2892
        %v2957 = vunpack.c.l.b16 %v2893
        %v2958 = vunpack.c.l.b16 %v2894
        %v2959 = vunpack.c.l.b16 %v2895
        %v2960 = vunpack.c.l.b16 %v2896
        %v2961 = vunpack.c.l.b16 %v2897
        %v2962 = vunpack.c.l.b16 %v2898
        %v2963 = vunpack.c.l.b16 %v2899
        %v2964 = vunpack.c.l.b16 %v2900
        %v2965 = vunpack.c.l.b16 %v2901
        %v2966 = vunpack.c.l.b16 %v2902
        %v2967 = vunpack.c.l.b16 %v2903
        %v2968 = vunpack.c.l.b16 %v2904
        %v2969 = vunpack.c.l.b16 %v2905
        %v2970 = vunpack.c.l.b16 %v2906
        %v2971 = vunpack.c.l.b16 %v2907
        %v2972 = vunpack.c.l.b16 %v2908
        %v2973 = vunpack.c.l.b16 %v2909
        %v2974 = vunpack.c.l.b16 %v2910
        %v2975 = vunpack.c.l.b16 %v2911
        %v2976 = vunpack.c.l.b16 %v2912
        %v2977 = vunpack.c.l.b16 %v2913
        %v2978 = vunpack.c.l.b16 %v2914
        %v2979 = vunpack.c.l.b16 %v2915
        %v2980 = vunpack.c.l.b16 %v2916
        %v2981 = vpack.c.b16 %v2950, %v2949
        %v2982 = vpack.c.b16 %v2952, %v2951
        %v2983 = vpack.c.b16 %v2954, %v2953
        %v2984 = vpack.c.b16 %v2956, %v2955
        %v2985 = vpack.c.b16 %v2958, %v2957
        %v2986 = vpack.c.b16 %v2960, %v2959
        %v2987 = vpack.c.b16 %v2962, %v2961
        %v2988 = vpack.c.b16 %v2964, %v2963
        %v2989 = vpack.c.b16 %v2966, %v2965
        %v2990 = vpack.c.b16 %v2968, %v2967
        %v2991 = vpack.c.b16 %v2970, %v2969
        %v2992 = vpack.c.b16 %v2972, %v2971
        %v2993 = vpack.c.b16 %v2974, %v2973
        %v2994 = vpack.c.b16 %v2976, %v2975
        %v2995 = vpack.c.b16 %v2978, %v2977
        %v2996 = vpack.c.b16 %v2980, %v2979
        %3013 = vmatprep.subr.bf16.mxu0 0
        %3014 = vmatpush1.bf16.msra.mxu0 %v2981
        %3015 = vmatprep.subr.bf16.mxu0 0
        %3016 = vmatpush1.bf16.msra.mxu0 %v2982
        %3017 = vmatprep.subr.bf16.mxu0 0
        %3018 = vmatpush1.bf16.msra.mxu0 %v2983
        %3019 = vmatprep.subr.bf16.mxu0 0
        %3020 = vmatpush1.bf16.msra.mxu0 %v2984
        %3021 = vmatprep.subr.bf16.mxu0 0
        %3022 = vmatpush1.bf16.msra.mxu0 %v2985
        %3023 = vmatprep.subr.bf16.mxu0 0
        %3024 = vmatpush1.bf16.msra.mxu0 %v2986
        %3025 = vmatprep.subr.bf16.mxu0 0
        %3026 = vmatpush1.bf16.msra.mxu0 %v2987
        %3027 = vmatprep.subr.bf16.mxu0 0
        %3028 = vmatpush1.bf16.msra.mxu0 %v2988
        %3029 = vmatprep.subr.bf16.mxu0 0
        %3030 = vmatpush1.bf16.msra.mxu0 %v2989
        %3031 = vmatprep.subr.bf16.mxu0 0
        %3032 = vmatpush1.bf16.msra.mxu0 %v2990
        %3033 = vmatprep.subr.bf16.mxu0 0
        %3034 = vmatpush1.bf16.msra.mxu0 %v2991
        %3035 = vmatprep.subr.bf16.mxu0 0
        %3036 = vmatpush1.bf16.msra.mxu0 %v2992
        %3037 = vmatprep.subr.bf16.mxu0 0
        %3038 = vmatpush1.bf16.msra.mxu0 %v2993
        %3039 = vmatprep.subr.bf16.mxu0 0
        %3040 = vmatpush1.bf16.msra.mxu0 %v2994
        %3041 = vmatprep.subr.bf16.mxu0 0
        %3042 = vmatpush1.bf16.msra.mxu0 %v2995
        %3043 = vmatprep.subr.bf16.mxu0 0
        %3044 = vmatpush1.bf16.msra.mxu0 %v2996
        %3045 = vmatprep.mubr.bf16.mxu0 %v2631
        %3046 = vmatmul.mubr.bf16.gmra.mrb[0].mxu0 %v2567
        %v3047 = vpop.f32.mrb[0].mxu0
        %v3048 = vadd.f32 0.0, %v3047
        %v3049 = vpop.f32.mrb[0].mxu0
        %v3050 = vpop.f32.mrb[0].mxu0
        %v3051 = vadd.f32 0.0, %v3050
        %v3052 = vpop.f32.mrb[0].mxu0
        %3053 = vmatprep.mubr.bf16.mxu0 %v2635
        %3054 = vmatmul.mubr.bf16.gmra.mrb[0].mxu0 %v2571
        %v3055 = vpop.f32.mrb[0].mxu0
        %v3056 = vadd.f32 0.0, %v3055
        %v3057 = vpop.f32.mrb[0].mxu0
        %v3058 = vpop.f32.mrb[0].mxu0
        %v3059 = vadd.f32 0.0, %v3058
        %v3060 = vpop.f32.mrb[0].mxu0
        %3061 = vmatprep.mubr.bf16.mxu0 %v2639
        %3062 = vmatmul.mubr.bf16.gmra.mrb[0].mxu0 %v2575
        %v3063 = vpop.f32.mrb[0].mxu0
        %v3064 = vadd.f32 0.0, %v3063
        %v3065 = vpop.f32.mrb[0].mxu0
        %v3066 = vpop.f32.mrb[0].mxu0
        %v3067 = vadd.f32 0.0, %v3066
        %v3068 = vpop.f32.mrb[0].mxu0
        %3069 = vmatprep.mubr.bf16.mxu0 %v2643
        %3070 = vmatmul.mubr.bf16.gmra.mrb[0].mxu0 %v2579
        %v3071 = vpop.f32.mrb[0].mxu0
        %v3072 = vadd.f32 0.0, %v3071
        %v3073 = vpop.f32.mrb[0].mxu0
        %v3074 = vpop.f32.mrb[0].mxu0
        %v3075 = vadd.f32 0.0, %v3074
        %v3076 = vpop.f32.mrb[0].mxu0
        %3077 = vmatprep.mubr.bf16.mxu0 %v2647
        %3078 = vmatmul.mubr.bf16.gmra.mrb[0].mxu0 %v2583
        %v3079 = vpop.f32.mrb[0].mxu0
        %v3080 = vadd.f32 0.0, %v3079
        %v3081 = vpop.f32.mrb[0].mxu0
        %v3082 = vpop.f32.mrb[0].mxu0
        %v3083 = vadd.f32 0.0, %v3082
        %v3084 = vpop.f32.mrb[0].mxu0
        %3085 = vmatprep.mubr.bf16.mxu0 %v2651
        %3086 = vmatmul.mubr.bf16.gmra.mrb[0].mxu0 %v2587
        %v3087 = vpop.f32.mrb[0].mxu0
        %v3088 = vadd.f32 0.0, %v3087
        %v3089 = vpop.f32.mrb[0].mxu0
        %v3090 = vpop.f32.mrb[0].mxu0
        %v3091 = vadd.f32 0.0, %v3090
        %v3092 = vpop.f32.mrb[0].mxu0
        %3093 = vmatprep.mubr.bf16.mxu0 %v2655
        %3094 = vmatmul.mubr.bf16.gmra.mrb[0].mxu0 %v2591
        %v3095 = vpop.f32.mrb[0].mxu0
        %v3096 = vadd.f32 0.0, %v3095
        %v3097 = vpop.f32.mrb[0].mxu0
        %v3098 = vpop.f32.mrb[0].mxu0
        %v3099 = vadd.f32 0.0, %v3098
        %v3100 = vpop.f32.mrb[0].mxu0
        %3101 = vmatprep.mubr.bf16.mxu0 %v2659
        %3102 = vmatmul.mubr.bf16.gmra.mrb[0].mxu0 %v2595
        %v3103 = vpop.f32.mrb[0].mxu0
        %v3104 = vadd.f32 0.0, %v3103
        %v3105 = vpop.f32.mrb[0].mxu0
        %v3106 = vpop.f32.mrb[0].mxu0
        %v3107 = vadd.f32 0.0, %v3106
        %v3108 = vpop.f32.mrb[0].mxu0
        %3109 = vmatprep.mubr.bf16.mxu0 %v2663
        %3110 = vmatmul.mubr.bf16.gmra.mrb[0].mxu0 %v2599
        %v3111 = vpop.f32.mrb[0].mxu0
        %v3112 = vadd.f32 0.0, %v3111
        %v3113 = vpop.f32.mrb[0].mxu0
        %v3114 = vpop.f32.mrb[0].mxu0
        %v3115 = vadd.f32 0.0, %v3114
        %v3116 = vpop.f32.mrb[0].mxu0
        %3117 = vmatprep.mubr.bf16.mxu0 %v2667
        %3118 = vmatmul.mubr.bf16.gmra.mrb[0].mxu0 %v2603
        %v3119 = vpop.f32.mrb[0].mxu0
        %v3120 = vadd.f32 0.0, %v3119
        %v3121 = vpop.f32.mrb[0].mxu0
        %v3122 = vpop.f32.mrb[0].mxu0
        %v3123 = vadd.f32 0.0, %v3122
        %v3124 = vpop.f32.mrb[0].mxu0
        %3125 = vmatprep.mubr.bf16.mxu0 %v2671
        %3126 = vmatmul.mubr.bf16.gmra.mrb[0].mxu0 %v2607
        %v3127 = vpop.f32.mrb[0].mxu0
        %v3128 = vadd.f32 0.0, %v3127
        %v3129 = vpop.f32.mrb[0].mxu0
        %v3130 = vpop.f32.mrb[0].mxu0
        %v3131 = vadd.f32 0.0, %v3130
        %v3132 = vpop.f32.mrb[0].mxu0
        %3133 = vmatprep.mubr.bf16.mxu0 %v2675
        %3134 = vmatmul.mubr.bf16.gmra.mrb[0].mxu0 %v2611
        %v3135 = vpop.f32.mrb[0].mxu0
        %v3136 = vadd.f32 0.0, %v3135
        %v3137 = vpop.f32.mrb[0].mxu0
        %v3138 = vpop.f32.mrb[0].mxu0
        %v3139 = vadd.f32 0.0, %v3138
        %v3140 = vpop.f32.mrb[0].mxu0
        %3141 = vmatprep.mubr.bf16.mxu0 %v2679
        %3142 = vmatmul.mubr.bf16.gmra.mrb[0].mxu0 %v2615
        %v3143 = vpop.f32.mrb[0].mxu0
        %v3144 = vadd.f32 0.0, %v3143
        %v3145 = vpop.f32.mrb[0].mxu0
        %v3146 = vpop.f32.mrb[0].mxu0
        %v3147 = vadd.f32 0.0, %v3146
        %v3148 = vpop.f32.mrb[0].mxu0
        %3149 = vmatprep.mubr.bf16.mxu0 %v2683
        %3150 = vmatmul.mubr.bf16.gmra.mrb[0].mxu0 %v2619
        %v3151 = vpop.f32.mrb[0].mxu0
        %v3152 = vadd.f32 0.0, %v3151
        %v3153 = vpop.f32.mrb[0].mxu0
        %v3154 = vpop.f32.mrb[0].mxu0
        %v3155 = vadd.f32 0.0, %v3154
        %v3156 = vpop.f32.mrb[0].mxu0
        %3157 = vmatprep.mubr.bf16.mxu0 %v2687
        %3158 = vmatmul.mubr.bf16.gmra.mrb[0].mxu0 %v2623
        %v3159 = vpop.f32.mrb[0].mxu0
        %v3160 = vadd.f32 0.0, %v3159
        %v3161 = vpop.f32.mrb[0].mxu0
        %v3162 = vpop.f32.mrb[0].mxu0
        %v3163 = vadd.f32 0.0, %v3162
        %v3164 = vpop.f32.mrb[0].mxu0
        %3165 = vmatprep.mubr.bf16.mxu0 %v2691
        %3166 = vmatmul.mubr.bf16.gmra.mrb[0].mxu0 %v2627
        %v3167 = vpop.f32.mrb[0].mxu0
        %v3168 = vadd.f32 0.0, %v3167
        %v3169 = vpop.f32.mrb[0].mxu0
        %v3170 = vpop.f32.mrb[0].mxu0
        %v3171 = vadd.f32 0.0, %v3170
        %v3172 = vpop.f32.mrb[0].mxu0
        %3173 = vdwg.mxu0
        %v3182 = vunpack.c.l.b16 %v617
        %v3183 = vunpack.c.l.b16 %v618
        %v3184 = vunpack.c.l.b16 %v619
        %v3185 = vunpack.c.l.b16 %v620
        %v3186 = vunpack.c.l.b16 %v621
        %v3187 = vunpack.c.l.b16 %v622
        %v3188 = vunpack.c.l.b16 %v623
        %v3189 = vunpack.c.l.b16 %v624
        %v3190 = vpack.c.b16 %v3183, %v3182
        %v3191 = vpack.c.b16 %v3185, %v3184
        %v3192 = vpack.c.b16 %v3187, %v3186
        %v3193 = vpack.c.b16 %v3189, %v3188
        %v3199 = vsel %vm278, %v457, 0
        %v3202 = vsel %vm278, %v458, 0
        %v3205 = vsel %vm278, %v459, 0
        %v3208 = vsel %vm278, %v460, 0
        %v3211 = vsel %vm278, %v461, 0
        %v3214 = vsel %vm278, %v462, 0
        %v3217 = vsel %vm278, %v463, 0
        %v3220 = vsel %vm278, %v464, 0
        %v3223 = vsel %vm278, %v465, 0
        %v3226 = vsel %vm278, %v466, 0
        %v3229 = vsel %vm278, %v467, 0
        %v3232 = vsel %vm278, %v468, 0
        %v3235 = vsel %vm278, %v469, 0
        %v3238 = vsel %vm278, %v470, 0
        %v3241 = vsel %vm278, %v471, 0
        %v3244 = vsel %vm278, %v472, 0
        %3246 = vmatprep.subr.bf16.mxu0 0
        %3247 = vmatpush1.bf16.msra.mxu0 %v3190
        %3248 = vmatprep.subr.bf16.mxu0 0
        %3249 = vmatpush1.bf16.msra.mxu0 %v3191
        %3250 = vmatprep.subr.bf16.mxu0 0
        %3251 = vmatpush1.bf16.msra.mxu0 %v3192
        %3252 = vmatprep.subr.bf16.mxu0 0
        %3253 = vmatpush1.bf16.msra.mxu0 %v3193
        %3254 = vmatprep.subr.bf16.mxu0 0
        %3255 = vmatpush1.bf16.msra.mxu0 0
        %3256 = vmatprep.subr.bf16.mxu0 0
        %3257 = vmatpush1.bf16.msra.mxu0 0
        %3258 = vmatprep.subr.bf16.mxu0 0
        %3259 = vmatpush1.bf16.msra.mxu0 0
        %3260 = vmatprep.subr.bf16.mxu0 0
        %3261 = vmatpush1.bf16.msra.mxu0 0
        %3262 = vmatprep.subr.bf16.mxu0 0
        %3263 = vmatpush1.bf16.msra.mxu0 0
        %3264 = vmatprep.subr.bf16.mxu0 0
        %3265 = vmatpush1.bf16.msra.mxu0 0
        %3266 = vmatprep.subr.bf16.mxu0 0
        %3267 = vmatpush1.bf16.msra.mxu0 0
        %3268 = vmatprep.subr.bf16.mxu0 0
        %3269 = vmatpush1.bf16.msra.mxu0 0
        %3270 = vmatprep.subr.bf16.mxu0 0
        %3271 = vmatpush1.bf16.msra.mxu0 0
        %3272 = vmatprep.subr.bf16.mxu0 0
        %3273 = vmatpush1.bf16.msra.mxu0 0
        %3274 = vmatprep.subr.bf16.mxu0 0
        %3275 = vmatpush1.bf16.msra.mxu0 0
        %3276 = vmatprep.subr.bf16.mxu0 0
        %3277 = vmatpush1.bf16.msra.mxu0 0
        %3278 = vmatprep.mubr.bf16.mxu0 0
        %3279 = vmatmul.mubr.bf16.gmra.mrb[0].mxu0 %v3199
        %v3280 = vpop.f32.mrb[0].mxu0
        %v3281 = vadd.f32 %v3048, %v3280
        %v3282 = vpop.f32.mrb[0].mxu0
        %v3283 = vpop.f32.mrb[0].mxu0
        %v3284 = vadd.f32 %v3051, %v3283
        %v3285 = vpop.f32.mrb[0].mxu0
        %3286 = vmatprep.mubr.bf16.mxu0 0
        %3287 = vmatmul.mubr.bf16.gmra.mrb[0].mxu0 %v3202
        %v3288 = vpop.f32.mrb[0].mxu0
        %v3289 = vadd.f32 %v3056, %v3288
        %v3290 = vpop.f32.mrb[0].mxu0
        %v3291 = vpop.f32.mrb[0].mxu0
        %v3292 = vadd.f32 %v3059, %v3291
        %v3293 = vpop.f32.mrb[0].mxu0
        %3294 = vmatprep.mubr.bf16.mxu0 0
        %3295 = vmatmul.mubr.bf16.gmra.mrb[0].mxu0 %v3205
        %v3296 = vpop.f32.mrb[0].mxu0
        %v3297 = vadd.f32 %v3064, %v3296
        %v3298 = vpop.f32.mrb[0].mxu0
        %v3299 = vpop.f32.mrb[0].mxu0
        %v3300 = vadd.f32 %v3067, %v3299
        %v3301 = vpop.f32.mrb[0].mxu0
        %3302 = vmatprep.mubr.bf16.mxu0 0
        %3303 = vmatmul.mubr.bf16.gmra.mrb[0].mxu0 %v3208
        %v3304 = vpop.f32.mrb[0].mxu0
        %v3305 = vadd.f32 %v3072, %v3304
        %v3306 = vpop.f32.mrb[0].mxu0
        %v3307 = vpop.f32.mrb[0].mxu0
        %v3308 = vadd.f32 %v3075, %v3307
        %v3309 = vpop.f32.mrb[0].mxu0
        %3310 = vmatprep.mubr.bf16.mxu0 0
        %3311 = vmatmul.mubr.bf16.gmra.mrb[0].mxu0 %v3211
        %v3312 = vpop.f32.mrb[0].mxu0
        %v3313 = vadd.f32 %v3080, %v3312
        %v3314 = vpop.f32.mrb[0].mxu0
        %v3315 = vpop.f32.mrb[0].mxu0
        %v3316 = vadd.f32 %v3083, %v3315
        %v3317 = vpop.f32.mrb[0].mxu0
        %3318 = vmatprep.mubr.bf16.mxu0 0
        %3319 = vmatmul.mubr.bf16.gmra.mrb[0].mxu0 %v3214
        %v3320 = vpop.f32.mrb[0].mxu0
        %v3321 = vadd.f32 %v3088, %v3320
        %v3322 = vpop.f32.mrb[0].mxu0
        %v3323 = vpop.f32.mrb[0].mxu0
        %v3324 = vadd.f32 %v3091, %v3323
        %v3325 = vpop.f32.mrb[0].mxu0
        %3326 = vmatprep.mubr.bf16.mxu0 0
        %3327 = vmatmul.mubr.bf16.gmra.mrb[0].mxu0 %v3217
        %v3328 = vpop.f32.mrb[0].mxu0
        %v3329 = vadd.f32 %v3096, %v3328
        %v3330 = vpop.f32.mrb[0].mxu0
        %v3331 = vpop.f32.mrb[0].mxu0
        %v3332 = vadd.f32 %v3099, %v3331
        %v3333 = vpop.f32.mrb[0].mxu0
        %3334 = vmatprep.mubr.bf16.mxu0 0
        %3335 = vmatmul.mubr.bf16.gmra.mrb[0].mxu0 %v3220
        %v3336 = vpop.f32.mrb[0].mxu0
        %v3337 = vadd.f32 %v3104, %v3336
        %v3338 = vpop.f32.mrb[0].mxu0
        %v3339 = vpop.f32.mrb[0].mxu0
        %v3340 = vadd.f32 %v3107, %v3339
        %v3341 = vpop.f32.mrb[0].mxu0
        %3342 = vmatprep.mubr.bf16.mxu0 0
        %3343 = vmatmul.mubr.bf16.gmra.mrb[0].mxu0 %v3223
        %v3344 = vpop.f32.mrb[0].mxu0
        %v3345 = vadd.f32 %v3112, %v3344
        %v3346 = vpop.f32.mrb[0].mxu0
        %v3347 = vpop.f32.mrb[0].mxu0
        %v3348 = vadd.f32 %v3115, %v3347
        %v3349 = vpop.f32.mrb[0].mxu0
        %3350 = vmatprep.mubr.bf16.mxu0 0
        %3351 = vmatmul.mubr.bf16.gmra.mrb[0].mxu0 %v3226
        %v3352 = vpop.f32.mrb[0].mxu0
        %v3353 = vadd.f32 %v3120, %v3352
        %v3354 = vpop.f32.mrb[0].mxu0
        %v3355 = vpop.f32.mrb[0].mxu0
        %v3356 = vadd.f32 %v3123, %v3355
        %v3357 = vpop.f32.mrb[0].mxu0
        %3358 = vmatprep.mubr.bf16.mxu0 0
        %3359 = vmatmul.mubr.bf16.gmra.mrb[0].mxu0 %v3229
        %v3360 = vpop.f32.mrb[0].mxu0
        %v3361 = vadd.f32 %v3128, %v3360
        %v3362 = vpop.f32.mrb[0].mxu0
        %v3363 = vpop.f32.mrb[0].mxu0
        %v3364 = vadd.f32 %v3131, %v3363
        %v3365 = vpop.f32.mrb[0].mxu0
        %3366 = vmatprep.mubr.bf16.mxu0 0
        %3367 = vmatmul.mubr.bf16.gmra.mrb[0].mxu0 %v3232
        %v3368 = vpop.f32.mrb[0].mxu0
        %v3369 = vadd.f32 %v3136, %v3368
        %v3370 = vpop.f32.mrb[0].mxu0
        %v3371 = vpop.f32.mrb[0].mxu0
        %v3372 = vadd.f32 %v3139, %v3371
        %v3373 = vpop.f32.mrb[0].mxu0
        %3374 = vmatprep.mubr.bf16.mxu0 0
        %3375 = vmatmul.mubr.bf16.gmra.mrb[0].mxu0 %v3235
        %v3376 = vpop.f32.mrb[0].mxu0
        %v3377 = vadd.f32 %v3144, %v3376
        %v3378 = vpop.f32.mrb[0].mxu0
        %v3379 = vpop.f32.mrb[0].mxu0
        %v3380 = vadd.f32 %v3147, %v3379
        %v3381 = vpop.f32.mrb[0].mxu0
        %3382 = vmatprep.mubr.bf16.mxu0 0
        %3383 = vmatmul.mubr.bf16.gmra.mrb[0].mxu0 %v3238
        %v3384 = vpop.f32.mrb[0].mxu0
        %v3385 = vadd.f32 %v3152, %v3384
        %v3386 = vpop.f32.mrb[0].mxu0
        %v3387 = vpop.f32.mrb[0].mxu0
        %v3388 = vadd.f32 %v3155, %v3387
        %v3389 = vpop.f32.mrb[0].mxu0
        %3390 = vmatprep.mubr.bf16.mxu0 0
        %3391 = vmatmul.mubr.bf16.gmra.mrb[0].mxu0 %v3241
        %v3392 = vpop.f32.mrb[0].mxu0
        %v3393 = vadd.f32 %v3160, %v3392
        %v3394 = vpop.f32.mrb[0].mxu0
        %v3395 = vpop.f32.mrb[0].mxu0
        %v3396 = vadd.f32 %v3163, %v3395
        %v3397 = vpop.f32.mrb[0].mxu0
        %3398 = vmatprep.mubr.bf16.mxu0 0
        %3399 = vmatmul.mubr.bf16.gmra.mrb[0].mxu0 %v3244
        %v3400 = vpop.f32.mrb[0].mxu0
        %v3401 = vadd.f32 %v3168, %v3400
        %v3402 = vpop.f32.mrb[0].mxu0
        %v3403 = vpop.f32.mrb[0].mxu0
        %v3404 = vadd.f32 %v3171, %v3403
        %v3405 = vpop.f32.mrb[0].mxu0
        %3406 = vdwg.mxu0
        %s3407 = scalar_lea.vmem %s2, 128
        %v3408 = vld [vmem:[%s3407] sm:$0xf]
        %v3409 = vld [vmem:[%s3407 + $0x4] sm:$0xf]
        %v3410 = vld [vmem:[%s3407 + $0x8] sm:$0xf]
        %v3411 = vld [vmem:[%s3407 + $0xc] sm:$0xf]
        %v3412 = vld [vmem:[%s3407 + $0x10] sm:$0xf]
        %v3413 = vld [vmem:[%s3407 + $0x14] sm:$0xf]
        %v3414 = vld [vmem:[%s3407 + $0x18] sm:$0xf]
        %v3415 = vld [vmem:[%s3407 + $0x1c] sm:$0xf]
        %v3416 = vld [vmem:[%s3407 + $0x20] sm:$0xf]
        %v3417 = vld [vmem:[%s3407 + $0x24] sm:$0xf]
        %v3418 = vld [vmem:[%s3407 + $0x28] sm:$0xf]
        %v3419 = vld [vmem:[%s3407 + $0x2c] sm:$0xf]
        %v3420 = vld [vmem:[%s3407 + $0x30] sm:$0xf]
        %v3421 = vld [vmem:[%s3407 + $0x34] sm:$0xf]
        %v3422 = vld [vmem:[%s3407 + $0x38] sm:$0xf]
        %v3423 = vld [vmem:[%s3407 + $0x3c] sm:$0xf]
        %v3424 = vld [vmem:[%s3407 + $0x40] sm:$0xf]
        %v3425 = vld [vmem:[%s3407 + $0x44] sm:$0xf]
        %v3426 = vld [vmem:[%s3407 + $0x48] sm:$0xf]
        %v3427 = vld [vmem:[%s3407 + $0x4c] sm:$0xf]
        %v3428 = vld [vmem:[%s3407 + $0x50] sm:$0xf]
        %v3429 = vld [vmem:[%s3407 + $0x54] sm:$0xf]
        %v3430 = vld [vmem:[%s3407 + $0x58] sm:$0xf]
        %v3431 = vld [vmem:[%s3407 + $0x5c] sm:$0xf]
        %v3432 = vld [vmem:[%s3407 + $0x60] sm:$0xf]
        %v3433 = vld [vmem:[%s3407 + $0x64] sm:$0xf]
        %v3434 = vld [vmem:[%s3407 + $0x68] sm:$0xf]
        %v3435 = vld [vmem:[%s3407 + $0x6c] sm:$0xf]
        %v3436 = vld [vmem:[%s3407 + $0x70] sm:$0xf]
        %v3437 = vld [vmem:[%s3407 + $0x74] sm:$0xf]
        %v3438 = vld [vmem:[%s3407 + $0x78] sm:$0xf]
        %v3439 = vld [vmem:[%s3407 + $0x7c] sm:$0xf]
        %v3472 = vunpack.c.l.b16 %v3408
        %v3473 = vunpack.c.l.b16 %v3409
        %v3474 = vunpack.c.l.b16 %v3410
        %v3475 = vunpack.c.l.b16 %v3411
        %v3476 = vunpack.c.l.b16 %v3412
        %v3477 = vunpack.c.l.b16 %v3413
        %v3478 = vunpack.c.l.b16 %v3414
        %v3479 = vunpack.c.l.b16 %v3415
        %v3480 = vunpack.c.l.b16 %v3416
        %v3481 = vunpack.c.l.b16 %v3417
        %v3482 = vunpack.c.l.b16 %v3418
        %v3483 = vunpack.c.l.b16 %v3419
        %v3484 = vunpack.c.l.b16 %v3420
        %v3485 = vunpack.c.l.b16 %v3421
        %v3486 = vunpack.c.l.b16 %v3422
        %v3487 = vunpack.c.l.b16 %v3423
        %v3488 = vunpack.c.l.b16 %v3424
        %v3489 = vunpack.c.l.b16 %v3425
        %v3490 = vunpack.c.l.b16 %v3426
        %v3491 = vunpack.c.l.b16 %v3427
        %v3492 = vunpack.c.l.b16 %v3428
        %v3493 = vunpack.c.l.b16 %v3429
        %v3494 = vunpack.c.l.b16 %v3430
        %v3495 = vunpack.c.l.b16 %v3431
        %v3496 = vunpack.c.l.b16 %v3432
        %v3497 = vunpack.c.l.b16 %v3433
        %v3498 = vunpack.c.l.b16 %v3434
        %v3499 = vunpack.c.l.b16 %v3435
        %v3500 = vunpack.c.l.b16 %v3436
        %v3501 = vunpack.c.l.b16 %v3437
        %v3502 = vunpack.c.l.b16 %v3438
        %v3503 = vunpack.c.l.b16 %v3439
        %v3504 = vpack.c.b16 %v3473, %v3472
        %v3505 = vpack.c.b16 %v3475, %v3474
        %v3506 = vpack.c.b16 %v3477, %v3476
        %v3507 = vpack.c.b16 %v3479, %v3478
        %v3508 = vpack.c.b16 %v3481, %v3480
        %v3509 = vpack.c.b16 %v3483, %v3482
        %v3510 = vpack.c.b16 %v3485, %v3484
        %v3511 = vpack.c.b16 %v3487, %v3486
        %v3512 = vpack.c.b16 %v3489, %v3488
        %v3513 = vpack.c.b16 %v3491, %v3490
        %v3514 = vpack.c.b16 %v3493, %v3492
        %v3515 = vpack.c.b16 %v3495, %v3494
        %v3516 = vpack.c.b16 %v3497, %v3496
        %v3517 = vpack.c.b16 %v3499, %v3498
        %v3518 = vpack.c.b16 %v3501, %v3500
        %v3519 = vpack.c.b16 %v3503, %v3502
        %3536 = vmatprep.subr.bf16.mxu0 0
        %3537 = vmatpush1.bf16.msra.mxu0 %v3504
        %3538 = vmatprep.subr.bf16.mxu0 0
        %3539 = vmatpush1.bf16.msra.mxu0 %v3505
        %3540 = vmatprep.subr.bf16.mxu0 0
        %3541 = vmatpush1.bf16.msra.mxu0 %v3506
        %3542 = vmatprep.subr.bf16.mxu0 0
        %3543 = vmatpush1.bf16.msra.mxu0 %v3507
        %3544 = vmatprep.subr.bf16.mxu0 0
        %3545 = vmatpush1.bf16.msra.mxu0 %v3508
        %3546 = vmatprep.subr.bf16.mxu0 0
        %3547 = vmatpush1.bf16.msra.mxu0 %v3509
        %3548 = vmatprep.subr.bf16.mxu0 0
        %3549 = vmatpush1.bf16.msra.mxu0 %v3510
        %3550 = vmatprep.subr.bf16.mxu0 0
        %3551 = vmatpush1.bf16.msra.mxu0 %v3511
        %3552 = vmatprep.subr.bf16.mxu0 0
        %3553 = vmatpush1.bf16.msra.mxu0 %v3512
        %3554 = vmatprep.subr.bf16.mxu0 0
        %3555 = vmatpush1.bf16.msra.mxu0 %v3513
        %3556 = vmatprep.subr.bf16.mxu0 0
        %3557 = vmatpush1.bf16.msra.mxu0 %v3514
        %3558 = vmatprep.subr.bf16.mxu0 0
        %3559 = vmatpush1.bf16.msra.mxu0 %v3515
        %3560 = vmatprep.subr.bf16.mxu0 0
        %3561 = vmatpush1.bf16.msra.mxu0 %v3516
        %3562 = vmatprep.subr.bf16.mxu0 0
        %3563 = vmatpush1.bf16.msra.mxu0 %v3517
        %3564 = vmatprep.subr.bf16.mxu0 0
        %3565 = vmatpush1.bf16.msra.mxu0 %v3518
        %3566 = vmatprep.subr.bf16.mxu0 0
        %3567 = vmatpush1.bf16.msra.mxu0 %v3519
        %3568 = vmatprep.mubr.bf16.mxu0 %v2823
        %3569 = vmatmul.mubr.bf16.gmra.mrb[0].mxu0 %v2759
        %v3570 = vpop.f32.mrb[0].mxu0
        %v3571 = vadd.f32 0.0, %v3570
        %v3572 = vpop.f32.mrb[0].mxu0
        %v3573 = vpop.f32.mrb[0].mxu0
        %v3574 = vadd.f32 0.0, %v3573
        %v3575 = vpop.f32.mrb[0].mxu0
        %3576 = vmatprep.mubr.bf16.mxu0 %v2827
        %3577 = vmatmul.mubr.bf16.gmra.mrb[0].mxu0 %v2763
        %v3578 = vpop.f32.mrb[0].mxu0
        %v3579 = vadd.f32 0.0, %v3578
        %v3580 = vpop.f32.mrb[0].mxu0
        %v3581 = vpop.f32.mrb[0].mxu0
        %v3582 = vadd.f32 0.0, %v3581
        %v3583 = vpop.f32.mrb[0].mxu0
        %3584 = vmatprep.mubr.bf16.mxu0 %v2831
        %3585 = vmatmul.mubr.bf16.gmra.mrb[0].mxu0 %v2767
        %v3586 = vpop.f32.mrb[0].mxu0
        %v3587 = vadd.f32 0.0, %v3586
        %v3588 = vpop.f32.mrb[0].mxu0
        %v3589 = vpop.f32.mrb[0].mxu0
        %v3590 = vadd.f32 0.0, %v3589
        %v3591 = vpop.f32.mrb[0].mxu0
        %3592 = vmatprep.mubr.bf16.mxu0 %v2835
        %3593 = vmatmul.mubr.bf16.gmra.mrb[0].mxu0 %v2771
        %v3594 = vpop.f32.mrb[0].mxu0
        %v3595 = vadd.f32 0.0, %v3594
        %v3596 = vpop.f32.mrb[0].mxu0
        %v3597 = vpop.f32.mrb[0].mxu0
        %v3598 = vadd.f32 0.0, %v3597
        %v3599 = vpop.f32.mrb[0].mxu0
        %3600 = vmatprep.mubr.bf16.mxu0 %v2839
        %3601 = vmatmul.mubr.bf16.gmra.mrb[0].mxu0 %v2775
        %v3602 = vpop.f32.mrb[0].mxu0
        %v3603 = vadd.f32 0.0, %v3602
        %v3604 = vpop.f32.mrb[0].mxu0
        %v3605 = vpop.f32.mrb[0].mxu0
        %v3606 = vadd.f32 0.0, %v3605
        %v3607 = vpop.f32.mrb[0].mxu0
        %3608 = vmatprep.mubr.bf16.mxu0 %v2843
        %3609 = vmatmul.mubr.bf16.gmra.mrb[0].mxu0 %v2779
        %v3610 = vpop.f32.mrb[0].mxu0
        %v3611 = vadd.f32 0.0, %v3610
        %v3612 = vpop.f32.mrb[0].mxu0
        %v3613 = vpop.f32.mrb[0].mxu0
        %v3614 = vadd.f32 0.0, %v3613
        %v3615 = vpop.f32.mrb[0].mxu0
        %3616 = vmatprep.mubr.bf16.mxu0 %v2847
        %3617 = vmatmul.mubr.bf16.gmra.mrb[0].mxu0 %v2783
        %v3618 = vpop.f32.mrb[0].mxu0
        %v3619 = vadd.f32 0.0, %v3618
        %v3620 = vpop.f32.mrb[0].mxu0
        %v3621 = vpop.f32.mrb[0].mxu0
        %v3622 = vadd.f32 0.0, %v3621
        %v3623 = vpop.f32.mrb[0].mxu0
        %3624 = vmatprep.mubr.bf16.mxu0 %v2851
        %3625 = vmatmul.mubr.bf16.gmra.mrb[0].mxu0 %v2787
        %v3626 = vpop.f32.mrb[0].mxu0
        %v3627 = vadd.f32 0.0, %v3626
        %v3628 = vpop.f32.mrb[0].mxu0
        %v3629 = vpop.f32.mrb[0].mxu0
        %v3630 = vadd.f32 0.0, %v3629
        %v3631 = vpop.f32.mrb[0].mxu0
        %3632 = vmatprep.mubr.bf16.mxu0 %v2855
        %3633 = vmatmul.mubr.bf16.gmra.mrb[0].mxu0 %v2791
        %v3634 = vpop.f32.mrb[0].mxu0
        %v3635 = vadd.f32 0.0, %v3634
        %v3636 = vpop.f32.mrb[0].mxu0
        %v3637 = vpop.f32.mrb[0].mxu0
        %v3638 = vadd.f32 0.0, %v3637
        %v3639 = vpop.f32.mrb[0].mxu0
        %3640 = vmatprep.mubr.bf16.mxu0 %v2859
        %3641 = vmatmul.mubr.bf16.gmra.mrb[0].mxu0 %v2795
        %v3642 = vpop.f32.mrb[0].mxu0
        %v3643 = vadd.f32 0.0, %v3642
        %v3644 = vpop.f32.mrb[0].mxu0
        %v3645 = vpop.f32.mrb[0].mxu0
        %v3646 = vadd.f32 0.0, %v3645
        %v3647 = vpop.f32.mrb[0].mxu0
        %3648 = vmatprep.mubr.bf16.mxu0 %v2863
        %3649 = vmatmul.mubr.bf16.gmra.mrb[0].mxu0 %v2799
        %v3650 = vpop.f32.mrb[0].mxu0
        %v3651 = vadd.f32 0.0, %v3650
        %v3652 = vpop.f32.mrb[0].mxu0
        %v3653 = vpop.f32.mrb[0].mxu0
        %v3654 = vadd.f32 0.0, %v3653
        %v3655 = vpop.f32.mrb[0].mxu0
        %3656 = vmatprep.mubr.bf16.mxu0 %v2867
        %3657 = vmatmul.mubr.bf16.gmra.mrb[0].mxu0 %v2803
        %v3658 = vpop.f32.mrb[0].mxu0
        %v3659 = vadd.f32 0.0, %v3658
        %v3660 = vpop.f32.mrb[0].mxu0
        %v3661 = vpop.f32.mrb[0].mxu0
        %v3662 = vadd.f32 0.0, %v3661
        %v3663 = vpop.f32.mrb[0].mxu0
        %3664 = vmatprep.mubr.bf16.mxu0 %v2871
        %3665 = vmatmul.mubr.bf16.gmra.mrb[0].mxu0 %v2807
        %v3666 = vpop.f32.mrb[0].mxu0
        %v3667 = vadd.f32 0.0, %v3666
        %v3668 = vpop.f32.mrb[0].mxu0
        %v3669 = vpop.f32.mrb[0].mxu0
        %v3670 = vadd.f32 0.0, %v3669
        %v3671 = vpop.f32.mrb[0].mxu0
        %3672 = vmatprep.mubr.bf16.mxu0 %v2875
        %3673 = vmatmul.mubr.bf16.gmra.mrb[0].mxu0 %v2811
        %v3674 = vpop.f32.mrb[0].mxu0
        %v3675 = vadd.f32 0.0, %v3674
        %v3676 = vpop.f32.mrb[0].mxu0
        %v3677 = vpop.f32.mrb[0].mxu0
        %v3678 = vadd.f32 0.0, %v3677
        %v3679 = vpop.f32.mrb[0].mxu0
        %3680 = vmatprep.mubr.bf16.mxu0 %v2879
        %3681 = vmatmul.mubr.bf16.gmra.mrb[0].mxu0 %v2815
        %v3682 = vpop.f32.mrb[0].mxu0
        %v3683 = vadd.f32 0.0, %v3682
        %v3684 = vpop.f32.mrb[0].mxu0
        %v3685 = vpop.f32.mrb[0].mxu0
        %v3686 = vadd.f32 0.0, %v3685
        %v3687 = vpop.f32.mrb[0].mxu0
        %3688 = vmatprep.mubr.bf16.mxu0 %v2883
        %3689 = vmatmul.mubr.bf16.gmra.mrb[0].mxu0 %v2819
        %v3690 = vpop.f32.mrb[0].mxu0
        %v3691 = vadd.f32 0.0, %v3690
        %v3692 = vpop.f32.mrb[0].mxu0
        %v3693 = vpop.f32.mrb[0].mxu0
        %v3694 = vadd.f32 0.0, %v3693
        %v3695 = vpop.f32.mrb[0].mxu0
        %3696 = vdwg.mxu0
        %v3697 = vadd.f32 %v3281, %v3571
        %v3698 = vadd.f32 %v3284, %v3574
        %v3699 = vadd.f32 %v3289, %v3579
        %v3700 = vadd.f32 %v3292, %v3582
        %v3701 = vadd.f32 %v3297, %v3587
        %v3702 = vadd.f32 %v3300, %v3590
        %v3703 = vadd.f32 %v3305, %v3595
        %v3704 = vadd.f32 %v3308, %v3598
        %v3705 = vadd.f32 %v3313, %v3603
        %v3706 = vadd.f32 %v3316, %v3606
        %v3707 = vadd.f32 %v3321, %v3611
        %v3708 = vadd.f32 %v3324, %v3614
        %v3709 = vadd.f32 %v3329, %v3619
        %v3710 = vadd.f32 %v3332, %v3622
        %v3711 = vadd.f32 %v3337, %v3627
        %v3712 = vadd.f32 %v3340, %v3630
        %v3713 = vadd.f32 %v3345, %v3635
        %v3714 = vadd.f32 %v3348, %v3638
        %v3715 = vadd.f32 %v3353, %v3643
        %v3716 = vadd.f32 %v3356, %v3646
        %v3717 = vadd.f32 %v3361, %v3651
        %v3718 = vadd.f32 %v3364, %v3654
        %v3719 = vadd.f32 %v3369, %v3659
        %v3720 = vadd.f32 %v3372, %v3662
        %v3721 = vadd.f32 %v3377, %v3667
        %v3722 = vadd.f32 %v3380, %v3670
        %v3723 = vadd.f32 %v3385, %v3675
        %v3724 = vadd.f32 %v3388, %v3678
        %v3725 = vadd.f32 %v3393, %v3683
        %v3726 = vadd.f32 %v3396, %v3686
        %v3727 = vadd.f32 %v3401, %v3691
        %v3728 = vadd.f32 %v3404, %v3694
        %s3729 = scalar_lea.vmem [#allocation2], 72
        %v3730 = vld [vmem:[%s3729] sm:$0xe0]
        %v3731 = vld [vmem:[%s3729 + $0x8] sm:$0x3f]
        %v3732 = vld [vmem:[%s3729 + $0x18] sm:$0xe0]
        %v3733 = vld [vmem:[%s3729 + $0x20] sm:$0x3f]
        %v3734 = vld [vmem:[%s3729 + $0x30] sm:$0xe0]
        %v3735 = vld [vmem:[%s3729 + $0x38] sm:$0x3f]
        %v3736 = vld [vmem:[%s3729 + $0x48] sm:$0xe0]
        %v3737 = vld [vmem:[%s3729 + $0x50] sm:$0x3f]
        %v3738 = vld [vmem:[%s3729 + $0x60] sm:$0xe0]
        %v3739 = vld [vmem:[%s3729 + $0x68] sm:$0x3f]
        %v3740 = vld [vmem:[%s3729 + $0x78] sm:$0xe0]
        %v3741 = vld [vmem:[%s3729 + $0x80] sm:$0x3f]
        %v3742 = vld [vmem:[%s3729 + $0x90] sm:$0xe0]
        %v3743 = vld [vmem:[%s3729 + $0x98] sm:$0x3f]
        %v3744 = vld [vmem:[%s3729 + $0xa8] sm:$0xe0]
        %v3745 = vld [vmem:[%s3729 + $0xb0] sm:$0x3f]
        %v3746 = vld [vmem:[%s3729 + $0xc0] sm:$0xe0]
        %v3747 = vld [vmem:[%s3729 + $0xc8] sm:$0x3f]
        %v3748 = vld [vmem:[%s3729 + $0xd8] sm:$0xe0]
        %v3749 = vld [vmem:[%s3729 + $0xe0] sm:$0x3f]
        %v3750 = vld [vmem:[%s3729 + $0xf0] sm:$0xe0]
        %v3751 = vld [vmem:[%s3729 + $0xf8] sm:$0x3f]
        %v3752 = vld [vmem:[%s3729 + $0x108] sm:$0xe0]
        %v3753 = vld [vmem:[%s3729 + $0x110] sm:$0x3f]
        %v3754 = vld [vmem:[%s3729 + $0x120] sm:$0xe0]
        %v3755 = vld [vmem:[%s3729 + $0x128] sm:$0x3f]
        %v3756 = vld [vmem:[%s3729 + $0x138] sm:$0xe0]
        %v3757 = vld [vmem:[%s3729 + $0x140] sm:$0x3f]
        %v3758 = vld [vmem:[%s3729 + $0x150] sm:$0xe0]
        %v3759 = vld [vmem:[%s3729 + $0x158] sm:$0x3f]
        %v3760 = vld [vmem:[%s3729 + $0x168] sm:$0xe0]
        %v3761 = vld [vmem:[%s3729 + $0x170] sm:$0x3f]
        %vm3762 = vsmask.f32 2304
        %v3764 = vshrl.u32 %v3730, 16
        %v3766 = vrot.slane %v3764, 5
        %v3767 = vshll.u32 %v3730, 16
        %v3769 = vrot.slane %v3767, 6
        %v3770 = vor.u32 %v3766, %v3769
        %v3772 = vshrl.u32 %v3731, 16
        %v3774 = vrot.slane %v3772, 5
        %v3775 = vshll.u32 %v3731, 16
        %v3777 = vrot.slane %v3775, 6
        %v3778 = vor.u32 %v3774, %v3777
        %v3779 = vsel %vm3762, %v3770, %v3778
        %v3781 = vshrl.u32 %v3732, 16
        %v3783 = vrot.slane %v3781, 5
        %v3784 = vshll.u32 %v3732, 16
        %v3786 = vrot.slane %v3784, 6
        %v3787 = vor.u32 %v3783, %v3786
        %v3789 = vshrl.u32 %v3733, 16
        %v3791 = vrot.slane %v3789, 5
        %v3792 = vshll.u32 %v3733, 16
        %v3794 = vrot.slane %v3792, 6
        %v3795 = vor.u32 %v3791, %v3794
        %v3796 = vsel %vm3762, %v3787, %v3795
        %v3798 = vshrl.u32 %v3734, 16
        %v3800 = vrot.slane %v3798, 5
        %v3801 = vshll.u32 %v3734, 16
        %v3803 = vrot.slane %v3801, 6
        %v3804 = vor.u32 %v3800, %v3803
        %v3806 = vshrl.u32 %v3735, 16
        %v3808 = vrot.slane %v3806, 5
        %v3809 = vshll.u32 %v3735, 16
        %v3811 = vrot.slane %v3809, 6
        %v3812 = vor.u32 %v3808, %v3811
        %v3813 = vsel %vm3762, %v3804, %v3812
        %v3815 = vshrl.u32 %v3736, 16
        %v3817 = vrot.slane %v3815, 5
        %v3818 = vshll.u32 %v3736, 16
        %v3820 = vrot.slane %v3818, 6
        %v3821 = vor.u32 %v3817, %v3820
        %v3823 = vshrl.u32 %v3737, 16
        %v3825 = vrot.slane %v3823, 5
        %v3826 = vshll.u32 %v3737, 16
        %v3828 = vrot.slane %v3826, 6
        %v3829 = vor.u32 %v3825, %v3828
        %v3830 = vsel %vm3762, %v3821, %v3829
        %v3832 = vshrl.u32 %v3738, 16
        %v3834 = vrot.slane %v3832, 5
        %v3835 = vshll.u32 %v3738, 16
        %v3837 = vrot.slane %v3835, 6
        %v3838 = vor.u32 %v3834, %v3837
        %v3840 = vshrl.u32 %v3739, 16
        %v3842 = vrot.slane %v3840, 5
        %v3843 = vshll.u32 %v3739, 16
        %v3845 = vrot.slane %v3843, 6
        %v3846 = vor.u32 %v3842, %v3845
        %v3847 = vsel %vm3762, %v3838, %v3846
        %v3849 = vshrl.u32 %v3740, 16
        %v3851 = vrot.slane %v3849, 5
        %v3852 = vshll.u32 %v3740, 16
        %v3854 = vrot.slane %v3852, 6
        %v3855 = vor.u32 %v3851, %v3854
        %v3857 = vshrl.u32 %v3741, 16
        %v3859 = vrot.slane %v3857, 5
        %v3860 = vshll.u32 %v3741, 16
        %v3862 = vrot.slane %v3860, 6
        %v3863 = vor.u32 %v3859, %v3862
        %v3864 = vsel %vm3762, %v3855, %v3863
        %v3866 = vshrl.u32 %v3742, 16
        %v3868 = vrot.slane %v3866, 5
        %v3869 = vshll.u32 %v3742, 16
        %v3871 = vrot.slane %v3869, 6
        %v3872 = vor.u32 %v3868, %v3871
        %v3874 = vshrl.u32 %v3743, 16
        %v3876 = vrot.slane %v3874, 5
        %v3877 = vshll.u32 %v3743, 16
        %v3879 = vrot.slane %v3877, 6
        %v3880 = vor.u32 %v3876, %v3879
        %v3881 = vsel %vm3762, %v3872, %v3880
        %v3883 = vshrl.u32 %v3744, 16
        %v3885 = vrot.slane %v3883, 5
        %v3886 = vshll.u32 %v3744, 16
        %v3888 = vrot.slane %v3886, 6
        %v3889 = vor.u32 %v3885, %v3888
        %v3891 = vshrl.u32 %v3745, 16
        %v3893 = vrot.slane %v3891, 5
        %v3894 = vshll.u32 %v3745, 16
        %v3896 = vrot.slane %v3894, 6
        %v3897 = vor.u32 %v3893, %v3896
        %v3898 = vsel %vm3762, %v3889, %v3897
        %v3900 = vshrl.u32 %v3746, 16
        %v3902 = vrot.slane %v3900, 5
        %v3903 = vshll.u32 %v3746, 16
        %v3905 = vrot.slane %v3903, 6
        %v3906 = vor.u32 %v3902, %v3905
        %v3908 = vshrl.u32 %v3747, 16
        %v3910 = vrot.slane %v3908, 5
        %v3911 = vshll.u32 %v3747, 16
        %v3913 = vrot.slane %v3911, 6
        %v3914 = vor.u32 %v3910, %v3913
        %v3915 = vsel %vm3762, %v3906, %v3914
        %v3917 = vshrl.u32 %v3748, 16
        %v3919 = vrot.slane %v3917, 5
        %v3920 = vshll.u32 %v3748, 16
        %v3922 = vrot.slane %v3920, 6
        %v3923 = vor.u32 %v3919, %v3922
        %v3925 = vshrl.u32 %v3749, 16
        %v3927 = vrot.slane %v3925, 5
        %v3928 = vshll.u32 %v3749, 16
        %v3930 = vrot.slane %v3928, 6
        %v3931 = vor.u32 %v3927, %v3930
        %v3932 = vsel %vm3762, %v3923, %v3931
        %v3934 = vshrl.u32 %v3750, 16
        %v3936 = vrot.slane %v3934, 5
        %v3937 = vshll.u32 %v3750, 16
        %v3939 = vrot.slane %v3937, 6
        %v3940 = vor.u32 %v3936, %v3939
        %v3942 = vshrl.u32 %v3751, 16
        %v3944 = vrot.slane %v3942, 5
        %v3945 = vshll.u32 %v3751, 16
        %v3947 = vrot.slane %v3945, 6
        %v3948 = vor.u32 %v3944, %v3947
        %v3949 = vsel %vm3762, %v3940, %v3948
        %v3951 = vshrl.u32 %v3752, 16
        %v3953 = vrot.slane %v3951, 5
        %v3954 = vshll.u32 %v3752, 16
        %v3956 = vrot.slane %v3954, 6
        %v3957 = vor.u32 %v3953, %v3956
        %v3959 = vshrl.u32 %v3753, 16
        %v3961 = vrot.slane %v3959, 5
        %v3962 = vshll.u32 %v3753, 16
        %v3964 = vrot.slane %v3962, 6
        %v3965 = vor.u32 %v3961, %v3964
        %v3966 = vsel %vm3762, %v3957, %v3965
        %v3968 = vshrl.u32 %v3754, 16
        %v3970 = vrot.slane %v3968, 5
        %v3971 = vshll.u32 %v3754, 16
        %v3973 = vrot.slane %v3971, 6
        %v3974 = vor.u32 %v3970, %v3973
        %v3976 = vshrl.u32 %v3755, 16
        %v3978 = vrot.slane %v3976, 5
        %v3979 = vshll.u32 %v3755, 16
        %v3981 = vrot.slane %v3979, 6
        %v3982 = vor.u32 %v3978, %v3981
        %v3983 = vsel %vm3762, %v3974, %v3982
        %v3985 = vshrl.u32 %v3756, 16
        %v3987 = vrot.slane %v3985, 5
        %v3988 = vshll.u32 %v3756, 16
        %v3990 = vrot.slane %v3988, 6
        %v3991 = vor.u32 %v3987, %v3990
        %v3993 = vshrl.u32 %v3757, 16
        %v3995 = vrot.slane %v3993, 5
        %v3996 = vshll.u32 %v3757, 16
        %v3998 = vrot.slane %v3996, 6
        %v3999 = vor.u32 %v3995, %v3998
        %v4000 = vsel %vm3762, %v3991, %v3999
        %v4002 = vshrl.u32 %v3758, 16
        %v4004 = vrot.slane %v4002, 5
        %v4005 = vshll.u32 %v3758, 16
        %v4007 = vrot.slane %v4005, 6
        %v4008 = vor.u32 %v4004, %v4007
        %v4010 = vshrl.u32 %v3759, 16
        %v4012 = vrot.slane %v4010, 5
        %v4013 = vshll.u32 %v3759, 16
        %v4015 = vrot.slane %v4013, 6
        %v4016 = vor.u32 %v4012, %v4015
        %v4017 = vsel %vm3762, %v4008, %v4016
        %v4019 = vshrl.u32 %v3760, 16
        %v4021 = vrot.slane %v4019, 5
        %v4022 = vshll.u32 %v3760, 16
        %v4024 = vrot.slane %v4022, 6
        %v4025 = vor.u32 %v4021, %v4024
        %v4027 = vshrl.u32 %v3761, 16
        %v4029 = vrot.slane %v4027, 5
        %v4030 = vshll.u32 %v3761, 16
        %v4032 = vrot.slane %v4030, 6
        %v4033 = vor.u32 %v4029, %v4032
        %v4034 = vsel %vm3762, %v4025, %v4033
        %v4035 = vld [vmem:[%s3729 + $0x8] sm:$0xff]
        %v4036 = vld [vmem:[%s3729 + $0x20] sm:$0xff]
        %v4037 = vld [vmem:[%s3729 + $0x38] sm:$0xff]
        %v4038 = vld [vmem:[%s3729 + $0x50] sm:$0xff]
        %v4039 = vld [vmem:[%s3729 + $0x68] sm:$0xff]
        %v4040 = vld [vmem:[%s3729 + $0x80] sm:$0xff]
        %v4041 = vld [vmem:[%s3729 + $0x98] sm:$0xff]
        %v4042 = vld [vmem:[%s3729 + $0xb0] sm:$0xff]
        %v4043 = vld [vmem:[%s3729 + $0xc8] sm:$0xff]
        %v4044 = vld [vmem:[%s3729 + $0xe0] sm:$0xff]
        %v4045 = vld [vmem:[%s3729 + $0xf8] sm:$0xff]
        %v4046 = vld [vmem:[%s3729 + $0x110] sm:$0xff]
        %v4047 = vld [vmem:[%s3729 + $0x128] sm:$0xff]
        %v4048 = vld [vmem:[%s3729 + $0x140] sm:$0xff]
        %v4049 = vld [vmem:[%s3729 + $0x158] sm:$0xff]
        %v4050 = vld [vmem:[%s3729 + $0x170] sm:$0xff]
        %v4051 = vld [vmem:[%s3729 + $0x8] sm:$0xfc]
        %v4052 = vld [vmem:[%s3729 + $0x10] sm:$0x7]
        %v4053 = vld [vmem:[%s3729 + $0x20] sm:$0xfc]
        %v4054 = vld [vmem:[%s3729 + $0x28] sm:$0x7]
        %v4055 = vld [vmem:[%s3729 + $0x38] sm:$0xfc]
        %v4056 = vld [vmem:[%s3729 + $0x40] sm:$0x7]
        %v4057 = vld [vmem:[%s3729 + $0x50] sm:$0xfc]
        %v4058 = vld [vmem:[%s3729 + $0x58] sm:$0x7]
        %v4059 = vld [vmem:[%s3729 + $0x68] sm:$0xfc]
        %v4060 = vld [vmem:[%s3729 + $0x70] sm:$0x7]
        %v4061 = vld [vmem:[%s3729 + $0x80] sm:$0xfc]
        %v4062 = vld [vmem:[%s3729 + $0x88] sm:$0x7]
        %v4063 = vld [vmem:[%s3729 + $0x98] sm:$0xfc]
        %v4064 = vld [vmem:[%s3729 + $0xa0] sm:$0x7]
        %v4065 = vld [vmem:[%s3729 + $0xb0] sm:$0xfc]
        %v4066 = vld [vmem:[%s3729 + $0xb8] sm:$0x7]
        %v4067 = vld [vmem:[%s3729 + $0xc8] sm:$0xfc]
        %v4068 = vld [vmem:[%s3729 + $0xd0] sm:$0x7]
        %v4069 = vld [vmem:[%s3729 + $0xe0] sm:$0xfc]
        %v4070 = vld [vmem:[%s3729 + $0xe8] sm:$0x7]
        %v4071 = vld [vmem:[%s3729 + $0xf8] sm:$0xfc]
        %v4072 = vld [vmem:[%s3729 + $0x100] sm:$0x7]
        %v4073 = vld [vmem:[%s3729 + $0x110] sm:$0xfc]
        %v4074 = vld [vmem:[%s3729 + $0x118] sm:$0x7]
        %v4075 = vld [vmem:[%s3729 + $0x128] sm:$0xfc]
        %v4076 = vld [vmem:[%s3729 + $0x130] sm:$0x7]
        %v4077 = vld [vmem:[%s3729 + $0x140] sm:$0xfc]
        %v4078 = vld [vmem:[%s3729 + $0x148] sm:$0x7]
        %v4079 = vld [vmem:[%s3729 + $0x158] sm:$0xfc]
        %v4080 = vld [vmem:[%s3729 + $0x160] sm:$0x7]
        %v4081 = vld [vmem:[%s3729 + $0x170] sm:$0xfc]
        %v4082 = vld [vmem:[%s3729 + $0x178] sm:$0x7]
        %vm4083 = vsmask.f32 5376
        %v4085 = vshrl.u32 %v4051, 16
        %v4087 = vrot.slane %v4085, 2
        %v4088 = vshll.u32 %v4051, 16
        %v4090 = vrot.slane %v4088, 3
        %v4091 = vor.u32 %v4087, %v4090
        %v4093 = vshrl.u32 %v4052, 16
        %v4095 = vrot.slane %v4093, 2
        %v4096 = vshll.u32 %v4052, 16
        %v4098 = vrot.slane %v4096, 3
        %v4099 = vor.u32 %v4095, %v4098
        %v4100 = vsel %vm4083, %v4091, %v4099
        %v4102 = vshrl.u32 %v4053, 16
        %v4104 = vrot.slane %v4102, 2
        %v4105 = vshll.u32 %v4053, 16
        %v4107 = vrot.slane %v4105, 3
        %v4108 = vor.u32 %v4104, %v4107
        %v4110 = vshrl.u32 %v4054, 16
        %v4112 = vrot.slane %v4110, 2
        %v4113 = vshll.u32 %v4054, 16
        %v4115 = vrot.slane %v4113, 3
        %v4116 = vor.u32 %v4112, %v4115
        %v4117 = vsel %vm4083, %v4108, %v4116
        %v4119 = vshrl.u32 %v4055, 16
        %v4121 = vrot.slane %v4119, 2
        %v4122 = vshll.u32 %v4055, 16
        %v4124 = vrot.slane %v4122, 3
        %v4125 = vor.u32 %v4121, %v4124
        %v4127 = vshrl.u32 %v4056, 16
        %v4129 = vrot.slane %v4127, 2
        %v4130 = vshll.u32 %v4056, 16
        %v4132 = vrot.slane %v4130, 3
        %v4133 = vor.u32 %v4129, %v4132
        %v4134 = vsel %vm4083, %v4125, %v4133
        %v4136 = vshrl.u32 %v4057, 16
        %v4138 = vrot.slane %v4136, 2
        %v4139 = vshll.u32 %v4057, 16
        %v4141 = vrot.slane %v4139, 3
        %v4142 = vor.u32 %v4138, %v4141
        %v4144 = vshrl.u32 %v4058, 16
        %v4146 = vrot.slane %v4144, 2
        %v4147 = vshll.u32 %v4058, 16
        %v4149 = vrot.slane %v4147, 3
        %v4150 = vor.u32 %v4146, %v4149
        %v4151 = vsel %vm4083, %v4142, %v4150
        %v4153 = vshrl.u32 %v4059, 16
        %v4155 = vrot.slane %v4153, 2
        %v4156 = vshll.u32 %v4059, 16
        %v4158 = vrot.slane %v4156, 3
        %v4159 = vor.u32 %v4155, %v4158
        %v4161 = vshrl.u32 %v4060, 16
        %v4163 = vrot.slane %v4161, 2
        %v4164 = vshll.u32 %v4060, 16
        %v4166 = vrot.slane %v4164, 3
        %v4167 = vor.u32 %v4163, %v4166
        %v4168 = vsel %vm4083, %v4159, %v4167
        %v4170 = vshrl.u32 %v4061, 16
        %v4172 = vrot.slane %v4170, 2
        %v4173 = vshll.u32 %v4061, 16
        %v4175 = vrot.slane %v4173, 3
        %v4176 = vor.u32 %v4172, %v4175
        %v4178 = vshrl.u32 %v4062, 16
        %v4180 = vrot.slane %v4178, 2
        %v4181 = vshll.u32 %v4062, 16
        %v4183 = vrot.slane %v4181, 3
        %v4184 = vor.u32 %v4180, %v4183
        %v4185 = vsel %vm4083, %v4176, %v4184
        %v4187 = vshrl.u32 %v4063, 16
        %v4189 = vrot.slane %v4187, 2
        %v4190 = vshll.u32 %v4063, 16
        %v4192 = vrot.slane %v4190, 3
        %v4193 = vor.u32 %v4189, %v4192
        %v4195 = vshrl.u32 %v4064, 16
        %v4197 = vrot.slane %v4195, 2
        %v4198 = vshll.u32 %v4064, 16
        %v4200 = vrot.slane %v4198, 3
        %v4201 = vor.u32 %v4197, %v4200
        %v4202 = vsel %vm4083, %v4193, %v4201
        %v4204 = vshrl.u32 %v4065, 16
        %v4206 = vrot.slane %v4204, 2
        %v4207 = vshll.u32 %v4065, 16
        %v4209 = vrot.slane %v4207, 3
        %v4210 = vor.u32 %v4206, %v4209
        %v4212 = vshrl.u32 %v4066, 16
        %v4214 = vrot.slane %v4212, 2
        %v4215 = vshll.u32 %v4066, 16
        %v4217 = vrot.slane %v4215, 3
        %v4218 = vor.u32 %v4214, %v4217
        %v4219 = vsel %vm4083, %v4210, %v4218
        %v4221 = vshrl.u32 %v4067, 16
        %v4223 = vrot.slane %v4221, 2
        %v4224 = vshll.u32 %v4067, 16
        %v4226 = vrot.slane %v4224, 3
        %v4227 = vor.u32 %v4223, %v4226
        %v4229 = vshrl.u32 %v4068, 16
        %v4231 = vrot.slane %v4229, 2
        %v4232 = vshll.u32 %v4068, 16
        %v4234 = vrot.slane %v4232, 3
        %v4235 = vor.u32 %v4231, %v4234
        %v4236 = vsel %vm4083, %v4227, %v4235
        %v4238 = vshrl.u32 %v4069, 16
        %v4240 = vrot.slane %v4238, 2
        %v4241 = vshll.u32 %v4069, 16
        %v4243 = vrot.slane %v4241, 3
        %v4244 = vor.u32 %v4240, %v4243
        %v4246 = vshrl.u32 %v4070, 16
        %v4248 = vrot.slane %v4246, 2
        %v4249 = vshll.u32 %v4070, 16
        %v4251 = vrot.slane %v4249, 3
        %v4252 = vor.u32 %v4248, %v4251
        %v4253 = vsel %vm4083, %v4244, %v4252
        %v4255 = vshrl.u32 %v4071, 16
        %v4257 = vrot.slane %v4255, 2
        %v4258 = vshll.u32 %v4071, 16
        %v4260 = vrot.slane %v4258, 3
        %v4261 = vor.u32 %v4257, %v4260
        %v4263 = vshrl.u32 %v4072, 16
        %v4265 = vrot.slane %v4263, 2
        %v4266 = vshll.u32 %v4072, 16
        %v4268 = vrot.slane %v4266, 3
        %v4269 = vor.u32 %v4265, %v4268
        %v4270 = vsel %vm4083, %v4261, %v4269
        %v4272 = vshrl.u32 %v4073, 16
        %v4274 = vrot.slane %v4272, 2
        %v4275 = vshll.u32 %v4073, 16
        %v4277 = vrot.slane %v4275, 3
        %v4278 = vor.u32 %v4274, %v4277
        %v4280 = vshrl.u32 %v4074, 16
        %v4282 = vrot.slane %v4280, 2
        %v4283 = vshll.u32 %v4074, 16
        %v4285 = vrot.slane %v4283, 3
        %v4286 = vor.u32 %v4282, %v4285
        %v4287 = vsel %vm4083, %v4278, %v4286
        %v4289 = vshrl.u32 %v4075, 16
        %v4291 = vrot.slane %v4289, 2
        %v4292 = vshll.u32 %v4075, 16
        %v4294 = vrot.slane %v4292, 3
        %v4295 = vor.u32 %v4291, %v4294
        %v4297 = vshrl.u32 %v4076, 16
        %v4299 = vrot.slane %v4297, 2
        %v4300 = vshll.u32 %v4076, 16
        %v4302 = vrot.slane %v4300, 3
        %v4303 = vor.u32 %v4299, %v4302
        %v4304 = vsel %vm4083, %v4295, %v4303
        %v4306 = vshrl.u32 %v4077, 16
        %v4308 = vrot.slane %v4306, 2
        %v4309 = vshll.u32 %v4077, 16
        %v4311 = vrot.slane %v4309, 3
        %v4312 = vor.u32 %v4308, %v4311
        %v4314 = vshrl.u32 %v4078, 16
        %v4316 = vrot.slane %v4314, 2
        %v4317 = vshll.u32 %v4078, 16
        %v4319 = vrot.slane %v4317, 3
        %v4320 = vor.u32 %v4316, %v4319
        %v4321 = vsel %vm4083, %v4312, %v4320
        %v4323 = vshrl.u32 %v4079, 16
        %v4325 = vrot.slane %v4323, 2
        %v4326 = vshll.u32 %v4079, 16
        %v4328 = vrot.slane %v4326, 3
        %v4329 = vor.u32 %v4325, %v4328
        %v4331 = vshrl.u32 %v4080, 16
        %v4333 = vrot.slane %v4331, 2
        %v4334 = vshll.u32 %v4080, 16
        %v4336 = vrot.slane %v4334, 3
        %v4337 = vor.u32 %v4333, %v4336
        %v4338 = vsel %vm4083, %v4329, %v4337
        %v4340 = vshrl.u32 %v4081, 16
        %v4342 = vrot.slane %v4340, 2
        %v4343 = vshll.u32 %v4081, 16
        %v4345 = vrot.slane %v4343, 3
        %v4346 = vor.u32 %v4342, %v4345
        %v4348 = vshrl.u32 %v4082, 16
        %v4350 = vrot.slane %v4348, 2
        %v4351 = vshll.u32 %v4082, 16
        %v4353 = vrot.slane %v4351, 3
        %v4354 = vor.u32 %v4350, %v4353
        %v4355 = vsel %vm4083, %v4346, %v4354
        %v4356 = vld [vmem:[%s328] sm:$0xe0]
        %v4357 = vld [vmem:[%s328 + $0x8] sm:$0x3f]
        %v4358 = vld [vmem:[%s328 + $0x18] sm:$0xe0]
        %v4359 = vld [vmem:[%s328 + $0x20] sm:$0x3f]
        %v4360 = vld [vmem:[%s328 + $0x30] sm:$0xe0]
        %v4361 = vld [vmem:[%s328 + $0x38] sm:$0x3f]
        %v4362 = vld [vmem:[%s328 + $0x48] sm:$0xe0]
        %v4363 = vld [vmem:[%s328 + $0x50] sm:$0x3f]
        %v4364 = vld [vmem:[%s328 + $0x60] sm:$0xe0]
        %v4365 = vld [vmem:[%s328 + $0x68] sm:$0x3f]
        %v4366 = vld [vmem:[%s328 + $0x78] sm:$0xe0]
        %v4367 = vld [vmem:[%s328 + $0x80] sm:$0x3f]
        %v4368 = vld [vmem:[%s328 + $0x90] sm:$0xe0]
        %v4369 = vld [vmem:[%s328 + $0x98] sm:$0x3f]
        %v4370 = vld [vmem:[%s328 + $0xa8] sm:$0xe0]
        %v4371 = vld [vmem:[%s328 + $0xb0] sm:$0x3f]
        %v4372 = vld [vmem:[%s328 + $0xc0] sm:$0xe0]
        %v4373 = vld [vmem:[%s328 + $0xc8] sm:$0x3f]
        %v4374 = vld [vmem:[%s328 + $0xd8] sm:$0xe0]
        %v4375 = vld [vmem:[%s328 + $0xe0] sm:$0x3f]
        %v4376 = vld [vmem:[%s328 + $0xf0] sm:$0xe0]
        %v4377 = vld [vmem:[%s328 + $0xf8] sm:$0x3f]
        %v4378 = vld [vmem:[%s328 + $0x108] sm:$0xe0]
        %v4379 = vld [vmem:[%s328 + $0x110] sm:$0x3f]
        %v4380 = vld [vmem:[%s328 + $0x120] sm:$0xe0]
        %v4381 = vld [vmem:[%s328 + $0x128] sm:$0x3f]
        %v4382 = vld [vmem:[%s328 + $0x138] sm:$0xe0]
        %v4383 = vld [vmem:[%s328 + $0x140] sm:$0x3f]
        %v4384 = vld [vmem:[%s328 + $0x150] sm:$0xe0]
        %v4385 = vld [vmem:[%s328 + $0x158] sm:$0x3f]
        %v4386 = vld [vmem:[%s328 + $0x168] sm:$0xe0]
        %v4387 = vld [vmem:[%s328 + $0x170] sm:$0x3f]
        %v4389 = vshrl.u32 %v4356, 16
        %v4391 = vrot.slane %v4389, 5
        %v4392 = vshll.u32 %v4356, 16
        %v4394 = vrot.slane %v4392, 6
        %v4395 = vor.u32 %v4391, %v4394
        %v4397 = vshrl.u32 %v4357, 16
        %v4399 = vrot.slane %v4397, 5
        %v4400 = vshll.u32 %v4357, 16
        %v4402 = vrot.slane %v4400, 6
        %v4403 = vor.u32 %v4399, %v4402
        %v4404 = vsel %vm3762, %v4395, %v4403
        %v4406 = vshrl.u32 %v4358, 16
        %v4408 = vrot.slane %v4406, 5
        %v4409 = vshll.u32 %v4358, 16
        %v4411 = vrot.slane %v4409, 6
        %v4412 = vor.u32 %v4408, %v4411
        %v4414 = vshrl.u32 %v4359, 16
        %v4416 = vrot.slane %v4414, 5
        %v4417 = vshll.u32 %v4359, 16
        %v4419 = vrot.slane %v4417, 6
        %v4420 = vor.u32 %v4416, %v4419
        %v4421 = vsel %vm3762, %v4412, %v4420
        %v4423 = vshrl.u32 %v4360, 16
        %v4425 = vrot.slane %v4423, 5
        %v4426 = vshll.u32 %v4360, 16
        %v4428 = vrot.slane %v4426, 6
        %v4429 = vor.u32 %v4425, %v4428
        %v4431 = vshrl.u32 %v4361, 16
        %v4433 = vrot.slane %v4431, 5
        %v4434 = vshll.u32 %v4361, 16
        %v4436 = vrot.slane %v4434, 6
        %v4437 = vor.u32 %v4433, %v4436
        %v4438 = vsel %vm3762, %v4429, %v4437
        %v4440 = vshrl.u32 %v4362, 16
        %v4442 = vrot.slane %v4440, 5
        %v4443 = vshll.u32 %v4362, 16
        %v4445 = vrot.slane %v4443, 6
        %v4446 = vor.u32 %v4442, %v4445
        %v4448 = vshrl.u32 %v4363, 16
        %v4450 = vrot.slane %v4448, 5
        %v4451 = vshll.u32 %v4363, 16
        %v4453 = vrot.slane %v4451, 6
        %v4454 = vor.u32 %v4450, %v4453
        %v4455 = vsel %vm3762, %v4446, %v4454
        %v4457 = vshrl.u32 %v4364, 16
        %v4459 = vrot.slane %v4457, 5
        %v4460 = vshll.u32 %v4364, 16
        %v4462 = vrot.slane %v4460, 6
        %v4463 = vor.u32 %v4459, %v4462
        %v4465 = vshrl.u32 %v4365, 16
        %v4467 = vrot.slane %v4465, 5
        %v4468 = vshll.u32 %v4365, 16
        %v4470 = vrot.slane %v4468, 6
        %v4471 = vor.u32 %v4467, %v4470
        %v4472 = vsel %vm3762, %v4463, %v4471
        %v4474 = vshrl.u32 %v4366, 16
        %v4476 = vrot.slane %v4474, 5
        %v4477 = vshll.u32 %v4366, 16
        %v4479 = vrot.slane %v4477, 6
        %v4480 = vor.u32 %v4476, %v4479
        %v4482 = vshrl.u32 %v4367, 16
        %v4484 = vrot.slane %v4482, 5
        %v4485 = vshll.u32 %v4367, 16
        %v4487 = vrot.slane %v4485, 6
        %v4488 = vor.u32 %v4484, %v4487
        %v4489 = vsel %vm3762, %v4480, %v4488
        %v4491 = vshrl.u32 %v4368, 16
        %v4493 = vrot.slane %v4491, 5
        %v4494 = vshll.u32 %v4368, 16
        %v4496 = vrot.slane %v4494, 6
        %v4497 = vor.u32 %v4493, %v4496
        %v4499 = vshrl.u32 %v4369, 16
        %v4501 = vrot.slane %v4499, 5
        %v4502 = vshll.u32 %v4369, 16
        %v4504 = vrot.slane %v4502, 6
        %v4505 = vor.u32 %v4501, %v4504
        %v4506 = vsel %vm3762, %v4497, %v4505
        %v4508 = vshrl.u32 %v4370, 16
        %v4510 = vrot.slane %v4508, 5
        %v4511 = vshll.u32 %v4370, 16
        %v4513 = vrot.slane %v4511, 6
        %v4514 = vor.u32 %v4510, %v4513
        %v4516 = vshrl.u32 %v4371, 16
        %v4518 = vrot.slane %v4516, 5
        %v4519 = vshll.u32 %v4371, 16
        %v4521 = vrot.slane %v4519, 6
        %v4522 = vor.u32 %v4518, %v4521
        %v4523 = vsel %vm3762, %v4514, %v4522
        %v4525 = vshrl.u32 %v4372, 16
        %v4527 = vrot.slane %v4525, 5
        %v4528 = vshll.u32 %v4372, 16
        %v4530 = vrot.slane %v4528, 6
        %v4531 = vor.u32 %v4527, %v4530
        %v4533 = vshrl.u32 %v4373, 16
        %v4535 = vrot.slane %v4533, 5
        %v4536 = vshll.u32 %v4373, 16
        %v4538 = vrot.slane %v4536, 6
        %v4539 = vor.u32 %v4535, %v4538
        %v4540 = vsel %vm3762, %v4531, %v4539
        %v4542 = vshrl.u32 %v4374, 16
        %v4544 = vrot.slane %v4542, 5
        %v4545 = vshll.u32 %v4374, 16
        %v4547 = vrot.slane %v4545, 6
        %v4548 = vor.u32 %v4544, %v4547
        %v4550 = vshrl.u32 %v4375, 16
        %v4552 = vrot.slane %v4550, 5
        %v4553 = vshll.u32 %v4375, 16
        %v4555 = vrot.slane %v4553, 6
        %v4556 = vor.u32 %v4552, %v4555
        %v4557 = vsel %vm3762, %v4548, %v4556
        %v4559 = vshrl.u32 %v4376, 16
        %v4561 = vrot.slane %v4559, 5
        %v4562 = vshll.u32 %v4376, 16
        %v4564 = vrot.slane %v4562, 6
        %v4565 = vor.u32 %v4561, %v4564
        %v4567 = vshrl.u32 %v4377, 16
        %v4569 = vrot.slane %v4567, 5
        %v4570 = vshll.u32 %v4377, 16
        %v4572 = vrot.slane %v4570, 6
        %v4573 = vor.u32 %v4569, %v4572
        %v4574 = vsel %vm3762, %v4565, %v4573
        %v4576 = vshrl.u32 %v4378, 16
        %v4578 = vrot.slane %v4576, 5
        %v4579 = vshll.u32 %v4378, 16
        %v4581 = vrot.slane %v4579, 6
        %v4582 = vor.u32 %v4578, %v4581
        %v4584 = vshrl.u32 %v4379, 16
        %v4586 = vrot.slane %v4584, 5
        %v4587 = vshll.u32 %v4379, 16
        %v4589 = vrot.slane %v4587, 6
        %v4590 = vor.u32 %v4586, %v4589
        %v4591 = vsel %vm3762, %v4582, %v4590
        %v4593 = vshrl.u32 %v4380, 16
        %v4595 = vrot.slane %v4593, 5
        %v4596 = vshll.u32 %v4380, 16
        %v4598 = vrot.slane %v4596, 6
        %v4599 = vor.u32 %v4595, %v4598
        %v4601 = vshrl.u32 %v4381, 16
        %v4603 = vrot.slane %v4601, 5
        %v4604 = vshll.u32 %v4381, 16
        %v4606 = vrot.slane %v4604, 6
        %v4607 = vor.u32 %v4603, %v4606
        %v4608 = vsel %vm3762, %v4599, %v4607
        %v4610 = vshrl.u32 %v4382, 16
        %v4612 = vrot.slane %v4610, 5
        %v4613 = vshll.u32 %v4382, 16
        %v4615 = vrot.slane %v4613, 6
        %v4616 = vor.u32 %v4612, %v4615
        %v4618 = vshrl.u32 %v4383, 16
        %v4620 = vrot.slane %v4618, 5
        %v4621 = vshll.u32 %v4383, 16
        %v4623 = vrot.slane %v4621, 6
        %v4624 = vor.u32 %v4620, %v4623
        %v4625 = vsel %vm3762, %v4616, %v4624
        %v4627 = vshrl.u32 %v4384, 16
        %v4629 = vrot.slane %v4627, 5
        %v4630 = vshll.u32 %v4384, 16
        %v4632 = vrot.slane %v4630, 6
        %v4633 = vor.u32 %v4629, %v4632
        %v4635 = vshrl.u32 %v4385, 16
        %v4637 = vrot.slane %v4635, 5
        %v4638 = vshll.u32 %v4385, 16
        %v4640 = vrot.slane %v4638, 6
        %v4641 = vor.u32 %v4637, %v4640
        %v4642 = vsel %vm3762, %v4633, %v4641
        %v4644 = vshrl.u32 %v4386, 16
        %v4646 = vrot.slane %v4644, 5
        %v4647 = vshll.u32 %v4386, 16
        %v4649 = vrot.slane %v4647, 6
        %v4650 = vor.u32 %v4646, %v4649
        %v4652 = vshrl.u32 %v4387, 16
        %v4654 = vrot.slane %v4652, 5
        %v4655 = vshll.u32 %v4387, 16
        %v4657 = vrot.slane %v4655, 6
        %v4658 = vor.u32 %v4654, %v4657
        %v4659 = vsel %vm3762, %v4650, %v4658
        %v4660 = vld [vmem:[%s328 + $0x8] sm:$0xfc]
        %v4661 = vld [vmem:[%s328 + $0x10] sm:$0x7]
        %v4662 = vld [vmem:[%s328 + $0x20] sm:$0xfc]
        %v4663 = vld [vmem:[%s328 + $0x28] sm:$0x7]
        %v4664 = vld [vmem:[%s328 + $0x38] sm:$0xfc]
        %v4665 = vld [vmem:[%s328 + $0x40] sm:$0x7]
        %v4666 = vld [vmem:[%s328 + $0x50] sm:$0xfc]
        %v4667 = vld [vmem:[%s328 + $0x58] sm:$0x7]
        %v4668 = vld [vmem:[%s328 + $0x68] sm:$0xfc]
        %v4669 = vld [vmem:[%s328 + $0x70] sm:$0x7]
        %v4670 = vld [vmem:[%s328 + $0x80] sm:$0xfc]
        %v4671 = vld [vmem:[%s328 + $0x88] sm:$0x7]
        %v4672 = vld [vmem:[%s328 + $0x98] sm:$0xfc]
        %v4673 = vld [vmem:[%s328 + $0xa0] sm:$0x7]
        %v4674 = vld [vmem:[%s328 + $0xb0] sm:$0xfc]
        %v4675 = vld [vmem:[%s328 + $0xb8] sm:$0x7]
        %v4676 = vld [vmem:[%s328 + $0xc8] sm:$0xfc]
        %v4677 = vld [vmem:[%s328 + $0xd0] sm:$0x7]
        %v4678 = vld [vmem:[%s328 + $0xe0] sm:$0xfc]
        %v4679 = vld [vmem:[%s328 + $0xe8] sm:$0x7]
        %v4680 = vld [vmem:[%s328 + $0xf8] sm:$0xfc]
        %v4681 = vld [vmem:[%s328 + $0x100] sm:$0x7]
        %v4682 = vld [vmem:[%s328 + $0x110] sm:$0xfc]
        %v4683 = vld [vmem:[%s328 + $0x118] sm:$0x7]
        %v4684 = vld [vmem:[%s328 + $0x128] sm:$0xfc]
        %v4685 = vld [vmem:[%s328 + $0x130] sm:$0x7]
        %v4686 = vld [vmem:[%s328 + $0x140] sm:$0xfc]
        %v4687 = vld [vmem:[%s328 + $0x148] sm:$0x7]
        %v4688 = vld [vmem:[%s328 + $0x158] sm:$0xfc]
        %v4689 = vld [vmem:[%s328 + $0x160] sm:$0x7]
        %v4690 = vld [vmem:[%s328 + $0x170] sm:$0xfc]
        %v4691 = vld [vmem:[%s328 + $0x178] sm:$0x7]
        %v4693 = vshrl.u32 %v4660, 16
        %v4695 = vrot.slane %v4693, 2
        %v4696 = vshll.u32 %v4660, 16
        %v4698 = vrot.slane %v4696, 3
        %v4699 = vor.u32 %v4695, %v4698
        %v4701 = vshrl.u32 %v4661, 16
        %v4703 = vrot.slane %v4701, 2
        %v4704 = vshll.u32 %v4661, 16
        %v4706 = vrot.slane %v4704, 3
        %v4707 = vor.u32 %v4703, %v4706
        %v4708 = vsel %vm4083, %v4699, %v4707
        %v4710 = vshrl.u32 %v4662, 16
        %v4712 = vrot.slane %v4710, 2
        %v4713 = vshll.u32 %v4662, 16
        %v4715 = vrot.slane %v4713, 3
        %v4716 = vor.u32 %v4712, %v4715
        %v4718 = vshrl.u32 %v4663, 16
        %v4720 = vrot.slane %v4718, 2
        %v4721 = vshll.u32 %v4663, 16
        %v4723 = vrot.slane %v4721, 3
        %v4724 = vor.u32 %v4720, %v4723
        %v4725 = vsel %vm4083, %v4716, %v4724
        %v4727 = vshrl.u32 %v4664, 16
        %v4729 = vrot.slane %v4727, 2
        %v4730 = vshll.u32 %v4664, 16
        %v4732 = vrot.slane %v4730, 3
        %v4733 = vor.u32 %v4729, %v4732
        %v4735 = vshrl.u32 %v4665, 16
        %v4737 = vrot.slane %v4735, 2
        %v4738 = vshll.u32 %v4665, 16
        %v4740 = vrot.slane %v4738, 3
        %v4741 = vor.u32 %v4737, %v4740
        %v4742 = vsel %vm4083, %v4733, %v4741
        %v4744 = vshrl.u32 %v4666, 16
        %v4746 = vrot.slane %v4744, 2
        %v4747 = vshll.u32 %v4666, 16
        %v4749 = vrot.slane %v4747, 3
        %v4750 = vor.u32 %v4746, %v4749
        %v4752 = vshrl.u32 %v4667, 16
        %v4754 = vrot.slane %v4752, 2
        %v4755 = vshll.u32 %v4667, 16
        %v4757 = vrot.slane %v4755, 3
        %v4758 = vor.u32 %v4754, %v4757
        %v4759 = vsel %vm4083, %v4750, %v4758
        %v4761 = vshrl.u32 %v4668, 16
        %v4763 = vrot.slane %v4761, 2
        %v4764 = vshll.u32 %v4668, 16
        %v4766 = vrot.slane %v4764, 3
        %v4767 = vor.u32 %v4763, %v4766
        %v4769 = vshrl.u32 %v4669, 16
        %v4771 = vrot.slane %v4769, 2
        %v4772 = vshll.u32 %v4669, 16
        %v4774 = vrot.slane %v4772, 3
        %v4775 = vor.u32 %v4771, %v4774
        %v4776 = vsel %vm4083, %v4767, %v4775
        %v4778 = vshrl.u32 %v4670, 16
        %v4780 = vrot.slane %v4778, 2
        %v4781 = vshll.u32 %v4670, 16
        %v4783 = vrot.slane %v4781, 3
        %v4784 = vor.u32 %v4780, %v4783
        %v4786 = vshrl.u32 %v4671, 16
        %v4788 = vrot.slane %v4786, 2
        %v4789 = vshll.u32 %v4671, 16
        %v4791 = vrot.slane %v4789, 3
        %v4792 = vor.u32 %v4788, %v4791
        %v4793 = vsel %vm4083, %v4784, %v4792
        %v4795 = vshrl.u32 %v4672, 16
        %v4797 = vrot.slane %v4795, 2
        %v4798 = vshll.u32 %v4672, 16
        %v4800 = vrot.slane %v4798, 3
        %v4801 = vor.u32 %v4797, %v4800
        %v4803 = vshrl.u32 %v4673, 16
        %v4805 = vrot.slane %v4803, 2
        %v4806 = vshll.u32 %v4673, 16
        %v4808 = vrot.slane %v4806, 3
        %v4809 = vor.u32 %v4805, %v4808
        %v4810 = vsel %vm4083, %v4801, %v4809
        %v4812 = vshrl.u32 %v4674, 16
        %v4814 = vrot.slane %v4812, 2
        %v4815 = vshll.u32 %v4674, 16
        %v4817 = vrot.slane %v4815, 3
        %v4818 = vor.u32 %v4814, %v4817
        %v4820 = vshrl.u32 %v4675, 16
        %v4822 = vrot.slane %v4820, 2
        %v4823 = vshll.u32 %v4675, 16
        %v4825 = vrot.slane %v4823, 3
        %v4826 = vor.u32 %v4822, %v4825
        %v4827 = vsel %vm4083, %v4818, %v4826
        %v4829 = vshrl.u32 %v4676, 16
        %v4831 = vrot.slane %v4829, 2
        %v4832 = vshll.u32 %v4676, 16
        %v4834 = vrot.slane %v4832, 3
        %v4835 = vor.u32 %v4831, %v4834
        %v4837 = vshrl.u32 %v4677, 16
        %v4839 = vrot.slane %v4837, 2
        %v4840 = vshll.u32 %v4677, 16
        %v4842 = vrot.slane %v4840, 3
        %v4843 = vor.u32 %v4839, %v4842
        %v4844 = vsel %vm4083, %v4835, %v4843
        %v4846 = vshrl.u32 %v4678, 16
        %v4848 = vrot.slane %v4846, 2
        %v4849 = vshll.u32 %v4678, 16
        %v4851 = vrot.slane %v4849, 3
        %v4852 = vor.u32 %v4848, %v4851
        %v4854 = vshrl.u32 %v4679, 16
        %v4856 = vrot.slane %v4854, 2
        %v4857 = vshll.u32 %v4679, 16
        %v4859 = vrot.slane %v4857, 3
        %v4860 = vor.u32 %v4856, %v4859
        %v4861 = vsel %vm4083, %v4852, %v4860
        %v4863 = vshrl.u32 %v4680, 16
        %v4865 = vrot.slane %v4863, 2
        %v4866 = vshll.u32 %v4680, 16
        %v4868 = vrot.slane %v4866, 3
        %v4869 = vor.u32 %v4865, %v4868
        %v4871 = vshrl.u32 %v4681, 16
        %v4873 = vrot.slane %v4871, 2
        %v4874 = vshll.u32 %v4681, 16
        %v4876 = vrot.slane %v4874, 3
        %v4877 = vor.u32 %v4873, %v4876
        %v4878 = vsel %vm4083, %v4869, %v4877
        %v4880 = vshrl.u32 %v4682, 16
        %v4882 = vrot.slane %v4880, 2
        %v4883 = vshll.u32 %v4682, 16
        %v4885 = vrot.slane %v4883, 3
        %v4886 = vor.u32 %v4882, %v4885
        %v4888 = vshrl.u32 %v4683, 16
        %v4890 = vrot.slane %v4888, 2
        %v4891 = vshll.u32 %v4683, 16
        %v4893 = vrot.slane %v4891, 3
        %v4894 = vor.u32 %v4890, %v4893
        %v4895 = vsel %vm4083, %v4886, %v4894
        %v4897 = vshrl.u32 %v4684, 16
        %v4899 = vrot.slane %v4897, 2
        %v4900 = vshll.u32 %v4684, 16
        %v4902 = vrot.slane %v4900, 3
        %v4903 = vor.u32 %v4899, %v4902
        %v4905 = vshrl.u32 %v4685, 16
        %v4907 = vrot.slane %v4905, 2
        %v4908 = vshll.u32 %v4685, 16
        %v4910 = vrot.slane %v4908, 3
        %v4911 = vor.u32 %v4907, %v4910
        %v4912 = vsel %vm4083, %v4903, %v4911
        %v4914 = vshrl.u32 %v4686, 16
        %v4916 = vrot.slane %v4914, 2
        %v4917 = vshll.u32 %v4686, 16
        %v4919 = vrot.slane %v4917, 3
        %v4920 = vor.u32 %v4916, %v4919
        %v4922 = vshrl.u32 %v4687, 16
        %v4924 = vrot.slane %v4922, 2
        %v4925 = vshll.u32 %v4687, 16
        %v4927 = vrot.slane %v4925, 3
        %v4928 = vor.u32 %v4924, %v4927
        %v4929 = vsel %vm4083, %v4920, %v4928
        %v4931 = vshrl.u32 %v4688, 16
        %v4933 = vrot.slane %v4931, 2
        %v4934 = vshll.u32 %v4688, 16
        %v4936 = vrot.slane %v4934, 3
        %v4937 = vor.u32 %v4933, %v4936
        %v4939 = vshrl.u32 %v4689, 16
        %v4941 = vrot.slane %v4939, 2
        %v4942 = vshll.u32 %v4689, 16
        %v4944 = vrot.slane %v4942, 3
        %v4945 = vor.u32 %v4941, %v4944
        %v4946 = vsel %vm4083, %v4937, %v4945
        %v4948 = vshrl.u32 %v4690, 16
        %v4950 = vrot.slane %v4948, 2
        %v4951 = vshll.u32 %v4690, 16
        %v4953 = vrot.slane %v4951, 3
        %v4954 = vor.u32 %v4950, %v4953
        %v4956 = vshrl.u32 %v4691, 16
        %v4958 = vrot.slane %v4956, 2
        %v4959 = vshll.u32 %v4691, 16
        %v4961 = vrot.slane %v4959, 3
        %v4962 = vor.u32 %v4958, %v4961
        %v4963 = vsel %vm4083, %v4954, %v4962
        %s4964 = scalar_lea.vmem [#allocation2], 312
        %v4965 = vld [vmem:[%s4964] sm:$0xe0]
        %v4966 = vld [vmem:[%s4964 + $0x8] sm:$0x3f]
        %v4967 = vld [vmem:[%s4964 + $0x18] sm:$0xe0]
        %v4968 = vld [vmem:[%s4964 + $0x20] sm:$0x3f]
        %v4969 = vld [vmem:[%s4964 + $0x30] sm:$0xe0]
        %v4970 = vld [vmem:[%s4964 + $0x38] sm:$0x3f]
        %v4971 = vld [vmem:[%s4964 + $0x48] sm:$0xe0]
        %v4972 = vld [vmem:[%s4964 + $0x50] sm:$0x3f]
        %v4973 = vld [vmem:[%s4964 + $0x60] sm:$0xe0]
        %v4974 = vld [vmem:[%s4964 + $0x68] sm:$0x3f]
        %v4975 = vld [vmem:[%s4964 + $0x78] sm:$0xe0]
        %v4976 = vld [vmem:[%s4964 + $0x80] sm:$0x3f]
        %v4977 = vld [vmem:[%s4964 + $0x90] sm:$0xe0]
        %v4978 = vld [vmem:[%s4964 + $0x98] sm:$0x3f]
        %v4979 = vld [vmem:[%s4964 + $0xa8] sm:$0xe0]
        %v4980 = vld [vmem:[%s4964 + $0xb0] sm:$0x3f]
        %v4981 = vld [vmem:[%s4964 + $0xc0] sm:$0xe0]
        %v4982 = vld [vmem:[%s4964 + $0xc8] sm:$0x3f]
        %v4983 = vld [vmem:[%s4964 + $0xd8] sm:$0xe0]
        %v4984 = vld [vmem:[%s4964 + $0xe0] sm:$0x3f]
        %v4985 = vld [vmem:[%s4964 + $0xf0] sm:$0xe0]
        %v4986 = vld [vmem:[%s4964 + $0xf8] sm:$0x3f]
        %v4987 = vld [vmem:[%s4964 + $0x108] sm:$0xe0]
        %v4988 = vld [vmem:[%s4964 + $0x110] sm:$0x3f]
        %v4989 = vld [vmem:[%s4964 + $0x120] sm:$0xe0]
        %v4990 = vld [vmem:[%s4964 + $0x128] sm:$0x3f]
        %v4991 = vld [vmem:[%s4964 + $0x138] sm:$0xe0]
        %v4992 = vld [vmem:[%s4964 + $0x140] sm:$0x3f]
        %v4993 = vld [vmem:[%s4964 + $0x150] sm:$0xe0]
        %v4994 = vld [vmem:[%s4964 + $0x158] sm:$0x3f]
        %v4995 = vld [vmem:[%s4964 + $0x168] sm:$0xe0]
        %v4996 = vld [vmem:[%s4964 + $0x170] sm:$0x3f]
        %v4998 = vshrl.u32 %v4965, 16
        %v5000 = vrot.slane %v4998, 5
        %v5001 = vshll.u32 %v4965, 16
        %v5003 = vrot.slane %v5001, 6
        %v5004 = vor.u32 %v5000, %v5003
        %v5006 = vshrl.u32 %v4966, 16
        %v5008 = vrot.slane %v5006, 5
        %v5009 = vshll.u32 %v4966, 16
        %v5011 = vrot.slane %v5009, 6
        %v5012 = vor.u32 %v5008, %v5011
        %v5013 = vsel %vm3762, %v5004, %v5012
        %v5015 = vshrl.u32 %v4967, 16
        %v5017 = vrot.slane %v5015, 5
        %v5018 = vshll.u32 %v4967, 16
        %v5020 = vrot.slane %v5018, 6
        %v5021 = vor.u32 %v5017, %v5020
        %v5023 = vshrl.u32 %v4968, 16
        %v5025 = vrot.slane %v5023, 5
        %v5026 = vshll.u32 %v4968, 16
        %v5028 = vrot.slane %v5026, 6
        %v5029 = vor.u32 %v5025, %v5028
        %v5030 = vsel %vm3762, %v5021, %v5029
        %v5032 = vshrl.u32 %v4969, 16
        %v5034 = vrot.slane %v5032, 5
        %v5035 = vshll.u32 %v4969, 16
        %v5037 = vrot.slane %v5035, 6
        %v5038 = vor.u32 %v5034, %v5037
        %v5040 = vshrl.u32 %v4970, 16
        %v5042 = vrot.slane %v5040, 5
        %v5043 = vshll.u32 %v4970, 16
        %v5045 = vrot.slane %v5043, 6
        %v5046 = vor.u32 %v5042, %v5045
        %v5047 = vsel %vm3762, %v5038, %v5046
        %v5049 = vshrl.u32 %v4971, 16
        %v5051 = vrot.slane %v5049, 5
        %v5052 = vshll.u32 %v4971, 16
        %v5054 = vrot.slane %v5052, 6
        %v5055 = vor.u32 %v5051, %v5054
        %v5057 = vshrl.u32 %v4972, 16
        %v5059 = vrot.slane %v5057, 5
        %v5060 = vshll.u32 %v4972, 16
        %v5062 = vrot.slane %v5060, 6
        %v5063 = vor.u32 %v5059, %v5062
        %v5064 = vsel %vm3762, %v5055, %v5063
        %v5066 = vshrl.u32 %v4973, 16
        %v5068 = vrot.slane %v5066, 5
        %v5069 = vshll.u32 %v4973, 16
        %v5071 = vrot.slane %v5069, 6
        %v5072 = vor.u32 %v5068, %v5071
        %v5074 = vshrl.u32 %v4974, 16
        %v5076 = vrot.slane %v5074, 5
        %v5077 = vshll.u32 %v4974, 16
        %v5079 = vrot.slane %v5077, 6
        %v5080 = vor.u32 %v5076, %v5079
        %v5081 = vsel %vm3762, %v5072, %v5080
        %v5083 = vshrl.u32 %v4975, 16
        %v5085 = vrot.slane %v5083, 5
        %v5086 = vshll.u32 %v4975, 16
        %v5088 = vrot.slane %v5086, 6
        %v5089 = vor.u32 %v5085, %v5088
        %v5091 = vshrl.u32 %v4976, 16
        %v5093 = vrot.slane %v5091, 5
        %v5094 = vshll.u32 %v4976, 16
        %v5096 = vrot.slane %v5094, 6
        %v5097 = vor.u32 %v5093, %v5096
        %v5098 = vsel %vm3762, %v5089, %v5097
        %v5100 = vshrl.u32 %v4977, 16
        %v5102 = vrot.slane %v5100, 5
        %v5103 = vshll.u32 %v4977, 16
        %v5105 = vrot.slane %v5103, 6
        %v5106 = vor.u32 %v5102, %v5105
        %v5108 = vshrl.u32 %v4978, 16
        %v5110 = vrot.slane %v5108, 5
        %v5111 = vshll.u32 %v4978, 16
        %v5113 = vrot.slane %v5111, 6
        %v5114 = vor.u32 %v5110, %v5113
        %v5115 = vsel %vm3762, %v5106, %v5114
        %v5117 = vshrl.u32 %v4979, 16
        %v5119 = vrot.slane %v5117, 5
        %v5120 = vshll.u32 %v4979, 16
        %v5122 = vrot.slane %v5120, 6
        %v5123 = vor.u32 %v5119, %v5122
        %v5125 = vshrl.u32 %v4980, 16
        %v5127 = vrot.slane %v5125, 5
        %v5128 = vshll.u32 %v4980, 16
        %v5130 = vrot.slane %v5128, 6
        %v5131 = vor.u32 %v5127, %v5130
        %v5132 = vsel %vm3762, %v5123, %v5131
        %v5134 = vshrl.u32 %v4981, 16
        %v5136 = vrot.slane %v5134, 5
        %v5137 = vshll.u32 %v4981, 16
        %v5139 = vrot.slane %v5137, 6
        %v5140 = vor.u32 %v5136, %v5139
        %v5142 = vshrl.u32 %v4982, 16
        %v5144 = vrot.slane %v5142, 5
        %v5145 = vshll.u32 %v4982, 16
        %v5147 = vrot.slane %v5145, 6
        %v5148 = vor.u32 %v5144, %v5147
        %v5149 = vsel %vm3762, %v5140, %v5148
        %v5151 = vshrl.u32 %v4983, 16
        %v5153 = vrot.slane %v5151, 5
        %v5154 = vshll.u32 %v4983, 16
        %v5156 = vrot.slane %v5154, 6
        %v5157 = vor.u32 %v5153, %v5156
        %v5159 = vshrl.u32 %v4984, 16
        %v5161 = vrot.slane %v5159, 5
        %v5162 = vshll.u32 %v4984, 16
        %v5164 = vrot.slane %v5162, 6
        %v5165 = vor.u32 %v5161, %v5164
        %v5166 = vsel %vm3762, %v5157, %v5165
        %v5168 = vshrl.u32 %v4985, 16
        %v5170 = vrot.slane %v5168, 5
        %v5171 = vshll.u32 %v4985, 16
        %v5173 = vrot.slane %v5171, 6
        %v5174 = vor.u32 %v5170, %v5173
        %v5176 = vshrl.u32 %v4986, 16
        %v5178 = vrot.slane %v5176, 5
        %v5179 = vshll.u32 %v4986, 16
        %v5181 = vrot.slane %v5179, 6
        %v5182 = vor.u32 %v5178, %v5181
        %v5183 = vsel %vm3762, %v5174, %v5182
        %v5185 = vshrl.u32 %v4987, 16
        %v5187 = vrot.slane %v5185, 5
        %v5188 = vshll.u32 %v4987, 16
        %v5190 = vrot.slane %v5188, 6
        %v5191 = vor.u32 %v5187, %v5190
        %v5193 = vshrl.u32 %v4988, 16
        %v5195 = vrot.slane %v5193, 5
        %v5196 = vshll.u32 %v4988, 16
        %v5198 = vrot.slane %v5196, 6
        %v5199 = vor.u32 %v5195, %v5198
        %v5200 = vsel %vm3762, %v5191, %v5199
        %v5202 = vshrl.u32 %v4989, 16
        %v5204 = vrot.slane %v5202, 5
        %v5205 = vshll.u32 %v4989, 16
        %v5207 = vrot.slane %v5205, 6
        %v5208 = vor.u32 %v5204, %v5207
        %v5210 = vshrl.u32 %v4990, 16
        %v5212 = vrot.slane %v5210, 5
        %v5213 = vshll.u32 %v4990, 16
        %v5215 = vrot.slane %v5213, 6
        %v5216 = vor.u32 %v5212, %v5215
        %v5217 = vsel %vm3762, %v5208, %v5216
        %v5219 = vshrl.u32 %v4991, 16
        %v5221 = vrot.slane %v5219, 5
        %v5222 = vshll.u32 %v4991, 16
        %v5224 = vrot.slane %v5222, 6
        %v5225 = vor.u32 %v5221, %v5224
        %v5227 = vshrl.u32 %v4992, 16
        %v5229 = vrot.slane %v5227, 5
        %v5230 = vshll.u32 %v4992, 16
        %v5232 = vrot.slane %v5230, 6
        %v5233 = vor.u32 %v5229, %v5232
        %v5234 = vsel %vm3762, %v5225, %v5233
        %v5236 = vshrl.u32 %v4993, 16
        %v5238 = vrot.slane %v5236, 5
        %v5239 = vshll.u32 %v4993, 16
        %v5241 = vrot.slane %v5239, 6
        %v5242 = vor.u32 %v5238, %v5241
        %v5244 = vshrl.u32 %v4994, 16
        %v5246 = vrot.slane %v5244, 5
        %v5247 = vshll.u32 %v4994, 16
        %v5249 = vrot.slane %v5247, 6
        %v5250 = vor.u32 %v5246, %v5249
        %v5251 = vsel %vm3762, %v5242, %v5250
        %v5253 = vshrl.u32 %v4995, 16
        %v5255 = vrot.slane %v5253, 5
        %v5256 = vshll.u32 %v4995, 16
        %v5258 = vrot.slane %v5256, 6
        %v5259 = vor.u32 %v5255, %v5258
        %v5261 = vshrl.u32 %v4996, 16
        %v5263 = vrot.slane %v5261, 5
        %v5264 = vshll.u32 %v4996, 16
        %v5266 = vrot.slane %v5264, 6
        %v5267 = vor.u32 %v5263, %v5266
        %v5268 = vsel %vm3762, %v5259, %v5267
        %v5269 = vld [vmem:[%s4964 + $0x8] sm:$0xff]
        %v5270 = vld [vmem:[%s4964 + $0x20] sm:$0xff]
        %v5271 = vld [vmem:[%s4964 + $0x38] sm:$0xff]
        %v5272 = vld [vmem:[%s4964 + $0x50] sm:$0xff]
        %v5273 = vld [vmem:[%s4964 + $0x68] sm:$0xff]
        %v5274 = vld [vmem:[%s4964 + $0x80] sm:$0xff]
        %v5275 = vld [vmem:[%s4964 + $0x98] sm:$0xff]
        %v5276 = vld [vmem:[%s4964 + $0xb0] sm:$0xff]
        %v5277 = vld [vmem:[%s4964 + $0xc8] sm:$0xff]
        %v5278 = vld [vmem:[%s4964 + $0xe0] sm:$0xff]
        %v5279 = vld [vmem:[%s4964 + $0xf8] sm:$0xff]
        %v5280 = vld [vmem:[%s4964 + $0x110] sm:$0xff]
        %v5281 = vld [vmem:[%s4964 + $0x128] sm:$0xff]
        %v5282 = vld [vmem:[%s4964 + $0x140] sm:$0xff]
        %v5283 = vld [vmem:[%s4964 + $0x158] sm:$0xff]
        %v5284 = vld [vmem:[%s4964 + $0x170] sm:$0xff]
        %v5285 = vld [vmem:[%s4964 + $0x8] sm:$0xfc]
        %v5286 = vld [vmem:[%s4964 + $0x10] sm:$0x7]
        %v5287 = vld [vmem:[%s4964 + $0x20] sm:$0xfc]
        %v5288 = vld [vmem:[%s4964 + $0x28] sm:$0x7]
        %v5289 = vld [vmem:[%s4964 + $0x38] sm:$0xfc]
        %v5290 = vld [vmem:[%s4964 + $0x40] sm:$0x7]
        %v5291 = vld [vmem:[%s4964 + $0x50] sm:$0xfc]
        %v5292 = vld [vmem:[%s4964 + $0x58] sm:$0x7]
        %v5293 = vld [vmem:[%s4964 + $0x68] sm:$0xfc]
        %v5294 = vld [vmem:[%s4964 + $0x70] sm:$0x7]
        %v5295 = vld [vmem:[%s4964 + $0x80] sm:$0xfc]
        %v5296 = vld [vmem:[%s4964 + $0x88] sm:$0x7]
        %v5297 = vld [vmem:[%s4964 + $0x98] sm:$0xfc]
        %v5298 = vld [vmem:[%s4964 + $0xa0] sm:$0x7]
        %v5299 = vld [vmem:[%s4964 + $0xb0] sm:$0xfc]
        %v5300 = vld [vmem:[%s4964 + $0xb8] sm:$0x7]
        %v5301 = vld [vmem:[%s4964 + $0xc8] sm:$0xfc]
        %v5302 = vld [vmem:[%s4964 + $0xd0] sm:$0x7]
        %v5303 = vld [vmem:[%s4964 + $0xe0] sm:$0xfc]
        %v5304 = vld [vmem:[%s4964 + $0xe8] sm:$0x7]
        %v5305 = vld [vmem:[%s4964 + $0xf8] sm:$0xfc]
        %v5306 = vld [vmem:[%s4964 + $0x100] sm:$0x7]
        %v5307 = vld [vmem:[%s4964 + $0x110] sm:$0xfc]
        %v5308 = vld [vmem:[%s4964 + $0x118] sm:$0x7]
        %v5309 = vld [vmem:[%s4964 + $0x128] sm:$0xfc]
        %v5310 = vld [vmem:[%s4964 + $0x130] sm:$0x7]
        %v5311 = vld [vmem:[%s4964 + $0x140] sm:$0xfc]
        %v5312 = vld [vmem:[%s4964 + $0x148] sm:$0x7]
        %v5313 = vld [vmem:[%s4964 + $0x158] sm:$0xfc]
        %v5314 = vld [vmem:[%s4964 + $0x160] sm:$0x7]
        %v5315 = vld [vmem:[%s4964 + $0x170] sm:$0xfc]
        %v5316 = vld [vmem:[%s4964 + $0x178] sm:$0x7]
        %v5318 = vshrl.u32 %v5285, 16
        %v5320 = vrot.slane %v5318, 2
        %v5321 = vshll.u32 %v5285, 16
        %v5323 = vrot.slane %v5321, 3
        %v5324 = vor.u32 %v5320, %v5323
        %v5326 = vshrl.u32 %v5286, 16
        %v5328 = vrot.slane %v5326, 2
        %v5329 = vshll.u32 %v5286, 16
        %v5331 = vrot.slane %v5329, 3
        %v5332 = vor.u32 %v5328, %v5331
        %v5333 = vsel %vm4083, %v5324, %v5332
        %v5335 = vshrl.u32 %v5287, 16
        %v5337 = vrot.slane %v5335, 2
        %v5338 = vshll.u32 %v5287, 16
        %v5340 = vrot.slane %v5338, 3
        %v5341 = vor.u32 %v5337, %v5340
        %v5343 = vshrl.u32 %v5288, 16
        %v5345 = vrot.slane %v5343, 2
        %v5346 = vshll.u32 %v5288, 16
        %v5348 = vrot.slane %v5346, 3
        %v5349 = vor.u32 %v5345, %v5348
        %v5350 = vsel %vm4083, %v5341, %v5349
        %v5352 = vshrl.u32 %v5289, 16
        %v5354 = vrot.slane %v5352, 2
        %v5355 = vshll.u32 %v5289, 16
        %v5357 = vrot.slane %v5355, 3
        %v5358 = vor.u32 %v5354, %v5357
        %v5360 = vshrl.u32 %v5290, 16
        %v5362 = vrot.slane %v5360, 2
        %v5363 = vshll.u32 %v5290, 16
        %v5365 = vrot.slane %v5363, 3
        %v5366 = vor.u32 %v5362, %v5365
        %v5367 = vsel %vm4083, %v5358, %v5366
        %v5369 = vshrl.u32 %v5291, 16
        %v5371 = vrot.slane %v5369, 2
        %v5372 = vshll.u32 %v5291, 16
        %v5374 = vrot.slane %v5372, 3
        %v5375 = vor.u32 %v5371, %v5374
        %v5377 = vshrl.u32 %v5292, 16
        %v5379 = vrot.slane %v5377, 2
        %v5380 = vshll.u32 %v5292, 16
        %v5382 = vrot.slane %v5380, 3
        %v5383 = vor.u32 %v5379, %v5382
        %v5384 = vsel %vm4083, %v5375, %v5383
        %v5386 = vshrl.u32 %v5293, 16
        %v5388 = vrot.slane %v5386, 2
        %v5389 = vshll.u32 %v5293, 16
        %v5391 = vrot.slane %v5389, 3
        %v5392 = vor.u32 %v5388, %v5391
        %v5394 = vshrl.u32 %v5294, 16
        %v5396 = vrot.slane %v5394, 2
        %v5397 = vshll.u32 %v5294, 16
        %v5399 = vrot.slane %v5397, 3
        %v5400 = vor.u32 %v5396, %v5399
        %v5401 = vsel %vm4083, %v5392, %v5400
        %v5403 = vshrl.u32 %v5295, 16
        %v5405 = vrot.slane %v5403, 2
        %v5406 = vshll.u32 %v5295, 16
        %v5408 = vrot.slane %v5406, 3
        %v5409 = vor.u32 %v5405, %v5408
        %v5411 = vshrl.u32 %v5296, 16
        %v5413 = vrot.slane %v5411, 2
        %v5414 = vshll.u32 %v5296, 16
        %v5416 = vrot.slane %v5414, 3
        %v5417 = vor.u32 %v5413, %v5416
        %v5418 = vsel %vm4083, %v5409, %v5417
        %v5420 = vshrl.u32 %v5297, 16
        %v5422 = vrot.slane %v5420, 2
        %v5423 = vshll.u32 %v5297, 16
        %v5425 = vrot.slane %v5423, 3
        %v5426 = vor.u32 %v5422, %v5425
        %v5428 = vshrl.u32 %v5298, 16
        %v5430 = vrot.slane %v5428, 2
        %v5431 = vshll.u32 %v5298, 16
        %v5433 = vrot.slane %v5431, 3
        %v5434 = vor.u32 %v5430, %v5433
        %v5435 = vsel %vm4083, %v5426, %v5434
        %v5437 = vshrl.u32 %v5299, 16
        %v5439 = vrot.slane %v5437, 2
        %v5440 = vshll.u32 %v5299, 16
        %v5442 = vrot.slane %v5440, 3
        %v5443 = vor.u32 %v5439, %v5442
        %v5445 = vshrl.u32 %v5300, 16
        %v5447 = vrot.slane %v5445, 2
        %v5448 = vshll.u32 %v5300, 16
        %v5450 = vrot.slane %v5448, 3
        %v5451 = vor.u32 %v5447, %v5450
        %v5452 = vsel %vm4083, %v5443, %v5451
        %v5454 = vshrl.u32 %v5301, 16
        %v5456 = vrot.slane %v5454, 2
        %v5457 = vshll.u32 %v5301, 16
        %v5459 = vrot.slane %v5457, 3
        %v5460 = vor.u32 %v5456, %v5459
        %v5462 = vshrl.u32 %v5302, 16
        %v5464 = vrot.slane %v5462, 2
        %v5465 = vshll.u32 %v5302, 16
        %v5467 = vrot.slane %v5465, 3
        %v5468 = vor.u32 %v5464, %v5467
        %v5469 = vsel %vm4083, %v5460, %v5468
        %v5471 = vshrl.u32 %v5303, 16
        %v5473 = vrot.slane %v5471, 2
        %v5474 = vshll.u32 %v5303, 16
        %v5476 = vrot.slane %v5474, 3
        %v5477 = vor.u32 %v5473, %v5476
        %v5479 = vshrl.u32 %v5304, 16
        %v5481 = vrot.slane %v5479, 2
        %v5482 = vshll.u32 %v5304, 16
        %v5484 = vrot.slane %v5482, 3
        %v5485 = vor.u32 %v5481, %v5484
        %v5486 = vsel %vm4083, %v5477, %v5485
        %v5488 = vshrl.u32 %v5305, 16
        %v5490 = vrot.slane %v5488, 2
        %v5491 = vshll.u32 %v5305, 16
        %v5493 = vrot.slane %v5491, 3
        %v5494 = vor.u32 %v5490, %v5493
        %v5496 = vshrl.u32 %v5306, 16
        %v5498 = vrot.slane %v5496, 2
        %v5499 = vshll.u32 %v5306, 16
        %v5501 = vrot.slane %v5499, 3
        %v5502 = vor.u32 %v5498, %v5501
        %v5503 = vsel %vm4083, %v5494, %v5502
        %v5505 = vshrl.u32 %v5307, 16
        %v5507 = vrot.slane %v5505, 2
        %v5508 = vshll.u32 %v5307, 16
        %v5510 = vrot.slane %v5508, 3
        %v5511 = vor.u32 %v5507, %v5510
        %v5513 = vshrl.u32 %v5308, 16
        %v5515 = vrot.slane %v5513, 2
        %v5516 = vshll.u32 %v5308, 16
        %v5518 = vrot.slane %v5516, 3
        %v5519 = vor.u32 %v5515, %v5518
        %v5520 = vsel %vm4083, %v5511, %v5519
        %v5522 = vshrl.u32 %v5309, 16
        %v5524 = vrot.slane %v5522, 2
        %v5525 = vshll.u32 %v5309, 16
        %v5527 = vrot.slane %v5525, 3
        %v5528 = vor.u32 %v5524, %v5527
        %v5530 = vshrl.u32 %v5310, 16
        %v5532 = vrot.slane %v5530, 2
        %v5533 = vshll.u32 %v5310, 16
        %v5535 = vrot.slane %v5533, 3
        %v5536 = vor.u32 %v5532, %v5535
        %v5537 = vsel %vm4083, %v5528, %v5536
        %v5539 = vshrl.u32 %v5311, 16
        %v5541 = vrot.slane %v5539, 2
        %v5542 = vshll.u32 %v5311, 16
        %v5544 = vrot.slane %v5542, 3
        %v5545 = vor.u32 %v5541, %v5544
        %v5547 = vshrl.u32 %v5312, 16
        %v5549 = vrot.slane %v5547, 2
        %v5550 = vshll.u32 %v5312, 16
        %v5552 = vrot.slane %v5550, 3
        %v5553 = vor.u32 %v5549, %v5552
        %v5554 = vsel %vm4083, %v5545, %v5553
        %v5556 = vshrl.u32 %v5313, 16
        %v5558 = vrot.slane %v5556, 2
        %v5559 = vshll.u32 %v5313, 16
        %v5561 = vrot.slane %v5559, 3
        %v5562 = vor.u32 %v5558, %v5561
        %v5564 = vshrl.u32 %v5314, 16
        %v5566 = vrot.slane %v5564, 2
        %v5567 = vshll.u32 %v5314, 16
        %v5569 = vrot.slane %v5567, 3
        %v5570 = vor.u32 %v5566, %v5569
        %v5571 = vsel %vm4083, %v5562, %v5570
        %v5573 = vshrl.u32 %v5315, 16
        %v5575 = vrot.slane %v5573, 2
        %v5576 = vshll.u32 %v5315, 16
        %v5578 = vrot.slane %v5576, 3
        %v5579 = vor.u32 %v5575, %v5578
        %v5581 = vshrl.u32 %v5316, 16
        %v5583 = vrot.slane %v5581, 2
        %v5584 = vshll.u32 %v5316, 16
        %v5586 = vrot.slane %v5584, 3
        %v5587 = vor.u32 %v5583, %v5586
        %v5588 = vsel %vm4083, %v5579, %v5587
        %5605 = vrot.lane.b32.xlu0 %v4035, 64
        %v5606 = vpop.permute.xlu0 %5605
        %5607 = vrot.lane.b32.xlu0 %v4036, 64
        %v5608 = vpop.permute.xlu0 %5607
        %5609 = vrot.lane.b32.xlu0 %v4037, 64
        %v5610 = vpop.permute.xlu0 %5609
        %5611 = vrot.lane.b32.xlu0 %v4038, 64
        %v5612 = vpop.permute.xlu0 %5611
        %5613 = vrot.lane.b32.xlu0 %v4039, 64
        %v5614 = vpop.permute.xlu0 %5613
        %5615 = vrot.lane.b32.xlu0 %v4040, 64
        %v5616 = vpop.permute.xlu0 %5615
        %5617 = vrot.lane.b32.xlu0 %v4041, 64
        %v5618 = vpop.permute.xlu0 %5617
        %5619 = vrot.lane.b32.xlu0 %v4042, 64
        %v5620 = vpop.permute.xlu0 %5619
        %5621 = vrot.lane.b32.xlu0 %v4043, 64
        %v5622 = vpop.permute.xlu0 %5621
        %5623 = vrot.lane.b32.xlu0 %v4044, 64
        %v5624 = vpop.permute.xlu0 %5623
        %5625 = vrot.lane.b32.xlu0 %v4045, 64
        %v5626 = vpop.permute.xlu0 %5625
        %5627 = vrot.lane.b32.xlu0 %v4046, 64
        %v5628 = vpop.permute.xlu0 %5627
        %5629 = vrot.lane.b32.xlu0 %v4047, 64
        %v5630 = vpop.permute.xlu0 %5629
        %5631 = vrot.lane.b32.xlu0 %v4048, 64
        %v5632 = vpop.permute.xlu0 %5631
        %5633 = vrot.lane.b32.xlu0 %v4049, 64
        %v5634 = vpop.permute.xlu0 %5633
        %5635 = vrot.lane.b32.xlu0 %v4050, 64
        %v5636 = vpop.permute.xlu0 %5635
        %5637 = vrot.lane.b32.xlu0 %v4404, 64
        %v5638 = vpop.permute.xlu0 %5637
        %5639 = vrot.lane.b32.xlu0 %v4421, 64
        %v5640 = vpop.permute.xlu0 %5639
        %5641 = vrot.lane.b32.xlu0 %v4438, 64
        %v5642 = vpop.permute.xlu0 %5641
        %5643 = vrot.lane.b32.xlu0 %v4455, 64
        %v5644 = vpop.permute.xlu0 %5643
        %5645 = vrot.lane.b32.xlu0 %v4472, 64
        %v5646 = vpop.permute.xlu0 %5645
        %5647 = vrot.lane.b32.xlu0 %v4489, 64
        %v5648 = vpop.permute.xlu0 %5647
        %5649 = vrot.lane.b32.xlu0 %v4506, 64
        %v5650 = vpop.permute.xlu0 %5649
        %5651 = vrot.lane.b32.xlu0 %v4523, 64
        %v5652 = vpop.permute.xlu0 %5651
        %5653 = vrot.lane.b32.xlu0 %v4540, 64
        %v5654 = vpop.permute.xlu0 %5653
        %5655 = vrot.lane.b32.xlu0 %v4557, 64
        %v5656 = vpop.permute.xlu0 %5655
        %5657 = vrot.lane.b32.xlu0 %v4574, 64
        %v5658 = vpop.permute.xlu0 %5657
        %5659 = vrot.lane.b32.xlu0 %v4591, 64
        %v5660 = vpop.permute.xlu0 %5659
        %5661 = vrot.lane.b32.xlu0 %v4608, 64
        %v5662 = vpop.permute.xlu0 %5661
        %5663 = vrot.lane.b32.xlu0 %v4625, 64
        %v5664 = vpop.permute.xlu0 %5663
        %5665 = vrot.lane.b32.xlu0 %v4642, 64
        %v5666 = vpop.permute.xlu0 %5665
        %5667 = vrot.lane.b32.xlu0 %v4659, 64
        %v5668 = vpop.permute.xlu0 %5667
        %v5671 = vsel %vm278, %v3779, %v5606
        %v5675 = vsel %vm278, %v3796, %v5608
        %v5679 = vsel %vm278, %v3813, %v5610
        %v5683 = vsel %vm278, %v3830, %v5612
        %v5687 = vsel %vm278, %v3847, %v5614
        %v5691 = vsel %vm278, %v3864, %v5616
        %v5695 = vsel %vm278, %v3881, %v5618
        %v5699 = vsel %vm278, %v3898, %v5620
        %v5703 = vsel %vm278, %v3915, %v5622
        %v5707 = vsel %vm278, %v3932, %v5624
        %v5711 = vsel %vm278, %v3949, %v5626
        %v5715 = vsel %vm278, %v3966, %v5628
        %v5719 = vsel %vm278, %v3983, %v5630
        %v5723 = vsel %vm278, %v4000, %v5632
        %v5727 = vsel %vm278, %v4017, %v5634
        %v5731 = vsel %vm278, %v4034, %v5636
        %v5735 = vsel %vm278, %v4100, %v5638
        %v5739 = vsel %vm278, %v4117, %v5640
        %v5743 = vsel %vm278, %v4134, %v5642
        %v5747 = vsel %vm278, %v4151, %v5644
        %v5751 = vsel %vm278, %v4168, %v5646
        %v5755 = vsel %vm278, %v4185, %v5648
        %v5759 = vsel %vm278, %v4202, %v5650
        %v5763 = vsel %vm278, %v4219, %v5652
        %v5767 = vsel %vm278, %v4236, %v5654
        %v5771 = vsel %vm278, %v4253, %v5656
        %v5775 = vsel %vm278, %v4270, %v5658
        %v5779 = vsel %vm278, %v4287, %v5660
        %v5783 = vsel %vm278, %v4304, %v5662
        %v5787 = vsel %vm278, %v4321, %v5664
        %v5791 = vsel %vm278, %v4338, %v5666
        %v5795 = vsel %vm278, %v4355, %v5668
        %5797 = vrot.lane.b32.xlu0 %v5013, 64
        %v5798 = vpop.permute.xlu0 %5797
        %5799 = vrot.lane.b32.xlu0 %v5030, 64
        %v5800 = vpop.permute.xlu0 %5799
        %5801 = vrot.lane.b32.xlu0 %v5047, 64
        %v5802 = vpop.permute.xlu0 %5801
        %5803 = vrot.lane.b32.xlu0 %v5064, 64
        %v5804 = vpop.permute.xlu0 %5803
        %5805 = vrot.lane.b32.xlu0 %v5081, 64
        %v5806 = vpop.permute.xlu0 %5805
        %5807 = vrot.lane.b32.xlu0 %v5098, 64
        %v5808 = vpop.permute.xlu0 %5807
        %5809 = vrot.lane.b32.xlu0 %v5115, 64
        %v5810 = vpop.permute.xlu0 %5809
        %5811 = vrot.lane.b32.xlu0 %v5132, 64
        %v5812 = vpop.permute.xlu0 %5811
        %5813 = vrot.lane.b32.xlu0 %v5149, 64
        %v5814 = vpop.permute.xlu0 %5813
        %5815 = vrot.lane.b32.xlu0 %v5166, 64
        %v5816 = vpop.permute.xlu0 %5815
        %5817 = vrot.lane.b32.xlu0 %v5183, 64
        %v5818 = vpop.permute.xlu0 %5817
        %5819 = vrot.lane.b32.xlu0 %v5200, 64
        %v5820 = vpop.permute.xlu0 %5819
        %5821 = vrot.lane.b32.xlu0 %v5217, 64
        %v5822 = vpop.permute.xlu0 %5821
        %5823 = vrot.lane.b32.xlu0 %v5234, 64
        %v5824 = vpop.permute.xlu0 %5823
        %5825 = vrot.lane.b32.xlu0 %v5251, 64
        %v5826 = vpop.permute.xlu0 %5825
        %5827 = vrot.lane.b32.xlu0 %v5268, 64
        %v5828 = vpop.permute.xlu0 %5827
        %5829 = vrot.lane.b32.xlu0 %v5333, 64
        %v5830 = vpop.permute.xlu0 %5829
        %5831 = vrot.lane.b32.xlu0 %v5350, 64
        %v5832 = vpop.permute.xlu0 %5831
        %5833 = vrot.lane.b32.xlu0 %v5367, 64
        %v5834 = vpop.permute.xlu0 %5833
        %5835 = vrot.lane.b32.xlu0 %v5384, 64
        %v5836 = vpop.permute.xlu0 %5835
        %5837 = vrot.lane.b32.xlu0 %v5401, 64
        %v5838 = vpop.permute.xlu0 %5837
        %5839 = vrot.lane.b32.xlu0 %v5418, 64
        %v5840 = vpop.permute.xlu0 %5839
        %5841 = vrot.lane.b32.xlu0 %v5435, 64
        %v5842 = vpop.permute.xlu0 %5841
        %5843 = vrot.lane.b32.xlu0 %v5452, 64
        %v5844 = vpop.permute.xlu0 %5843
        %5845 = vrot.lane.b32.xlu0 %v5469, 64
        %v5846 = vpop.permute.xlu0 %5845
        %5847 = vrot.lane.b32.xlu0 %v5486, 64
        %v5848 = vpop.permute.xlu0 %5847
        %5849 = vrot.lane.b32.xlu0 %v5503, 64
        %v5850 = vpop.permute.xlu0 %5849
        %5851 = vrot.lane.b32.xlu0 %v5520, 64
        %v5852 = vpop.permute.xlu0 %5851
        %5853 = vrot.lane.b32.xlu0 %v5537, 64
        %v5854 = vpop.permute.xlu0 %5853
        %5855 = vrot.lane.b32.xlu0 %v5554, 64
        %v5856 = vpop.permute.xlu0 %5855
        %5857 = vrot.lane.b32.xlu0 %v5571, 64
        %v5858 = vpop.permute.xlu0 %5857
        %5859 = vrot.lane.b32.xlu0 %v5588, 64
        %v5860 = vpop.permute.xlu0 %5859
        %v5863 = vsel %vm278, %v4708, %v5798
        %v5867 = vsel %vm278, %v4725, %v5800
        %v5871 = vsel %vm278, %v4742, %v5802
        %v5875 = vsel %vm278, %v4759, %v5804
        %v5879 = vsel %vm278, %v4776, %v5806
        %v5883 = vsel %vm278, %v4793, %v5808
        %v5887 = vsel %vm278, %v4810, %v5810
        %v5891 = vsel %vm278, %v4827, %v5812
        %v5895 = vsel %vm278, %v4844, %v5814
        %v5899 = vsel %vm278, %v4861, %v5816
        %v5903 = vsel %vm278, %v4878, %v5818
        %v5907 = vsel %vm278, %v4895, %v5820
        %v5911 = vsel %vm278, %v4912, %v5822
        %v5915 = vsel %vm278, %v4929, %v5824
        %v5919 = vsel %vm278, %v4946, %v5826
        %v5923 = vsel %vm278, %v4963, %v5828
        %v5927 = vsel %vm278, %v5269, %v5830
        %v5931 = vsel %vm278, %v5270, %v5832
        %v5935 = vsel %vm278, %v5271, %v5834
        %v5939 = vsel %vm278, %v5272, %v5836
        %v5943 = vsel %vm278, %v5273, %v5838
        %v5947 = vsel %vm278, %v5274, %v5840
        %v5951 = vsel %vm278, %v5275, %v5842
        %v5955 = vsel %vm278, %v5276, %v5844
        %v5959 = vsel %vm278, %v5277, %v5846
        %v5963 = vsel %vm278, %v5278, %v5848
        %v5967 = vsel %vm278, %v5279, %v5850
        %v5971 = vsel %vm278, %v5280, %v5852
        %v5975 = vsel %vm278, %v5281, %v5854
        %v5979 = vsel %vm278, %v5282, %v5856
        %v5983 = vsel %vm278, %v5283, %v5858
        %v5987 = vsel %vm278, %v5284, %v5860
        %v5989 = vld [vmem:[%s3] sm:$0xf]
        %v5990 = vld [vmem:[%s3 + $0x4] sm:$0xf]
        %v5991 = vld [vmem:[%s3 + $0x8] sm:$0xf]
        %v5992 = vld [vmem:[%s3 + $0xc] sm:$0xf]
        %v5993 = vld [vmem:[%s3 + $0x10] sm:$0xf]
        %v5994 = vld [vmem:[%s3 + $0x14] sm:$0xf]
        %v5995 = vld [vmem:[%s3 + $0x18] sm:$0xf]
        %v5996 = vld [vmem:[%s3 + $0x1c] sm:$0xf]
        %v5997 = vld [vmem:[%s3 + $0x20] sm:$0xf]
        %v5998 = vld [vmem:[%s3 + $0x24] sm:$0xf]
        %v5999 = vld [vmem:[%s3 + $0x28] sm:$0xf]
        %v6000 = vld [vmem:[%s3 + $0x2c] sm:$0xf]
        %v6001 = vld [vmem:[%s3 + $0x30] sm:$0xf]
        %v6002 = vld [vmem:[%s3 + $0x34] sm:$0xf]
        %v6003 = vld [vmem:[%s3 + $0x38] sm:$0xf]
        %v6004 = vld [vmem:[%s3 + $0x3c] sm:$0xf]
        %v6005 = vld [vmem:[%s3 + $0x40] sm:$0xf]
        %v6006 = vld [vmem:[%s3 + $0x44] sm:$0xf]
        %v6007 = vld [vmem:[%s3 + $0x48] sm:$0xf]
        %v6008 = vld [vmem:[%s3 + $0x4c] sm:$0xf]
        %v6009 = vld [vmem:[%s3 + $0x50] sm:$0xf]
        %v6010 = vld [vmem:[%s3 + $0x54] sm:$0xf]
        %v6011 = vld [vmem:[%s3 + $0x58] sm:$0xf]
        %v6012 = vld [vmem:[%s3 + $0x5c] sm:$0xf]
        %v6013 = vld [vmem:[%s3 + $0x60] sm:$0xf]
        %v6014 = vld [vmem:[%s3 + $0x64] sm:$0xf]
        %v6015 = vld [vmem:[%s3 + $0x68] sm:$0xf]
        %v6016 = vld [vmem:[%s3 + $0x6c] sm:$0xf]
        %v6017 = vld [vmem:[%s3 + $0x70] sm:$0xf]
        %v6018 = vld [vmem:[%s3 + $0x74] sm:$0xf]
        %v6019 = vld [vmem:[%s3 + $0x78] sm:$0xf]
        %v6020 = vld [vmem:[%s3 + $0x7c] sm:$0xf]
        %v6053 = vunpack.c.l.b16 %v5989
        %v6054 = vunpack.c.l.b16 %v5990
        %v6055 = vunpack.c.l.b16 %v5991
        %v6056 = vunpack.c.l.b16 %v5992
        %v6057 = vunpack.c.l.b16 %v5993
        %v6058 = vunpack.c.l.b16 %v5994
        %v6059 = vunpack.c.l.b16 %v5995
        %v6060 = vunpack.c.l.b16 %v5996
        %v6061 = vunpack.c.l.b16 %v5997
        %v6062 = vunpack.c.l.b16 %v5998
        %v6063 = vunpack.c.l.b16 %v5999
        %v6064 = vunpack.c.l.b16 %v6000
        %v6065 = vunpack.c.l.b16 %v6001
        %v6066 = vunpack.c.l.b16 %v6002
        %v6067 = vunpack.c.l.b16 %v6003
        %v6068 = vunpack.c.l.b16 %v6004
        %v6069 = vunpack.c.l.b16 %v6005
        %v6070 = vunpack.c.l.b16 %v6006
        %v6071 = vunpack.c.l.b16 %v6007
        %v6072 = vunpack.c.l.b16 %v6008
        %v6073 = vunpack.c.l.b16 %v6009
        %v6074 = vunpack.c.l.b16 %v6010
        %v6075 = vunpack.c.l.b16 %v6011
        %v6076 = vunpack.c.l.b16 %v6012
        %v6077 = vunpack.c.l.b16 %v6013
        %v6078 = vunpack.c.l.b16 %v6014
        %v6079 = vunpack.c.l.b16 %v6015
        %v6080 = vunpack.c.l.b16 %v6016
        %v6081 = vunpack.c.l.b16 %v6017
        %v6082 = vunpack.c.l.b16 %v6018
        %v6083 = vunpack.c.l.b16 %v6019
        %v6084 = vunpack.c.l.b16 %v6020
        %v6085 = vpack.c.b16 %v6054, %v6053
        %v6086 = vpack.c.b16 %v6056, %v6055
        %v6087 = vpack.c.b16 %v6058, %v6057
        %v6088 = vpack.c.b16 %v6060, %v6059
        %v6089 = vpack.c.b16 %v6062, %v6061
        %v6090 = vpack.c.b16 %v6064, %v6063
        %v6091 = vpack.c.b16 %v6066, %v6065
        %v6092 = vpack.c.b16 %v6068, %v6067
        %v6093 = vpack.c.b16 %v6070, %v6069
        %v6094 = vpack.c.b16 %v6072, %v6071
        %v6095 = vpack.c.b16 %v6074, %v6073
        %v6096 = vpack.c.b16 %v6076, %v6075
        %v6097 = vpack.c.b16 %v6078, %v6077
        %v6098 = vpack.c.b16 %v6080, %v6079
        %v6099 = vpack.c.b16 %v6082, %v6081
        %v6100 = vpack.c.b16 %v6084, %v6083
        %6117 = vmatprep.subr.bf16.mxu0 0
        %6118 = vmatpush1.bf16.msra.mxu0 %v6085
        %6119 = vmatprep.subr.bf16.mxu0 0
        %6120 = vmatpush1.bf16.msra.mxu0 %v6086
        %6121 = vmatprep.subr.bf16.mxu0 0
        %6122 = vmatpush1.bf16.msra.mxu0 %v6087
        %6123 = vmatprep.subr.bf16.mxu0 0
        %6124 = vmatpush1.bf16.msra.mxu0 %v6088
        %6125 = vmatprep.subr.bf16.mxu0 0
        %6126 = vmatpush1.bf16.msra.mxu0 %v6089
        %6127 = vmatprep.subr.bf16.mxu0 0
        %6128 = vmatpush1.bf16.msra.mxu0 %v6090
        %6129 = vmatprep.subr.bf16.mxu0 0
        %6130 = vmatpush1.bf16.msra.mxu0 %v6091
        %6131 = vmatprep.subr.bf16.mxu0 0
        %6132 = vmatpush1.bf16.msra.mxu0 %v6092
        %6133 = vmatprep.subr.bf16.mxu0 0
        %6134 = vmatpush1.bf16.msra.mxu0 %v6093
        %6135 = vmatprep.subr.bf16.mxu0 0
        %6136 = vmatpush1.bf16.msra.mxu0 %v6094
        %6137 = vmatprep.subr.bf16.mxu0 0
        %6138 = vmatpush1.bf16.msra.mxu0 %v6095
        %6139 = vmatprep.subr.bf16.mxu0 0
        %6140 = vmatpush1.bf16.msra.mxu0 %v6096
        %6141 = vmatprep.subr.bf16.mxu0 0
        %6142 = vmatpush1.bf16.msra.mxu0 %v6097
        %6143 = vmatprep.subr.bf16.mxu0 0
        %6144 = vmatpush1.bf16.msra.mxu0 %v6098
        %6145 = vmatprep.subr.bf16.mxu0 0
        %6146 = vmatpush1.bf16.msra.mxu0 %v6099
        %6147 = vmatprep.subr.bf16.mxu0 0
        %6148 = vmatpush1.bf16.msra.mxu0 %v6100
        %6149 = vmatprep.mubr.bf16.mxu0 %v5735
        %6150 = vmatmul.mubr.bf16.gmra.mrb[0].mxu0 %v5671
        %v6151 = vpop.f32.mrb[0].mxu0
        %v6152 = vadd.f32 0.0, %v6151
        %v6153 = vpop.f32.mrb[0].mxu0
        %v6154 = vpop.f32.mrb[0].mxu0
        %v6155 = vadd.f32 0.0, %v6154
        %v6156 = vpop.f32.mrb[0].mxu0
        %6157 = vmatprep.mubr.bf16.mxu0 %v5739
        %6158 = vmatmul.mubr.bf16.gmra.mrb[0].mxu0 %v5675
        %v6159 = vpop.f32.mrb[0].mxu0
        %v6160 = vadd.f32 0.0, %v6159
        %v6161 = vpop.f32.mrb[0].mxu0
        %v6162 = vpop.f32.mrb[0].mxu0
        %v6163 = vadd.f32 0.0, %v6162
        %v6164 = vpop.f32.mrb[0].mxu0
        %6165 = vmatprep.mubr.bf16.mxu0 %v5743
        %6166 = vmatmul.mubr.bf16.gmra.mrb[0].mxu0 %v5679
        %v6167 = vpop.f32.mrb[0].mxu0
        %v6168 = vadd.f32 0.0, %v6167
        %v6169 = vpop.f32.mrb[0].mxu0
        %v6170 = vpop.f32.mrb[0].mxu0
        %v6171 = vadd.f32 0.0, %v6170
        %v6172 = vpop.f32.mrb[0].mxu0
        %6173 = vmatprep.mubr.bf16.mxu0 %v5747
        %6174 = vmatmul.mubr.bf16.gmra.mrb[0].mxu0 %v5683
        %v6175 = vpop.f32.mrb[0].mxu0
        %v6176 = vadd.f32 0.0, %v6175
        %v6177 = vpop.f32.mrb[0].mxu0
        %v6178 = vpop.f32.mrb[0].mxu0
        %v6179 = vadd.f32 0.0, %v6178
        %v6180 = vpop.f32.mrb[0].mxu0
        %6181 = vmatprep.mubr.bf16.mxu0 %v5751
        %6182 = vmatmul.mubr.bf16.gmra.mrb[0].mxu0 %v5687
        %v6183 = vpop.f32.mrb[0].mxu0
        %v6184 = vadd.f32 0.0, %v6183
        %v6185 = vpop.f32.mrb[0].mxu0
        %v6186 = vpop.f32.mrb[0].mxu0
        %v6187 = vadd.f32 0.0, %v6186
        %v6188 = vpop.f32.mrb[0].mxu0
        %6189 = vmatprep.mubr.bf16.mxu0 %v5755
        %6190 = vmatmul.mubr.bf16.gmra.mrb[0].mxu0 %v5691
        %v6191 = vpop.f32.mrb[0].mxu0
        %v6192 = vadd.f32 0.0, %v6191
        %v6193 = vpop.f32.mrb[0].mxu0
        %v6194 = vpop.f32.mrb[0].mxu0
        %v6195 = vadd.f32 0.0, %v6194
        %v6196 = vpop.f32.mrb[0].mxu0
        %6197 = vmatprep.mubr.bf16.mxu0 %v5759
        %6198 = vmatmul.mubr.bf16.gmra.mrb[0].mxu0 %v5695
        %v6199 = vpop.f32.mrb[0].mxu0
        %v6200 = vadd.f32 0.0, %v6199
        %v6201 = vpop.f32.mrb[0].mxu0
        %v6202 = vpop.f32.mrb[0].mxu0
        %v6203 = vadd.f32 0.0, %v6202
        %v6204 = vpop.f32.mrb[0].mxu0
        %6205 = vmatprep.mubr.bf16.mxu0 %v5763
        %6206 = vmatmul.mubr.bf16.gmra.mrb[0].mxu0 %v5699
        %v6207 = vpop.f32.mrb[0].mxu0
        %v6208 = vadd.f32 0.0, %v6207
        %v6209 = vpop.f32.mrb[0].mxu0
        %v6210 = vpop.f32.mrb[0].mxu0
        %v6211 = vadd.f32 0.0, %v6210
        %v6212 = vpop.f32.mrb[0].mxu0
        %6213 = vmatprep.mubr.bf16.mxu0 %v5767
        %6214 = vmatmul.mubr.bf16.gmra.mrb[0].mxu0 %v5703
        %v6215 = vpop.f32.mrb[0].mxu0
        %v6216 = vadd.f32 0.0, %v6215
        %v6217 = vpop.f32.mrb[0].mxu0
        %v6218 = vpop.f32.mrb[0].mxu0
        %v6219 = vadd.f32 0.0, %v6218
        %v6220 = vpop.f32.mrb[0].mxu0
        %6221 = vmatprep.mubr.bf16.mxu0 %v5771
        %6222 = vmatmul.mubr.bf16.gmra.mrb[0].mxu0 %v5707
        %v6223 = vpop.f32.mrb[0].mxu0
        %v6224 = vadd.f32 0.0, %v6223
        %v6225 = vpop.f32.mrb[0].mxu0
        %v6226 = vpop.f32.mrb[0].mxu0
        %v6227 = vadd.f32 0.0, %v6226
        %v6228 = vpop.f32.mrb[0].mxu0
        %6229 = vmatprep.mubr.bf16.mxu0 %v5775
        %6230 = vmatmul.mubr.bf16.gmra.mrb[0].mxu0 %v5711
        %v6231 = vpop.f32.mrb[0].mxu0
        %v6232 = vadd.f32 0.0, %v6231
        %v6233 = vpop.f32.mrb[0].mxu0
        %v6234 = vpop.f32.mrb[0].mxu0
        %v6235 = vadd.f32 0.0, %v6234
        %v6236 = vpop.f32.mrb[0].mxu0
        %6237 = vmatprep.mubr.bf16.mxu0 %v5779
        %6238 = vmatmul.mubr.bf16.gmra.mrb[0].mxu0 %v5715
        %v6239 = vpop.f32.mrb[0].mxu0
        %v6240 = vadd.f32 0.0, %v6239
        %v6241 = vpop.f32.mrb[0].mxu0
        %v6242 = vpop.f32.mrb[0].mxu0
        %v6243 = vadd.f32 0.0, %v6242
        %v6244 = vpop.f32.mrb[0].mxu0
        %6245 = vmatprep.mubr.bf16.mxu0 %v5783
        %6246 = vmatmul.mubr.bf16.gmra.mrb[0].mxu0 %v5719
        %v6247 = vpop.f32.mrb[0].mxu0
        %v6248 = vadd.f32 0.0, %v6247
        %v6249 = vpop.f32.mrb[0].mxu0
        %v6250 = vpop.f32.mrb[0].mxu0
        %v6251 = vadd.f32 0.0, %v6250
        %v6252 = vpop.f32.mrb[0].mxu0
        %6253 = vmatprep.mubr.bf16.mxu0 %v5787
        %6254 = vmatmul.mubr.bf16.gmra.mrb[0].mxu0 %v5723
        %v6255 = vpop.f32.mrb[0].mxu0
        %v6256 = vadd.f32 0.0, %v6255
        %v6257 = vpop.f32.mrb[0].mxu0
        %v6258 = vpop.f32.mrb[0].mxu0
        %v6259 = vadd.f32 0.0, %v6258
        %v6260 = vpop.f32.mrb[0].mxu0
        %6261 = vmatprep.mubr.bf16.mxu0 %v5791
        %6262 = vmatmul.mubr.bf16.gmra.mrb[0].mxu0 %v5727
        %v6263 = vpop.f32.mrb[0].mxu0
        %v6264 = vadd.f32 0.0, %v6263
        %v6265 = vpop.f32.mrb[0].mxu0
        %v6266 = vpop.f32.mrb[0].mxu0
        %v6267 = vadd.f32 0.0, %v6266
        %v6268 = vpop.f32.mrb[0].mxu0
        %6269 = vmatprep.mubr.bf16.mxu0 %v5795
        %6270 = vmatmul.mubr.bf16.gmra.mrb[0].mxu0 %v5731
        %v6271 = vpop.f32.mrb[0].mxu0
        %v6272 = vadd.f32 0.0, %v6271
        %v6273 = vpop.f32.mrb[0].mxu0
        %v6274 = vpop.f32.mrb[0].mxu0
        %v6275 = vadd.f32 0.0, %v6274
        %v6276 = vpop.f32.mrb[0].mxu0
        %6277 = vdwg.mxu0
        %v6278 = vadd.f32 %v3697, %v6152
        %v6279 = vadd.f32 %v3698, %v6155
        %v6280 = vadd.f32 %v3699, %v6160
        %v6281 = vadd.f32 %v3700, %v6163
        %v6282 = vadd.f32 %v3701, %v6168
        %v6283 = vadd.f32 %v3702, %v6171
        %v6284 = vadd.f32 %v3703, %v6176
        %v6285 = vadd.f32 %v3704, %v6179
        %v6286 = vadd.f32 %v3705, %v6184
        %v6287 = vadd.f32 %v3706, %v6187
        %v6288 = vadd.f32 %v3707, %v6192
        %v6289 = vadd.f32 %v3708, %v6195
        %v6290 = vadd.f32 %v3709, %v6200
        %v6291 = vadd.f32 %v3710, %v6203
        %v6292 = vadd.f32 %v3711, %v6208
        %v6293 = vadd.f32 %v3712, %v6211
        %v6294 = vadd.f32 %v3713, %v6216
        %v6295 = vadd.f32 %v3714, %v6219
        %v6296 = vadd.f32 %v3715, %v6224
        %v6297 = vadd.f32 %v3716, %v6227
        %v6298 = vadd.f32 %v3717, %v6232
        %v6299 = vadd.f32 %v3718, %v6235
        %v6300 = vadd.f32 %v3719, %v6240
        %v6301 = vadd.f32 %v3720, %v6243
        %v6302 = vadd.f32 %v3721, %v6248
        %v6303 = vadd.f32 %v3722, %v6251
        %v6304 = vadd.f32 %v3723, %v6256
        %v6305 = vadd.f32 %v3724, %v6259
        %v6306 = vadd.f32 %v3725, %v6264
        %v6307 = vadd.f32 %v3726, %v6267
        %v6308 = vadd.f32 %v3727, %v6272
        %v6309 = vadd.f32 %v3728, %v6275
        %s6310 = scalar_lea.vmem %s3, 128
        %v6311 = vld [vmem:[%s6310] sm:$0xf]
        %v6312 = vld [vmem:[%s6310 + $0x4] sm:$0xf]
        %v6313 = vld [vmem:[%s6310 + $0x8] sm:$0xf]
        %v6314 = vld [vmem:[%s6310 + $0xc] sm:$0xf]
        %v6315 = vld [vmem:[%s6310 + $0x10] sm:$0xf]
        %v6316 = vld [vmem:[%s6310 + $0x14] sm:$0xf]
        %v6317 = vld [vmem:[%s6310 + $0x18] sm:$0xf]
        %v6318 = vld [vmem:[%s6310 + $0x1c] sm:$0xf]
        %v6319 = vld [vmem:[%s6310 + $0x20] sm:$0xf]
        %v6320 = vld [vmem:[%s6310 + $0x24] sm:$0xf]
        %v6321 = vld [vmem:[%s6310 + $0x28] sm:$0xf]
        %v6322 = vld [vmem:[%s6310 + $0x2c] sm:$0xf]
        %v6323 = vld [vmem:[%s6310 + $0x30] sm:$0xf]
        %v6324 = vld [vmem:[%s6310 + $0x34] sm:$0xf]
        %v6325 = vld [vmem:[%s6310 + $0x38] sm:$0xf]
        %v6326 = vld [vmem:[%s6310 + $0x3c] sm:$0xf]
        %v6327 = vld [vmem:[%s6310 + $0x40] sm:$0xf]
        %v6328 = vld [vmem:[%s6310 + $0x44] sm:$0xf]
        %v6329 = vld [vmem:[%s6310 + $0x48] sm:$0xf]
        %v6330 = vld [vmem:[%s6310 + $0x4c] sm:$0xf]
        %v6331 = vld [vmem:[%s6310 + $0x50] sm:$0xf]
        %v6332 = vld [vmem:[%s6310 + $0x54] sm:$0xf]
        %v6333 = vld [vmem:[%s6310 + $0x58] sm:$0xf]
        %v6334 = vld [vmem:[%s6310 + $0x5c] sm:$0xf]
        %v6335 = vld [vmem:[%s6310 + $0x60] sm:$0xf]
        %v6336 = vld [vmem:[%s6310 + $0x64] sm:$0xf]
        %v6337 = vld [vmem:[%s6310 + $0x68] sm:$0xf]
        %v6338 = vld [vmem:[%s6310 + $0x6c] sm:$0xf]
        %v6339 = vld [vmem:[%s6310 + $0x70] sm:$0xf]
        %v6340 = vld [vmem:[%s6310 + $0x74] sm:$0xf]
        %v6341 = vld [vmem:[%s6310 + $0x78] sm:$0xf]
        %v6342 = vld [vmem:[%s6310 + $0x7c] sm:$0xf]
        %v6375 = vunpack.c.l.b16 %v6311
        %v6376 = vunpack.c.l.b16 %v6312
        %v6377 = vunpack.c.l.b16 %v6313
        %v6378 = vunpack.c.l.b16 %v6314
        %v6379 = vunpack.c.l.b16 %v6315
        %v6380 = vunpack.c.l.b16 %v6316
        %v6381 = vunpack.c.l.b16 %v6317
        %v6382 = vunpack.c.l.b16 %v6318
        %v6383 = vunpack.c.l.b16 %v6319
        %v6384 = vunpack.c.l.b16 %v6320
        %v6385 = vunpack.c.l.b16 %v6321
        %v6386 = vunpack.c.l.b16 %v6322
        %v6387 = vunpack.c.l.b16 %v6323
        %v6388 = vunpack.c.l.b16 %v6324
        %v6389 = vunpack.c.l.b16 %v6325
        %v6390 = vunpack.c.l.b16 %v6326
        %v6391 = vunpack.c.l.b16 %v6327
        %v6392 = vunpack.c.l.b16 %v6328
        %v6393 = vunpack.c.l.b16 %v6329
        %v6394 = vunpack.c.l.b16 %v6330
        %v6395 = vunpack.c.l.b16 %v6331
        %v6396 = vunpack.c.l.b16 %v6332
        %v6397 = vunpack.c.l.b16 %v6333
        %v6398 = vunpack.c.l.b16 %v6334
        %v6399 = vunpack.c.l.b16 %v6335
        %v6400 = vunpack.c.l.b16 %v6336
        %v6401 = vunpack.c.l.b16 %v6337
        %v6402 = vunpack.c.l.b16 %v6338
        %v6403 = vunpack.c.l.b16 %v6339
        %v6404 = vunpack.c.l.b16 %v6340
        %v6405 = vunpack.c.l.b16 %v6341
        %v6406 = vunpack.c.l.b16 %v6342
        %v6407 = vpack.c.b16 %v6376, %v6375
        %v6408 = vpack.c.b16 %v6378, %v6377
        %v6409 = vpack.c.b16 %v6380, %v6379
        %v6410 = vpack.c.b16 %v6382, %v6381
        %v6411 = vpack.c.b16 %v6384, %v6383
        %v6412 = vpack.c.b16 %v6386, %v6385
        %v6413 = vpack.c.b16 %v6388, %v6387
        %v6414 = vpack.c.b16 %v6390, %v6389
        %v6415 = vpack.c.b16 %v6392, %v6391
        %v6416 = vpack.c.b16 %v6394, %v6393
        %v6417 = vpack.c.b16 %v6396, %v6395
        %v6418 = vpack.c.b16 %v6398, %v6397
        %v6419 = vpack.c.b16 %v6400, %v6399
        %v6420 = vpack.c.b16 %v6402, %v6401
        %v6421 = vpack.c.b16 %v6404, %v6403
        %v6422 = vpack.c.b16 %v6406, %v6405
        %6439 = vmatprep.subr.bf16.mxu0 0
        %6440 = vmatpush1.bf16.msra.mxu0 %v6407
        %6441 = vmatprep.subr.bf16.mxu0 0
        %6442 = vmatpush1.bf16.msra.mxu0 %v6408
        %6443 = vmatprep.subr.bf16.mxu0 0
        %6444 = vmatpush1.bf16.msra.mxu0 %v6409
        %6445 = vmatprep.subr.bf16.mxu0 0
        %6446 = vmatpush1.bf16.msra.mxu0 %v6410
        %6447 = vmatprep.subr.bf16.mxu0 0
        %6448 = vmatpush1.bf16.msra.mxu0 %v6411
        %6449 = vmatprep.subr.bf16.mxu0 0
        %6450 = vmatpush1.bf16.msra.mxu0 %v6412
        %6451 = vmatprep.subr.bf16.mxu0 0
        %6452 = vmatpush1.bf16.msra.mxu0 %v6413
        %6453 = vmatprep.subr.bf16.mxu0 0
        %6454 = vmatpush1.bf16.msra.mxu0 %v6414
        %6455 = vmatprep.subr.bf16.mxu0 0
        %6456 = vmatpush1.bf16.msra.mxu0 %v6415
        %6457 = vmatprep.subr.bf16.mxu0 0
        %6458 = vmatpush1.bf16.msra.mxu0 %v6416
        %6459 = vmatprep.subr.bf16.mxu0 0
        %6460 = vmatpush1.bf16.msra.mxu0 %v6417
        %6461 = vmatprep.subr.bf16.mxu0 0
        %6462 = vmatpush1.bf16.msra.mxu0 %v6418
        %6463 = vmatprep.subr.bf16.mxu0 0
        %6464 = vmatpush1.bf16.msra.mxu0 %v6419
        %6465 = vmatprep.subr.bf16.mxu0 0
        %6466 = vmatpush1.bf16.msra.mxu0 %v6420
        %6467 = vmatprep.subr.bf16.mxu0 0
        %6468 = vmatpush1.bf16.msra.mxu0 %v6421
        %6469 = vmatprep.subr.bf16.mxu0 0
        %6470 = vmatpush1.bf16.msra.mxu0 %v6422
        %6471 = vmatprep.mubr.bf16.mxu0 %v5927
        %6472 = vmatmul.mubr.bf16.gmra.mrb[0].mxu0 %v5863
        %v6473 = vpop.f32.mrb[0].mxu0
        %v6474 = vadd.f32 0.0, %v6473
        %v6475 = vpop.f32.mrb[0].mxu0
        %v6476 = vpop.f32.mrb[0].mxu0
        %v6477 = vadd.f32 0.0, %v6476
        %v6478 = vpop.f32.mrb[0].mxu0
        %6479 = vmatprep.mubr.bf16.mxu0 %v5931
        %6480 = vmatmul.mubr.bf16.gmra.mrb[0].mxu0 %v5867
        %v6481 = vpop.f32.mrb[0].mxu0
        %v6482 = vadd.f32 0.0, %v6481
        %v6483 = vpop.f32.mrb[0].mxu0
        %v6484 = vpop.f32.mrb[0].mxu0
        %v6485 = vadd.f32 0.0, %v6484
        %v6486 = vpop.f32.mrb[0].mxu0
        %6487 = vmatprep.mubr.bf16.mxu0 %v5935
        %6488 = vmatmul.mubr.bf16.gmra.mrb[0].mxu0 %v5871
        %v6489 = vpop.f32.mrb[0].mxu0
        %v6490 = vadd.f32 0.0, %v6489
        %v6491 = vpop.f32.mrb[0].mxu0
        %v6492 = vpop.f32.mrb[0].mxu0
        %v6493 = vadd.f32 0.0, %v6492
        %v6494 = vpop.f32.mrb[0].mxu0
        %6495 = vmatprep.mubr.bf16.mxu0 %v5939
        %6496 = vmatmul.mubr.bf16.gmra.mrb[0].mxu0 %v5875
        %v6497 = vpop.f32.mrb[0].mxu0
        %v6498 = vadd.f32 0.0, %v6497
        %v6499 = vpop.f32.mrb[0].mxu0
        %v6500 = vpop.f32.mrb[0].mxu0
        %v6501 = vadd.f32 0.0, %v6500
        %v6502 = vpop.f32.mrb[0].mxu0
        %6503 = vmatprep.mubr.bf16.mxu0 %v5943
        %6504 = vmatmul.mubr.bf16.gmra.mrb[0].mxu0 %v5879
        %v6505 = vpop.f32.mrb[0].mxu0
        %v6506 = vadd.f32 0.0, %v6505
        %v6507 = vpop.f32.mrb[0].mxu0
        %v6508 = vpop.f32.mrb[0].mxu0
        %v6509 = vadd.f32 0.0, %v6508
        %v6510 = vpop.f32.mrb[0].mxu0
        %6511 = vmatprep.mubr.bf16.mxu0 %v5947
        %6512 = vmatmul.mubr.bf16.gmra.mrb[0].mxu0 %v5883
        %v6513 = vpop.f32.mrb[0].mxu0
        %v6514 = vadd.f32 0.0, %v6513
        %v6515 = vpop.f32.mrb[0].mxu0
        %v6516 = vpop.f32.mrb[0].mxu0
        %v6517 = vadd.f32 0.0, %v6516
        %v6518 = vpop.f32.mrb[0].mxu0
        %6519 = vmatprep.mubr.bf16.mxu0 %v5951
        %6520 = vmatmul.mubr.bf16.gmra.mrb[0].mxu0 %v5887
        %v6521 = vpop.f32.mrb[0].mxu0
        %v6522 = vadd.f32 0.0, %v6521
        %v6523 = vpop.f32.mrb[0].mxu0
        %v6524 = vpop.f32.mrb[0].mxu0
        %v6525 = vadd.f32 0.0, %v6524
        %v6526 = vpop.f32.mrb[0].mxu0
        %6527 = vmatprep.mubr.bf16.mxu0 %v5955
        %6528 = vmatmul.mubr.bf16.gmra.mrb[0].mxu0 %v5891
        %v6529 = vpop.f32.mrb[0].mxu0
        %v6530 = vadd.f32 0.0, %v6529
        %v6531 = vpop.f32.mrb[0].mxu0
        %v6532 = vpop.f32.mrb[0].mxu0
        %v6533 = vadd.f32 0.0, %v6532
        %v6534 = vpop.f32.mrb[0].mxu0
        %6535 = vmatprep.mubr.bf16.mxu0 %v5959
        %6536 = vmatmul.mubr.bf16.gmra.mrb[0].mxu0 %v5895
        %v6537 = vpop.f32.mrb[0].mxu0
        %v6538 = vadd.f32 0.0, %v6537
        %v6539 = vpop.f32.mrb[0].mxu0
        %v6540 = vpop.f32.mrb[0].mxu0
        %v6541 = vadd.f32 0.0, %v6540
        %v6542 = vpop.f32.mrb[0].mxu0
        %6543 = vmatprep.mubr.bf16.mxu0 %v5963
        %6544 = vmatmul.mubr.bf16.gmra.mrb[0].mxu0 %v5899
        %v6545 = vpop.f32.mrb[0].mxu0
        %v6546 = vadd.f32 0.0, %v6545
        %v6547 = vpop.f32.mrb[0].mxu0
        %v6548 = vpop.f32.mrb[0].mxu0
        %v6549 = vadd.f32 0.0, %v6548
        %v6550 = vpop.f32.mrb[0].mxu0
        %6551 = vmatprep.mubr.bf16.mxu0 %v5967
        %6552 = vmatmul.mubr.bf16.gmra.mrb[0].mxu0 %v5903
        %v6553 = vpop.f32.mrb[0].mxu0
        %v6554 = vadd.f32 0.0, %v6553
        %v6555 = vpop.f32.mrb[0].mxu0
        %v6556 = vpop.f32.mrb[0].mxu0
        %v6557 = vadd.f32 0.0, %v6556
        %v6558 = vpop.f32.mrb[0].mxu0
        %6559 = vmatprep.mubr.bf16.mxu0 %v5971
        %6560 = vmatmul.mubr.bf16.gmra.mrb[0].mxu0 %v5907
        %v6561 = vpop.f32.mrb[0].mxu0
        %v6562 = vadd.f32 0.0, %v6561
        %v6563 = vpop.f32.mrb[0].mxu0
        %v6564 = vpop.f32.mrb[0].mxu0
        %v6565 = vadd.f32 0.0, %v6564
        %v6566 = vpop.f32.mrb[0].mxu0
        %6567 = vmatprep.mubr.bf16.mxu0 %v5975
        %6568 = vmatmul.mubr.bf16.gmra.mrb[0].mxu0 %v5911
        %v6569 = vpop.f32.mrb[0].mxu0
        %v6570 = vadd.f32 0.0, %v6569
        %v6571 = vpop.f32.mrb[0].mxu0
        %v6572 = vpop.f32.mrb[0].mxu0
        %v6573 = vadd.f32 0.0, %v6572
        %v6574 = vpop.f32.mrb[0].mxu0
        %6575 = vmatprep.mubr.bf16.mxu0 %v5979
        %6576 = vmatmul.mubr.bf16.gmra.mrb[0].mxu0 %v5915
        %v6577 = vpop.f32.mrb[0].mxu0
        %v6578 = vadd.f32 0.0, %v6577
        %v6579 = vpop.f32.mrb[0].mxu0
        %v6580 = vpop.f32.mrb[0].mxu0
        %v6581 = vadd.f32 0.0, %v6580
        %v6582 = vpop.f32.mrb[0].mxu0
        %6583 = vmatprep.mubr.bf16.mxu0 %v5983
        %6584 = vmatmul.mubr.bf16.gmra.mrb[0].mxu0 %v5919
        %v6585 = vpop.f32.mrb[0].mxu0
        %v6586 = vadd.f32 0.0, %v6585
        %v6587 = vpop.f32.mrb[0].mxu0
        %v6588 = vpop.f32.mrb[0].mxu0
        %v6589 = vadd.f32 0.0, %v6588
        %v6590 = vpop.f32.mrb[0].mxu0
        %6591 = vmatprep.mubr.bf16.mxu0 %v5987
        %6592 = vmatmul.mubr.bf16.gmra.mrb[0].mxu0 %v5923
        %v6593 = vpop.f32.mrb[0].mxu0
        %v6594 = vadd.f32 0.0, %v6593
        %v6595 = vpop.f32.mrb[0].mxu0
        %v6596 = vpop.f32.mrb[0].mxu0
        %v6597 = vadd.f32 0.0, %v6596
        %v6598 = vpop.f32.mrb[0].mxu0
        %6599 = vdwg.mxu0
        %v6600 = vadd.f32 %v6278, %v6474
        %v6601 = vadd.f32 %v6279, %v6477
        %v6602 = vadd.f32 %v6280, %v6482
        %v6603 = vadd.f32 %v6281, %v6485
        %v6604 = vadd.f32 %v6282, %v6490
        %v6605 = vadd.f32 %v6283, %v6493
        %v6606 = vadd.f32 %v6284, %v6498
        %v6607 = vadd.f32 %v6285, %v6501
        %v6608 = vadd.f32 %v6286, %v6506
        %v6609 = vadd.f32 %v6287, %v6509
        %v6610 = vadd.f32 %v6288, %v6514
        %v6611 = vadd.f32 %v6289, %v6517
        %v6612 = vadd.f32 %v6290, %v6522
        %v6613 = vadd.f32 %v6291, %v6525
        %v6614 = vadd.f32 %v6292, %v6530
        %v6615 = vadd.f32 %v6293, %v6533
        %v6616 = vadd.f32 %v6294, %v6538
        %v6617 = vadd.f32 %v6295, %v6541
        %v6618 = vadd.f32 %v6296, %v6546
        %v6619 = vadd.f32 %v6297, %v6549
        %v6620 = vadd.f32 %v6298, %v6554
        %v6621 = vadd.f32 %v6299, %v6557
        %v6622 = vadd.f32 %v6300, %v6562
        %v6623 = vadd.f32 %v6301, %v6565
        %v6624 = vadd.f32 %v6302, %v6570
        %v6625 = vadd.f32 %v6303, %v6573
        %v6626 = vadd.f32 %v6304, %v6578
        %v6627 = vadd.f32 %v6305, %v6581
        %v6628 = vadd.f32 %v6306, %v6586
        %v6629 = vadd.f32 %v6307, %v6589
        %v6630 = vadd.f32 %v6308, %v6594
        %v6631 = vadd.f32 %v6309, %v6597
        %s6632 = scalar_lea.vmem [#allocation2], 24
        %v6633 = vld [vmem:[%s6632] sm:$0xf0]
        %v6634 = vld [vmem:[%s6632 + $0x8] sm:$0x1f]
        %v6635 = vld [vmem:[%s6632 + $0x18] sm:$0xf0]
        %v6636 = vld [vmem:[%s6632 + $0x20] sm:$0x1f]
        %v6637 = vld [vmem:[%s6632 + $0x30] sm:$0xf0]
        %v6638 = vld [vmem:[%s6632 + $0x38] sm:$0x1f]
        %v6639 = vld [vmem:[%s6632 + $0x48] sm:$0xf0]
        %v6640 = vld [vmem:[%s6632 + $0x50] sm:$0x1f]
        %v6641 = vld [vmem:[%s6632 + $0x60] sm:$0xf0]
        %v6642 = vld [vmem:[%s6632 + $0x68] sm:$0x1f]
        %v6643 = vld [vmem:[%s6632 + $0x78] sm:$0xf0]
        %v6644 = vld [vmem:[%s6632 + $0x80] sm:$0x1f]
        %v6645 = vld [vmem:[%s6632 + $0x90] sm:$0xf0]
        %v6646 = vld [vmem:[%s6632 + $0x98] sm:$0x1f]
        %v6647 = vld [vmem:[%s6632 + $0xa8] sm:$0xf0]
        %v6648 = vld [vmem:[%s6632 + $0xb0] sm:$0x1f]
        %v6649 = vld [vmem:[%s6632 + $0xc0] sm:$0xf0]
        %v6650 = vld [vmem:[%s6632 + $0xc8] sm:$0x1f]
        %v6651 = vld [vmem:[%s6632 + $0xd8] sm:$0xf0]
        %v6652 = vld [vmem:[%s6632 + $0xe0] sm:$0x1f]
        %v6653 = vld [vmem:[%s6632 + $0xf0] sm:$0xf0]
        %v6654 = vld [vmem:[%s6632 + $0xf8] sm:$0x1f]
        %v6655 = vld [vmem:[%s6632 + $0x108] sm:$0xf0]
        %v6656 = vld [vmem:[%s6632 + $0x110] sm:$0x1f]
        %v6657 = vld [vmem:[%s6632 + $0x120] sm:$0xf0]
        %v6658 = vld [vmem:[%s6632 + $0x128] sm:$0x1f]
        %v6659 = vld [vmem:[%s6632 + $0x138] sm:$0xf0]
        %v6660 = vld [vmem:[%s6632 + $0x140] sm:$0x1f]
        %v6661 = vld [vmem:[%s6632 + $0x150] sm:$0xf0]
        %v6662 = vld [vmem:[%s6632 + $0x158] sm:$0x1f]
        %v6663 = vld [vmem:[%s6632 + $0x168] sm:$0xf0]
        %v6664 = vld [vmem:[%s6632 + $0x170] sm:$0x1f]
        %vm6665 = vsmask.f32 3328
        %v6667 = vshrl.u32 %v6633, 16
        %v6669 = vrot.slane %v6667, 4
        %v6670 = vshll.u32 %v6633, 16
        %v6672 = vrot.slane %v6670, 5
        %v6673 = vor.u32 %v6669, %v6672
        %v6675 = vshrl.u32 %v6634, 16
        %v6677 = vrot.slane %v6675, 4
        %v6678 = vshll.u32 %v6634, 16
        %v6680 = vrot.slane %v6678, 5
        %v6681 = vor.u32 %v6677, %v6680
        %v6682 = vsel %vm6665, %v6673, %v6681
        %v6684 = vshrl.u32 %v6635, 16
        %v6686 = vrot.slane %v6684, 4
        %v6687 = vshll.u32 %v6635, 16
        %v6689 = vrot.slane %v6687, 5
        %v6690 = vor.u32 %v6686, %v6689
        %v6692 = vshrl.u32 %v6636, 16
        %v6694 = vrot.slane %v6692, 4
        %v6695 = vshll.u32 %v6636, 16
        %v6697 = vrot.slane %v6695, 5
        %v6698 = vor.u32 %v6694, %v6697
        %v6699 = vsel %vm6665, %v6690, %v6698
        %v6701 = vshrl.u32 %v6637, 16
        %v6703 = vrot.slane %v6701, 4
        %v6704 = vshll.u32 %v6637, 16
        %v6706 = vrot.slane %v6704, 5
        %v6707 = vor.u32 %v6703, %v6706
        %v6709 = vshrl.u32 %v6638, 16
        %v6711 = vrot.slane %v6709, 4
        %v6712 = vshll.u32 %v6638, 16
        %v6714 = vrot.slane %v6712, 5
        %v6715 = vor.u32 %v6711, %v6714
        %v6716 = vsel %vm6665, %v6707, %v6715
        %v6718 = vshrl.u32 %v6639, 16
        %v6720 = vrot.slane %v6718, 4
        %v6721 = vshll.u32 %v6639, 16
        %v6723 = vrot.slane %v6721, 5
        %v6724 = vor.u32 %v6720, %v6723
        %v6726 = vshrl.u32 %v6640, 16
        %v6728 = vrot.slane %v6726, 4
        %v6729 = vshll.u32 %v6640, 16
        %v6731 = vrot.slane %v6729, 5
        %v6732 = vor.u32 %v6728, %v6731
        %v6733 = vsel %vm6665, %v6724, %v6732
        %v6735 = vshrl.u32 %v6641, 16
        %v6737 = vrot.slane %v6735, 4
        %v6738 = vshll.u32 %v6641, 16
        %v6740 = vrot.slane %v6738, 5
        %v6741 = vor.u32 %v6737, %v6740
        %v6743 = vshrl.u32 %v6642, 16
        %v6745 = vrot.slane %v6743, 4
        %v6746 = vshll.u32 %v6642, 16
        %v6748 = vrot.slane %v6746, 5
        %v6749 = vor.u32 %v6745, %v6748
        %v6750 = vsel %vm6665, %v6741, %v6749
        %v6752 = vshrl.u32 %v6643, 16
        %v6754 = vrot.slane %v6752, 4
        %v6755 = vshll.u32 %v6643, 16
        %v6757 = vrot.slane %v6755, 5
        %v6758 = vor.u32 %v6754, %v6757
        %v6760 = vshrl.u32 %v6644, 16
        %v6762 = vrot.slane %v6760, 4
        %v6763 = vshll.u32 %v6644, 16
        %v6765 = vrot.slane %v6763, 5
        %v6766 = vor.u32 %v6762, %v6765
        %v6767 = vsel %vm6665, %v6758, %v6766
        %v6769 = vshrl.u32 %v6645, 16
        %v6771 = vrot.slane %v6769, 4
        %v6772 = vshll.u32 %v6645, 16
        %v6774 = vrot.slane %v6772, 5
        %v6775 = vor.u32 %v6771, %v6774
        %v6777 = vshrl.u32 %v6646, 16
        %v6779 = vrot.slane %v6777, 4
        %v6780 = vshll.u32 %v6646, 16
        %v6782 = vrot.slane %v6780, 5
        %v6783 = vor.u32 %v6779, %v6782
        %v6784 = vsel %vm6665, %v6775, %v6783
        %v6786 = vshrl.u32 %v6647, 16
        %v6788 = vrot.slane %v6786, 4
        %v6789 = vshll.u32 %v6647, 16
        %v6791 = vrot.slane %v6789, 5
        %v6792 = vor.u32 %v6788, %v6791
        %v6794 = vshrl.u32 %v6648, 16
        %v6796 = vrot.slane %v6794, 4
        %v6797 = vshll.u32 %v6648, 16
        %v6799 = vrot.slane %v6797, 5
        %v6800 = vor.u32 %v6796, %v6799
        %v6801 = vsel %vm6665, %v6792, %v6800
        %v6803 = vshrl.u32 %v6649, 16
        %v6805 = vrot.slane %v6803, 4
        %v6806 = vshll.u32 %v6649, 16
        %v6808 = vrot.slane %v6806, 5
        %v6809 = vor.u32 %v6805, %v6808
        %v6811 = vshrl.u32 %v6650, 16
        %v6813 = vrot.slane %v6811, 4
        %v6814 = vshll.u32 %v6650, 16
        %v6816 = vrot.slane %v6814, 5
        %v6817 = vor.u32 %v6813, %v6816
        %v6818 = vsel %vm6665, %v6809, %v6817
        %v6820 = vshrl.u32 %v6651, 16
        %v6822 = vrot.slane %v6820, 4
        %v6823 = vshll.u32 %v6651, 16
        %v6825 = vrot.slane %v6823, 5
        %v6826 = vor.u32 %v6822, %v6825
        %v6828 = vshrl.u32 %v6652, 16
        %v6830 = vrot.slane %v6828, 4
        %v6831 = vshll.u32 %v6652, 16
        %v6833 = vrot.slane %v6831, 5
        %v6834 = vor.u32 %v6830, %v6833
        %v6835 = vsel %vm6665, %v6826, %v6834
        %v6837 = vshrl.u32 %v6653, 16
        %v6839 = vrot.slane %v6837, 4
        %v6840 = vshll.u32 %v6653, 16
        %v6842 = vrot.slane %v6840, 5
        %v6843 = vor.u32 %v6839, %v6842
        %v6845 = vshrl.u32 %v6654, 16
        %v6847 = vrot.slane %v6845, 4
        %v6848 = vshll.u32 %v6654, 16
        %v6850 = vrot.slane %v6848, 5
        %v6851 = vor.u32 %v6847, %v6850
        %v6852 = vsel %vm6665, %v6843, %v6851
        %v6854 = vshrl.u32 %v6655, 16
        %v6856 = vrot.slane %v6854, 4
        %v6857 = vshll.u32 %v6655, 16
        %v6859 = vrot.slane %v6857, 5
        %v6860 = vor.u32 %v6856, %v6859
        %v6862 = vshrl.u32 %v6656, 16
        %v6864 = vrot.slane %v6862, 4
        %v6865 = vshll.u32 %v6656, 16
        %v6867 = vrot.slane %v6865, 5
        %v6868 = vor.u32 %v6864, %v6867
        %v6869 = vsel %vm6665, %v6860, %v6868
        %v6871 = vshrl.u32 %v6657, 16
        %v6873 = vrot.slane %v6871, 4
        %v6874 = vshll.u32 %v6657, 16
        %v6876 = vrot.slane %v6874, 5
        %v6877 = vor.u32 %v6873, %v6876
        %v6879 = vshrl.u32 %v6658, 16
        %v6881 = vrot.slane %v6879, 4
        %v6882 = vshll.u32 %v6658, 16
        %v6884 = vrot.slane %v6882, 5
        %v6885 = vor.u32 %v6881, %v6884
        %v6886 = vsel %vm6665, %v6877, %v6885
        %v6888 = vshrl.u32 %v6659, 16
        %v6890 = vrot.slane %v6888, 4
        %v6891 = vshll.u32 %v6659, 16
        %v6893 = vrot.slane %v6891, 5
        %v6894 = vor.u32 %v6890, %v6893
        %v6896 = vshrl.u32 %v6660, 16
        %v6898 = vrot.slane %v6896, 4
        %v6899 = vshll.u32 %v6660, 16
        %v6901 = vrot.slane %v6899, 5
        %v6902 = vor.u32 %v6898, %v6901
        %v6903 = vsel %vm6665, %v6894, %v6902
        %v6905 = vshrl.u32 %v6661, 16
        %v6907 = vrot.slane %v6905, 4
        %v6908 = vshll.u32 %v6661, 16
        %v6910 = vrot.slane %v6908, 5
        %v6911 = vor.u32 %v6907, %v6910
        %v6913 = vshrl.u32 %v6662, 16
        %v6915 = vrot.slane %v6913, 4
        %v6916 = vshll.u32 %v6662, 16
        %v6918 = vrot.slane %v6916, 5
        %v6919 = vor.u32 %v6915, %v6918
        %v6920 = vsel %vm6665, %v6911, %v6919
        %v6922 = vshrl.u32 %v6663, 16
        %v6924 = vrot.slane %v6922, 4
        %v6925 = vshll.u32 %v6663, 16
        %v6927 = vrot.slane %v6925, 5
        %v6928 = vor.u32 %v6924, %v6927
        %v6930 = vshrl.u32 %v6664, 16
        %v6932 = vrot.slane %v6930, 4
        %v6933 = vshll.u32 %v6664, 16
        %v6935 = vrot.slane %v6933, 5
        %v6936 = vor.u32 %v6932, %v6935
        %v6937 = vsel %vm6665, %v6928, %v6936
        %v6938 = vld [vmem:[%s6632 + $0x8] sm:$0xff]
        %v6939 = vld [vmem:[%s6632 + $0x20] sm:$0xff]
        %v6940 = vld [vmem:[%s6632 + $0x38] sm:$0xff]
        %v6941 = vld [vmem:[%s6632 + $0x50] sm:$0xff]
        %v6942 = vld [vmem:[%s6632 + $0x68] sm:$0xff]
        %v6943 = vld [vmem:[%s6632 + $0x80] sm:$0xff]
        %v6944 = vld [vmem:[%s6632 + $0x98] sm:$0xff]
        %v6945 = vld [vmem:[%s6632 + $0xb0] sm:$0xff]
        %v6946 = vld [vmem:[%s6632 + $0xc8] sm:$0xff]
        %v6947 = vld [vmem:[%s6632 + $0xe0] sm:$0xff]
        %v6948 = vld [vmem:[%s6632 + $0xf8] sm:$0xff]
        %v6949 = vld [vmem:[%s6632 + $0x110] sm:$0xff]
        %v6950 = vld [vmem:[%s6632 + $0x128] sm:$0xff]
        %v6951 = vld [vmem:[%s6632 + $0x140] sm:$0xff]
        %v6952 = vld [vmem:[%s6632 + $0x158] sm:$0xff]
        %v6953 = vld [vmem:[%s6632 + $0x170] sm:$0xff]
        %v6954 = vld [vmem:[%s6632 + $0x8] sm:$0xf8]
        %v6955 = vld [vmem:[%s6632 + $0x10] sm:$0xf]
        %v6956 = vld [vmem:[%s6632 + $0x20] sm:$0xf8]
        %v6957 = vld [vmem:[%s6632 + $0x28] sm:$0xf]
        %v6958 = vld [vmem:[%s6632 + $0x38] sm:$0xf8]
        %v6959 = vld [vmem:[%s6632 + $0x40] sm:$0xf]
        %v6960 = vld [vmem:[%s6632 + $0x50] sm:$0xf8]
        %v6961 = vld [vmem:[%s6632 + $0x58] sm:$0xf]
        %v6962 = vld [vmem:[%s6632 + $0x68] sm:$0xf8]
        %v6963 = vld [vmem:[%s6632 + $0x70] sm:$0xf]
        %v6964 = vld [vmem:[%s6632 + $0x80] sm:$0xf8]
        %v6965 = vld [vmem:[%s6632 + $0x88] sm:$0xf]
        %v6966 = vld [vmem:[%s6632 + $0x98] sm:$0xf8]
        %v6967 = vld [vmem:[%s6632 + $0xa0] sm:$0xf]
        %v6968 = vld [vmem:[%s6632 + $0xb0] sm:$0xf8]
        %v6969 = vld [vmem:[%s6632 + $0xb8] sm:$0xf]
        %v6970 = vld [vmem:[%s6632 + $0xc8] sm:$0xf8]
        %v6971 = vld [vmem:[%s6632 + $0xd0] sm:$0xf]
        %v6972 = vld [vmem:[%s6632 + $0xe0] sm:$0xf8]
        %v6973 = vld [vmem:[%s6632 + $0xe8] sm:$0xf]
        %v6974 = vld [vmem:[%s6632 + $0xf8] sm:$0xf8]
        %v6975 = vld [vmem:[%s6632 + $0x100] sm:$0xf]
        %v6976 = vld [vmem:[%s6632 + $0x110] sm:$0xf8]
        %v6977 = vld [vmem:[%s6632 + $0x118] sm:$0xf]
        %v6978 = vld [vmem:[%s6632 + $0x128] sm:$0xf8]
        %v6979 = vld [vmem:[%s6632 + $0x130] sm:$0xf]
        %v6980 = vld [vmem:[%s6632 + $0x140] sm:$0xf8]
        %v6981 = vld [vmem:[%s6632 + $0x148] sm:$0xf]
        %v6982 = vld [vmem:[%s6632 + $0x158] sm:$0xf8]
        %v6983 = vld [vmem:[%s6632 + $0x160] sm:$0xf]
        %v6984 = vld [vmem:[%s6632 + $0x170] sm:$0xf8]
        %v6985 = vld [vmem:[%s6632 + $0x178] sm:$0xf]
        %vm6986 = vsmask.f32 4352
        %v6988 = vshrl.u32 %v6954, 16
        %v6990 = vrot.slane %v6988, 3
        %v6991 = vshll.u32 %v6954, 16
        %v6993 = vrot.slane %v6991, 4
        %v6994 = vor.u32 %v6990, %v6993
        %v6996 = vshrl.u32 %v6955, 16
        %v6998 = vrot.slane %v6996, 3
        %v6999 = vshll.u32 %v6955, 16
        %v7001 = vrot.slane %v6999, 4
        %v7002 = vor.u32 %v6998, %v7001
        %v7003 = vsel %vm6986, %v6994, %v7002
        %v7005 = vshrl.u32 %v6956, 16
        %v7007 = vrot.slane %v7005, 3
        %v7008 = vshll.u32 %v6956, 16
        %v7010 = vrot.slane %v7008, 4
        %v7011 = vor.u32 %v7007, %v7010
        %v7013 = vshrl.u32 %v6957, 16
        %v7015 = vrot.slane %v7013, 3
        %v7016 = vshll.u32 %v6957, 16
        %v7018 = vrot.slane %v7016, 4
        %v7019 = vor.u32 %v7015, %v7018
        %v7020 = vsel %vm6986, %v7011, %v7019
        %v7022 = vshrl.u32 %v6958, 16
        %v7024 = vrot.slane %v7022, 3
        %v7025 = vshll.u32 %v6958, 16
        %v7027 = vrot.slane %v7025, 4
        %v7028 = vor.u32 %v7024, %v7027
        %v7030 = vshrl.u32 %v6959, 16
        %v7032 = vrot.slane %v7030, 3
        %v7033 = vshll.u32 %v6959, 16
        %v7035 = vrot.slane %v7033, 4
        %v7036 = vor.u32 %v7032, %v7035
        %v7037 = vsel %vm6986, %v7028, %v7036
        %v7039 = vshrl.u32 %v6960, 16
        %v7041 = vrot.slane %v7039, 3
        %v7042 = vshll.u32 %v6960, 16
        %v7044 = vrot.slane %v7042, 4
        %v7045 = vor.u32 %v7041, %v7044
        %v7047 = vshrl.u32 %v6961, 16
        %v7049 = vrot.slane %v7047, 3
        %v7050 = vshll.u32 %v6961, 16
        %v7052 = vrot.slane %v7050, 4
        %v7053 = vor.u32 %v7049, %v7052
        %v7054 = vsel %vm6986, %v7045, %v7053
        %v7056 = vshrl.u32 %v6962, 16
        %v7058 = vrot.slane %v7056, 3
        %v7059 = vshll.u32 %v6962, 16
        %v7061 = vrot.slane %v7059, 4
        %v7062 = vor.u32 %v7058, %v7061
        %v7064 = vshrl.u32 %v6963, 16
        %v7066 = vrot.slane %v7064, 3
        %v7067 = vshll.u32 %v6963, 16
        %v7069 = vrot.slane %v7067, 4
        %v7070 = vor.u32 %v7066, %v7069
        %v7071 = vsel %vm6986, %v7062, %v7070
        %v7073 = vshrl.u32 %v6964, 16
        %v7075 = vrot.slane %v7073, 3
        %v7076 = vshll.u32 %v6964, 16
        %v7078 = vrot.slane %v7076, 4
        %v7079 = vor.u32 %v7075, %v7078
        %v7081 = vshrl.u32 %v6965, 16
        %v7083 = vrot.slane %v7081, 3
        %v7084 = vshll.u32 %v6965, 16
        %v7086 = vrot.slane %v7084, 4
        %v7087 = vor.u32 %v7083, %v7086
        %v7088 = vsel %vm6986, %v7079, %v7087
        %v7090 = vshrl.u32 %v6966, 16
        %v7092 = vrot.slane %v7090, 3
        %v7093 = vshll.u32 %v6966, 16
        %v7095 = vrot.slane %v7093, 4
        %v7096 = vor.u32 %v7092, %v7095
        %v7098 = vshrl.u32 %v6967, 16
        %v7100 = vrot.slane %v7098, 3
        %v7101 = vshll.u32 %v6967, 16
        %v7103 = vrot.slane %v7101, 4
        %v7104 = vor.u32 %v7100, %v7103
        %v7105 = vsel %vm6986, %v7096, %v7104
        %v7107 = vshrl.u32 %v6968, 16
        %v7109 = vrot.slane %v7107, 3
        %v7110 = vshll.u32 %v6968, 16
        %v7112 = vrot.slane %v7110, 4
        %v7113 = vor.u32 %v7109, %v7112
        %v7115 = vshrl.u32 %v6969, 16
        %v7117 = vrot.slane %v7115, 3
        %v7118 = vshll.u32 %v6969, 16
        %v7120 = vrot.slane %v7118, 4
        %v7121 = vor.u32 %v7117, %v7120
        %v7122 = vsel %vm6986, %v7113, %v7121
        %v7124 = vshrl.u32 %v6970, 16
        %v7126 = vrot.slane %v7124, 3
        %v7127 = vshll.u32 %v6970, 16
        %v7129 = vrot.slane %v7127, 4
        %v7130 = vor.u32 %v7126, %v7129
        %v7132 = vshrl.u32 %v6971, 16
        %v7134 = vrot.slane %v7132, 3
        %v7135 = vshll.u32 %v6971, 16
        %v7137 = vrot.slane %v7135, 4
        %v7138 = vor.u32 %v7134, %v7137
        %v7139 = vsel %vm6986, %v7130, %v7138
        %v7141 = vshrl.u32 %v6972, 16
        %v7143 = vrot.slane %v7141, 3
        %v7144 = vshll.u32 %v6972, 16
        %v7146 = vrot.slane %v7144, 4
        %v7147 = vor.u32 %v7143, %v7146
        %v7149 = vshrl.u32 %v6973, 16
        %v7151 = vrot.slane %v7149, 3
        %v7152 = vshll.u32 %v6973, 16
        %v7154 = vrot.slane %v7152, 4
        %v7155 = vor.u32 %v7151, %v7154
        %v7156 = vsel %vm6986, %v7147, %v7155
        %v7158 = vshrl.u32 %v6974, 16
        %v7160 = vrot.slane %v7158, 3
        %v7161 = vshll.u32 %v6974, 16
        %v7163 = vrot.slane %v7161, 4
        %v7164 = vor.u32 %v7160, %v7163
        %v7166 = vshrl.u32 %v6975, 16
        %v7168 = vrot.slane %v7166, 3
        %v7169 = vshll.u32 %v6975, 16
        %v7171 = vrot.slane %v7169, 4
        %v7172 = vor.u32 %v7168, %v7171
        %v7173 = vsel %vm6986, %v7164, %v7172
        %v7175 = vshrl.u32 %v6976, 16
        %v7177 = vrot.slane %v7175, 3
        %v7178 = vshll.u32 %v6976, 16
        %v7180 = vrot.slane %v7178, 4
        %v7181 = vor.u32 %v7177, %v7180
        %v7183 = vshrl.u32 %v6977, 16
        %v7185 = vrot.slane %v7183, 3
        %v7186 = vshll.u32 %v6977, 16
        %v7188 = vrot.slane %v7186, 4
        %v7189 = vor.u32 %v7185, %v7188
        %v7190 = vsel %vm6986, %v7181, %v7189
        %v7192 = vshrl.u32 %v6978, 16
        %v7194 = vrot.slane %v7192, 3
        %v7195 = vshll.u32 %v6978, 16
        %v7197 = vrot.slane %v7195, 4
        %v7198 = vor.u32 %v7194, %v7197
        %v7200 = vshrl.u32 %v6979, 16
        %v7202 = vrot.slane %v7200, 3
        %v7203 = vshll.u32 %v6979, 16
        %v7205 = vrot.slane %v7203, 4
        %v7206 = vor.u32 %v7202, %v7205
        %v7207 = vsel %vm6986, %v7198, %v7206
        %v7209 = vshrl.u32 %v6980, 16
        %v7211 = vrot.slane %v7209, 3
        %v7212 = vshll.u32 %v6980, 16
        %v7214 = vrot.slane %v7212, 4
        %v7215 = vor.u32 %v7211, %v7214
        %v7217 = vshrl.u32 %v6981, 16
        %v7219 = vrot.slane %v7217, 3
        %v7220 = vshll.u32 %v6981, 16
        %v7222 = vrot.slane %v7220, 4
        %v7223 = vor.u32 %v7219, %v7222
        %v7224 = vsel %vm6986, %v7215, %v7223
        %v7226 = vshrl.u32 %v6982, 16
        %v7228 = vrot.slane %v7226, 3
        %v7229 = vshll.u32 %v6982, 16
        %v7231 = vrot.slane %v7229, 4
        %v7232 = vor.u32 %v7228, %v7231
        %v7234 = vshrl.u32 %v6983, 16
        %v7236 = vrot.slane %v7234, 3
        %v7237 = vshll.u32 %v6983, 16
        %v7239 = vrot.slane %v7237, 4
        %v7240 = vor.u32 %v7236, %v7239
        %v7241 = vsel %vm6986, %v7232, %v7240
        %v7243 = vshrl.u32 %v6984, 16
        %v7245 = vrot.slane %v7243, 3
        %v7246 = vshll.u32 %v6984, 16
        %v7248 = vrot.slane %v7246, 4
        %v7249 = vor.u32 %v7245, %v7248
        %v7251 = vshrl.u32 %v6985, 16
        %v7253 = vrot.slane %v7251, 3
        %v7254 = vshll.u32 %v6985, 16
        %v7256 = vrot.slane %v7254, 4
        %v7257 = vor.u32 %v7253, %v7256
        %v7258 = vsel %vm6986, %v7249, %v7257
        %v7259 = vld [vmem:[%s328] sm:$0xf0]
        %v7260 = vld [vmem:[%s328 + $0x8] sm:$0x1f]
        %v7261 = vld [vmem:[%s328 + $0x18] sm:$0xf0]
        %v7262 = vld [vmem:[%s328 + $0x20] sm:$0x1f]
        %v7263 = vld [vmem:[%s328 + $0x30] sm:$0xf0]
        %v7264 = vld [vmem:[%s328 + $0x38] sm:$0x1f]
        %v7265 = vld [vmem:[%s328 + $0x48] sm:$0xf0]
        %v7266 = vld [vmem:[%s328 + $0x50] sm:$0x1f]
        %v7267 = vld [vmem:[%s328 + $0x60] sm:$0xf0]
        %v7268 = vld [vmem:[%s328 + $0x68] sm:$0x1f]
        %v7269 = vld [vmem:[%s328 + $0x78] sm:$0xf0]
        %v7270 = vld [vmem:[%s328 + $0x80] sm:$0x1f]
        %v7271 = vld [vmem:[%s328 + $0x90] sm:$0xf0]
        %v7272 = vld [vmem:[%s328 + $0x98] sm:$0x1f]
        %v7273 = vld [vmem:[%s328 + $0xa8] sm:$0xf0]
        %v7274 = vld [vmem:[%s328 + $0xb0] sm:$0x1f]
        %v7275 = vld [vmem:[%s328 + $0xc0] sm:$0xf0]
        %v7276 = vld [vmem:[%s328 + $0xc8] sm:$0x1f]
        %v7277 = vld [vmem:[%s328 + $0xd8] sm:$0xf0]
        %v7278 = vld [vmem:[%s328 + $0xe0] sm:$0x1f]
        %v7279 = vld [vmem:[%s328 + $0xf0] sm:$0xf0]
        %v7280 = vld [vmem:[%s328 + $0xf8] sm:$0x1f]
        %v7281 = vld [vmem:[%s328 + $0x108] sm:$0xf0]
        %v7282 = vld [vmem:[%s328 + $0x110] sm:$0x1f]
        %v7283 = vld [vmem:[%s328 + $0x120] sm:$0xf0]
        %v7284 = vld [vmem:[%s328 + $0x128] sm:$0x1f]
        %v7285 = vld [vmem:[%s328 + $0x138] sm:$0xf0]
        %v7286 = vld [vmem:[%s328 + $0x140] sm:$0x1f]
        %v7287 = vld [vmem:[%s328 + $0x150] sm:$0xf0]
        %v7288 = vld [vmem:[%s328 + $0x158] sm:$0x1f]
        %v7289 = vld [vmem:[%s328 + $0x168] sm:$0xf0]
        %v7290 = vld [vmem:[%s328 + $0x170] sm:$0x1f]
        %v7292 = vshrl.u32 %v7259, 16
        %v7294 = vrot.slane %v7292, 4
        %v7295 = vshll.u32 %v7259, 16
        %v7297 = vrot.slane %v7295, 5
        %v7298 = vor.u32 %v7294, %v7297
        %v7300 = vshrl.u32 %v7260, 16
        %v7302 = vrot.slane %v7300, 4
        %v7303 = vshll.u32 %v7260, 16
        %v7305 = vrot.slane %v7303, 5
        %v7306 = vor.u32 %v7302, %v7305
        %v7307 = vsel %vm6665, %v7298, %v7306
        %v7309 = vshrl.u32 %v7261, 16
        %v7311 = vrot.slane %v7309, 4
        %v7312 = vshll.u32 %v7261, 16
        %v7314 = vrot.slane %v7312, 5
        %v7315 = vor.u32 %v7311, %v7314
        %v7317 = vshrl.u32 %v7262, 16
        %v7319 = vrot.slane %v7317, 4
        %v7320 = vshll.u32 %v7262, 16
        %v7322 = vrot.slane %v7320, 5
        %v7323 = vor.u32 %v7319, %v7322
        %v7324 = vsel %vm6665, %v7315, %v7323
        %v7326 = vshrl.u32 %v7263, 16
        %v7328 = vrot.slane %v7326, 4
        %v7329 = vshll.u32 %v7263, 16
        %v7331 = vrot.slane %v7329, 5
        %v7332 = vor.u32 %v7328, %v7331
        %v7334 = vshrl.u32 %v7264, 16
        %v7336 = vrot.slane %v7334, 4
        %v7337 = vshll.u32 %v7264, 16
        %v7339 = vrot.slane %v7337, 5
        %v7340 = vor.u32 %v7336, %v7339
        %v7341 = vsel %vm6665, %v7332, %v7340
        %v7343 = vshrl.u32 %v7265, 16
        %v7345 = vrot.slane %v7343, 4
        %v7346 = vshll.u32 %v7265, 16
        %v7348 = vrot.slane %v7346, 5
        %v7349 = vor.u32 %v7345, %v7348
        %v7351 = vshrl.u32 %v7266, 16
        %v7353 = vrot.slane %v7351, 4
        %v7354 = vshll.u32 %v7266, 16
        %v7356 = vrot.slane %v7354, 5
        %v7357 = vor.u32 %v7353, %v7356
        %v7358 = vsel %vm6665, %v7349, %v7357
        %v7360 = vshrl.u32 %v7267, 16
        %v7362 = vrot.slane %v7360, 4
        %v7363 = vshll.u32 %v7267, 16
        %v7365 = vrot.slane %v7363, 5
        %v7366 = vor.u32 %v7362, %v7365
        %v7368 = vshrl.u32 %v7268, 16
        %v7370 = vrot.slane %v7368, 4
        %v7371 = vshll.u32 %v7268, 16
        %v7373 = vrot.slane %v7371, 5
        %v7374 = vor.u32 %v7370, %v7373
        %v7375 = vsel %vm6665, %v7366, %v7374
        %v7377 = vshrl.u32 %v7269, 16
        %v7379 = vrot.slane %v7377, 4
        %v7380 = vshll.u32 %v7269, 16
        %v7382 = vrot.slane %v7380, 5
        %v7383 = vor.u32 %v7379, %v7382
        %v7385 = vshrl.u32 %v7270, 16
        %v7387 = vrot.slane %v7385, 4
        %v7388 = vshll.u32 %v7270, 16
        %v7390 = vrot.slane %v7388, 5
        %v7391 = vor.u32 %v7387, %v7390
        %v7392 = vsel %vm6665, %v7383, %v7391
        %v7394 = vshrl.u32 %v7271, 16
        %v7396 = vrot.slane %v7394, 4
        %v7397 = vshll.u32 %v7271, 16
        %v7399 = vrot.slane %v7397, 5
        %v7400 = vor.u32 %v7396, %v7399
        %v7402 = vshrl.u32 %v7272, 16
        %v7404 = vrot.slane %v7402, 4
        %v7405 = vshll.u32 %v7272, 16
        %v7407 = vrot.slane %v7405, 5
        %v7408 = vor.u32 %v7404, %v7407
        %v7409 = vsel %vm6665, %v7400, %v7408
        %v7411 = vshrl.u32 %v7273, 16
        %v7413 = vrot.slane %v7411, 4
        %v7414 = vshll.u32 %v7273, 16
        %v7416 = vrot.slane %v7414, 5
        %v7417 = vor.u32 %v7413, %v7416
        %v7419 = vshrl.u32 %v7274, 16
        %v7421 = vrot.slane %v7419, 4
        %v7422 = vshll.u32 %v7274, 16
        %v7424 = vrot.slane %v7422, 5
        %v7425 = vor.u32 %v7421, %v7424
        %v7426 = vsel %vm6665, %v7417, %v7425
        %v7428 = vshrl.u32 %v7275, 16
        %v7430 = vrot.slane %v7428, 4
        %v7431 = vshll.u32 %v7275, 16
        %v7433 = vrot.slane %v7431, 5
        %v7434 = vor.u32 %v7430, %v7433
        %v7436 = vshrl.u32 %v7276, 16
        %v7438 = vrot.slane %v7436, 4
        %v7439 = vshll.u32 %v7276, 16
        %v7441 = vrot.slane %v7439, 5
        %v7442 = vor.u32 %v7438, %v7441
        %v7443 = vsel %vm6665, %v7434, %v7442
        %v7445 = vshrl.u32 %v7277, 16
        %v7447 = vrot.slane %v7445, 4
        %v7448 = vshll.u32 %v7277, 16
        %v7450 = vrot.slane %v7448, 5
        %v7451 = vor.u32 %v7447, %v7450
        %v7453 = vshrl.u32 %v7278, 16
        %v7455 = vrot.slane %v7453, 4
        %v7456 = vshll.u32 %v7278, 16
        %v7458 = vrot.slane %v7456, 5
        %v7459 = vor.u32 %v7455, %v7458
        %v7460 = vsel %vm6665, %v7451, %v7459
        %v7462 = vshrl.u32 %v7279, 16
        %v7464 = vrot.slane %v7462, 4
        %v7465 = vshll.u32 %v7279, 16
        %v7467 = vrot.slane %v7465, 5
        %v7468 = vor.u32 %v7464, %v7467
        %v7470 = vshrl.u32 %v7280, 16
        %v7472 = vrot.slane %v7470, 4
        %v7473 = vshll.u32 %v7280, 16
        %v7475 = vrot.slane %v7473, 5
        %v7476 = vor.u32 %v7472, %v7475
        %v7477 = vsel %vm6665, %v7468, %v7476
        %v7479 = vshrl.u32 %v7281, 16
        %v7481 = vrot.slane %v7479, 4
        %v7482 = vshll.u32 %v7281, 16
        %v7484 = vrot.slane %v7482, 5
        %v7485 = vor.u32 %v7481, %v7484
        %v7487 = vshrl.u32 %v7282, 16
        %v7489 = vrot.slane %v7487, 4
        %v7490 = vshll.u32 %v7282, 16
        %v7492 = vrot.slane %v7490, 5
        %v7493 = vor.u32 %v7489, %v7492
        %v7494 = vsel %vm6665, %v7485, %v7493
        %v7496 = vshrl.u32 %v7283, 16
        %v7498 = vrot.slane %v7496, 4
        %v7499 = vshll.u32 %v7283, 16
        %v7501 = vrot.slane %v7499, 5
        %v7502 = vor.u32 %v7498, %v7501
        %v7504 = vshrl.u32 %v7284, 16
        %v7506 = vrot.slane %v7504, 4
        %v7507 = vshll.u32 %v7284, 16
        %v7509 = vrot.slane %v7507, 5
        %v7510 = vor.u32 %v7506, %v7509
        %v7511 = vsel %vm6665, %v7502, %v7510
        %v7513 = vshrl.u32 %v7285, 16
        %v7515 = vrot.slane %v7513, 4
        %v7516 = vshll.u32 %v7285, 16
        %v7518 = vrot.slane %v7516, 5
        %v7519 = vor.u32 %v7515, %v7518
        %v7521 = vshrl.u32 %v7286, 16
        %v7523 = vrot.slane %v7521, 4
        %v7524 = vshll.u32 %v7286, 16
        %v7526 = vrot.slane %v7524, 5
        %v7527 = vor.u32 %v7523, %v7526
        %v7528 = vsel %vm6665, %v7519, %v7527
        %v7530 = vshrl.u32 %v7287, 16
        %v7532 = vrot.slane %v7530, 4
        %v7533 = vshll.u32 %v7287, 16
        %v7535 = vrot.slane %v7533, 5
        %v7536 = vor.u32 %v7532, %v7535
        %v7538 = vshrl.u32 %v7288, 16
        %v7540 = vrot.slane %v7538, 4
        %v7541 = vshll.u32 %v7288, 16
        %v7543 = vrot.slane %v7541, 5
        %v7544 = vor.u32 %v7540, %v7543
        %v7545 = vsel %vm6665, %v7536, %v7544
        %v7547 = vshrl.u32 %v7289, 16
        %v7549 = vrot.slane %v7547, 4
        %v7550 = vshll.u32 %v7289, 16
        %v7552 = vrot.slane %v7550, 5
        %v7553 = vor.u32 %v7549, %v7552
        %v7555 = vshrl.u32 %v7290, 16
        %v7557 = vrot.slane %v7555, 4
        %v7558 = vshll.u32 %v7290, 16
        %v7560 = vrot.slane %v7558, 5
        %v7561 = vor.u32 %v7557, %v7560
        %v7562 = vsel %vm6665, %v7553, %v7561
        %v7563 = vld [vmem:[%s328 + $0x8] sm:$0xf8]
        %v7564 = vld [vmem:[%s328 + $0x10] sm:$0xf]
        %v7565 = vld [vmem:[%s328 + $0x20] sm:$0xf8]
        %v7566 = vld [vmem:[%s328 + $0x28] sm:$0xf]
        %v7567 = vld [vmem:[%s328 + $0x38] sm:$0xf8]
        %v7568 = vld [vmem:[%s328 + $0x40] sm:$0xf]
        %v7569 = vld [vmem:[%s328 + $0x50] sm:$0xf8]
        %v7570 = vld [vmem:[%s328 + $0x58] sm:$0xf]
        %v7571 = vld [vmem:[%s328 + $0x68] sm:$0xf8]
        %v7572 = vld [vmem:[%s328 + $0x70] sm:$0xf]
        %v7573 = vld [vmem:[%s328 + $0x80] sm:$0xf8]
        %v7574 = vld [vmem:[%s328 + $0x88] sm:$0xf]
        %v7575 = vld [vmem:[%s328 + $0x98] sm:$0xf8]
        %v7576 = vld [vmem:[%s328 + $0xa0] sm:$0xf]
        %v7577 = vld [vmem:[%s328 + $0xb0] sm:$0xf8]
        %v7578 = vld [vmem:[%s328 + $0xb8] sm:$0xf]
        %v7579 = vld [vmem:[%s328 + $0xc8] sm:$0xf8]
        %v7580 = vld [vmem:[%s328 + $0xd0] sm:$0xf]
        %v7581 = vld [vmem:[%s328 + $0xe0] sm:$0xf8]
        %v7582 = vld [vmem:[%s328 + $0xe8] sm:$0xf]
        %v7583 = vld [vmem:[%s328 + $0xf8] sm:$0xf8]
        %v7584 = vld [vmem:[%s328 + $0x100] sm:$0xf]
        %v7585 = vld [vmem:[%s328 + $0x110] sm:$0xf8]
        %v7586 = vld [vmem:[%s328 + $0x118] sm:$0xf]
        %v7587 = vld [vmem:[%s328 + $0x128] sm:$0xf8]
        %v7588 = vld [vmem:[%s328 + $0x130] sm:$0xf]
        %v7589 = vld [vmem:[%s328 + $0x140] sm:$0xf8]
        %v7590 = vld [vmem:[%s328 + $0x148] sm:$0xf]
        %v7591 = vld [vmem:[%s328 + $0x158] sm:$0xf8]
        %v7592 = vld [vmem:[%s328 + $0x160] sm:$0xf]
        %v7593 = vld [vmem:[%s328 + $0x170] sm:$0xf8]
        %v7594 = vld [vmem:[%s328 + $0x178] sm:$0xf]
        %v7596 = vshrl.u32 %v7563, 16
        %v7598 = vrot.slane %v7596, 3
        %v7599 = vshll.u32 %v7563, 16
        %v7601 = vrot.slane %v7599, 4
        %v7602 = vor.u32 %v7598, %v7601
        %v7604 = vshrl.u32 %v7564, 16
        %v7606 = vrot.slane %v7604, 3
        %v7607 = vshll.u32 %v7564, 16
        %v7609 = vrot.slane %v7607, 4
        %v7610 = vor.u32 %v7606, %v7609
        %v7611 = vsel %vm6986, %v7602, %v7610
        %v7613 = vshrl.u32 %v7565, 16
        %v7615 = vrot.slane %v7613, 3
        %v7616 = vshll.u32 %v7565, 16
        %v7618 = vrot.slane %v7616, 4
        %v7619 = vor.u32 %v7615, %v7618
        %v7621 = vshrl.u32 %v7566, 16
        %v7623 = vrot.slane %v7621, 3
        %v7624 = vshll.u32 %v7566, 16
        %v7626 = vrot.slane %v7624, 4
        %v7627 = vor.u32 %v7623, %v7626
        %v7628 = vsel %vm6986, %v7619, %v7627
        %v7630 = vshrl.u32 %v7567, 16
        %v7632 = vrot.slane %v7630, 3
        %v7633 = vshll.u32 %v7567, 16
        %v7635 = vrot.slane %v7633, 4
        %v7636 = vor.u32 %v7632, %v7635
        %v7638 = vshrl.u32 %v7568, 16
        %v7640 = vrot.slane %v7638, 3
        %v7641 = vshll.u32 %v7568, 16
        %v7643 = vrot.slane %v7641, 4
        %v7644 = vor.u32 %v7640, %v7643
        %v7645 = vsel %vm6986, %v7636, %v7644
        %v7647 = vshrl.u32 %v7569, 16
        %v7649 = vrot.slane %v7647, 3
        %v7650 = vshll.u32 %v7569, 16
        %v7652 = vrot.slane %v7650, 4
        %v7653 = vor.u32 %v7649, %v7652
        %v7655 = vshrl.u32 %v7570, 16
        %v7657 = vrot.slane %v7655, 3
        %v7658 = vshll.u32 %v7570, 16
        %v7660 = vrot.slane %v7658, 4
        %v7661 = vor.u32 %v7657, %v7660
        %v7662 = vsel %vm6986, %v7653, %v7661
        %v7664 = vshrl.u32 %v7571, 16
        %v7666 = vrot.slane %v7664, 3
        %v7667 = vshll.u32 %v7571, 16
        %v7669 = vrot.slane %v7667, 4
        %v7670 = vor.u32 %v7666, %v7669
        %v7672 = vshrl.u32 %v7572, 16
        %v7674 = vrot.slane %v7672, 3
        %v7675 = vshll.u32 %v7572, 16
        %v7677 = vrot.slane %v7675, 4
        %v7678 = vor.u32 %v7674, %v7677
        %v7679 = vsel %vm6986, %v7670, %v7678
        %v7681 = vshrl.u32 %v7573, 16
        %v7683 = vrot.slane %v7681, 3
        %v7684 = vshll.u32 %v7573, 16
        %v7686 = vrot.slane %v7684, 4
        %v7687 = vor.u32 %v7683, %v7686
        %v7689 = vshrl.u32 %v7574, 16
        %v7691 = vrot.slane %v7689, 3
        %v7692 = vshll.u32 %v7574, 16
        %v7694 = vrot.slane %v7692, 4
        %v7695 = vor.u32 %v7691, %v7694
        %v7696 = vsel %vm6986, %v7687, %v7695
        %v7698 = vshrl.u32 %v7575, 16
        %v7700 = vrot.slane %v7698, 3
        %v7701 = vshll.u32 %v7575, 16
        %v7703 = vrot.slane %v7701, 4
        %v7704 = vor.u32 %v7700, %v7703
        %v7706 = vshrl.u32 %v7576, 16
        %v7708 = vrot.slane %v7706, 3
        %v7709 = vshll.u32 %v7576, 16
        %v7711 = vrot.slane %v7709, 4
        %v7712 = vor.u32 %v7708, %v7711
        %v7713 = vsel %vm6986, %v7704, %v7712
        %v7715 = vshrl.u32 %v7577, 16
        %v7717 = vrot.slane %v7715, 3
        %v7718 = vshll.u32 %v7577, 16
        %v7720 = vrot.slane %v7718, 4
        %v7721 = vor.u32 %v7717, %v7720
        %v7723 = vshrl.u32 %v7578, 16
        %v7725 = vrot.slane %v7723, 3
        %v7726 = vshll.u32 %v7578, 16
        %v7728 = vrot.slane %v7726, 4
        %v7729 = vor.u32 %v7725, %v7728
        %v7730 = vsel %vm6986, %v7721, %v7729
        %v7732 = vshrl.u32 %v7579, 16
        %v7734 = vrot.slane %v7732, 3
        %v7735 = vshll.u32 %v7579, 16
        %v7737 = vrot.slane %v7735, 4
        %v7738 = vor.u32 %v7734, %v7737
        %v7740 = vshrl.u32 %v7580, 16
        %v7742 = vrot.slane %v7740, 3
        %v7743 = vshll.u32 %v7580, 16
        %v7745 = vrot.slane %v7743, 4
        %v7746 = vor.u32 %v7742, %v7745
        %v7747 = vsel %vm6986, %v7738, %v7746
        %v7749 = vshrl.u32 %v7581, 16
        %v7751 = vrot.slane %v7749, 3
        %v7752 = vshll.u32 %v7581, 16
        %v7754 = vrot.slane %v7752, 4
        %v7755 = vor.u32 %v7751, %v7754
        %v7757 = vshrl.u32 %v7582, 16
        %v7759 = vrot.slane %v7757, 3
        %v7760 = vshll.u32 %v7582, 16
        %v7762 = vrot.slane %v7760, 4
        %v7763 = vor.u32 %v7759, %v7762
        %v7764 = vsel %vm6986, %v7755, %v7763
        %v7766 = vshrl.u32 %v7583, 16
        %v7768 = vrot.slane %v7766, 3
        %v7769 = vshll.u32 %v7583, 16
        %v7771 = vrot.slane %v7769, 4
        %v7772 = vor.u32 %v7768, %v7771
        %v7774 = vshrl.u32 %v7584, 16
        %v7776 = vrot.slane %v7774, 3
        %v7777 = vshll.u32 %v7584, 16
        %v7779 = vrot.slane %v7777, 4
        %v7780 = vor.u32 %v7776, %v7779
        %v7781 = vsel %vm6986, %v7772, %v7780
        %v7783 = vshrl.u32 %v7585, 16
        %v7785 = vrot.slane %v7783, 3
        %v7786 = vshll.u32 %v7585, 16
        %v7788 = vrot.slane %v7786, 4
        %v7789 = vor.u32 %v7785, %v7788
        %v7791 = vshrl.u32 %v7586, 16
        %v7793 = vrot.slane %v7791, 3
        %v7794 = vshll.u32 %v7586, 16
        %v7796 = vrot.slane %v7794, 4
        %v7797 = vor.u32 %v7793, %v7796
        %v7798 = vsel %vm6986, %v7789, %v7797
        %v7800 = vshrl.u32 %v7587, 16
        %v7802 = vrot.slane %v7800, 3
        %v7803 = vshll.u32 %v7587, 16
        %v7805 = vrot.slane %v7803, 4
        %v7806 = vor.u32 %v7802, %v7805
        %v7808 = vshrl.u32 %v7588, 16
        %v7810 = vrot.slane %v7808, 3
        %v7811 = vshll.u32 %v7588, 16
        %v7813 = vrot.slane %v7811, 4
        %v7814 = vor.u32 %v7810, %v7813
        %v7815 = vsel %vm6986, %v7806, %v7814
        %v7817 = vshrl.u32 %v7589, 16
        %v7819 = vrot.slane %v7817, 3
        %v7820 = vshll.u32 %v7589, 16
        %v7822 = vrot.slane %v7820, 4
        %v7823 = vor.u32 %v7819, %v7822
        %v7825 = vshrl.u32 %v7590, 16
        %v7827 = vrot.slane %v7825, 3
        %v7828 = vshll.u32 %v7590, 16
        %v7830 = vrot.slane %v7828, 4
        %v7831 = vor.u32 %v7827, %v7830
        %v7832 = vsel %vm6986, %v7823, %v7831
        %v7834 = vshrl.u32 %v7591, 16
        %v7836 = vrot.slane %v7834, 3
        %v7837 = vshll.u32 %v7591, 16
        %v7839 = vrot.slane %v7837, 4
        %v7840 = vor.u32 %v7836, %v7839
        %v7842 = vshrl.u32 %v7592, 16
        %v7844 = vrot.slane %v7842, 3
        %v7845 = vshll.u32 %v7592, 16
        %v7847 = vrot.slane %v7845, 4
        %v7848 = vor.u32 %v7844, %v7847
        %v7849 = vsel %vm6986, %v7840, %v7848
        %v7851 = vshrl.u32 %v7593, 16
        %v7853 = vrot.slane %v7851, 3
        %v7854 = vshll.u32 %v7593, 16
        %v7856 = vrot.slane %v7854, 4
        %v7857 = vor.u32 %v7853, %v7856
        %v7859 = vshrl.u32 %v7594, 16
        %v7861 = vrot.slane %v7859, 3
        %v7862 = vshll.u32 %v7594, 16
        %v7864 = vrot.slane %v7862, 4
        %v7865 = vor.u32 %v7861, %v7864
        %v7866 = vsel %vm6986, %v7857, %v7865
        %s7867 = scalar_lea.vmem [#allocation2], 360
        %v7868 = vld [vmem:[%s7867] sm:$0xf0]
        %v7869 = vld [vmem:[%s7867 + $0x8] sm:$0x1f]
        %v7870 = vld [vmem:[%s7867 + $0x18] sm:$0xf0]
        %v7871 = vld [vmem:[%s7867 + $0x20] sm:$0x1f]
        %v7872 = vld [vmem:[%s7867 + $0x30] sm:$0xf0]
        %v7873 = vld [vmem:[%s7867 + $0x38] sm:$0x1f]
        %v7874 = vld [vmem:[%s7867 + $0x48] sm:$0xf0]
        %v7875 = vld [vmem:[%s7867 + $0x50] sm:$0x1f]
        %v7876 = vld [vmem:[%s7867 + $0x60] sm:$0xf0]
        %v7877 = vld [vmem:[%s7867 + $0x68] sm:$0x1f]
        %v7878 = vld [vmem:[%s7867 + $0x78] sm:$0xf0]
        %v7879 = vld [vmem:[%s7867 + $0x80] sm:$0x1f]
        %v7880 = vld [vmem:[%s7867 + $0x90] sm:$0xf0]
        %v7881 = vld [vmem:[%s7867 + $0x98] sm:$0x1f]
        %v7882 = vld [vmem:[%s7867 + $0xa8] sm:$0xf0]
        %v7883 = vld [vmem:[%s7867 + $0xb0] sm:$0x1f]
        %v7884 = vld [vmem:[%s7867 + $0xc0] sm:$0xf0]
        %v7885 = vld [vmem:[%s7867 + $0xc8] sm:$0x1f]
        %v7886 = vld [vmem:[%s7867 + $0xd8] sm:$0xf0]
        %v7887 = vld [vmem:[%s7867 + $0xe0] sm:$0x1f]
        %v7888 = vld [vmem:[%s7867 + $0xf0] sm:$0xf0]
        %v7889 = vld [vmem:[%s7867 + $0xf8] sm:$0x1f]
        %v7890 = vld [vmem:[%s7867 + $0x108] sm:$0xf0]
        %v7891 = vld [vmem:[%s7867 + $0x110] sm:$0x1f]
        %v7892 = vld [vmem:[%s7867 + $0x120] sm:$0xf0]
        %v7893 = vld [vmem:[%s7867 + $0x128] sm:$0x1f]
        %v7894 = vld [vmem:[%s7867 + $0x138] sm:$0xf0]
        %v7895 = vld [vmem:[%s7867 + $0x140] sm:$0x1f]
        %v7896 = vld [vmem:[%s7867 + $0x150] sm:$0xf0]
        %v7897 = vld [vmem:[%s7867 + $0x158] sm:$0x1f]
        %v7898 = vld [vmem:[%s7867 + $0x168] sm:$0xf0]
        %v7899 = vld [vmem:[%s7867 + $0x170] sm:$0x1f]
        %v7901 = vshrl.u32 %v7868, 16
        %v7903 = vrot.slane %v7901, 4
        %v7904 = vshll.u32 %v7868, 16
        %v7906 = vrot.slane %v7904, 5
        %v7907 = vor.u32 %v7903, %v7906
        %v7909 = vshrl.u32 %v7869, 16
        %v7911 = vrot.slane %v7909, 4
        %v7912 = vshll.u32 %v7869, 16
        %v7914 = vrot.slane %v7912, 5
        %v7915 = vor.u32 %v7911, %v7914
        %v7916 = vsel %vm6665, %v7907, %v7915
        %v7918 = vshrl.u32 %v7870, 16
        %v7920 = vrot.slane %v7918, 4
        %v7921 = vshll.u32 %v7870, 16
        %v7923 = vrot.slane %v7921, 5
        %v7924 = vor.u32 %v7920, %v7923
        %v7926 = vshrl.u32 %v7871, 16
        %v7928 = vrot.slane %v7926, 4
        %v7929 = vshll.u32 %v7871, 16
        %v7931 = vrot.slane %v7929, 5
        %v7932 = vor.u32 %v7928, %v7931
        %v7933 = vsel %vm6665, %v7924, %v7932
        %v7935 = vshrl.u32 %v7872, 16
        %v7937 = vrot.slane %v7935, 4
        %v7938 = vshll.u32 %v7872, 16
        %v7940 = vrot.slane %v7938, 5
        %v7941 = vor.u32 %v7937, %v7940
        %v7943 = vshrl.u32 %v7873, 16
        %v7945 = vrot.slane %v7943, 4
        %v7946 = vshll.u32 %v7873, 16
        %v7948 = vrot.slane %v7946, 5
        %v7949 = vor.u32 %v7945, %v7948
        %v7950 = vsel %vm6665, %v7941, %v7949
        %v7952 = vshrl.u32 %v7874, 16
        %v7954 = vrot.slane %v7952, 4
        %v7955 = vshll.u32 %v7874, 16
        %v7957 = vrot.slane %v7955, 5
        %v7958 = vor.u32 %v7954, %v7957
        %v7960 = vshrl.u32 %v7875, 16
        %v7962 = vrot.slane %v7960, 4
        %v7963 = vshll.u32 %v7875, 16
        %v7965 = vrot.slane %v7963, 5
        %v7966 = vor.u32 %v7962, %v7965
        %v7967 = vsel %vm6665, %v7958, %v7966
        %v7969 = vshrl.u32 %v7876, 16
        %v7971 = vrot.slane %v7969, 4
        %v7972 = vshll.u32 %v7876, 16
        %v7974 = vrot.slane %v7972, 5
        %v7975 = vor.u32 %v7971, %v7974
        %v7977 = vshrl.u32 %v7877, 16
        %v7979 = vrot.slane %v7977, 4
        %v7980 = vshll.u32 %v7877, 16
        %v7982 = vrot.slane %v7980, 5
        %v7983 = vor.u32 %v7979, %v7982
        %v7984 = vsel %vm6665, %v7975, %v7983
        %v7986 = vshrl.u32 %v7878, 16
        %v7988 = vrot.slane %v7986, 4
        %v7989 = vshll.u32 %v7878, 16
        %v7991 = vrot.slane %v7989, 5
        %v7992 = vor.u32 %v7988, %v7991
        %v7994 = vshrl.u32 %v7879, 16
        %v7996 = vrot.slane %v7994, 4
        %v7997 = vshll.u32 %v7879, 16
        %v7999 = vrot.slane %v7997, 5
        %v8000 = vor.u32 %v7996, %v7999
        %v8001 = vsel %vm6665, %v7992, %v8000
        %v8003 = vshrl.u32 %v7880, 16
        %v8005 = vrot.slane %v8003, 4
        %v8006 = vshll.u32 %v7880, 16
        %v8008 = vrot.slane %v8006, 5
        %v8009 = vor.u32 %v8005, %v8008
        %v8011 = vshrl.u32 %v7881, 16
        %v8013 = vrot.slane %v8011, 4
        %v8014 = vshll.u32 %v7881, 16
        %v8016 = vrot.slane %v8014, 5
        %v8017 = vor.u32 %v8013, %v8016
        %v8018 = vsel %vm6665, %v8009, %v8017
        %v8020 = vshrl.u32 %v7882, 16
        %v8022 = vrot.slane %v8020, 4
        %v8023 = vshll.u32 %v7882, 16
        %v8025 = vrot.slane %v8023, 5
        %v8026 = vor.u32 %v8022, %v8025
        %v8028 = vshrl.u32 %v7883, 16
        %v8030 = vrot.slane %v8028, 4
        %v8031 = vshll.u32 %v7883, 16
        %v8033 = vrot.slane %v8031, 5
        %v8034 = vor.u32 %v8030, %v8033
        %v8035 = vsel %vm6665, %v8026, %v8034
        %v8037 = vshrl.u32 %v7884, 16
        %v8039 = vrot.slane %v8037, 4
        %v8040 = vshll.u32 %v7884, 16
        %v8042 = vrot.slane %v8040, 5
        %v8043 = vor.u32 %v8039, %v8042
        %v8045 = vshrl.u32 %v7885, 16
        %v8047 = vrot.slane %v8045, 4
        %v8048 = vshll.u32 %v7885, 16
        %v8050 = vrot.slane %v8048, 5
        %v8051 = vor.u32 %v8047, %v8050
        %v8052 = vsel %vm6665, %v8043, %v8051
        %v8054 = vshrl.u32 %v7886, 16
        %v8056 = vrot.slane %v8054, 4
        %v8057 = vshll.u32 %v7886, 16
        %v8059 = vrot.slane %v8057, 5
        %v8060 = vor.u32 %v8056, %v8059
        %v8062 = vshrl.u32 %v7887, 16
        %v8064 = vrot.slane %v8062, 4
        %v8065 = vshll.u32 %v7887, 16
        %v8067 = vrot.slane %v8065, 5
        %v8068 = vor.u32 %v8064, %v8067
        %v8069 = vsel %vm6665, %v8060, %v8068
        %v8071 = vshrl.u32 %v7888, 16
        %v8073 = vrot.slane %v8071, 4
        %v8074 = vshll.u32 %v7888, 16
        %v8076 = vrot.slane %v8074, 5
        %v8077 = vor.u32 %v8073, %v8076
        %v8079 = vshrl.u32 %v7889, 16
        %v8081 = vrot.slane %v8079, 4
        %v8082 = vshll.u32 %v7889, 16
        %v8084 = vrot.slane %v8082, 5
        %v8085 = vor.u32 %v8081, %v8084
        %v8086 = vsel %vm6665, %v8077, %v8085
        %v8088 = vshrl.u32 %v7890, 16
        %v8090 = vrot.slane %v8088, 4
        %v8091 = vshll.u32 %v7890, 16
        %v8093 = vrot.slane %v8091, 5
        %v8094 = vor.u32 %v8090, %v8093
        %v8096 = vshrl.u32 %v7891, 16
        %v8098 = vrot.slane %v8096, 4
        %v8099 = vshll.u32 %v7891, 16
        %v8101 = vrot.slane %v8099, 5
        %v8102 = vor.u32 %v8098, %v8101
        %v8103 = vsel %vm6665, %v8094, %v8102
        %v8105 = vshrl.u32 %v7892, 16
        %v8107 = vrot.slane %v8105, 4
        %v8108 = vshll.u32 %v7892, 16
        %v8110 = vrot.slane %v8108, 5
        %v8111 = vor.u32 %v8107, %v8110
        %v8113 = vshrl.u32 %v7893, 16
        %v8115 = vrot.slane %v8113, 4
        %v8116 = vshll.u32 %v7893, 16
        %v8118 = vrot.slane %v8116, 5
        %v8119 = vor.u32 %v8115, %v8118
        %v8120 = vsel %vm6665, %v8111, %v8119
        %v8122 = vshrl.u32 %v7894, 16
        %v8124 = vrot.slane %v8122, 4
        %v8125 = vshll.u32 %v7894, 16
        %v8127 = vrot.slane %v8125, 5
        %v8128 = vor.u32 %v8124, %v8127
        %v8130 = vshrl.u32 %v7895, 16
        %v8132 = vrot.slane %v8130, 4
        %v8133 = vshll.u32 %v7895, 16
        %v8135 = vrot.slane %v8133, 5
        %v8136 = vor.u32 %v8132, %v8135
        %v8137 = vsel %vm6665, %v8128, %v8136
        %v8139 = vshrl.u32 %v7896, 16
        %v8141 = vrot.slane %v8139, 4
        %v8142 = vshll.u32 %v7896, 16
        %v8144 = vrot.slane %v8142, 5
        %v8145 = vor.u32 %v8141, %v8144
        %v8147 = vshrl.u32 %v7897, 16
        %v8149 = vrot.slane %v8147, 4
        %v8150 = vshll.u32 %v7897, 16
        %v8152 = vrot.slane %v8150, 5
        %v8153 = vor.u32 %v8149, %v8152
        %v8154 = vsel %vm6665, %v8145, %v8153
        %v8156 = vshrl.u32 %v7898, 16
        %v8158 = vrot.slane %v8156, 4
        %v8159 = vshll.u32 %v7898, 16
        %v8161 = vrot.slane %v8159, 5
        %v8162 = vor.u32 %v8158, %v8161
        %v8164 = vshrl.u32 %v7899, 16
        %v8166 = vrot.slane %v8164, 4
        %v8167 = vshll.u32 %v7899, 16
        %v8169 = vrot.slane %v8167, 5
        %v8170 = vor.u32 %v8166, %v8169
        %v8171 = vsel %vm6665, %v8162, %v8170
        %v8172 = vld [vmem:[%s7867 + $0x8] sm:$0xff]
        %v8173 = vld [vmem:[%s7867 + $0x20] sm:$0xff]
        %v8174 = vld [vmem:[%s7867 + $0x38] sm:$0xff]
        %v8175 = vld [vmem:[%s7867 + $0x50] sm:$0xff]
        %v8176 = vld [vmem:[%s7867 + $0x68] sm:$0xff]
        %v8177 = vld [vmem:[%s7867 + $0x80] sm:$0xff]
        %v8178 = vld [vmem:[%s7867 + $0x98] sm:$0xff]
        %v8179 = vld [vmem:[%s7867 + $0xb0] sm:$0xff]
        %v8180 = vld [vmem:[%s7867 + $0xc8] sm:$0xff]
        %v8181 = vld [vmem:[%s7867 + $0xe0] sm:$0xff]
        %v8182 = vld [vmem:[%s7867 + $0xf8] sm:$0xff]
        %v8183 = vld [vmem:[%s7867 + $0x110] sm:$0xff]
        %v8184 = vld [vmem:[%s7867 + $0x128] sm:$0xff]
        %v8185 = vld [vmem:[%s7867 + $0x140] sm:$0xff]
        %v8186 = vld [vmem:[%s7867 + $0x158] sm:$0xff]
        %v8187 = vld [vmem:[%s7867 + $0x170] sm:$0xff]
        %v8188 = vld [vmem:[%s7867 + $0x8] sm:$0xf8]
        %v8189 = vld [vmem:[%s7867 + $0x10] sm:$0xf]
        %v8190 = vld [vmem:[%s7867 + $0x20] sm:$0xf8]
        %v8191 = vld [vmem:[%s7867 + $0x28] sm:$0xf]
        %v8192 = vld [vmem:[%s7867 + $0x38] sm:$0xf8]
        %v8193 = vld [vmem:[%s7867 + $0x40] sm:$0xf]
        %v8194 = vld [vmem:[%s7867 + $0x50] sm:$0xf8]
        %v8195 = vld [vmem:[%s7867 + $0x58] sm:$0xf]
        %v8196 = vld [vmem:[%s7867 + $0x68] sm:$0xf8]
        %v8197 = vld [vmem:[%s7867 + $0x70] sm:$0xf]
        %v8198 = vld [vmem:[%s7867 + $0x80] sm:$0xf8]
        %v8199 = vld [vmem:[%s7867 + $0x88] sm:$0xf]
        %v8200 = vld [vmem:[%s7867 + $0x98] sm:$0xf8]
        %v8201 = vld [vmem:[%s7867 + $0xa0] sm:$0xf]
        %v8202 = vld [vmem:[%s7867 + $0xb0] sm:$0xf8]
        %v8203 = vld [vmem:[%s7867 + $0xb8] sm:$0xf]
        %v8204 = vld [vmem:[%s7867 + $0xc8] sm:$0xf8]
        %v8205 = vld [vmem:[%s7867 + $0xd0] sm:$0xf]
        %v8206 = vld [vmem:[%s7867 + $0xe0] sm:$0xf8]
        %v8207 = vld [vmem:[%s7867 + $0xe8] sm:$0xf]
        %v8208 = vld [vmem:[%s7867 + $0xf8] sm:$0xf8]
        %v8209 = vld [vmem:[%s7867 + $0x100] sm:$0xf]
        %v8210 = vld [vmem:[%s7867 + $0x110] sm:$0xf8]
        %v8211 = vld [vmem:[%s7867 + $0x118] sm:$0xf]
        %v8212 = vld [vmem:[%s7867 + $0x128] sm:$0xf8]
        %v8213 = vld [vmem:[%s7867 + $0x130] sm:$0xf]
        %v8214 = vld [vmem:[%s7867 + $0x140] sm:$0xf8]
        %v8215 = vld [vmem:[%s7867 + $0x148] sm:$0xf]
        %v8216 = vld [vmem:[%s7867 + $0x158] sm:$0xf8]
        %v8217 = vld [vmem:[%s7867 + $0x160] sm:$0xf]
        %v8218 = vld [vmem:[%s7867 + $0x170] sm:$0xf8]
        %v8219 = vld [vmem:[%s7867 + $0x178] sm:$0xf]
        %v8221 = vshrl.u32 %v8188, 16
        %v8223 = vrot.slane %v8221, 3
        %v8224 = vshll.u32 %v8188, 16
        %v8226 = vrot.slane %v8224, 4
        %v8227 = vor.u32 %v8223, %v8226
        %v8229 = vshrl.u32 %v8189, 16
        %v8231 = vrot.slane %v8229, 3
        %v8232 = vshll.u32 %v8189, 16
        %v8234 = vrot.slane %v8232, 4
        %v8235 = vor.u32 %v8231, %v8234
        %v8236 = vsel %vm6986, %v8227, %v8235
        %v8238 = vshrl.u32 %v8190, 16
        %v8240 = vrot.slane %v8238, 3
        %v8241 = vshll.u32 %v8190, 16
        %v8243 = vrot.slane %v8241, 4
        %v8244 = vor.u32 %v8240, %v8243
        %v8246 = vshrl.u32 %v8191, 16
        %v8248 = vrot.slane %v8246, 3
        %v8249 = vshll.u32 %v8191, 16
        %v8251 = vrot.slane %v8249, 4
        %v8252 = vor.u32 %v8248, %v8251
        %v8253 = vsel %vm6986, %v8244, %v8252
        %v8255 = vshrl.u32 %v8192, 16
        %v8257 = vrot.slane %v8255, 3
        %v8258 = vshll.u32 %v8192, 16
        %v8260 = vrot.slane %v8258, 4
        %v8261 = vor.u32 %v8257, %v8260
        %v8263 = vshrl.u32 %v8193, 16
        %v8265 = vrot.slane %v8263, 3
        %v8266 = vshll.u32 %v8193, 16
        %v8268 = vrot.slane %v8266, 4
        %v8269 = vor.u32 %v8265, %v8268
        %v8270 = vsel %vm6986, %v8261, %v8269
        %v8272 = vshrl.u32 %v8194, 16
        %v8274 = vrot.slane %v8272, 3
        %v8275 = vshll.u32 %v8194, 16
        %v8277 = vrot.slane %v8275, 4
        %v8278 = vor.u32 %v8274, %v8277
        %v8280 = vshrl.u32 %v8195, 16
        %v8282 = vrot.slane %v8280, 3
        %v8283 = vshll.u32 %v8195, 16
        %v8285 = vrot.slane %v8283, 4
        %v8286 = vor.u32 %v8282, %v8285
        %v8287 = vsel %vm6986, %v8278, %v8286
        %v8289 = vshrl.u32 %v8196, 16
        %v8291 = vrot.slane %v8289, 3
        %v8292 = vshll.u32 %v8196, 16
        %v8294 = vrot.slane %v8292, 4
        %v8295 = vor.u32 %v8291, %v8294
        %v8297 = vshrl.u32 %v8197, 16
        %v8299 = vrot.slane %v8297, 3
        %v8300 = vshll.u32 %v8197, 16
        %v8302 = vrot.slane %v8300, 4
        %v8303 = vor.u32 %v8299, %v8302
        %v8304 = vsel %vm6986, %v8295, %v8303
        %v8306 = vshrl.u32 %v8198, 16
        %v8308 = vrot.slane %v8306, 3
        %v8309 = vshll.u32 %v8198, 16
        %v8311 = vrot.slane %v8309, 4
        %v8312 = vor.u32 %v8308, %v8311
        %v8314 = vshrl.u32 %v8199, 16
        %v8316 = vrot.slane %v8314, 3
        %v8317 = vshll.u32 %v8199, 16
        %v8319 = vrot.slane %v8317, 4
        %v8320 = vor.u32 %v8316, %v8319
        %v8321 = vsel %vm6986, %v8312, %v8320
        %v8323 = vshrl.u32 %v8200, 16
        %v8325 = vrot.slane %v8323, 3
        %v8326 = vshll.u32 %v8200, 16
        %v8328 = vrot.slane %v8326, 4
        %v8329 = vor.u32 %v8325, %v8328
        %v8331 = vshrl.u32 %v8201, 16
        %v8333 = vrot.slane %v8331, 3
        %v8334 = vshll.u32 %v8201, 16
        %v8336 = vrot.slane %v8334, 4
        %v8337 = vor.u32 %v8333, %v8336
        %v8338 = vsel %vm6986, %v8329, %v8337
        %v8340 = vshrl.u32 %v8202, 16
        %v8342 = vrot.slane %v8340, 3
        %v8343 = vshll.u32 %v8202, 16
        %v8345 = vrot.slane %v8343, 4
        %v8346 = vor.u32 %v8342, %v8345
        %v8348 = vshrl.u32 %v8203, 16
        %v8350 = vrot.slane %v8348, 3
        %v8351 = vshll.u32 %v8203, 16
        %v8353 = vrot.slane %v8351, 4
        %v8354 = vor.u32 %v8350, %v8353
        %v8355 = vsel %vm6986, %v8346, %v8354
        %v8357 = vshrl.u32 %v8204, 16
        %v8359 = vrot.slane %v8357, 3
        %v8360 = vshll.u32 %v8204, 16
        %v8362 = vrot.slane %v8360, 4
        %v8363 = vor.u32 %v8359, %v8362
        %v8365 = vshrl.u32 %v8205, 16
        %v8367 = vrot.slane %v8365, 3
        %v8368 = vshll.u32 %v8205, 16
        %v8370 = vrot.slane %v8368, 4
        %v8371 = vor.u32 %v8367, %v8370
        %v8372 = vsel %vm6986, %v8363, %v8371
        %v8374 = vshrl.u32 %v8206, 16
        %v8376 = vrot.slane %v8374, 3
        %v8377 = vshll.u32 %v8206, 16
        %v8379 = vrot.slane %v8377, 4
        %v8380 = vor.u32 %v8376, %v8379
        %v8382 = vshrl.u32 %v8207, 16
        %v8384 = vrot.slane %v8382, 3
        %v8385 = vshll.u32 %v8207, 16
        %v8387 = vrot.slane %v8385, 4
        %v8388 = vor.u32 %v8384, %v8387
        %v8389 = vsel %vm6986, %v8380, %v8388
        %v8391 = vshrl.u32 %v8208, 16
        %v8393 = vrot.slane %v8391, 3
        %v8394 = vshll.u32 %v8208, 16
        %v8396 = vrot.slane %v8394, 4
        %v8397 = vor.u32 %v8393, %v8396
        %v8399 = vshrl.u32 %v8209, 16
        %v8401 = vrot.slane %v8399, 3
        %v8402 = vshll.u32 %v8209, 16
        %v8404 = vrot.slane %v8402, 4
        %v8405 = vor.u32 %v8401, %v8404
        %v8406 = vsel %vm6986, %v8397, %v8405
        %v8408 = vshrl.u32 %v8210, 16
        %v8410 = vrot.slane %v8408, 3
        %v8411 = vshll.u32 %v8210, 16
        %v8413 = vrot.slane %v8411, 4
        %v8414 = vor.u32 %v8410, %v8413
        %v8416 = vshrl.u32 %v8211, 16
        %v8418 = vrot.slane %v8416, 3
        %v8419 = vshll.u32 %v8211, 16
        %v8421 = vrot.slane %v8419, 4
        %v8422 = vor.u32 %v8418, %v8421
        %v8423 = vsel %vm6986, %v8414, %v8422
        %v8425 = vshrl.u32 %v8212, 16
        %v8427 = vrot.slane %v8425, 3
        %v8428 = vshll.u32 %v8212, 16
        %v8430 = vrot.slane %v8428, 4
        %v8431 = vor.u32 %v8427, %v8430
        %v8433 = vshrl.u32 %v8213, 16
        %v8435 = vrot.slane %v8433, 3
        %v8436 = vshll.u32 %v8213, 16
        %v8438 = vrot.slane %v8436, 4
        %v8439 = vor.u32 %v8435, %v8438
        %v8440 = vsel %vm6986, %v8431, %v8439
        %v8442 = vshrl.u32 %v8214, 16
        %v8444 = vrot.slane %v8442, 3
        %v8445 = vshll.u32 %v8214, 16
        %v8447 = vrot.slane %v8445, 4
        %v8448 = vor.u32 %v8444, %v8447
        %v8450 = vshrl.u32 %v8215, 16
        %v8452 = vrot.slane %v8450, 3
        %v8453 = vshll.u32 %v8215, 16
        %v8455 = vrot.slane %v8453, 4
        %v8456 = vor.u32 %v8452, %v8455
        %v8457 = vsel %vm6986, %v8448, %v8456
        %v8459 = vshrl.u32 %v8216, 16
        %v8461 = vrot.slane %v8459, 3
        %v8462 = vshll.u32 %v8216, 16
        %v8464 = vrot.slane %v8462, 4
        %v8465 = vor.u32 %v8461, %v8464
        %v8467 = vshrl.u32 %v8217, 16
        %v8469 = vrot.slane %v8467, 3
        %v8470 = vshll.u32 %v8217, 16
        %v8472 = vrot.slane %v8470, 4
        %v8473 = vor.u32 %v8469, %v8472
        %v8474 = vsel %vm6986, %v8465, %v8473
        %v8476 = vshrl.u32 %v8218, 16
        %v8478 = vrot.slane %v8476, 3
        %v8479 = vshll.u32 %v8218, 16
        %v8481 = vrot.slane %v8479, 4
        %v8482 = vor.u32 %v8478, %v8481
        %v8484 = vshrl.u32 %v8219, 16
        %v8486 = vrot.slane %v8484, 3
        %v8487 = vshll.u32 %v8219, 16
        %v8489 = vrot.slane %v8487, 4
        %v8490 = vor.u32 %v8486, %v8489
        %v8491 = vsel %vm6986, %v8482, %v8490
        %8508 = vrot.lane.b32.xlu0 %v6938, 64
        %v8509 = vpop.permute.xlu0 %8508
        %8510 = vrot.lane.b32.xlu0 %v6939, 64
        %v8511 = vpop.permute.xlu0 %8510
        %8512 = vrot.lane.b32.xlu0 %v6940, 64
        %v8513 = vpop.permute.xlu0 %8512
        %8514 = vrot.lane.b32.xlu0 %v6941, 64
        %v8515 = vpop.permute.xlu0 %8514
        %8516 = vrot.lane.b32.xlu0 %v6942, 64
        %v8517 = vpop.permute.xlu0 %8516
        %8518 = vrot.lane.b32.xlu0 %v6943, 64
        %v8519 = vpop.permute.xlu0 %8518
        %8520 = vrot.lane.b32.xlu0 %v6944, 64
        %v8521 = vpop.permute.xlu0 %8520
        %8522 = vrot.lane.b32.xlu0 %v6945, 64
        %v8523 = vpop.permute.xlu0 %8522
        %8524 = vrot.lane.b32.xlu0 %v6946, 64
        %v8525 = vpop.permute.xlu0 %8524
        %8526 = vrot.lane.b32.xlu0 %v6947, 64
        %v8527 = vpop.permute.xlu0 %8526
        %8528 = vrot.lane.b32.xlu0 %v6948, 64
        %v8529 = vpop.permute.xlu0 %8528
        %8530 = vrot.lane.b32.xlu0 %v6949, 64
        %v8531 = vpop.permute.xlu0 %8530
        %8532 = vrot.lane.b32.xlu0 %v6950, 64
        %v8533 = vpop.permute.xlu0 %8532
        %8534 = vrot.lane.b32.xlu0 %v6951, 64
        %v8535 = vpop.permute.xlu0 %8534
        %8536 = vrot.lane.b32.xlu0 %v6952, 64
        %v8537 = vpop.permute.xlu0 %8536
        %8538 = vrot.lane.b32.xlu0 %v6953, 64
        %v8539 = vpop.permute.xlu0 %8538
        %8540 = vrot.lane.b32.xlu0 %v7307, 64
        %v8541 = vpop.permute.xlu0 %8540
        %8542 = vrot.lane.b32.xlu0 %v7324, 64
        %v8543 = vpop.permute.xlu0 %8542
        %8544 = vrot.lane.b32.xlu0 %v7341, 64
        %v8545 = vpop.permute.xlu0 %8544
        %8546 = vrot.lane.b32.xlu0 %v7358, 64
        %v8547 = vpop.permute.xlu0 %8546
        %8548 = vrot.lane.b32.xlu0 %v7375, 64
        %v8549 = vpop.permute.xlu0 %8548
        %8550 = vrot.lane.b32.xlu0 %v7392, 64
        %v8551 = vpop.permute.xlu0 %8550
        %8552 = vrot.lane.b32.xlu0 %v7409, 64
        %v8553 = vpop.permute.xlu0 %8552
        %8554 = vrot.lane.b32.xlu0 %v7426, 64
        %v8555 = vpop.permute.xlu0 %8554
        %8556 = vrot.lane.b32.xlu0 %v7443, 64
        %v8557 = vpop.permute.xlu0 %8556
        %8558 = vrot.lane.b32.xlu0 %v7460, 64
        %v8559 = vpop.permute.xlu0 %8558
        %8560 = vrot.lane.b32.xlu0 %v7477, 64
        %v8561 = vpop.permute.xlu0 %8560
        %8562 = vrot.lane.b32.xlu0 %v7494, 64
        %v8563 = vpop.permute.xlu0 %8562
        %8564 = vrot.lane.b32.xlu0 %v7511, 64
        %v8565 = vpop.permute.xlu0 %8564
        %8566 = vrot.lane.b32.xlu0 %v7528, 64
        %v8567 = vpop.permute.xlu0 %8566
        %8568 = vrot.lane.b32.xlu0 %v7545, 64
        %v8569 = vpop.permute.xlu0 %8568
        %8570 = vrot.lane.b32.xlu0 %v7562, 64
        %v8571 = vpop.permute.xlu0 %8570
        %v8574 = vsel %vm278, %v6682, %v8509
        %v8578 = vsel %vm278, %v6699, %v8511
        %v8582 = vsel %vm278, %v6716, %v8513
        %v8586 = vsel %vm278, %v6733, %v8515
        %v8590 = vsel %vm278, %v6750, %v8517
        %v8594 = vsel %vm278, %v6767, %v8519
        %v8598 = vsel %vm278, %v6784, %v8521
        %v8602 = vsel %vm278, %v6801, %v8523
        %v8606 = vsel %vm278, %v6818, %v8525
        %v8610 = vsel %vm278, %v6835, %v8527
        %v8614 = vsel %vm278, %v6852, %v8529
        %v8618 = vsel %vm278, %v6869, %v8531
        %v8622 = vsel %vm278, %v6886, %v8533
        %v8626 = vsel %vm278, %v6903, %v8535
        %v8630 = vsel %vm278, %v6920, %v8537
        %v8634 = vsel %vm278, %v6937, %v8539
        %v8638 = vsel %vm278, %v7003, %v8541
        %v8642 = vsel %vm278, %v7020, %v8543
        %v8646 = vsel %vm278, %v7037, %v8545
        %v8650 = vsel %vm278, %v7054, %v8547
        %v8654 = vsel %vm278, %v7071, %v8549
        %v8658 = vsel %vm278, %v7088, %v8551
        %v8662 = vsel %vm278, %v7105, %v8553
        %v8666 = vsel %vm278, %v7122, %v8555
        %v8670 = vsel %vm278, %v7139, %v8557
        %v8674 = vsel %vm278, %v7156, %v8559
        %v8678 = vsel %vm278, %v7173, %v8561
        %v8682 = vsel %vm278, %v7190, %v8563
        %v8686 = vsel %vm278, %v7207, %v8565
        %v8690 = vsel %vm278, %v7224, %v8567
        %v8694 = vsel %vm278, %v7241, %v8569
        %v8698 = vsel %vm278, %v7258, %v8571
        %8700 = vrot.lane.b32.xlu0 %v7916, 64
        %v8701 = vpop.permute.xlu0 %8700
        %8702 = vrot.lane.b32.xlu0 %v7933, 64
        %v8703 = vpop.permute.xlu0 %8702
        %8704 = vrot.lane.b32.xlu0 %v7950, 64
        %v8705 = vpop.permute.xlu0 %8704
        %8706 = vrot.lane.b32.xlu0 %v7967, 64
        %v8707 = vpop.permute.xlu0 %8706
        %8708 = vrot.lane.b32.xlu0 %v7984, 64
        %v8709 = vpop.permute.xlu0 %8708
        %8710 = vrot.lane.b32.xlu0 %v8001, 64
        %v8711 = vpop.permute.xlu0 %8710
        %8712 = vrot.lane.b32.xlu0 %v8018, 64
        %v8713 = vpop.permute.xlu0 %8712
        %8714 = vrot.lane.b32.xlu0 %v8035, 64
        %v8715 = vpop.permute.xlu0 %8714
        %8716 = vrot.lane.b32.xlu0 %v8052, 64
        %v8717 = vpop.permute.xlu0 %8716
        %8718 = vrot.lane.b32.xlu0 %v8069, 64
        %v8719 = vpop.permute.xlu0 %8718
        %8720 = vrot.lane.b32.xlu0 %v8086, 64
        %v8721 = vpop.permute.xlu0 %8720
        %8722 = vrot.lane.b32.xlu0 %v8103, 64
        %v8723 = vpop.permute.xlu0 %8722
        %8724 = vrot.lane.b32.xlu0 %v8120, 64
        %v8725 = vpop.permute.xlu0 %8724
        %8726 = vrot.lane.b32.xlu0 %v8137, 64
        %v8727 = vpop.permute.xlu0 %8726
        %8728 = vrot.lane.b32.xlu0 %v8154, 64
        %v8729 = vpop.permute.xlu0 %8728
        %8730 = vrot.lane.b32.xlu0 %v8171, 64
        %v8731 = vpop.permute.xlu0 %8730
        %8732 = vrot.lane.b32.xlu0 %v8236, 64
        %v8733 = vpop.permute.xlu0 %8732
        %8734 = vrot.lane.b32.xlu0 %v8253, 64
        %v8735 = vpop.permute.xlu0 %8734
        %8736 = vrot.lane.b32.xlu0 %v8270, 64
        %v8737 = vpop.permute.xlu0 %8736
        %8738 = vrot.lane.b32.xlu0 %v8287, 64
        %v8739 = vpop.permute.xlu0 %8738
        %8740 = vrot.lane.b32.xlu0 %v8304, 64
        %v8741 = vpop.permute.xlu0 %8740
        %8742 = vrot.lane.b32.xlu0 %v8321, 64
        %v8743 = vpop.permute.xlu0 %8742
        %8744 = vrot.lane.b32.xlu0 %v8338, 64
        %v8745 = vpop.permute.xlu0 %8744
        %8746 = vrot.lane.b32.xlu0 %v8355, 64
        %v8747 = vpop.permute.xlu0 %8746
        %8748 = vrot.lane.b32.xlu0 %v8372, 64
        %v8749 = vpop.permute.xlu0 %8748
        %8750 = vrot.lane.b32.xlu0 %v8389, 64
        %v8751 = vpop.permute.xlu0 %8750
        %8752 = vrot.lane.b32.xlu0 %v8406, 64
        %v8753 = vpop.permute.xlu0 %8752
        %8754 = vrot.lane.b32.xlu0 %v8423, 64
        %v8755 = vpop.permute.xlu0 %8754
        %8756 = vrot.lane.b32.xlu0 %v8440, 64
        %v8757 = vpop.permute.xlu0 %8756
        %8758 = vrot.lane.b32.xlu0 %v8457, 64
        %v8759 = vpop.permute.xlu0 %8758
        %8760 = vrot.lane.b32.xlu0 %v8474, 64
        %v8761 = vpop.permute.xlu0 %8760
        %8762 = vrot.lane.b32.xlu0 %v8491, 64
        %v8763 = vpop.permute.xlu0 %8762
        %v8766 = vsel %vm278, %v7611, %v8701
        %v8770 = vsel %vm278, %v7628, %v8703
        %v8774 = vsel %vm278, %v7645, %v8705
        %v8778 = vsel %vm278, %v7662, %v8707
        %v8782 = vsel %vm278, %v7679, %v8709
        %v8786 = vsel %vm278, %v7696, %v8711
        %v8790 = vsel %vm278, %v7713, %v8713
        %v8794 = vsel %vm278, %v7730, %v8715
        %v8798 = vsel %vm278, %v7747, %v8717
        %v8802 = vsel %vm278, %v7764, %v8719
        %v8806 = vsel %vm278, %v7781, %v8721
        %v8810 = vsel %vm278, %v7798, %v8723
        %v8814 = vsel %vm278, %v7815, %v8725
        %v8818 = vsel %vm278, %v7832, %v8727
        %v8822 = vsel %vm278, %v7849, %v8729
        %v8826 = vsel %vm278, %v7866, %v8731
        %v8830 = vsel %vm278, %v8172, %v8733
        %v8834 = vsel %vm278, %v8173, %v8735
        %v8838 = vsel %vm278, %v8174, %v8737
        %v8842 = vsel %vm278, %v8175, %v8739
        %v8846 = vsel %vm278, %v8176, %v8741
        %v8850 = vsel %vm278, %v8177, %v8743
        %v8854 = vsel %vm278, %v8178, %v8745
        %v8858 = vsel %vm278, %v8179, %v8747
        %v8862 = vsel %vm278, %v8180, %v8749
        %v8866 = vsel %vm278, %v8181, %v8751
        %v8870 = vsel %vm278, %v8182, %v8753
        %v8874 = vsel %vm278, %v8183, %v8755
        %v8878 = vsel %vm278, %v8184, %v8757
        %v8882 = vsel %vm278, %v8185, %v8759
        %v8886 = vsel %vm278, %v8186, %v8761
        %v8890 = vsel %vm278, %v8187, %v8763
        %v8892 = vld [vmem:[%s4] sm:$0xf]
        %v8893 = vld [vmem:[%s4 + $0x4] sm:$0xf]
        %v8894 = vld [vmem:[%s4 + $0x8] sm:$0xf]
        %v8895 = vld [vmem:[%s4 + $0xc] sm:$0xf]
        %v8896 = vld [vmem:[%s4 + $0x10] sm:$0xf]
        %v8897 = vld [vmem:[%s4 + $0x14] sm:$0xf]
        %v8898 = vld [vmem:[%s4 + $0x18] sm:$0xf]
        %v8899 = vld [vmem:[%s4 + $0x1c] sm:$0xf]
        %v8900 = vld [vmem:[%s4 + $0x20] sm:$0xf]
        %v8901 = vld [vmem:[%s4 + $0x24] sm:$0xf]
        %v8902 = vld [vmem:[%s4 + $0x28] sm:$0xf]
        %v8903 = vld [vmem:[%s4 + $0x2c] sm:$0xf]
        %v8904 = vld [vmem:[%s4 + $0x30] sm:$0xf]
        %v8905 = vld [vmem:[%s4 + $0x34] sm:$0xf]
        %v8906 = vld [vmem:[%s4 + $0x38] sm:$0xf]
        %v8907 = vld [vmem:[%s4 + $0x3c] sm:$0xf]
        %v8908 = vld [vmem:[%s4 + $0x40] sm:$0xf]
        %v8909 = vld [vmem:[%s4 + $0x44] sm:$0xf]
        %v8910 = vld [vmem:[%s4 + $0x48] sm:$0xf]
        %v8911 = vld [vmem:[%s4 + $0x4c] sm:$0xf]
        %v8912 = vld [vmem:[%s4 + $0x50] sm:$0xf]
        %v8913 = vld [vmem:[%s4 + $0x54] sm:$0xf]
        %v8914 = vld [vmem:[%s4 + $0x58] sm:$0xf]
        %v8915 = vld [vmem:[%s4 + $0x5c] sm:$0xf]
        %v8916 = vld [vmem:[%s4 + $0x60] sm:$0xf]
        %v8917 = vld [vmem:[%s4 + $0x64] sm:$0xf]
        %v8918 = vld [vmem:[%s4 + $0x68] sm:$0xf]
        %v8919 = vld [vmem:[%s4 + $0x6c] sm:$0xf]
        %v8920 = vld [vmem:[%s4 + $0x70] sm:$0xf]
        %v8921 = vld [vmem:[%s4 + $0x74] sm:$0xf]
        %v8922 = vld [vmem:[%s4 + $0x78] sm:$0xf]
        %v8923 = vld [vmem:[%s4 + $0x7c] sm:$0xf]
        %v8956 = vunpack.c.l.b16 %v8892
        %v8957 = vunpack.c.l.b16 %v8893
        %v8958 = vunpack.c.l.b16 %v8894
        %v8959 = vunpack.c.l.b16 %v8895
        %v8960 = vunpack.c.l.b16 %v8896
        %v8961 = vunpack.c.l.b16 %v8897
        %v8962 = vunpack.c.l.b16 %v8898
        %v8963 = vunpack.c.l.b16 %v8899
        %v8964 = vunpack.c.l.b16 %v8900
        %v8965 = vunpack.c.l.b16 %v8901
        %v8966 = vunpack.c.l.b16 %v8902
        %v8967 = vunpack.c.l.b16 %v8903
        %v8968 = vunpack.c.l.b16 %v8904
        %v8969 = vunpack.c.l.b16 %v8905
        %v8970 = vunpack.c.l.b16 %v8906
        %v8971 = vunpack.c.l.b16 %v8907
        %v8972 = vunpack.c.l.b16 %v8908
        %v8973 = vunpack.c.l.b16 %v8909
        %v8974 = vunpack.c.l.b16 %v8910
        %v8975 = vunpack.c.l.b16 %v8911
        %v8976 = vunpack.c.l.b16 %v8912
        %v8977 = vunpack.c.l.b16 %v8913
        %v8978 = vunpack.c.l.b16 %v8914
        %v8979 = vunpack.c.l.b16 %v8915
        %v8980 = vunpack.c.l.b16 %v8916
        %v8981 = vunpack.c.l.b16 %v8917
        %v8982 = vunpack.c.l.b16 %v8918
        %v8983 = vunpack.c.l.b16 %v8919
        %v8984 = vunpack.c.l.b16 %v8920
        %v8985 = vunpack.c.l.b16 %v8921
        %v8986 = vunpack.c.l.b16 %v8922
        %v8987 = vunpack.c.l.b16 %v8923
        %v8988 = vpack.c.b16 %v8957, %v8956
        %v8989 = vpack.c.b16 %v8959, %v8958
        %v8990 = vpack.c.b16 %v8961, %v8960
        %v8991 = vpack.c.b16 %v8963, %v8962
        %v8992 = vpack.c.b16 %v8965, %v8964
        %v8993 = vpack.c.b16 %v8967, %v8966
        %v8994 = vpack.c.b16 %v8969, %v8968
        %v8995 = vpack.c.b16 %v8971, %v8970
        %v8996 = vpack.c.b16 %v8973, %v8972
        %v8997 = vpack.c.b16 %v8975, %v8974
        %v8998 = vpack.c.b16 %v8977, %v8976
        %v8999 = vpack.c.b16 %v8979, %v8978
        %v9000 = vpack.c.b16 %v8981, %v8980
        %v9001 = vpack.c.b16 %v8983, %v8982
        %v9002 = vpack.c.b16 %v8985, %v8984
        %v9003 = vpack.c.b16 %v8987, %v8986
        %9020 = vmatprep.subr.bf16.mxu0 0
        %9021 = vmatpush1.bf16.msra.mxu0 %v8988
        %9022 = vmatprep.subr.bf16.mxu0 0
        %9023 = vmatpush1.bf16.msra.mxu0 %v8989
        %9024 = vmatprep.subr.bf16.mxu0 0
        %9025 = vmatpush1.bf16.msra.mxu0 %v8990
        %9026 = vmatprep.subr.bf16.mxu0 0
        %9027 = vmatpush1.bf16.msra.mxu0 %v8991
        %9028 = vmatprep.subr.bf16.mxu0 0
        %9029 = vmatpush1.bf16.msra.mxu0 %v8992
        %9030 = vmatprep.subr.bf16.mxu0 0
        %9031 = vmatpush1.bf16.msra.mxu0 %v8993
        %9032 = vmatprep.subr.bf16.mxu0 0
        %9033 = vmatpush1.bf16.msra.mxu0 %v8994
        %9034 = vmatprep.subr.bf16.mxu0 0
        %9035 = vmatpush1.bf16.msra.mxu0 %v8995
        %9036 = vmatprep.subr.bf16.mxu0 0
        %9037 = vmatpush1.bf16.msra.mxu0 %v8996
        %9038 = vmatprep.subr.bf16.mxu0 0
        %9039 = vmatpush1.bf16.msra.mxu0 %v8997
        %9040 = vmatprep.subr.bf16.mxu0 0
        %9041 = vmatpush1.bf16.msra.mxu0 %v8998
        %9042 = vmatprep.subr.bf16.mxu0 0
        %9043 = vmatpush1.bf16.msra.mxu0 %v8999
        %9044 = vmatprep.subr.bf16.mxu0 0
        %9045 = vmatpush1.bf16.msra.mxu0 %v9000
        %9046 = vmatprep.subr.bf16.mxu0 0
        %9047 = vmatpush1.bf16.msra.mxu0 %v9001
        %9048 = vmatprep.subr.bf16.mxu0 0
        %9049 = vmatpush1.bf16.msra.mxu0 %v9002
        %9050 = vmatprep.subr.bf16.mxu0 0
        %9051 = vmatpush1.bf16.msra.mxu0 %v9003
        %9052 = vmatprep.mubr.bf16.mxu0 %v8638
        %9053 = vmatmul.mubr.bf16.gmra.mrb[0].mxu0 %v8574
        %v9054 = vpop.f32.mrb[0].mxu0
        %v9055 = vadd.f32 0.0, %v9054
        %v9056 = vpop.f32.mrb[0].mxu0
        %v9057 = vpop.f32.mrb[0].mxu0
        %v9058 = vadd.f32 0.0, %v9057
        %v9059 = vpop.f32.mrb[0].mxu0
        %9060 = vmatprep.mubr.bf16.mxu0 %v8642
        %9061 = vmatmul.mubr.bf16.gmra.mrb[0].mxu0 %v8578
        %v9062 = vpop.f32.mrb[0].mxu0
        %v9063 = vadd.f32 0.0, %v9062
        %v9064 = vpop.f32.mrb[0].mxu0
        %v9065 = vpop.f32.mrb[0].mxu0
        %v9066 = vadd.f32 0.0, %v9065
        %v9067 = vpop.f32.mrb[0].mxu0
        %9068 = vmatprep.mubr.bf16.mxu0 %v8646
        %9069 = vmatmul.mubr.bf16.gmra.mrb[0].mxu0 %v8582
        %v9070 = vpop.f32.mrb[0].mxu0
        %v9071 = vadd.f32 0.0, %v9070
        %v9072 = vpop.f32.mrb[0].mxu0
        %v9073 = vpop.f32.mrb[0].mxu0
        %v9074 = vadd.f32 0.0, %v9073
        %v9075 = vpop.f32.mrb[0].mxu0
        %9076 = vmatprep.mubr.bf16.mxu0 %v8650
        %9077 = vmatmul.mubr.bf16.gmra.mrb[0].mxu0 %v8586
        %v9078 = vpop.f32.mrb[0].mxu0
        %v9079 = vadd.f32 0.0, %v9078
        %v9080 = vpop.f32.mrb[0].mxu0
        %v9081 = vpop.f32.mrb[0].mxu0
        %v9082 = vadd.f32 0.0, %v9081
        %v9083 = vpop.f32.mrb[0].mxu0
        %9084 = vmatprep.mubr.bf16.mxu0 %v8654
        %9085 = vmatmul.mubr.bf16.gmra.mrb[0].mxu0 %v8590
        %v9086 = vpop.f32.mrb[0].mxu0
        %v9087 = vadd.f32 0.0, %v9086
        %v9088 = vpop.f32.mrb[0].mxu0
        %v9089 = vpop.f32.mrb[0].mxu0
        %v9090 = vadd.f32 0.0, %v9089
        %v9091 = vpop.f32.mrb[0].mxu0
        %9092 = vmatprep.mubr.bf16.mxu0 %v8658
        %9093 = vmatmul.mubr.bf16.gmra.mrb[0].mxu0 %v8594
        %v9094 = vpop.f32.mrb[0].mxu0
        %v9095 = vadd.f32 0.0, %v9094
        %v9096 = vpop.f32.mrb[0].mxu0
        %v9097 = vpop.f32.mrb[0].mxu0
        %v9098 = vadd.f32 0.0, %v9097
        %v9099 = vpop.f32.mrb[0].mxu0
        %9100 = vmatprep.mubr.bf16.mxu0 %v8662
        %9101 = vmatmul.mubr.bf16.gmra.mrb[0].mxu0 %v8598
        %v9102 = vpop.f32.mrb[0].mxu0
        %v9103 = vadd.f32 0.0, %v9102
        %v9104 = vpop.f32.mrb[0].mxu0
        %v9105 = vpop.f32.mrb[0].mxu0
        %v9106 = vadd.f32 0.0, %v9105
        %v9107 = vpop.f32.mrb[0].mxu0
        %9108 = vmatprep.mubr.bf16.mxu0 %v8666
        %9109 = vmatmul.mubr.bf16.gmra.mrb[0].mxu0 %v8602
        %v9110 = vpop.f32.mrb[0].mxu0
        %v9111 = vadd.f32 0.0, %v9110
        %v9112 = vpop.f32.mrb[0].mxu0
        %v9113 = vpop.f32.mrb[0].mxu0
        %v9114 = vadd.f32 0.0, %v9113
        %v9115 = vpop.f32.mrb[0].mxu0
        %9116 = vmatprep.mubr.bf16.mxu0 %v8670
        %9117 = vmatmul.mubr.bf16.gmra.mrb[0].mxu0 %v8606
        %v9118 = vpop.f32.mrb[0].mxu0
        %v9119 = vadd.f32 0.0, %v9118
        %v9120 = vpop.f32.mrb[0].mxu0
        %v9121 = vpop.f32.mrb[0].mxu0
        %v9122 = vadd.f32 0.0, %v9121
        %v9123 = vpop.f32.mrb[0].mxu0
        %9124 = vmatprep.mubr.bf16.mxu0 %v8674
        %9125 = vmatmul.mubr.bf16.gmra.mrb[0].mxu0 %v8610
        %v9126 = vpop.f32.mrb[0].mxu0
        %v9127 = vadd.f32 0.0, %v9126
        %v9128 = vpop.f32.mrb[0].mxu0
        %v9129 = vpop.f32.mrb[0].mxu0
        %v9130 = vadd.f32 0.0, %v9129
        %v9131 = vpop.f32.mrb[0].mxu0
        %9132 = vmatprep.mubr.bf16.mxu0 %v8678
        %9133 = vmatmul.mubr.bf16.gmra.mrb[0].mxu0 %v8614
        %v9134 = vpop.f32.mrb[0].mxu0
        %v9135 = vadd.f32 0.0, %v9134
        %v9136 = vpop.f32.mrb[0].mxu0
        %v9137 = vpop.f32.mrb[0].mxu0
        %v9138 = vadd.f32 0.0, %v9137
        %v9139 = vpop.f32.mrb[0].mxu0
        %9140 = vmatprep.mubr.bf16.mxu0 %v8682
        %9141 = vmatmul.mubr.bf16.gmra.mrb[0].mxu0 %v8618
        %v9142 = vpop.f32.mrb[0].mxu0
        %v9143 = vadd.f32 0.0, %v9142
        %v9144 = vpop.f32.mrb[0].mxu0
        %v9145 = vpop.f32.mrb[0].mxu0
        %v9146 = vadd.f32 0.0, %v9145
        %v9147 = vpop.f32.mrb[0].mxu0
        %9148 = vmatprep.mubr.bf16.mxu0 %v8686
        %9149 = vmatmul.mubr.bf16.gmra.mrb[0].mxu0 %v8622
        %v9150 = vpop.f32.mrb[0].mxu0
        %v9151 = vadd.f32 0.0, %v9150
        %v9152 = vpop.f32.mrb[0].mxu0
        %v9153 = vpop.f32.mrb[0].mxu0
        %v9154 = vadd.f32 0.0, %v9153
        %v9155 = vpop.f32.mrb[0].mxu0
        %9156 = vmatprep.mubr.bf16.mxu0 %v8690
        %9157 = vmatmul.mubr.bf16.gmra.mrb[0].mxu0 %v8626
        %v9158 = vpop.f32.mrb[0].mxu0
        %v9159 = vadd.f32 0.0, %v9158
        %v9160 = vpop.f32.mrb[0].mxu0
        %v9161 = vpop.f32.mrb[0].mxu0
        %v9162 = vadd.f32 0.0, %v9161
        %v9163 = vpop.f32.mrb[0].mxu0
        %9164 = vmatprep.mubr.bf16.mxu0 %v8694
        %9165 = vmatmul.mubr.bf16.gmra.mrb[0].mxu0 %v8630
        %v9166 = vpop.f32.mrb[0].mxu0
        %v9167 = vadd.f32 0.0, %v9166
        %v9168 = vpop.f32.mrb[0].mxu0
        %v9169 = vpop.f32.mrb[0].mxu0
        %v9170 = vadd.f32 0.0, %v9169
        %v9171 = vpop.f32.mrb[0].mxu0
        %9172 = vmatprep.mubr.bf16.mxu0 %v8698
        %9173 = vmatmul.mubr.bf16.gmra.mrb[0].mxu0 %v8634
        %v9174 = vpop.f32.mrb[0].mxu0
        %v9175 = vadd.f32 0.0, %v9174
        %v9176 = vpop.f32.mrb[0].mxu0
        %v9177 = vpop.f32.mrb[0].mxu0
        %v9178 = vadd.f32 0.0, %v9177
        %v9179 = vpop.f32.mrb[0].mxu0
        %9180 = vdwg.mxu0
        %v9181 = vadd.f32 %v6600, %v9055
        %v9182 = vadd.f32 %v6601, %v9058
        %v9183 = vadd.f32 %v6602, %v9063
        %v9184 = vadd.f32 %v6603, %v9066
        %v9185 = vadd.f32 %v6604, %v9071
        %v9186 = vadd.f32 %v6605, %v9074
        %v9187 = vadd.f32 %v6606, %v9079
        %v9188 = vadd.f32 %v6607, %v9082
        %v9189 = vadd.f32 %v6608, %v9087
        %v9190 = vadd.f32 %v6609, %v9090
        %v9191 = vadd.f32 %v6610, %v9095
        %v9192 = vadd.f32 %v6611, %v9098
        %v9193 = vadd.f32 %v6612, %v9103
        %v9194 = vadd.f32 %v6613, %v9106
        %v9195 = vadd.f32 %v6614, %v9111
        %v9196 = vadd.f32 %v6615, %v9114
        %v9197 = vadd.f32 %v6616, %v9119
        %v9198 = vadd.f32 %v6617, %v9122
        %v9199 = vadd.f32 %v6618, %v9127
        %v9200 = vadd.f32 %v6619, %v9130
        %v9201 = vadd.f32 %v6620, %v9135
        %v9202 = vadd.f32 %v6621, %v9138
        %v9203 = vadd.f32 %v6622, %v9143
        %v9204 = vadd.f32 %v6623, %v9146
        %v9205 = vadd.f32 %v6624, %v9151
        %v9206 = vadd.f32 %v6625, %v9154
        %v9207 = vadd.f32 %v6626, %v9159
        %v9208 = vadd.f32 %v6627, %v9162
        %v9209 = vadd.f32 %v6628, %v9167
        %v9210 = vadd.f32 %v6629, %v9170
        %v9211 = vadd.f32 %v6630, %v9175
        %v9212 = vadd.f32 %v6631, %v9178
        %s9213 = scalar_lea.vmem %s4, 128
        %v9214 = vld [vmem:[%s9213] sm:$0xf]
        %v9215 = vld [vmem:[%s9213 + $0x4] sm:$0xf]
        %v9216 = vld [vmem:[%s9213 + $0x8] sm:$0xf]
        %v9217 = vld [vmem:[%s9213 + $0xc] sm:$0xf]
        %v9218 = vld [vmem:[%s9213 + $0x10] sm:$0xf]
        %v9219 = vld [vmem:[%s9213 + $0x14] sm:$0xf]
        %v9220 = vld [vmem:[%s9213 + $0x18] sm:$0xf]
        %v9221 = vld [vmem:[%s9213 + $0x1c] sm:$0xf]
        %v9222 = vld [vmem:[%s9213 + $0x20] sm:$0xf]
        %v9223 = vld [vmem:[%s9213 + $0x24] sm:$0xf]
        %v9224 = vld [vmem:[%s9213 + $0x28] sm:$0xf]
        %v9225 = vld [vmem:[%s9213 + $0x2c] sm:$0xf]
        %v9226 = vld [vmem:[%s9213 + $0x30] sm:$0xf]
        %v9227 = vld [vmem:[%s9213 + $0x34] sm:$0xf]
        %v9228 = vld [vmem:[%s9213 + $0x38] sm:$0xf]
        %v9229 = vld [vmem:[%s9213 + $0x3c] sm:$0xf]
        %v9230 = vld [vmem:[%s9213 + $0x40] sm:$0xf]
        %v9231 = vld [vmem:[%s9213 + $0x44] sm:$0xf]
        %v9232 = vld [vmem:[%s9213 + $0x48] sm:$0xf]
        %v9233 = vld [vmem:[%s9213 + $0x4c] sm:$0xf]
        %v9234 = vld [vmem:[%s9213 + $0x50] sm:$0xf]
        %v9235 = vld [vmem:[%s9213 + $0x54] sm:$0xf]
        %v9236 = vld [vmem:[%s9213 + $0x58] sm:$0xf]
        %v9237 = vld [vmem:[%s9213 + $0x5c] sm:$0xf]
        %v9238 = vld [vmem:[%s9213 + $0x60] sm:$0xf]
        %v9239 = vld [vmem:[%s9213 + $0x64] sm:$0xf]
        %v9240 = vld [vmem:[%s9213 + $0x68] sm:$0xf]
        %v9241 = vld [vmem:[%s9213 + $0x6c] sm:$0xf]
        %v9242 = vld [vmem:[%s9213 + $0x70] sm:$0xf]
        %v9243 = vld [vmem:[%s9213 + $0x74] sm:$0xf]
        %v9244 = vld [vmem:[%s9213 + $0x78] sm:$0xf]
        %v9245 = vld [vmem:[%s9213 + $0x7c] sm:$0xf]
        %v9278 = vunpack.c.l.b16 %v9214
        %v9279 = vunpack.c.l.b16 %v9215
        %v9280 = vunpack.c.l.b16 %v9216
        %v9281 = vunpack.c.l.b16 %v9217
        %v9282 = vunpack.c.l.b16 %v9218
        %v9283 = vunpack.c.l.b16 %v9219
        %v9284 = vunpack.c.l.b16 %v9220
        %v9285 = vunpack.c.l.b16 %v9221
        %v9286 = vunpack.c.l.b16 %v9222
        %v9287 = vunpack.c.l.b16 %v9223
        %v9288 = vunpack.c.l.b16 %v9224
        %v9289 = vunpack.c.l.b16 %v9225
        %v9290 = vunpack.c.l.b16 %v9226
        %v9291 = vunpack.c.l.b16 %v9227
        %v9292 = vunpack.c.l.b16 %v9228
        %v9293 = vunpack.c.l.b16 %v9229
        %v9294 = vunpack.c.l.b16 %v9230
        %v9295 = vunpack.c.l.b16 %v9231
        %v9296 = vunpack.c.l.b16 %v9232
        %v9297 = vunpack.c.l.b16 %v9233
        %v9298 = vunpack.c.l.b16 %v9234
        %v9299 = vunpack.c.l.b16 %v9235
        %v9300 = vunpack.c.l.b16 %v9236
        %v9301 = vunpack.c.l.b16 %v9237
        %v9302 = vunpack.c.l.b16 %v9238
        %v9303 = vunpack.c.l.b16 %v9239
        %v9304 = vunpack.c.l.b16 %v9240
        %v9305 = vunpack.c.l.b16 %v9241
        %v9306 = vunpack.c.l.b16 %v9242
        %v9307 = vunpack.c.l.b16 %v9243
        %v9308 = vunpack.c.l.b16 %v9244
        %v9309 = vunpack.c.l.b16 %v9245
        %v9310 = vpack.c.b16 %v9279, %v9278
        %v9311 = vpack.c.b16 %v9281, %v9280
        %v9312 = vpack.c.b16 %v9283, %v9282
        %v9313 = vpack.c.b16 %v9285, %v9284
        %v9314 = vpack.c.b16 %v9287, %v9286
        %v9315 = vpack.c.b16 %v9289, %v9288
        %v9316 = vpack.c.b16 %v9291, %v9290
        %v9317 = vpack.c.b16 %v9293, %v9292
        %v9318 = vpack.c.b16 %v9295, %v9294
        %v9319 = vpack.c.b16 %v9297, %v9296
        %v9320 = vpack.c.b16 %v9299, %v9298
        %v9321 = vpack.c.b16 %v9301, %v9300
        %v9322 = vpack.c.b16 %v9303, %v9302
        %v9323 = vpack.c.b16 %v9305, %v9304
        %v9324 = vpack.c.b16 %v9307, %v9306
        %v9325 = vpack.c.b16 %v9309, %v9308
        %9342 = vmatprep.subr.bf16.mxu0 0
        %9343 = vmatpush1.bf16.msra.mxu0 %v9310
        %9344 = vmatprep.subr.bf16.mxu0 0
        %9345 = vmatpush1.bf16.msra.mxu0 %v9311
        %9346 = vmatprep.subr.bf16.mxu0 0
        %9347 = vmatpush1.bf16.msra.mxu0 %v9312
        %9348 = vmatprep.subr.bf16.mxu0 0
        %9349 = vmatpush1.bf16.msra.mxu0 %v9313
        %9350 = vmatprep.subr.bf16.mxu0 0
        %9351 = vmatpush1.bf16.msra.mxu0 %v9314
        %9352 = vmatprep.subr.bf16.mxu0 0
        %9353 = vmatpush1.bf16.msra.mxu0 %v9315
        %9354 = vmatprep.subr.bf16.mxu0 0
        %9355 = vmatpush1.bf16.msra.mxu0 %v9316
        %9356 = vmatprep.subr.bf16.mxu0 0
        %9357 = vmatpush1.bf16.msra.mxu0 %v9317
        %9358 = vmatprep.subr.bf16.mxu0 0
        %9359 = vmatpush1.bf16.msra.mxu0 %v9318
        %9360 = vmatprep.subr.bf16.mxu0 0
        %9361 = vmatpush1.bf16.msra.mxu0 %v9319
        %9362 = vmatprep.subr.bf16.mxu0 0
        %9363 = vmatpush1.bf16.msra.mxu0 %v9320
        %9364 = vmatprep.subr.bf16.mxu0 0
        %9365 = vmatpush1.bf16.msra.mxu0 %v9321
        %9366 = vmatprep.subr.bf16.mxu0 0
        %9367 = vmatpush1.bf16.msra.mxu0 %v9322
        %9368 = vmatprep.subr.bf16.mxu0 0
        %9369 = vmatpush1.bf16.msra.mxu0 %v9323
        %9370 = vmatprep.subr.bf16.mxu0 0
        %9371 = vmatpush1.bf16.msra.mxu0 %v9324
        %9372 = vmatprep.subr.bf16.mxu0 0
        %9373 = vmatpush1.bf16.msra.mxu0 %v9325
        %9374 = vmatprep.mubr.bf16.mxu0 %v8830
        %9375 = vmatmul.mubr.bf16.gmra.mrb[0].mxu0 %v8766
        %v9376 = vpop.f32.mrb[0].mxu0
        %v9377 = vadd.f32 0.0, %v9376
        %v9378 = vpop.f32.mrb[0].mxu0
        %v9379 = vpop.f32.mrb[0].mxu0
        %v9380 = vadd.f32 0.0, %v9379
        %v9381 = vpop.f32.mrb[0].mxu0
        %9382 = vmatprep.mubr.bf16.mxu0 %v8834
        %9383 = vmatmul.mubr.bf16.gmra.mrb[0].mxu0 %v8770
        %v9384 = vpop.f32.mrb[0].mxu0
        %v9385 = vadd.f32 0.0, %v9384
        %v9386 = vpop.f32.mrb[0].mxu0
        %v9387 = vpop.f32.mrb[0].mxu0
        %v9388 = vadd.f32 0.0, %v9387
        %v9389 = vpop.f32.mrb[0].mxu0
        %9390 = vmatprep.mubr.bf16.mxu0 %v8838
        %9391 = vmatmul.mubr.bf16.gmra.mrb[0].mxu0 %v8774
        %v9392 = vpop.f32.mrb[0].mxu0
        %v9393 = vadd.f32 0.0, %v9392
        %v9394 = vpop.f32.mrb[0].mxu0
        %v9395 = vpop.f32.mrb[0].mxu0
        %v9396 = vadd.f32 0.0, %v9395
        %v9397 = vpop.f32.mrb[0].mxu0
        %9398 = vmatprep.mubr.bf16.mxu0 %v8842
        %9399 = vmatmul.mubr.bf16.gmra.mrb[0].mxu0 %v8778
        %v9400 = vpop.f32.mrb[0].mxu0
        %v9401 = vadd.f32 0.0, %v9400
        %v9402 = vpop.f32.mrb[0].mxu0
        %v9403 = vpop.f32.mrb[0].mxu0
        %v9404 = vadd.f32 0.0, %v9403
        %v9405 = vpop.f32.mrb[0].mxu0
        %9406 = vmatprep.mubr.bf16.mxu0 %v8846
        %9407 = vmatmul.mubr.bf16.gmra.mrb[0].mxu0 %v8782
        %v9408 = vpop.f32.mrb[0].mxu0
        %v9409 = vadd.f32 0.0, %v9408
        %v9410 = vpop.f32.mrb[0].mxu0
        %v9411 = vpop.f32.mrb[0].mxu0
        %v9412 = vadd.f32 0.0, %v9411
        %v9413 = vpop.f32.mrb[0].mxu0
        %9414 = vmatprep.mubr.bf16.mxu0 %v8850
        %9415 = vmatmul.mubr.bf16.gmra.mrb[0].mxu0 %v8786
        %v9416 = vpop.f32.mrb[0].mxu0
        %v9417 = vadd.f32 0.0, %v9416
        %v9418 = vpop.f32.mrb[0].mxu0
        %v9419 = vpop.f32.mrb[0].mxu0
        %v9420 = vadd.f32 0.0, %v9419
        %v9421 = vpop.f32.mrb[0].mxu0
        %9422 = vmatprep.mubr.bf16.mxu0 %v8854
        %9423 = vmatmul.mubr.bf16.gmra.mrb[0].mxu0 %v8790
        %v9424 = vpop.f32.mrb[0].mxu0
        %v9425 = vadd.f32 0.0, %v9424
        %v9426 = vpop.f32.mrb[0].mxu0
        %v9427 = vpop.f32.mrb[0].mxu0
        %v9428 = vadd.f32 0.0, %v9427
        %v9429 = vpop.f32.mrb[0].mxu0
        %9430 = vmatprep.mubr.bf16.mxu0 %v8858
        %9431 = vmatmul.mubr.bf16.gmra.mrb[0].mxu0 %v8794
        %v9432 = vpop.f32.mrb[0].mxu0
        %v9433 = vadd.f32 0.0, %v9432
        %v9434 = vpop.f32.mrb[0].mxu0
        %v9435 = vpop.f32.mrb[0].mxu0
        %v9436 = vadd.f32 0.0, %v9435
        %v9437 = vpop.f32.mrb[0].mxu0
        %9438 = vmatprep.mubr.bf16.mxu0 %v8862
        %9439 = vmatmul.mubr.bf16.gmra.mrb[0].mxu0 %v8798
        %v9440 = vpop.f32.mrb[0].mxu0
        %v9441 = vadd.f32 0.0, %v9440
        %v9442 = vpop.f32.mrb[0].mxu0
        %v9443 = vpop.f32.mrb[0].mxu0
        %v9444 = vadd.f32 0.0, %v9443
        %v9445 = vpop.f32.mrb[0].mxu0
        %9446 = vmatprep.mubr.bf16.mxu0 %v8866
        %9447 = vmatmul.mubr.bf16.gmra.mrb[0].mxu0 %v8802
        %v9448 = vpop.f32.mrb[0].mxu0
        %v9449 = vadd.f32 0.0, %v9448
        %v9450 = vpop.f32.mrb[0].mxu0
        %v9451 = vpop.f32.mrb[0].mxu0
        %v9452 = vadd.f32 0.0, %v9451
        %v9453 = vpop.f32.mrb[0].mxu0
        %9454 = vmatprep.mubr.bf16.mxu0 %v8870
        %9455 = vmatmul.mubr.bf16.gmra.mrb[0].mxu0 %v8806
        %v9456 = vpop.f32.mrb[0].mxu0
        %v9457 = vadd.f32 0.0, %v9456
        %v9458 = vpop.f32.mrb[0].mxu0
        %v9459 = vpop.f32.mrb[0].mxu0
        %v9460 = vadd.f32 0.0, %v9459
        %v9461 = vpop.f32.mrb[0].mxu0
        %9462 = vmatprep.mubr.bf16.mxu0 %v8874
        %9463 = vmatmul.mubr.bf16.gmra.mrb[0].mxu0 %v8810
        %v9464 = vpop.f32.mrb[0].mxu0
        %v9465 = vadd.f32 0.0, %v9464
        %v9466 = vpop.f32.mrb[0].mxu0
        %v9467 = vpop.f32.mrb[0].mxu0
        %v9468 = vadd.f32 0.0, %v9467
        %v9469 = vpop.f32.mrb[0].mxu0
        %9470 = vmatprep.mubr.bf16.mxu0 %v8878
        %9471 = vmatmul.mubr.bf16.gmra.mrb[0].mxu0 %v8814
        %v9472 = vpop.f32.mrb[0].mxu0
        %v9473 = vadd.f32 0.0, %v9472
        %v9474 = vpop.f32.mrb[0].mxu0
        %v9475 = vpop.f32.mrb[0].mxu0
        %v9476 = vadd.f32 0.0, %v9475
        %v9477 = vpop.f32.mrb[0].mxu0
        %9478 = vmatprep.mubr.bf16.mxu0 %v8882
        %9479 = vmatmul.mubr.bf16.gmra.mrb[0].mxu0 %v8818
        %v9480 = vpop.f32.mrb[0].mxu0
        %v9481 = vadd.f32 0.0, %v9480
        %v9482 = vpop.f32.mrb[0].mxu0
        %v9483 = vpop.f32.mrb[0].mxu0
        %v9484 = vadd.f32 0.0, %v9483
        %v9485 = vpop.f32.mrb[0].mxu0
        %9486 = vmatprep.mubr.bf16.mxu0 %v8886
        %9487 = vmatmul.mubr.bf16.gmra.mrb[0].mxu0 %v8822
        %v9488 = vpop.f32.mrb[0].mxu0
        %v9489 = vadd.f32 0.0, %v9488
        %v9490 = vpop.f32.mrb[0].mxu0
        %v9491 = vpop.f32.mrb[0].mxu0
        %v9492 = vadd.f32 0.0, %v9491
        %v9493 = vpop.f32.mrb[0].mxu0
        %9494 = vmatprep.mubr.bf16.mxu0 %v8890
        %9495 = vmatmul.mubr.bf16.gmra.mrb[0].mxu0 %v8826
        %v9496 = vpop.f32.mrb[0].mxu0
        %v9497 = vadd.f32 0.0, %v9496
        %v9498 = vpop.f32.mrb[0].mxu0
        %v9499 = vpop.f32.mrb[0].mxu0
        %v9500 = vadd.f32 0.0, %v9499
        %v9501 = vpop.f32.mrb[0].mxu0
        %9502 = vdwg.mxu0
        %v9503 = vadd.f32 %v9181, %v9377
        %v9504 = vadd.f32 %v9182, %v9380
        %v9505 = vadd.f32 %v9183, %v9385
        %v9506 = vadd.f32 %v9184, %v9388
        %v9507 = vadd.f32 %v9185, %v9393
        %v9508 = vadd.f32 %v9186, %v9396
        %v9509 = vadd.f32 %v9187, %v9401
        %v9510 = vadd.f32 %v9188, %v9404
        %v9511 = vadd.f32 %v9189, %v9409
        %v9512 = vadd.f32 %v9190, %v9412
        %v9513 = vadd.f32 %v9191, %v9417
        %v9514 = vadd.f32 %v9192, %v9420
        %v9515 = vadd.f32 %v9193, %v9425
        %v9516 = vadd.f32 %v9194, %v9428
        %v9517 = vadd.f32 %v9195, %v9433
        %v9518 = vadd.f32 %v9196, %v9436
        %v9519 = vadd.f32 %v9197, %v9441
        %v9520 = vadd.f32 %v9198, %v9444
        %v9521 = vadd.f32 %v9199, %v9449
        %v9522 = vadd.f32 %v9200, %v9452
        %v9523 = vadd.f32 %v9201, %v9457
        %v9524 = vadd.f32 %v9202, %v9460
        %v9525 = vadd.f32 %v9203, %v9465
        %v9526 = vadd.f32 %v9204, %v9468
        %v9527 = vadd.f32 %v9205, %v9473
        %v9528 = vadd.f32 %v9206, %v9476
        %v9529 = vadd.f32 %v9207, %v9481
        %v9530 = vadd.f32 %v9208, %v9484
        %v9531 = vadd.f32 %v9209, %v9489
        %v9532 = vadd.f32 %v9210, %v9492
        %v9533 = vadd.f32 %v9211, %v9497
        %v9534 = vadd.f32 %v9212, %v9500
        %v9535 = vld [vmem:[%s6] sm:$0x1]
        %v9544 = vunpack.c.l.b16 %v609
        %v9545 = vunpack.c.l.b16 %v610
        %v9546 = vunpack.c.l.b16 %v611
        %v9547 = vunpack.c.l.b16 %v612
        %v9548 = vunpack.c.l.b16 %v613
        %v9549 = vunpack.c.l.b16 %v614
        %v9550 = vunpack.c.l.b16 %v615
        %v9551 = vunpack.c.l.b16 %v616
        %v9552 = vpack.c.b16 %v9545, %v9544
        %v9553 = vpack.c.b16 %v9547, %v9546
        %v9554 = vpack.c.b16 %v9549, %v9548
        %v9555 = vpack.c.b16 %v9551, %v9550
        %v9561 = vsel %vm278, %v608, 0
        %9563 = vmatprep.subr.bf16.mxu0 0
        %9564 = vmatpush1.bf16.msra.mxu0 %v9552
        %9565 = vmatprep.subr.bf16.mxu0 0
        %9566 = vmatpush1.bf16.msra.mxu0 %v9553
        %9567 = vmatprep.subr.bf16.mxu0 0
        %9568 = vmatpush1.bf16.msra.mxu0 %v9554
        %9569 = vmatprep.subr.bf16.mxu0 0
        %9570 = vmatpush1.bf16.msra.mxu0 %v9555
        %9571 = vmatprep.subr.bf16.mxu0 0
        %9572 = vmatpush1.bf16.msra.mxu0 0
        %9573 = vmatprep.subr.bf16.mxu0 0
        %9574 = vmatpush1.bf16.msra.mxu0 0
        %9575 = vmatprep.subr.bf16.mxu0 0
        %9576 = vmatpush1.bf16.msra.mxu0 0
        %9577 = vmatprep.subr.bf16.mxu0 0
        %9578 = vmatpush1.bf16.msra.mxu0 0
        %9579 = vmatprep.subr.bf16.mxu0 0
        %9580 = vmatpush1.bf16.msra.mxu0 0
        %9581 = vmatprep.subr.bf16.mxu0 0
        %9582 = vmatpush1.bf16.msra.mxu0 0
        %9583 = vmatprep.subr.bf16.mxu0 0
        %9584 = vmatpush1.bf16.msra.mxu0 0
        %9585 = vmatprep.subr.bf16.mxu0 0
        %9586 = vmatpush1.bf16.msra.mxu0 0
        %9587 = vmatprep.subr.bf16.mxu0 0
        %9588 = vmatpush1.bf16.msra.mxu0 0
        %9589 = vmatprep.subr.bf16.mxu0 0
        %9590 = vmatpush1.bf16.msra.mxu0 0
        %9591 = vmatprep.subr.bf16.mxu0 0
        %9592 = vmatpush1.bf16.msra.mxu0 0
        %9593 = vmatprep.subr.bf16.mxu0 0
        %9594 = vmatpush1.bf16.msra.mxu0 0
        %9595 = vmatprep.mubr.bf16.mxu0 0
        %9596 = vmatmul.mubr.bf16.gmra.mrb[0].mxu0 %v9561
        %v9597 = vpop.f32.mrb[0].mxu0
        %v9598 = vadd.f32 %v9535, %v9597
        %v9599 = vpop.f32.mrb[0].mxu0
        %v9600 = vpop.f32.mrb[0].mxu0
        %v9601 = vpop.f32.mrb[0].mxu0
        %9602 = vdwg.mxu0
        %v9603 = vlaneseq
        %v9604 = vshrl.u32 %v9603, 7
        %v9605 = vsub.s32 0, %v9604
        %v9606 = vrot.slane %v9598, %v9605
        %v9607 = vadd.f32 %v9503, %v9606
        %v9608 = vadd.f32 %v9504, %v9606
        %v9609 = vadd.f32 %v9505, %v9606
        %v9610 = vadd.f32 %v9506, %v9606
        %v9611 = vadd.f32 %v9507, %v9606
        %v9612 = vadd.f32 %v9508, %v9606
        %v9613 = vadd.f32 %v9509, %v9606
        %v9614 = vadd.f32 %v9510, %v9606
        %v9615 = vadd.f32 %v9511, %v9606
        %v9616 = vadd.f32 %v9512, %v9606
        %v9617 = vadd.f32 %v9513, %v9606
        %v9618 = vadd.f32 %v9514, %v9606
        %v9619 = vadd.f32 %v9515, %v9606
        %v9620 = vadd.f32 %v9516, %v9606
        %v9621 = vadd.f32 %v9517, %v9606
        %v9622 = vadd.f32 %v9518, %v9606
        %v9623 = vadd.f32 %v9519, %v9606
        %v9624 = vadd.f32 %v9520, %v9606
        %v9625 = vadd.f32 %v9521, %v9606
        %v9626 = vadd.f32 %v9522, %v9606
        %v9627 = vadd.f32 %v9523, %v9606
        %v9628 = vadd.f32 %v9524, %v9606
        %v9629 = vadd.f32 %v9525, %v9606
        %v9630 = vadd.f32 %v9526, %v9606
        %v9631 = vadd.f32 %v9527, %v9606
        %v9632 = vadd.f32 %v9528, %v9606
        %v9633 = vadd.f32 %v9529, %v9606
        %v9634 = vadd.f32 %v9530, %v9606
        %v9635 = vadd.f32 %v9531, %v9606
        %v9636 = vadd.f32 %v9532, %v9606
        %v9637 = vadd.f32 %v9533, %v9606
        %v9638 = vadd.f32 %v9534, %v9606
        %9639 = vst.msk [vmem:[%s271] sm:$0xff] %vm278, %v9607
        %9640 = vst.msk [vmem:[%s271 + $0x8] sm:$0xff] %vm278, %v9608
        %9641 = vst.msk [vmem:[%s271 + $0x10] sm:$0xff] %vm278, %v9609
        %9642 = vst.msk [vmem:[%s271 + $0x18] sm:$0xff] %vm278, %v9610
        %9643 = vst.msk [vmem:[%s271 + $0x20] sm:$0xff] %vm278, %v9611
        %9644 = vst.msk [vmem:[%s271 + $0x28] sm:$0xff] %vm278, %v9612
        %9645 = vst.msk [vmem:[%s271 + $0x30] sm:$0xff] %vm278, %v9613
        %9646 = vst.msk [vmem:[%s271 + $0x38] sm:$0xff] %vm278, %v9614
        %9647 = vst.msk [vmem:[%s271 + $0x40] sm:$0xff] %vm278, %v9615
        %9648 = vst.msk [vmem:[%s271 + $0x48] sm:$0xff] %vm278, %v9616
        %9649 = vst.msk [vmem:[%s271 + $0x50] sm:$0xff] %vm278, %v9617
        %9650 = vst.msk [vmem:[%s271 + $0x58] sm:$0xff] %vm278, %v9618
        %9651 = vst.msk [vmem:[%s271 + $0x60] sm:$0xff] %vm278, %v9619
        %9652 = vst.msk [vmem:[%s271 + $0x68] sm:$0xff] %vm278, %v9620
        %9653 = vst.msk [vmem:[%s271 + $0x70] sm:$0xff] %vm278, %v9621
        %9654 = vst.msk [vmem:[%s271 + $0x78] sm:$0xff] %vm278, %v9622
        %9655 = vst.msk [vmem:[%s271 + $0x80] sm:$0xff] %vm278, %v9623
        %9656 = vst.msk [vmem:[%s271 + $0x88] sm:$0xff] %vm278, %v9624
        %9657 = vst.msk [vmem:[%s271 + $0x90] sm:$0xff] %vm278, %v9625
        %9658 = vst.msk [vmem:[%s271 + $0x98] sm:$0xff] %vm278, %v9626
        %9659 = vst.msk [vmem:[%s271 + $0xa0] sm:$0xff] %vm278, %v9627
        %9660 = vst.msk [vmem:[%s271 + $0xa8] sm:$0xff] %vm278, %v9628
        %9661 = vst.msk [vmem:[%s271 + $0xb0] sm:$0xff] %vm278, %v9629
        %9662 = vst.msk [vmem:[%s271 + $0xb8] sm:$0xff] %vm278, %v9630
        %9663 = vst.msk [vmem:[%s271 + $0xc0] sm:$0xff] %vm278, %v9631
        %9664 = vst.msk [vmem:[%s271 + $0xc8] sm:$0xff] %vm278, %v9632
        %9665 = vst.msk [vmem:[%s271 + $0xd0] sm:$0xff] %vm278, %v9633
        %9666 = vst.msk [vmem:[%s271 + $0xd8] sm:$0xff] %vm278, %v9634
        %9667 = vst.msk [vmem:[%s271 + $0xe0] sm:$0xff] %vm278, %v9635
        %9668 = vst.msk [vmem:[%s271 + $0xe8] sm:$0xff] %vm278, %v9636
        %9669 = vst.msk [vmem:[%s271 + $0xf0] sm:$0xff] %vm278, %v9637
        %9670 = vst.msk [vmem:[%s271 + $0xf8] sm:$0xff] %vm278, %v9638
        %s9671 = sand.u32 %s181, 1
        %s9672 = scalar_lea.sflag [#allocation4], %s9671
        %s9673 = sand.u32 %s181, 1
        %s9674 = smul.addr %s9673, 256
        %s9675 = scalar_lea.vmem [#allocation3], %s9674
        // Predicated region
        $region49: #{tpu_custom_call.1} parent=47 // pred_check
          %p9676 = pneg %p191
        $region50: #{tpu_custom_call.1} parent=47 // pred_check_branch
          %9678 = sbr.rel (%p9676) target = $region52
        $region51: #{tpu_custom_call.1} parent=47 // pred_region
          %s9680 = ssub.s32 4096, 4096
          %9681 = vsyncadd %s9672, %s9680
          %s9682 = smul.addr %s21, 32
          %s9683 = smul.addr %s9682, 128
          %s9684 = scalar_lea.hbm %s7, %s9683
          %s9685 = sshll.u32 %s9675, 4
          %s9686 = int_to_ptr.vmem [resolvable:$true] %s9685
          %9691 = dma.vmem_to_hbm [thread:$0]  %s9686, 4096, %s9684, %s9672, 128, 128, 8
        $region52: #{tpu_custom_call.1} parent=47 // pred_fallthru
          _
      $region48: #{tpu_custom_call.1} parent=5 // pred_fallthru
        _
      %p9692 = scmp.le.s32.totalorder 2, %s16
      // Predicated region
      $region53: #{tpu_custom_call.1} parent=5 // pred_check
        %p9693 = pneg %p9692
      $region54: #{tpu_custom_call.1} parent=5 // pred_check_branch
        %9695 = sbr.rel (%p9693) target = $region56
      $region55: #{tpu_custom_call.1} parent=5 // pred_region
        %s9696 = ssub.s32 %s16, 2
        // Predicated region
        $region57: #{tpu_custom_call.1} parent=55 // pred_check
          %p9697 = pneg %p197
        $region58: #{tpu_custom_call.1} parent=55 // pred_check_branch
          %9699 = sbr.rel (%p9697) target = $region60
        $region59: #{tpu_custom_call.1} parent=55 // pred_region
          %s9700 = sand.u32 %s182, 1
          %s9701 = scalar_lea.sflag [#allocation4], %s9700
          %s9702 = sand.u32 %s182, 1
          %s9703 = smul.addr %s9702, 256
          %s9704 = scalar_lea.vmem [#allocation3], %s9703
          %9705 = dma.done %s9701, 4096
        $region60: #{tpu_custom_call.1} parent=55 // pred_fallthru
          _
      $region56: #{tpu_custom_call.1} parent=5 // pred_fallthru
        _
    $region6: #{tpu_custom_call.1} parent=1 // loop_footer
      %s20 = sadd.s32 1, %s16
    $region7: #{tpu_custom_call.1} parent=1 // loop_footer_branch
      %15 = sbr.rel target = $region3
    $region8: #{tpu_custom_call.1} parent=1 // loop_exit
      _
    %9706 = vsyncpa [#allocation4], 1
    %s9707 = scalar_lea.sflag [#allocation4], 1
    %9708 = vsyncpa %s9707, 1

</llo_original>
